<compile_context>
chip_gen: v5e
topology: v5e:2x2
jax: 0.10.0
libtpu: 0.0.40
codegen_flags: <defaults>
</compile_context>

<pallas_src>
import functools

import jax
import jax.numpy as jnp
from jax import lax
from jax.experimental import pallas as pl
from jax.experimental.pallas import tpu as pltpu

EPS = 1e-8  # torch.cosine_similarity eps default


def proto_net_kernel(sup_ref, qry_ref, w_ref, b_ref, out_ref):
    # Static block shapes:
    #   sup_ref : [te*C, every, D]   (support rows, grouped by class)
    #   qry_ref : [te*Nq, D]
    #   w_ref   : [H, D]   (PyTorch nn.Linear layout, contraction on D)
    #   b_ref   : [1, H]
    #   out_ref : [te, Nq, C]
    te, nq, c = out_ref.shape
    h = w_ref.shape[0]

    # --- class prototypes in input space (mean commutes with the affine map) ---
    means = jnp.mean(sup_ref[...], axis=1)                         # [te*C, D]

    # --- two row-aligned embedding matmuls (no transpose of the weight) ---
    w = w_ref[...]
    b = b_ref[...]
    q_emb = lax.dot_general(
        qry_ref[...], w,
        dimension_numbers=(((1,), (1,)), ((), ())),
        preferred_element_type=jnp.float32) + b                    # [te*Nq, H]
    p_emb = lax.dot_general(
        means, w,
        dimension_numbers=(((1,), (1,)), ((), ())),
        preferred_element_type=jnp.float32) + b                    # [te*C, H]

    # --- cosine similarity via rsqrt row pre-scaling (EUP, no divide) ---
    # 1/max(||x||, eps) == rsqrt(max(||x||^2, eps^2))
    inv_q = lax.rsqrt(jnp.maximum(
        jnp.sum(q_emb * q_emb, axis=-1, keepdims=True), EPS * EPS))  # [te*Nq, 1]
    inv_p = lax.rsqrt(jnp.maximum(
        jnp.sum(p_emb * p_emb, axis=-1, keepdims=True), EPS * EPS))  # [te*C, 1]
    qn = (q_emb * inv_q).reshape(te, nq, h)                        # [te, Nq, H]
    pn = (p_emb * inv_p).reshape(te, c, h)                         # [te, C,  H]

    # Per-episode cosine matrix, batched over the episode axis (same structure
    # as the documented 'bqd,bkd->bqk' batched-matmul pattern).
    cos = jnp.einsum('eqh,ech->eqc', qn, pn,
                     preferred_element_type=jnp.float32)           # [te, Nq, C]

    # log_softmax over classes. cos is bounded in [-1, 1] (post eps clamp), so
    # the max-subtraction is safe to drop. Keep this invariant in mind if the
    # similarity is ever swapped for unbounded logits.
    lse = jnp.log(jnp.sum(jnp.exp(cos), axis=-1, keepdims=True))
    out_ref[...] = cos - lse


def _pick_episode_block(num_episodes, n_query, target):
    """Largest te <= target dividing num_episodes whose query row-block is
    8-sublane aligned (or te == num_episodes, i.e. full-extent blocks)."""
    best = 1
    for te in range(1, min(num_episodes, target) + 1):
        if num_episodes % te:
            continue
        if te == num_episodes or (te * n_query) % 8 == 0:
            best = te
    return best


@functools.partial(jax.jit, static_argnames=("num_class", "episodes_per_block"))
def few_model_forward_batched(support, query, weight, bias, *, num_class,
                              episodes_per_block=128):
    """Batched ProtoNet forward.

    support: [E, S, D], query: [E, Nq, D], weight: [H, D] (PyTorch layout),
    bias: [H].  Returns [E, Nq, num_class] log-softmax of cosine similarities.
    """
    E, S, D = support.shape
    Nq = query.shape[1]
    H = weight.shape[0]
    every = S // num_class

    te = _pick_episode_block(E, Nq, episodes_per_block)
    grid = (E // te,)

    # Contiguous reshapes only (free metadata ops in XLA): group support rows
    # by class so the kernel can mean-pool without an in-kernel sublane split.
    sup = support.astype(jnp.float32).reshape(E * num_class, every, D)
    qry = query.astype(jnp.float32).reshape(E * Nq, D)
    w = weight.astype(jnp.float32)                 # [H, D], no transpose
    b2 = bias.astype(jnp.float32).reshape(1, H)    # [1, H]

    return pl.pallas_call(
        proto_net_kernel,
        out_shape=jax.ShapeDtypeStruct((E, Nq, num_class), jnp.float32),
        grid_spec=pltpu.PrefetchScalarGridSpec(
            num_scalar_prefetch=0,
            grid=grid,
            in_specs=[
                # per-step episode blocks
                pl.BlockSpec((te * num_class, every, D), lambda e: (e, 0, 0)),
                pl.BlockSpec((te * Nq, D), lambda e: (e, 0)),
                # weight / bias: same block every step -> resident in VMEM
                pl.BlockSpec((H, D), lambda e: (0, 0)),
                pl.BlockSpec((1, H), lambda e: (0, 0)),
            ],
            out_specs=pl.BlockSpec((te, Nq, num_class), lambda e: (e, 0, 0)),
        ),
        compiler_params=pltpu.CompilerParams(
            dimension_semantics=("parallel",)),
    )(sup, qry, w, b2)


def few_model_forward(support, query, weight, bias, *, num_class):
    """Single-episode forward, matching fewModel.forward exactly.

    support: [S, D], query: [Nq, D] -> [Nq, num_class]."""
    out = few_model_forward_batched(support[None], query[None], weight, bias,
                                    num_class=num_class)
    return out[0]


def few_model_reference(support, query, weight, bias, num_class):
    """Pure-JAX mirror of the PyTorch module (one episode)."""
    s_emb = support @ weight.T + bias
    q_emb = query @ weight.T + bias
    every = support.shape[0] // num_class
    protos = s_emb.reshape(num_class, every, -1).mean(axis=1)
    qn = jnp.maximum(jnp.linalg.norm(q_emb, axis=-1, keepdims=True), EPS)
    pn = jnp.maximum(jnp.linalg.norm(protos, axis=-1, keepdims=True), EPS)
    cos = (q_emb @ protos.T) / (qn * pn.T)
    return jax.nn.log_softmax(cos, axis=-1)


if __name__ == "__main__":
    # Shapes implied by the module: hidden_dim = 4 (module-level constant).
    input_dim = 16
    hidden_dim = 4
    num_class = 2
    every_class_num = 4
    support_size = num_class * every_class_num   # 8
    n_query = 4
    num_episodes = 256                           # batched episodes in one call

    key = jax.random.PRNGKey(0)
    k_s, k_q, k_w, k_b = jax.random.split(key, 4)

    support = jax.random.normal(
        k_s, (num_episodes, support_size, input_dim), jnp.float32)
    query = jax.random.normal(
        k_q, (num_episodes, n_query, input_dim), jnp.float32)

    # nn.Linear-style deterministic init: U(-1/sqrt(in), 1/sqrt(in))
    bound = 1.0 / (input_dim ** 0.5)
    weight = jax.random.uniform(k_w, (hidden_dim, input_dim), jnp.float32,
                                minval=-bound, maxval=bound)
    bias = jax.random.uniform(k_b, (hidden_dim,), jnp.float32,
                              minval=-bound, maxval=bound)

    # Batched kernel (grid over episode blocks, "parallel" axis).
    out = few_model_forward_batched(support, query, weight, bias,
                                    num_class=num_class)
    out = jax.block_until_ready(out)
    assert out.shape == (num_episodes, n_query, num_class)

    ref = jax.vmap(
        lambda s, q: few_model_reference(s, q, weight, bias, num_class)
    )(support, query)
    assert jnp.allclose(out, ref, atol=2e-5, rtol=2e-5), \
        float(jnp.max(jnp.abs(out - ref)))

    # Single-episode path (exact module.forward semantics).
    out1 = few_model_forward(support[0], query[0], weight, bias,
                             num_class=num_class)
    out1 = jax.block_until_ready(out1)
    assert out1.shape == (n_query, num_class)
    assert jnp.allclose(out1, ref[0], atol=2e-5, rtol=2e-5)

    print("KERNEL_OK")
</pallas_src>

<mosaic_0001>
module attributes {stable_mosaic.version = 11 : i64} {
  func.func @proto_net_kernel(%arg0: i32, %arg1: memref<256x4x16xf32, #tpu.memory_space<vmem>>, %arg2: memref<512x16xf32, #tpu.memory_space<vmem>>, %arg3: memref<4x16xf32, #tpu.memory_space<vmem>>, %arg4: memref<1x4xf32, #tpu.memory_space<vmem>>, %arg5: memref<128x4x2xf32, #tpu.memory_space<vmem>>) attributes {dimension_semantics = [#tpu.dimension_semantics<parallel>], iteration_bounds = array<i64: 2>, scalar_prefetch = 0 : i64, scratch_operands = 0 : i64, tpu.core_type = #tpu.core_type<tc>, window_params = [{transform_indices = @transform_0, window_bounds = array<i64: 256, 4, 16>}, {transform_indices = @transform_1, window_bounds = array<i64: 512, 16>}, {pipeline_mode = #tpu.pipeline_mode<synchronous>, transform_indices = @transform_2, window_bounds = array<i64: 4, 16>}, {pipeline_mode = #tpu.pipeline_mode<synchronous>, transform_indices = @transform_3, window_bounds = array<i64: 1, 4>}, {transform_indices = @transform_4, window_bounds = array<i64: 128, 4, 2>}]} {
    %c0 = arith.constant 0 : index
    %c0_0 = arith.constant 0 : index
    %c0_1 = arith.constant 0 : index
    %0 = vector.load %arg1[%c0, %c0_0, %c0_1] : memref<256x4x16xf32, #tpu.memory_space<vmem>>, vector<256x4x16xf32>
    %cst = arith.constant dense<0.000000e+00> : vector<256x16xf32>
    %1 = vector.multi_reduction <add>, %0, %cst [1] : vector<256x4x16xf32> to vector<256x16xf32>
    %cst_2 = arith.constant 4.000000e+00 : f32
    %2 = vector.broadcast %cst_2 : f32 to vector<256x16xf32>
    %3 = arith.divf %1, %2 : vector<256x16xf32>
    %c0_3 = arith.constant 0 : index
    %c0_4 = arith.constant 0 : index
    %4 = vector.load %arg3[%c0_3, %c0_4] : memref<4x16xf32, #tpu.memory_space<vmem>>, vector<4x16xf32>
    %c0_5 = arith.constant 0 : index
    %c0_6 = arith.constant 0 : index
    %5 = vector.load %arg4[%c0_5, %c0_6] : memref<1x4xf32, #tpu.memory_space<vmem>>, vector<1x4xf32>
    %c0_7 = arith.constant 0 : index
    %c0_8 = arith.constant 0 : index
    %6 = vector.load %arg2[%c0_7, %c0_8] : memref<512x16xf32, #tpu.memory_space<vmem>>, vector<512x16xf32>
    %cst_9 = arith.constant dense<0.000000e+00> : vector<512x4xf32>
    %7 = tpu.matmul %6, %4, %cst_9 {dimension_numbers = #tpu.dot_dimension_numbers<[1], [1], [0], [0], [0, 0, 1, 0], [], []>} : vector<512x16xf32>, vector<4x16xf32>, vector<512x4xf32> -> vector<512x4xf32>
    %8 = vector.broadcast %5 : vector<1x4xf32> to vector<512x4xf32>
    %9 = arith.addf %7, %8 : vector<512x4xf32>
    %cst_10 = arith.constant dense<0.000000e+00> : vector<256x4xf32>
    %10 = tpu.matmul %3, %4, %cst_10 {dimension_numbers = #tpu.dot_dimension_numbers<[1], [1], [0], [0], [0, 0, 1, 0], [], []>} : vector<256x16xf32>, vector<4x16xf32>, vector<256x4xf32> -> vector<256x4xf32>
    %11 = vector.broadcast %5 : vector<1x4xf32> to vector<256x4xf32>
    %12 = arith.addf %10, %11 : vector<256x4xf32>
    %13 = arith.mulf %9, %9 : vector<512x4xf32>
    %cst_11 = arith.constant dense<0.000000e+00> : vector<512xf32>
    %14 = vector.multi_reduction <add>, %13, %cst_11 [1] : vector<512x4xf32> to vector<512xf32>
    %15 = vector.shape_cast %14 : vector<512xf32> to vector<512x1xf32>
    %cst_12 = arith.constant 1.000000e-16 : f32
    %16 = vector.broadcast %cst_12 : f32 to vector<512x1xf32>
    %17 = arith.maximumf %15, %16 : vector<512x1xf32>
    %18 = math.rsqrt %17 : vector<512x1xf32>
    %19 = arith.mulf %12, %12 : vector<256x4xf32>
    %cst_13 = arith.constant dense<0.000000e+00> : vector<256xf32>
    %20 = vector.multi_reduction <add>, %19, %cst_13 [1] : vector<256x4xf32> to vector<256xf32>
    %21 = vector.shape_cast %20 : vector<256xf32> to vector<256x1xf32>
    %cst_14 = arith.constant 1.000000e-16 : f32
    %22 = vector.broadcast %cst_14 : f32 to vector<256x1xf32>
    %23 = arith.maximumf %21, %22 : vector<256x1xf32>
    %24 = math.rsqrt %23 : vector<256x1xf32>
    %25 = vector.broadcast %18 : vector<512x1xf32> to vector<512x4xf32>
    %26 = arith.mulf %9, %25 : vector<512x4xf32>
    %27 = vector.shape_cast %26 : vector<512x4xf32> to vector<128x4x4xf32>
    %28 = vector.broadcast %24 : vector<256x1xf32> to vector<256x4xf32>
    %29 = arith.mulf %12, %28 : vector<256x4xf32>
    %30 = vector.shape_cast %29 : vector<256x4xf32> to vector<128x2x4xf32>
    "tpu.trace_start"() <{level = 10 : i32, message = "eqh,ech->eqc"}> : () -> ()
    %cst_15 = arith.constant dense<0.000000e+00> : vector<128x4x2xf32>
    %31 = tpu.matmul %27, %30, %cst_15 {dimension_numbers = #tpu.dot_dimension_numbers<[2], [2], [1], [1], [0, 0, 0, 1, 1, 1], [0], [0]>} : vector<128x4x4xf32>, vector<128x2x4xf32>, vector<128x4x2xf32> -> vector<128x4x2xf32>
    "tpu.trace_stop"() : () -> ()
    %32 = math.exp %31 : vector<128x4x2xf32>
    %cst_16 = arith.constant dense<0.000000e+00> : vector<128x4xf32>
    %33 = vector.multi_reduction <add>, %32, %cst_16 [2] : vector<128x4x2xf32> to vector<128x4xf32>
    %34 = vector.shape_cast %33 : vector<128x4xf32> to vector<128x4x1xf32>
    %35 = math.log %34 : vector<128x4x1xf32>
    %36 = vector.broadcast %35 : vector<128x4x1xf32> to vector<128x4x2xf32>
    %37 = arith.subf %31, %36 : vector<128x4x2xf32>
    %c0_17 = arith.constant 0 : index
    %c0_18 = arith.constant 0 : index
    %c0_19 = arith.constant 0 : index
    %38 = vector.load %arg5[%c0_17, %c0_18, %c0_19] : memref<128x4x2xf32, #tpu.memory_space<vmem>>, vector<128x4x2xf32>
    tpu.vector_store %arg5[%c0_17, %c0_18, %c0_19], %37 {strides = array<i32>} : memref<128x4x2xf32, #tpu.memory_space<vmem>>, vector<128x4x2xf32>,
    return
  }
  func.func @transform_0(%arg0: i32) -> (i32, i32, i32) {
    %c0_i32 = arith.constant 0 : i32
    %c0_i32_0 = arith.constant 0 : i32
    %c0_i32_1 = arith.constant 0 : i32
    return %arg0, %c0_i32, %c0_i32_0 : i32, i32, i32
  }
  func.func @transform_1(%arg0: i32) -> (i32, i32) {
    %c0_i32 = arith.constant 0 : i32
    %c0_i32_0 = arith.constant 0 : i32
    return %arg0, %c0_i32 : i32, i32
  }
  func.func @transform_2(%arg0: i32) -> (i32, i32) {
    %c0_i32 = arith.constant 0 : i32
    %c0_i32_0 = arith.constant 0 : i32
    %c0_i32_1 = arith.constant 0 : i32
    return %c0_i32, %c0_i32_0 : i32, i32
  }
  func.func @transform_3(%arg0: i32) -> (i32, i32) {
    %c0_i32 = arith.constant 0 : i32
    %c0_i32_0 = arith.constant 0 : i32
    %c0_i32_1 = arith.constant 0 : i32
    return %c0_i32, %c0_i32_0 : i32, i32
  }
  func.func @transform_4(%arg0: i32) -> (i32, i32, i32) {
    %c0_i32 = arith.constant 0 : i32
    %c0_i32_0 = arith.constant 0 : i32
    %c0_i32_1 = arith.constant 0 : i32
    return %arg0, %c0_i32, %c0_i32_0 : i32, i32, i32
  }
}

</mosaic_0001>

<llo_original>
// kernel: few_model_forward_batched.1
$region0: #{few_model_forward_batched.1}
  #allocation0 [shape = 'u32[]', space=smem, size = 0x4, offset = 0x4, fixed_abs, tag = 'smem constant byte address 0x4 - core index']
  #allocation1 [shape = 'u32[72,128]{1,0:T(1,128)}', space=vmem, size = 0x9000, scoped, tag = 'internal scratch']
  %s0 = inlined_call_operand.vmem [shape: f32[512,4,16], index: 0, kind: input, shape index: {}]
  %s1 = inlined_call_operand.vmem [shape: f32[1024,16], index: 1, kind: input, shape index: {}]
  %s2 = inlined_call_operand.vmem [shape: f32[4,16], index: 2, kind: input, shape index: {}]
  %s3 = inlined_call_operand.vmem [shape: f32[1,4], index: 3, kind: input, shape index: {}]
  %s4 = inlined_call_operand.vmem [shape: f32[256,4,2], index: 4, kind: output, shape index: {}]
  %s5 = sld [smem:[#allocation0]]
  $region49: #{few_model_forward_batched.1} parent=0
    _
  %s7 = ssub.s32 1, %s5
  %s8 = scalar_select 0, %s7, %s5
  loop: start=0, step=1, limit=4
  $region2: #{few_model_forward_batched.1} parent=0 // loop_pre_header
    _
  $region3: #{few_model_forward_batched.1} parent=0 // loop_header
    %s10 = sphi 0, %s14
    %p11 = scmp.ge.s32.totalorder %s10, 4
    %s20 = sphi 0, %s22
    %s23 = sphi 0, %s20
    %s24 = sphi 0, %s23
    %s40 = sphi 0, %s24
    %s46 = sphi 0, %s48
    %s49 = sphi 0, %s46
    %s50 = sphi 0, %s49
    %s66 = sphi 0, %s50
    %s70 = sphi 0, %s70
    %s72 = sphi 0, %s70
    %s73 = sphi 0, %s72
    %s87 = sphi 0, %s73
    %s91 = sphi 0, %s91
    %s93 = sphi 0, %s91
    %s94 = sphi 0, %s93
    %s108 = sphi 0, %s94
    %s114 = sphi 0, %s116
    %s117 = sphi 0, %s114
    %s118 = sphi 0, %s117
    %s134 = sphi 0, %s118
  $region4: #{few_model_forward_batched.1} parent=0 // loop_header_branch
    %13 = sbr.rel (%p11) target = $region8
  $region5: #{few_model_forward_batched.1} parent=0 // loop_body
    %s15 = ssub.s32 %s10, 1
    %s16 = ssub.s32 %s10, 2
    %s17 = sadd.s32 %s10, 1
    %s18 = ssub.s32 %s10, %s17
    %p19 = scmp.eq.s32.totalorder %s18, 0
    %s21 = sadd.s32 %s20, 1
    %s22 = scalar_select %p19, %s20, %s21
    %p25 = pneg %p19
    %p26 = scmp.eq.s32.totalorder %s10, 1
    %p27 = por %p25, %p26
    %p28 = scmp.ne.s32.totalorder %s20, %s23
    %p29 = scmp.eq.s32.totalorder %s10, 0
    %p30 = por %p28, %p29
    %p31 = scmp.ne.s32.totalorder %s20, %s23
    %p32 = scmp.eq.s32.totalorder %s15, 1
    %p33 = por %p31, %p32
    %p34 = scmp.ne.s32.totalorder %s23, %s24
    %p35 = scmp.eq.s32.totalorder %s15, 0
    %p36 = por %p34, %p35
    %p37 = scmp.ne.s32.totalorder %s23, %s24
    %p38 = scmp.eq.s32.totalorder %s16, 1
    %p39 = por %p37, %p38
    %p41 = scmp.ne.s32.totalorder %s24, %s40
    %p42 = scmp.eq.s32.totalorder %s16, 0
    %p43 = por %p41, %p42
    %s44 = ssub.s32 %s10, %s17
    %p45 = scmp.eq.s32.totalorder %s44, 0
    %s47 = sadd.s32 %s46, 1
    %s48 = scalar_select %p45, %s46, %s47
    %p51 = pneg %p45
    %p52 = scmp.eq.s32.totalorder %s10, 1
    %p53 = por %p51, %p52
    %p54 = scmp.ne.s32.totalorder %s46, %s49
    %p55 = scmp.eq.s32.totalorder %s10, 0
    %p56 = por %p54, %p55
    %p57 = scmp.ne.s32.totalorder %s46, %s49
    %p58 = scmp.eq.s32.totalorder %s15, 1
    %p59 = por %p57, %p58
    %p60 = scmp.ne.s32.totalorder %s49, %s50
    %p61 = scmp.eq.s32.totalorder %s15, 0
    %p62 = por %p60, %p61
    %p63 = scmp.ne.s32.totalorder %s49, %s50
    %p64 = scmp.eq.s32.totalorder %s16, 1
    %p65 = por %p63, %p64
    %p67 = scmp.ne.s32.totalorder %s50, %s66
    %p68 = scmp.eq.s32.totalorder %s16, 0
    %p69 = por %p67, %p68
    %s71 = sadd.s32 %s70, 1
    %p74 = scmp.eq.s32.totalorder %s10, 1
    %p75 = scmp.ne.s32.totalorder %s70, %s72
    %p76 = scmp.eq.s32.totalorder %s10, 0
    %p77 = por %p75, %p76
    %p78 = scmp.ne.s32.totalorder %s70, %s72
    %p79 = scmp.eq.s32.totalorder %s15, 1
    %p80 = por %p78, %p79
    %p81 = scmp.ne.s32.totalorder %s72, %s73
    %p82 = scmp.eq.s32.totalorder %s15, 0
    %p83 = por %p81, %p82
    %p84 = scmp.ne.s32.totalorder %s72, %s73
    %p85 = scmp.eq.s32.totalorder %s16, 1
    %p86 = por %p84, %p85
    %p88 = scmp.ne.s32.totalorder %s73, %s87
    %p89 = scmp.eq.s32.totalorder %s16, 0
    %p90 = por %p88, %p89
    %s92 = sadd.s32 %s91, 1
    %p95 = scmp.eq.s32.totalorder %s10, 1
    %p96 = scmp.ne.s32.totalorder %s91, %s93
    %p97 = scmp.eq.s32.totalorder %s10, 0
    %p98 = por %p96, %p97
    %p99 = scmp.ne.s32.totalorder %s91, %s93
    %p100 = scmp.eq.s32.totalorder %s15, 1
    %p101 = por %p99, %p100
    %p102 = scmp.ne.s32.totalorder %s93, %s94
    %p103 = scmp.eq.s32.totalorder %s15, 0
    %p104 = por %p102, %p103
    %p105 = scmp.ne.s32.totalorder %s93, %s94
    %p106 = scmp.eq.s32.totalorder %s16, 1
    %p107 = por %p105, %p106
    %p109 = scmp.ne.s32.totalorder %s94, %s108
    %p110 = scmp.eq.s32.totalorder %s16, 0
    %p111 = por %p109, %p110
    %s112 = ssub.s32 %s10, %s17
    %p113 = scmp.eq.s32.totalorder %s112, 0
    %s115 = sadd.s32 %s114, 1
    %s116 = scalar_select %p113, %s114, %s115
    %p119 = pneg %p113
    %p120 = scmp.eq.s32.totalorder %s10, 1
    %p121 = por %p119, %p120
    %p122 = scmp.ne.s32.totalorder %s114, %s117
    %p123 = scmp.eq.s32.totalorder %s10, 0
    %p124 = por %p122, %p123
    %p125 = scmp.ne.s32.totalorder %s114, %s117
    %p126 = scmp.eq.s32.totalorder %s15, 1
    %p127 = por %p125, %p126
    %p128 = scmp.ne.s32.totalorder %s117, %s118
    %p129 = scmp.eq.s32.totalorder %s15, 0
    %p130 = por %p128, %p129
    %p131 = scmp.ne.s32.totalorder %s117, %s118
    %p132 = scmp.eq.s32.totalorder %s16, 1
    %p133 = por %p131, %p132
    %p135 = scmp.ne.s32.totalorder %s118, %s134
    %p136 = scmp.eq.s32.totalorder %s16, 0
    %p137 = por %p135, %p136
    %p138 = scmp.le.s32.totalorder 1, %s10
    %p139 = scmp.lt.s32.totalorder %s10, 3
    %p140 = pnand %p138, %p139
    %p141 = pneg %p140
    // Predicated region
    $region9: #{few_model_forward_batched.1} parent=5 // pred_check
      _
    $region10: #{few_model_forward_batched.1} parent=5 // pred_check_branch
      %143 = sbr.rel (%p140) target = $region12
    $region11: #{few_model_forward_batched.1} parent=5 // pred_region
      %s144 = ssub.s32 %s10, 1
      // Predicated region
      $region13: #{few_model_forward_batched.1} parent=11 // pred_check
        %p145 = pneg %p83
      $region14: #{few_model_forward_batched.1} parent=11 // pred_check_branch
        %147 = sbr.rel (%p145) target = $region16
      $region15: #{few_model_forward_batched.1} parent=11 // pred_region
        _
      $region16: #{few_model_forward_batched.1} parent=11 // pred_fallthru
        _
      // Predicated region
      $region17: #{few_model_forward_batched.1} parent=11 // pred_check
        %p148 = pneg %p104
      $region18: #{few_model_forward_batched.1} parent=11 // pred_check_branch
        %150 = sbr.rel (%p148) target = $region20
      $region19: #{few_model_forward_batched.1} parent=11 // pred_region
        _
      $region20: #{few_model_forward_batched.1} parent=11 // pred_fallthru
        _
    $region12: #{few_model_forward_batched.1} parent=5 // pred_fallthru
      _
    %p151 = scmp.lt.s32.totalorder %s10, 2
    // Predicated region
    $region21: #{few_model_forward_batched.1} parent=5 // pred_check
      %p152 = pneg %p151
    $region22: #{few_model_forward_batched.1} parent=5 // pred_check_branch
      %154 = sbr.rel (%p152) target = $region24
    $region23: #{few_model_forward_batched.1} parent=5 // pred_region
      // Predicated region
      $region25: #{few_model_forward_batched.1} parent=23 // pred_check
        %p155 = pneg %p30
      $region26: #{few_model_forward_batched.1} parent=23 // pred_check_branch
        %157 = sbr.rel (%p155) target = $region28
      $region27: #{few_model_forward_batched.1} parent=23 // pred_region
        %s158 = smul.u32 256, %s10
        %p159 = scmp.lt.s32.totalorder %s158, 511
        %s160 = scalar_select %p159, %s158, 511
        %s161 = smul.addr %s160, 4
        %s162 = scalar_lea.vmem %s0, %s161
        %s163 = smul.u32 256, %s10
      $region28: #{few_model_forward_batched.1} parent=23 // pred_fallthru
        _
      // Predicated region
      $region29: #{few_model_forward_batched.1} parent=23 // pred_check
        %p164 = pneg %p56
      $region30: #{few_model_forward_batched.1} parent=23 // pred_check_branch
        %166 = sbr.rel (%p164) target = $region32
      $region31: #{few_model_forward_batched.1} parent=23 // pred_region
        %s167 = smul.u32 64, %s10
        %p168 = scmp.lt.s32.totalorder %s167, 127
        %s169 = scalar_select %p168, %s167, 127
        %s170 = smul.addr %s169, 8
        %s171 = scalar_lea.vmem %s1, %s170
        %s172 = smul.u32 64, %s10
      $region32: #{few_model_forward_batched.1} parent=23 // pred_fallthru
        _
    $region24: #{few_model_forward_batched.1} parent=5 // pred_fallthru
      _
    %p173 = scmp.le.s32.totalorder 1, %s10
    %p174 = scmp.lt.s32.totalorder %s10, 3
    %p175 = pnand %p173, %p174
    %p176 = pneg %p175
    // Predicated region
    $region33: #{few_model_forward_batched.1} parent=5 // pred_check
      _
    $region34: #{few_model_forward_batched.1} parent=5 // pred_check_branch
      %178 = sbr.rel (%p175) target = $region36
    $region35: #{few_model_forward_batched.1} parent=5 // pred_region
      %s179 = ssub.s32 %s10, 1
      %s180 = smul.u32 256, %s15
      %p181 = scmp.lt.s32.totalorder %s180, 511
      %s182 = scalar_select %p181, %s180, 511
      %s183 = smul.addr %s182, 4
      %s184 = scalar_lea.vmem %s0, %s183
      %p185 = pneg %p36
      %p186 = pneg %p33
      %s187 = smul.u32 64, %s15
      %p188 = scmp.lt.s32.totalorder %s187, 127
      %s189 = scalar_select %p188, %s187, 127
      %s190 = smul.addr %s189, 8
      %s191 = scalar_lea.vmem %s1, %s190
      %p192 = pneg %p62
      %p193 = pneg %p59
      %p194 = pneg %p83
      %p195 = pneg %p80
      %p196 = pneg %p104
      %p197 = pneg %p101
      %p198 = pneg %p130
      %p199 = pneg %p127
      %s200 = smul.u32 128, %s15
      %p201 = scmp.lt.s32.totalorder %s200, 255
      %s202 = scalar_select %p201, %s200, 255
      %s203 = smul.addr %s202, 4
      %s204 = scalar_lea.vmem %s4, %s203
      %s205 = smul.u32 256, %s15
      %p206 = scmp.lt.s32.totalorder %s205, 511
      %s207 = scalar_select %p206, %s205, 511
      %s208 = smul.addr %s207, 4
      %s209 = scalar_lea.vmem %s0, %s208
      %s210 = smul.u32 256, %s15
      %s211 = smul.u32 64, %s15
      %p212 = scmp.lt.s32.totalorder %s211, 127
      %s213 = scalar_select %p212, %s211, 127
      %s214 = smul.addr %s213, 8
      %s215 = scalar_lea.vmem %s1, %s214
      %s216 = smul.u32 64, %s15
      %s217 = smul.u32 128, %s15
      %p218 = scmp.lt.s32.totalorder %s217, 255
      %s219 = scalar_select %p218, %s217, 255
      %s220 = smul.addr %s219, 4
      %s221 = scalar_lea.vmem %s4, %s220
      %s222 = smul.u32 128, %s15
      %v223 = vld [vmem:[%s209] sm:$0xf]
      %v224 = vld [vmem:[%s209 + $0x4] sm:$0xf]
      %v225 = vld [vmem:[%s209 + $0x8] sm:$0xf]
      %v226 = vld [vmem:[%s209 + $0xc] sm:$0xf]
      %v227 = vld [vmem:[%s209 + $0x10] sm:$0xf]
      %v228 = vld [vmem:[%s209 + $0x14] sm:$0xf]
      %v229 = vld [vmem:[%s209 + $0x18] sm:$0xf]
      %v230 = vld [vmem:[%s209 + $0x1c] sm:$0xf]
      %v231 = vld [vmem:[%s209 + $0x20] sm:$0xf]
      %v232 = vld [vmem:[%s209 + $0x24] sm:$0xf]
      %v233 = vld [vmem:[%s209 + $0x28] sm:$0xf]
      %v234 = vld [vmem:[%s209 + $0x2c] sm:$0xf]
      %v235 = vld [vmem:[%s209 + $0x30] sm:$0xf]
      %v236 = vld [vmem:[%s209 + $0x34] sm:$0xf]
      %v237 = vld [vmem:[%s209 + $0x38] sm:$0xf]
      %v238 = vld [vmem:[%s209 + $0x3c] sm:$0xf]
      %v239 = vld [vmem:[%s209 + $0x40] sm:$0xf]
      %v240 = vld [vmem:[%s209 + $0x44] sm:$0xf]
      %v241 = vld [vmem:[%s209 + $0x48] sm:$0xf]
      %v242 = vld [vmem:[%s209 + $0x4c] sm:$0xf]
      %v243 = vld [vmem:[%s209 + $0x50] sm:$0xf]
      %v244 = vld [vmem:[%s209 + $0x54] sm:$0xf]
      %v245 = vld [vmem:[%s209 + $0x58] sm:$0xf]
      %v246 = vld [vmem:[%s209 + $0x5c] sm:$0xf]
      %v247 = vld [vmem:[%s209 + $0x60] sm:$0xf]
      %v248 = vld [vmem:[%s209 + $0x64] sm:$0xf]
      %v249 = vld [vmem:[%s209 + $0x68] sm:$0xf]
      %v250 = vld [vmem:[%s209 + $0x6c] sm:$0xf]
      %v251 = vld [vmem:[%s209 + $0x70] sm:$0xf]
      %v252 = vld [vmem:[%s209 + $0x74] sm:$0xf]
      %v253 = vld [vmem:[%s209 + $0x78] sm:$0xf]
      %v254 = vld [vmem:[%s209 + $0x7c] sm:$0xf]
      %v255 = vld [vmem:[%s209 + $0x80] sm:$0xf]
      %v256 = vld [vmem:[%s209 + $0x84] sm:$0xf]
      %v257 = vld [vmem:[%s209 + $0x88] sm:$0xf]
      %v258 = vld [vmem:[%s209 + $0x8c] sm:$0xf]
      %v259 = vld [vmem:[%s209 + $0x90] sm:$0xf]
      %v260 = vld [vmem:[%s209 + $0x94] sm:$0xf]
      %v261 = vld [vmem:[%s209 + $0x98] sm:$0xf]
      %v262 = vld [vmem:[%s209 + $0x9c] sm:$0xf]
      %v263 = vld [vmem:[%s209 + $0xa0] sm:$0xf]
      %v264 = vld [vmem:[%s209 + $0xa4] sm:$0xf]
      %v265 = vld [vmem:[%s209 + $0xa8] sm:$0xf]
      %v266 = vld [vmem:[%s209 + $0xac] sm:$0xf]
      %v267 = vld [vmem:[%s209 + $0xb0] sm:$0xf]
      %v268 = vld [vmem:[%s209 + $0xb4] sm:$0xf]
      %v269 = vld [vmem:[%s209 + $0xb8] sm:$0xf]
      %v270 = vld [vmem:[%s209 + $0xbc] sm:$0xf]
      %v271 = vld [vmem:[%s209 + $0xc0] sm:$0xf]
      %v272 = vld [vmem:[%s209 + $0xc4] sm:$0xf]
      %v273 = vld [vmem:[%s209 + $0xc8] sm:$0xf]
      %v274 = vld [vmem:[%s209 + $0xcc] sm:$0xf]
      %v275 = vld [vmem:[%s209 + $0xd0] sm:$0xf]
      %v276 = vld [vmem:[%s209 + $0xd4] sm:$0xf]
      %v277 = vld [vmem:[%s209 + $0xd8] sm:$0xf]
      %v278 = vld [vmem:[%s209 + $0xdc] sm:$0xf]
      %v279 = vld [vmem:[%s209 + $0xe0] sm:$0xf]
      %v280 = vld [vmem:[%s209 + $0xe4] sm:$0xf]
      %v281 = vld [vmem:[%s209 + $0xe8] sm:$0xf]
      %v282 = vld [vmem:[%s209 + $0xec] sm:$0xf]
      %v283 = vld [vmem:[%s209 + $0xf0] sm:$0xf]
      %v284 = vld [vmem:[%s209 + $0xf4] sm:$0xf]
      %v285 = vld [vmem:[%s209 + $0xf8] sm:$0xf]
      %v286 = vld [vmem:[%s209 + $0xfc] sm:$0xf]
      %v287 = vld [vmem:[%s209 + $0x100] sm:$0xf]
      %v288 = vld [vmem:[%s209 + $0x104] sm:$0xf]
      %v289 = vld [vmem:[%s209 + $0x108] sm:$0xf]
      %v290 = vld [vmem:[%s209 + $0x10c] sm:$0xf]
      %v291 = vld [vmem:[%s209 + $0x110] sm:$0xf]
      %v292 = vld [vmem:[%s209 + $0x114] sm:$0xf]
      %v293 = vld [vmem:[%s209 + $0x118] sm:$0xf]
      %v294 = vld [vmem:[%s209 + $0x11c] sm:$0xf]
      %v295 = vld [vmem:[%s209 + $0x120] sm:$0xf]
      %v296 = vld [vmem:[%s209 + $0x124] sm:$0xf]
      %v297 = vld [vmem:[%s209 + $0x128] sm:$0xf]
      %v298 = vld [vmem:[%s209 + $0x12c] sm:$0xf]
      %v299 = vld [vmem:[%s209 + $0x130] sm:$0xf]
      %v300 = vld [vmem:[%s209 + $0x134] sm:$0xf]
      %v301 = vld [vmem:[%s209 + $0x138] sm:$0xf]
      %v302 = vld [vmem:[%s209 + $0x13c] sm:$0xf]
      %v303 = vld [vmem:[%s209 + $0x140] sm:$0xf]
      %v304 = vld [vmem:[%s209 + $0x144] sm:$0xf]
      %v305 = vld [vmem:[%s209 + $0x148] sm:$0xf]
      %v306 = vld [vmem:[%s209 + $0x14c] sm:$0xf]
      %v307 = vld [vmem:[%s209 + $0x150] sm:$0xf]
      %v308 = vld [vmem:[%s209 + $0x154] sm:$0xf]
      %v309 = vld [vmem:[%s209 + $0x158] sm:$0xf]
      %v310 = vld [vmem:[%s209 + $0x15c] sm:$0xf]
      %v311 = vld [vmem:[%s209 + $0x160] sm:$0xf]
      %v312 = vld [vmem:[%s209 + $0x164] sm:$0xf]
      %v313 = vld [vmem:[%s209 + $0x168] sm:$0xf]
      %v314 = vld [vmem:[%s209 + $0x16c] sm:$0xf]
      %v315 = vld [vmem:[%s209 + $0x170] sm:$0xf]
      %v316 = vld [vmem:[%s209 + $0x174] sm:$0xf]
      %v317 = vld [vmem:[%s209 + $0x178] sm:$0xf]
      %v318 = vld [vmem:[%s209 + $0x17c] sm:$0xf]
      %v319 = vld [vmem:[%s209 + $0x180] sm:$0xf]
      %v320 = vld [vmem:[%s209 + $0x184] sm:$0xf]
      %v321 = vld [vmem:[%s209 + $0x188] sm:$0xf]
      %v322 = vld [vmem:[%s209 + $0x18c] sm:$0xf]
      %v323 = vld [vmem:[%s209 + $0x190] sm:$0xf]
      %v324 = vld [vmem:[%s209 + $0x194] sm:$0xf]
      %v325 = vld [vmem:[%s209 + $0x198] sm:$0xf]
      %v326 = vld [vmem:[%s209 + $0x19c] sm:$0xf]
      %v327 = vld [vmem:[%s209 + $0x1a0] sm:$0xf]
      %v328 = vld [vmem:[%s209 + $0x1a4] sm:$0xf]
      %v329 = vld [vmem:[%s209 + $0x1a8] sm:$0xf]
      %v330 = vld [vmem:[%s209 + $0x1ac] sm:$0xf]
      %v331 = vld [vmem:[%s209 + $0x1b0] sm:$0xf]
      %v332 = vld [vmem:[%s209 + $0x1b4] sm:$0xf]
      %v333 = vld [vmem:[%s209 + $0x1b8] sm:$0xf]
      %v334 = vld [vmem:[%s209 + $0x1bc] sm:$0xf]
      %v335 = vld [vmem:[%s209 + $0x1c0] sm:$0xf]
      %v336 = vld [vmem:[%s209 + $0x1c4] sm:$0xf]
      %v337 = vld [vmem:[%s209 + $0x1c8] sm:$0xf]
      %v338 = vld [vmem:[%s209 + $0x1cc] sm:$0xf]
      %v339 = vld [vmem:[%s209 + $0x1d0] sm:$0xf]
      %v340 = vld [vmem:[%s209 + $0x1d4] sm:$0xf]
      %v341 = vld [vmem:[%s209 + $0x1d8] sm:$0xf]
      %v342 = vld [vmem:[%s209 + $0x1dc] sm:$0xf]
      %v343 = vld [vmem:[%s209 + $0x1e0] sm:$0xf]
      %v344 = vld [vmem:[%s209 + $0x1e4] sm:$0xf]
      %v345 = vld [vmem:[%s209 + $0x1e8] sm:$0xf]
      %v346 = vld [vmem:[%s209 + $0x1ec] sm:$0xf]
      %v347 = vld [vmem:[%s209 + $0x1f0] sm:$0xf]
      %v348 = vld [vmem:[%s209 + $0x1f4] sm:$0xf]
      %v349 = vld [vmem:[%s209 + $0x1f8] sm:$0xf]
      %v350 = vld [vmem:[%s209 + $0x1fc] sm:$0xf]
      %v351 = vld [vmem:[%s209 + $0x200] sm:$0xf]
      %v352 = vld [vmem:[%s209 + $0x204] sm:$0xf]
      %v353 = vld [vmem:[%s209 + $0x208] sm:$0xf]
      %v354 = vld [vmem:[%s209 + $0x20c] sm:$0xf]
      %v355 = vld [vmem:[%s209 + $0x210] sm:$0xf]
      %v356 = vld [vmem:[%s209 + $0x214] sm:$0xf]
      %v357 = vld [vmem:[%s209 + $0x218] sm:$0xf]
      %v358 = vld [vmem:[%s209 + $0x21c] sm:$0xf]
      %v359 = vld [vmem:[%s209 + $0x220] sm:$0xf]
      %v360 = vld [vmem:[%s209 + $0x224] sm:$0xf]
      %v361 = vld [vmem:[%s209 + $0x228] sm:$0xf]
      %v362 = vld [vmem:[%s209 + $0x22c] sm:$0xf]
      %v363 = vld [vmem:[%s209 + $0x230] sm:$0xf]
      %v364 = vld [vmem:[%s209 + $0x234] sm:$0xf]
      %v365 = vld [vmem:[%s209 + $0x238] sm:$0xf]
      %v366 = vld [vmem:[%s209 + $0x23c] sm:$0xf]
      %v367 = vld [vmem:[%s209 + $0x240] sm:$0xf]
      %v368 = vld [vmem:[%s209 + $0x244] sm:$0xf]
      %v369 = vld [vmem:[%s209 + $0x248] sm:$0xf]
      %v370 = vld [vmem:[%s209 + $0x24c] sm:$0xf]
      %v371 = vld [vmem:[%s209 + $0x250] sm:$0xf]
      %v372 = vld [vmem:[%s209 + $0x254] sm:$0xf]
      %v373 = vld [vmem:[%s209 + $0x258] sm:$0xf]
      %v374 = vld [vmem:[%s209 + $0x25c] sm:$0xf]
      %v375 = vld [vmem:[%s209 + $0x260] sm:$0xf]
      %v376 = vld [vmem:[%s209 + $0x264] sm:$0xf]
      %v377 = vld [vmem:[%s209 + $0x268] sm:$0xf]
      %v378 = vld [vmem:[%s209 + $0x26c] sm:$0xf]
      %v379 = vld [vmem:[%s209 + $0x270] sm:$0xf]
      %v380 = vld [vmem:[%s209 + $0x274] sm:$0xf]
      %v381 = vld [vmem:[%s209 + $0x278] sm:$0xf]
      %v382 = vld [vmem:[%s209 + $0x27c] sm:$0xf]
      %v383 = vld [vmem:[%s209 + $0x280] sm:$0xf]
      %v384 = vld [vmem:[%s209 + $0x284] sm:$0xf]
      %v385 = vld [vmem:[%s209 + $0x288] sm:$0xf]
      %v386 = vld [vmem:[%s209 + $0x28c] sm:$0xf]
      %v387 = vld [vmem:[%s209 + $0x290] sm:$0xf]
      %v388 = vld [vmem:[%s209 + $0x294] sm:$0xf]
      %v389 = vld [vmem:[%s209 + $0x298] sm:$0xf]
      %v390 = vld [vmem:[%s209 + $0x29c] sm:$0xf]
      %v391 = vld [vmem:[%s209 + $0x2a0] sm:$0xf]
      %v392 = vld [vmem:[%s209 + $0x2a4] sm:$0xf]
      %v393 = vld [vmem:[%s209 + $0x2a8] sm:$0xf]
      %v394 = vld [vmem:[%s209 + $0x2ac] sm:$0xf]
      %v395 = vld [vmem:[%s209 + $0x2b0] sm:$0xf]
      %v396 = vld [vmem:[%s209 + $0x2b4] sm:$0xf]
      %v397 = vld [vmem:[%s209 + $0x2b8] sm:$0xf]
      %v398 = vld [vmem:[%s209 + $0x2bc] sm:$0xf]
      %v399 = vld [vmem:[%s209 + $0x2c0] sm:$0xf]
      %v400 = vld [vmem:[%s209 + $0x2c4] sm:$0xf]
      %v401 = vld [vmem:[%s209 + $0x2c8] sm:$0xf]
      %v402 = vld [vmem:[%s209 + $0x2cc] sm:$0xf]
      %v403 = vld [vmem:[%s209 + $0x2d0] sm:$0xf]
      %v404 = vld [vmem:[%s209 + $0x2d4] sm:$0xf]
      %v405 = vld [vmem:[%s209 + $0x2d8] sm:$0xf]
      %v406 = vld [vmem:[%s209 + $0x2dc] sm:$0xf]
      %v407 = vld [vmem:[%s209 + $0x2e0] sm:$0xf]
      %v408 = vld [vmem:[%s209 + $0x2e4] sm:$0xf]
      %v409 = vld [vmem:[%s209 + $0x2e8] sm:$0xf]
      %v410 = vld [vmem:[%s209 + $0x2ec] sm:$0xf]
      %v411 = vld [vmem:[%s209 + $0x2f0] sm:$0xf]
      %v412 = vld [vmem:[%s209 + $0x2f4] sm:$0xf]
      %v413 = vld [vmem:[%s209 + $0x2f8] sm:$0xf]
      %v414 = vld [vmem:[%s209 + $0x2fc] sm:$0xf]
      %v415 = vld [vmem:[%s209 + $0x300] sm:$0xf]
      %v416 = vld [vmem:[%s209 + $0x304] sm:$0xf]
      %v417 = vld [vmem:[%s209 + $0x308] sm:$0xf]
      %v418 = vld [vmem:[%s209 + $0x30c] sm:$0xf]
      %v419 = vld [vmem:[%s209 + $0x310] sm:$0xf]
      %v420 = vld [vmem:[%s209 + $0x314] sm:$0xf]
      %v421 = vld [vmem:[%s209 + $0x318] sm:$0xf]
      %v422 = vld [vmem:[%s209 + $0x31c] sm:$0xf]
      %v423 = vld [vmem:[%s209 + $0x320] sm:$0xf]
      %v424 = vld [vmem:[%s209 + $0x324] sm:$0xf]
      %v425 = vld [vmem:[%s209 + $0x328] sm:$0xf]
      %v426 = vld [vmem:[%s209 + $0x32c] sm:$0xf]
      %v427 = vld [vmem:[%s209 + $0x330] sm:$0xf]
      %v428 = vld [vmem:[%s209 + $0x334] sm:$0xf]
      %v429 = vld [vmem:[%s209 + $0x338] sm:$0xf]
      %v430 = vld [vmem:[%s209 + $0x33c] sm:$0xf]
      %v431 = vld [vmem:[%s209 + $0x340] sm:$0xf]
      %v432 = vld [vmem:[%s209 + $0x344] sm:$0xf]
      %v433 = vld [vmem:[%s209 + $0x348] sm:$0xf]
      %v434 = vld [vmem:[%s209 + $0x34c] sm:$0xf]
      %v435 = vld [vmem:[%s209 + $0x350] sm:$0xf]
      %v436 = vld [vmem:[%s209 + $0x354] sm:$0xf]
      %v437 = vld [vmem:[%s209 + $0x358] sm:$0xf]
      %v438 = vld [vmem:[%s209 + $0x35c] sm:$0xf]
      %v439 = vld [vmem:[%s209 + $0x360] sm:$0xf]
      %v440 = vld [vmem:[%s209 + $0x364] sm:$0xf]
      %v441 = vld [vmem:[%s209 + $0x368] sm:$0xf]
      %v442 = vld [vmem:[%s209 + $0x36c] sm:$0xf]
      %v443 = vld [vmem:[%s209 + $0x370] sm:$0xf]
      %v444 = vld [vmem:[%s209 + $0x374] sm:$0xf]
      %v445 = vld [vmem:[%s209 + $0x378] sm:$0xf]
      %v446 = vld [vmem:[%s209 + $0x37c] sm:$0xf]
      %v447 = vld [vmem:[%s209 + $0x380] sm:$0xf]
      %v448 = vld [vmem:[%s209 + $0x384] sm:$0xf]
      %v449 = vld [vmem:[%s209 + $0x388] sm:$0xf]
      %v450 = vld [vmem:[%s209 + $0x38c] sm:$0xf]
      %v451 = vld [vmem:[%s209 + $0x390] sm:$0xf]
      %v452 = vld [vmem:[%s209 + $0x394] sm:$0xf]
      %v453 = vld [vmem:[%s209 + $0x398] sm:$0xf]
      %v454 = vld [vmem:[%s209 + $0x39c] sm:$0xf]
      %v455 = vld [vmem:[%s209 + $0x3a0] sm:$0xf]
      %v456 = vld [vmem:[%s209 + $0x3a4] sm:$0xf]
      %v457 = vld [vmem:[%s209 + $0x3a8] sm:$0xf]
      %v458 = vld [vmem:[%s209 + $0x3ac] sm:$0xf]
      %v459 = vld [vmem:[%s209 + $0x3b0] sm:$0xf]
      %v460 = vld [vmem:[%s209 + $0x3b4] sm:$0xf]
      %v461 = vld [vmem:[%s209 + $0x3b8] sm:$0xf]
      %v462 = vld [vmem:[%s209 + $0x3bc] sm:$0xf]
      %v463 = vld [vmem:[%s209 + $0x3c0] sm:$0xf]
      %v464 = vld [vmem:[%s209 + $0x3c4] sm:$0xf]
      %v465 = vld [vmem:[%s209 + $0x3c8] sm:$0xf]
      %v466 = vld [vmem:[%s209 + $0x3cc] sm:$0xf]
      %v467 = vld [vmem:[%s209 + $0x3d0] sm:$0xf]
      %v468 = vld [vmem:[%s209 + $0x3d4] sm:$0xf]
      %v469 = vld [vmem:[%s209 + $0x3d8] sm:$0xf]
      %v470 = vld [vmem:[%s209 + $0x3dc] sm:$0xf]
      %v471 = vld [vmem:[%s209 + $0x3e0] sm:$0xf]
      %v472 = vld [vmem:[%s209 + $0x3e4] sm:$0xf]
      %v473 = vld [vmem:[%s209 + $0x3e8] sm:$0xf]
      %v474 = vld [vmem:[%s209 + $0x3ec] sm:$0xf]
      %v475 = vld [vmem:[%s209 + $0x3f0] sm:$0xf]
      %v476 = vld [vmem:[%s209 + $0x3f4] sm:$0xf]
      %v477 = vld [vmem:[%s209 + $0x3f8] sm:$0xf]
      %v478 = vld [vmem:[%s209 + $0x3fc] sm:$0xf]
      %vm479 = vcmask 125952
      %v480 = vsel %vm479, %v223, 0.0
      %v481 = vrot.slane %v480, 4
      %v482 = vadd.f32 %v480, %v481
      %v483 = vrot.slane %v482, 2
      %v484 = vadd.f32 %v482, %v483
      %v485 = vrot.slane %v484, 1
      %v486 = vadd.f32 %v484, %v485
      %v487 = vsel %vm479, %v224, 0.0
      %v488 = vrot.slane %v487, 4
      %v489 = vadd.f32 %v487, %v488
      %v490 = vrot.slane %v489, 2
      %v491 = vadd.f32 %v489, %v490
      %v492 = vrot.slane %v491, 1
      %v493 = vadd.f32 %v491, %v492
      %v494 = vsel %vm479, %v225, 0.0
      %v495 = vrot.slane %v494, 4
      %v496 = vadd.f32 %v494, %v495
      %v497 = vrot.slane %v496, 2
      %v498 = vadd.f32 %v496, %v497
      %v499 = vrot.slane %v498, 1
      %v500 = vadd.f32 %v498, %v499
      %v501 = vsel %vm479, %v226, 0.0
      %v502 = vrot.slane %v501, 4
      %v503 = vadd.f32 %v501, %v502
      %v504 = vrot.slane %v503, 2
      %v505 = vadd.f32 %v503, %v504
      %v506 = vrot.slane %v505, 1
      %v507 = vadd.f32 %v505, %v506
      %v508 = vsel %vm479, %v227, 0.0
      %v509 = vrot.slane %v508, 4
      %v510 = vadd.f32 %v508, %v509
      %v511 = vrot.slane %v510, 2
      %v512 = vadd.f32 %v510, %v511
      %v513 = vrot.slane %v512, 1
      %v514 = vadd.f32 %v512, %v513
      %v515 = vsel %vm479, %v228, 0.0
      %v516 = vrot.slane %v515, 4
      %v517 = vadd.f32 %v515, %v516
      %v518 = vrot.slane %v517, 2
      %v519 = vadd.f32 %v517, %v518
      %v520 = vrot.slane %v519, 1
      %v521 = vadd.f32 %v519, %v520
      %v522 = vsel %vm479, %v229, 0.0
      %v523 = vrot.slane %v522, 4
      %v524 = vadd.f32 %v522, %v523
      %v525 = vrot.slane %v524, 2
      %v526 = vadd.f32 %v524, %v525
      %v527 = vrot.slane %v526, 1
      %v528 = vadd.f32 %v526, %v527
      %v529 = vsel %vm479, %v230, 0.0
      %v530 = vrot.slane %v529, 4
      %v531 = vadd.f32 %v529, %v530
      %v532 = vrot.slane %v531, 2
      %v533 = vadd.f32 %v531, %v532
      %v534 = vrot.slane %v533, 1
      %v535 = vadd.f32 %v533, %v534
      %v536 = vsel %vm479, %v231, 0.0
      %v537 = vrot.slane %v536, 4
      %v538 = vadd.f32 %v536, %v537
      %v539 = vrot.slane %v538, 2
      %v540 = vadd.f32 %v538, %v539
      %v541 = vrot.slane %v540, 1
      %v542 = vadd.f32 %v540, %v541
      %v543 = vsel %vm479, %v232, 0.0
      %v544 = vrot.slane %v543, 4
      %v545 = vadd.f32 %v543, %v544
      %v546 = vrot.slane %v545, 2
      %v547 = vadd.f32 %v545, %v546
      %v548 = vrot.slane %v547, 1
      %v549 = vadd.f32 %v547, %v548
      %v550 = vsel %vm479, %v233, 0.0
      %v551 = vrot.slane %v550, 4
      %v552 = vadd.f32 %v550, %v551
      %v553 = vrot.slane %v552, 2
      %v554 = vadd.f32 %v552, %v553
      %v555 = vrot.slane %v554, 1
      %v556 = vadd.f32 %v554, %v555
      %v557 = vsel %vm479, %v234, 0.0
      %v558 = vrot.slane %v557, 4
      %v559 = vadd.f32 %v557, %v558
      %v560 = vrot.slane %v559, 2
      %v561 = vadd.f32 %v559, %v560
      %v562 = vrot.slane %v561, 1
      %v563 = vadd.f32 %v561, %v562
      %v564 = vsel %vm479, %v235, 0.0
      %v565 = vrot.slane %v564, 4
      %v566 = vadd.f32 %v564, %v565
      %v567 = vrot.slane %v566, 2
      %v568 = vadd.f32 %v566, %v567
      %v569 = vrot.slane %v568, 1
      %v570 = vadd.f32 %v568, %v569
      %v571 = vsel %vm479, %v236, 0.0
      %v572 = vrot.slane %v571, 4
      %v573 = vadd.f32 %v571, %v572
      %v574 = vrot.slane %v573, 2
      %v575 = vadd.f32 %v573, %v574
      %v576 = vrot.slane %v575, 1
      %v577 = vadd.f32 %v575, %v576
      %v578 = vsel %vm479, %v237, 0.0
      %v579 = vrot.slane %v578, 4
      %v580 = vadd.f32 %v578, %v579
      %v581 = vrot.slane %v580, 2
      %v582 = vadd.f32 %v580, %v581
      %v583 = vrot.slane %v582, 1
      %v584 = vadd.f32 %v582, %v583
      %v585 = vsel %vm479, %v238, 0.0
      %v586 = vrot.slane %v585, 4
      %v587 = vadd.f32 %v585, %v586
      %v588 = vrot.slane %v587, 2
      %v589 = vadd.f32 %v587, %v588
      %v590 = vrot.slane %v589, 1
      %v591 = vadd.f32 %v589, %v590
      %v592 = vsel %vm479, %v239, 0.0
      %v593 = vrot.slane %v592, 4
      %v594 = vadd.f32 %v592, %v593
      %v595 = vrot.slane %v594, 2
      %v596 = vadd.f32 %v594, %v595
      %v597 = vrot.slane %v596, 1
      %v598 = vadd.f32 %v596, %v597
      %v599 = vsel %vm479, %v240, 0.0
      %v600 = vrot.slane %v599, 4
      %v601 = vadd.f32 %v599, %v600
      %v602 = vrot.slane %v601, 2
      %v603 = vadd.f32 %v601, %v602
      %v604 = vrot.slane %v603, 1
      %v605 = vadd.f32 %v603, %v604
      %v606 = vsel %vm479, %v241, 0.0
      %v607 = vrot.slane %v606, 4
      %v608 = vadd.f32 %v606, %v607
      %v609 = vrot.slane %v608, 2
      %v610 = vadd.f32 %v608, %v609
      %v611 = vrot.slane %v610, 1
      %v612 = vadd.f32 %v610, %v611
      %v613 = vsel %vm479, %v242, 0.0
      %v614 = vrot.slane %v613, 4
      %v615 = vadd.f32 %v613, %v614
      %v616 = vrot.slane %v615, 2
      %v617 = vadd.f32 %v615, %v616
      %v618 = vrot.slane %v617, 1
      %v619 = vadd.f32 %v617, %v618
      %v620 = vsel %vm479, %v243, 0.0
      %v621 = vrot.slane %v620, 4
      %v622 = vadd.f32 %v620, %v621
      %v623 = vrot.slane %v622, 2
      %v624 = vadd.f32 %v622, %v623
      %v625 = vrot.slane %v624, 1
      %v626 = vadd.f32 %v624, %v625
      %v627 = vsel %vm479, %v244, 0.0
      %v628 = vrot.slane %v627, 4
      %v629 = vadd.f32 %v627, %v628
      %v630 = vrot.slane %v629, 2
      %v631 = vadd.f32 %v629, %v630
      %v632 = vrot.slane %v631, 1
      %v633 = vadd.f32 %v631, %v632
      %v634 = vsel %vm479, %v245, 0.0
      %v635 = vrot.slane %v634, 4
      %v636 = vadd.f32 %v634, %v635
      %v637 = vrot.slane %v636, 2
      %v638 = vadd.f32 %v636, %v637
      %v639 = vrot.slane %v638, 1
      %v640 = vadd.f32 %v638, %v639
      %v641 = vsel %vm479, %v246, 0.0
      %v642 = vrot.slane %v641, 4
      %v643 = vadd.f32 %v641, %v642
      %v644 = vrot.slane %v643, 2
      %v645 = vadd.f32 %v643, %v644
      %v646 = vrot.slane %v645, 1
      %v647 = vadd.f32 %v645, %v646
      %v648 = vsel %vm479, %v247, 0.0
      %v649 = vrot.slane %v648, 4
      %v650 = vadd.f32 %v648, %v649
      %v651 = vrot.slane %v650, 2
      %v652 = vadd.f32 %v650, %v651
      %v653 = vrot.slane %v652, 1
      %v654 = vadd.f32 %v652, %v653
      %v655 = vsel %vm479, %v248, 0.0
      %v656 = vrot.slane %v655, 4
      %v657 = vadd.f32 %v655, %v656
      %v658 = vrot.slane %v657, 2
      %v659 = vadd.f32 %v657, %v658
      %v660 = vrot.slane %v659, 1
      %v661 = vadd.f32 %v659, %v660
      %v662 = vsel %vm479, %v249, 0.0
      %v663 = vrot.slane %v662, 4
      %v664 = vadd.f32 %v662, %v663
      %v665 = vrot.slane %v664, 2
      %v666 = vadd.f32 %v664, %v665
      %v667 = vrot.slane %v666, 1
      %v668 = vadd.f32 %v666, %v667
      %v669 = vsel %vm479, %v250, 0.0
      %v670 = vrot.slane %v669, 4
      %v671 = vadd.f32 %v669, %v670
      %v672 = vrot.slane %v671, 2
      %v673 = vadd.f32 %v671, %v672
      %v674 = vrot.slane %v673, 1
      %v675 = vadd.f32 %v673, %v674
      %v676 = vsel %vm479, %v251, 0.0
      %v677 = vrot.slane %v676, 4
      %v678 = vadd.f32 %v676, %v677
      %v679 = vrot.slane %v678, 2
      %v680 = vadd.f32 %v678, %v679
      %v681 = vrot.slane %v680, 1
      %v682 = vadd.f32 %v680, %v681
      %v683 = vsel %vm479, %v252, 0.0
      %v684 = vrot.slane %v683, 4
      %v685 = vadd.f32 %v683, %v684
      %v686 = vrot.slane %v685, 2
      %v687 = vadd.f32 %v685, %v686
      %v688 = vrot.slane %v687, 1
      %v689 = vadd.f32 %v687, %v688
      %v690 = vsel %vm479, %v253, 0.0
      %v691 = vrot.slane %v690, 4
      %v692 = vadd.f32 %v690, %v691
      %v693 = vrot.slane %v692, 2
      %v694 = vadd.f32 %v692, %v693
      %v695 = vrot.slane %v694, 1
      %v696 = vadd.f32 %v694, %v695
      %v697 = vsel %vm479, %v254, 0.0
      %v698 = vrot.slane %v697, 4
      %v699 = vadd.f32 %v697, %v698
      %v700 = vrot.slane %v699, 2
      %v701 = vadd.f32 %v699, %v700
      %v702 = vrot.slane %v701, 1
      %v703 = vadd.f32 %v701, %v702
      %v704 = vsel %vm479, %v255, 0.0
      %v705 = vrot.slane %v704, 4
      %v706 = vadd.f32 %v704, %v705
      %v707 = vrot.slane %v706, 2
      %v708 = vadd.f32 %v706, %v707
      %v709 = vrot.slane %v708, 1
      %v710 = vadd.f32 %v708, %v709
      %v711 = vsel %vm479, %v256, 0.0
      %v712 = vrot.slane %v711, 4
      %v713 = vadd.f32 %v711, %v712
      %v714 = vrot.slane %v713, 2
      %v715 = vadd.f32 %v713, %v714
      %v716 = vrot.slane %v715, 1
      %v717 = vadd.f32 %v715, %v716
      %v718 = vsel %vm479, %v257, 0.0
      %v719 = vrot.slane %v718, 4
      %v720 = vadd.f32 %v718, %v719
      %v721 = vrot.slane %v720, 2
      %v722 = vadd.f32 %v720, %v721
      %v723 = vrot.slane %v722, 1
      %v724 = vadd.f32 %v722, %v723
      %v725 = vsel %vm479, %v258, 0.0
      %v726 = vrot.slane %v725, 4
      %v727 = vadd.f32 %v725, %v726
      %v728 = vrot.slane %v727, 2
      %v729 = vadd.f32 %v727, %v728
      %v730 = vrot.slane %v729, 1
      %v731 = vadd.f32 %v729, %v730
      %v732 = vsel %vm479, %v259, 0.0
      %v733 = vrot.slane %v732, 4
      %v734 = vadd.f32 %v732, %v733
      %v735 = vrot.slane %v734, 2
      %v736 = vadd.f32 %v734, %v735
      %v737 = vrot.slane %v736, 1
      %v738 = vadd.f32 %v736, %v737
      %v739 = vsel %vm479, %v260, 0.0
      %v740 = vrot.slane %v739, 4
      %v741 = vadd.f32 %v739, %v740
      %v742 = vrot.slane %v741, 2
      %v743 = vadd.f32 %v741, %v742
      %v744 = vrot.slane %v743, 1
      %v745 = vadd.f32 %v743, %v744
      %v746 = vsel %vm479, %v261, 0.0
      %v747 = vrot.slane %v746, 4
      %v748 = vadd.f32 %v746, %v747
      %v749 = vrot.slane %v748, 2
      %v750 = vadd.f32 %v748, %v749
      %v751 = vrot.slane %v750, 1
      %v752 = vadd.f32 %v750, %v751
      %v753 = vsel %vm479, %v262, 0.0
      %v754 = vrot.slane %v753, 4
      %v755 = vadd.f32 %v753, %v754
      %v756 = vrot.slane %v755, 2
      %v757 = vadd.f32 %v755, %v756
      %v758 = vrot.slane %v757, 1
      %v759 = vadd.f32 %v757, %v758
      %v760 = vsel %vm479, %v263, 0.0
      %v761 = vrot.slane %v760, 4
      %v762 = vadd.f32 %v760, %v761
      %v763 = vrot.slane %v762, 2
      %v764 = vadd.f32 %v762, %v763
      %v765 = vrot.slane %v764, 1
      %v766 = vadd.f32 %v764, %v765
      %v767 = vsel %vm479, %v264, 0.0
      %v768 = vrot.slane %v767, 4
      %v769 = vadd.f32 %v767, %v768
      %v770 = vrot.slane %v769, 2
      %v771 = vadd.f32 %v769, %v770
      %v772 = vrot.slane %v771, 1
      %v773 = vadd.f32 %v771, %v772
      %v774 = vsel %vm479, %v265, 0.0
      %v775 = vrot.slane %v774, 4
      %v776 = vadd.f32 %v774, %v775
      %v777 = vrot.slane %v776, 2
      %v778 = vadd.f32 %v776, %v777
      %v779 = vrot.slane %v778, 1
      %v780 = vadd.f32 %v778, %v779
      %v781 = vsel %vm479, %v266, 0.0
      %v782 = vrot.slane %v781, 4
      %v783 = vadd.f32 %v781, %v782
      %v784 = vrot.slane %v783, 2
      %v785 = vadd.f32 %v783, %v784
      %v786 = vrot.slane %v785, 1
      %v787 = vadd.f32 %v785, %v786
      %v788 = vsel %vm479, %v267, 0.0
      %v789 = vrot.slane %v788, 4
      %v790 = vadd.f32 %v788, %v789
      %v791 = vrot.slane %v790, 2
      %v792 = vadd.f32 %v790, %v791
      %v793 = vrot.slane %v792, 1
      %v794 = vadd.f32 %v792, %v793
      %v795 = vsel %vm479, %v268, 0.0
      %v796 = vrot.slane %v795, 4
      %v797 = vadd.f32 %v795, %v796
      %v798 = vrot.slane %v797, 2
      %v799 = vadd.f32 %v797, %v798
      %v800 = vrot.slane %v799, 1
      %v801 = vadd.f32 %v799, %v800
      %v802 = vsel %vm479, %v269, 0.0
      %v803 = vrot.slane %v802, 4
      %v804 = vadd.f32 %v802, %v803
      %v805 = vrot.slane %v804, 2
      %v806 = vadd.f32 %v804, %v805
      %v807 = vrot.slane %v806, 1
      %v808 = vadd.f32 %v806, %v807
      %v809 = vsel %vm479, %v270, 0.0
      %v810 = vrot.slane %v809, 4
      %v811 = vadd.f32 %v809, %v810
      %v812 = vrot.slane %v811, 2
      %v813 = vadd.f32 %v811, %v812
      %v814 = vrot.slane %v813, 1
      %v815 = vadd.f32 %v813, %v814
      %v816 = vsel %vm479, %v271, 0.0
      %v817 = vrot.slane %v816, 4
      %v818 = vadd.f32 %v816, %v817
      %v819 = vrot.slane %v818, 2
      %v820 = vadd.f32 %v818, %v819
      %v821 = vrot.slane %v820, 1
      %v822 = vadd.f32 %v820, %v821
      %v823 = vsel %vm479, %v272, 0.0
      %v824 = vrot.slane %v823, 4
      %v825 = vadd.f32 %v823, %v824
      %v826 = vrot.slane %v825, 2
      %v827 = vadd.f32 %v825, %v826
      %v828 = vrot.slane %v827, 1
      %v829 = vadd.f32 %v827, %v828
      %v830 = vsel %vm479, %v273, 0.0
      %v831 = vrot.slane %v830, 4
      %v832 = vadd.f32 %v830, %v831
      %v833 = vrot.slane %v832, 2
      %v834 = vadd.f32 %v832, %v833
      %v835 = vrot.slane %v834, 1
      %v836 = vadd.f32 %v834, %v835
      %v837 = vsel %vm479, %v274, 0.0
      %v838 = vrot.slane %v837, 4
      %v839 = vadd.f32 %v837, %v838
      %v840 = vrot.slane %v839, 2
      %v841 = vadd.f32 %v839, %v840
      %v842 = vrot.slane %v841, 1
      %v843 = vadd.f32 %v841, %v842
      %v844 = vsel %vm479, %v275, 0.0
      %v845 = vrot.slane %v844, 4
      %v846 = vadd.f32 %v844, %v845
      %v847 = vrot.slane %v846, 2
      %v848 = vadd.f32 %v846, %v847
      %v849 = vrot.slane %v848, 1
      %v850 = vadd.f32 %v848, %v849
      %v851 = vsel %vm479, %v276, 0.0
      %v852 = vrot.slane %v851, 4
      %v853 = vadd.f32 %v851, %v852
      %v854 = vrot.slane %v853, 2
      %v855 = vadd.f32 %v853, %v854
      %v856 = vrot.slane %v855, 1
      %v857 = vadd.f32 %v855, %v856
      %v858 = vsel %vm479, %v277, 0.0
      %v859 = vrot.slane %v858, 4
      %v860 = vadd.f32 %v858, %v859
      %v861 = vrot.slane %v860, 2
      %v862 = vadd.f32 %v860, %v861
      %v863 = vrot.slane %v862, 1
      %v864 = vadd.f32 %v862, %v863
      %v865 = vsel %vm479, %v278, 0.0
      %v866 = vrot.slane %v865, 4
      %v867 = vadd.f32 %v865, %v866
      %v868 = vrot.slane %v867, 2
      %v869 = vadd.f32 %v867, %v868
      %v870 = vrot.slane %v869, 1
      %v871 = vadd.f32 %v869, %v870
      %v872 = vsel %vm479, %v279, 0.0
      %v873 = vrot.slane %v872, 4
      %v874 = vadd.f32 %v872, %v873
      %v875 = vrot.slane %v874, 2
      %v876 = vadd.f32 %v874, %v875
      %v877 = vrot.slane %v876, 1
      %v878 = vadd.f32 %v876, %v877
      %v879 = vsel %vm479, %v280, 0.0
      %v880 = vrot.slane %v879, 4
      %v881 = vadd.f32 %v879, %v880
      %v882 = vrot.slane %v881, 2
      %v883 = vadd.f32 %v881, %v882
      %v884 = vrot.slane %v883, 1
      %v885 = vadd.f32 %v883, %v884
      %v886 = vsel %vm479, %v281, 0.0
      %v887 = vrot.slane %v886, 4
      %v888 = vadd.f32 %v886, %v887
      %v889 = vrot.slane %v888, 2
      %v890 = vadd.f32 %v888, %v889
      %v891 = vrot.slane %v890, 1
      %v892 = vadd.f32 %v890, %v891
      %v893 = vsel %vm479, %v282, 0.0
      %v894 = vrot.slane %v893, 4
      %v895 = vadd.f32 %v893, %v894
      %v896 = vrot.slane %v895, 2
      %v897 = vadd.f32 %v895, %v896
      %v898 = vrot.slane %v897, 1
      %v899 = vadd.f32 %v897, %v898
      %v900 = vsel %vm479, %v283, 0.0
      %v901 = vrot.slane %v900, 4
      %v902 = vadd.f32 %v900, %v901
      %v903 = vrot.slane %v902, 2
      %v904 = vadd.f32 %v902, %v903
      %v905 = vrot.slane %v904, 1
      %v906 = vadd.f32 %v904, %v905
      %v907 = vsel %vm479, %v284, 0.0
      %v908 = vrot.slane %v907, 4
      %v909 = vadd.f32 %v907, %v908
      %v910 = vrot.slane %v909, 2
      %v911 = vadd.f32 %v909, %v910
      %v912 = vrot.slane %v911, 1
      %v913 = vadd.f32 %v911, %v912
      %v914 = vsel %vm479, %v285, 0.0
      %v915 = vrot.slane %v914, 4
      %v916 = vadd.f32 %v914, %v915
      %v917 = vrot.slane %v916, 2
      %v918 = vadd.f32 %v916, %v917
      %v919 = vrot.slane %v918, 1
      %v920 = vadd.f32 %v918, %v919
      %v921 = vsel %vm479, %v286, 0.0
      %v922 = vrot.slane %v921, 4
      %v923 = vadd.f32 %v921, %v922
      %v924 = vrot.slane %v923, 2
      %v925 = vadd.f32 %v923, %v924
      %v926 = vrot.slane %v925, 1
      %v927 = vadd.f32 %v925, %v926
      %v928 = vsel %vm479, %v287, 0.0
      %v929 = vrot.slane %v928, 4
      %v930 = vadd.f32 %v928, %v929
      %v931 = vrot.slane %v930, 2
      %v932 = vadd.f32 %v930, %v931
      %v933 = vrot.slane %v932, 1
      %v934 = vadd.f32 %v932, %v933
      %v935 = vsel %vm479, %v288, 0.0
      %v936 = vrot.slane %v935, 4
      %v937 = vadd.f32 %v935, %v936
      %v938 = vrot.slane %v937, 2
      %v939 = vadd.f32 %v937, %v938
      %v940 = vrot.slane %v939, 1
      %v941 = vadd.f32 %v939, %v940
      %v942 = vsel %vm479, %v289, 0.0
      %v943 = vrot.slane %v942, 4
      %v944 = vadd.f32 %v942, %v943
      %v945 = vrot.slane %v944, 2
      %v946 = vadd.f32 %v944, %v945
      %v947 = vrot.slane %v946, 1
      %v948 = vadd.f32 %v946, %v947
      %v949 = vsel %vm479, %v290, 0.0
      %v950 = vrot.slane %v949, 4
      %v951 = vadd.f32 %v949, %v950
      %v952 = vrot.slane %v951, 2
      %v953 = vadd.f32 %v951, %v952
      %v954 = vrot.slane %v953, 1
      %v955 = vadd.f32 %v953, %v954
      %v956 = vsel %vm479, %v291, 0.0
      %v957 = vrot.slane %v956, 4
      %v958 = vadd.f32 %v956, %v957
      %v959 = vrot.slane %v958, 2
      %v960 = vadd.f32 %v958, %v959
      %v961 = vrot.slane %v960, 1
      %v962 = vadd.f32 %v960, %v961
      %v963 = vsel %vm479, %v292, 0.0
      %v964 = vrot.slane %v963, 4
      %v965 = vadd.f32 %v963, %v964
      %v966 = vrot.slane %v965, 2
      %v967 = vadd.f32 %v965, %v966
      %v968 = vrot.slane %v967, 1
      %v969 = vadd.f32 %v967, %v968
      %v970 = vsel %vm479, %v293, 0.0
      %v971 = vrot.slane %v970, 4
      %v972 = vadd.f32 %v970, %v971
      %v973 = vrot.slane %v972, 2
      %v974 = vadd.f32 %v972, %v973
      %v975 = vrot.slane %v974, 1
      %v976 = vadd.f32 %v974, %v975
      %v977 = vsel %vm479, %v294, 0.0
      %v978 = vrot.slane %v977, 4
      %v979 = vadd.f32 %v977, %v978
      %v980 = vrot.slane %v979, 2
      %v981 = vadd.f32 %v979, %v980
      %v982 = vrot.slane %v981, 1
      %v983 = vadd.f32 %v981, %v982
      %v984 = vsel %vm479, %v295, 0.0
      %v985 = vrot.slane %v984, 4
      %v986 = vadd.f32 %v984, %v985
      %v987 = vrot.slane %v986, 2
      %v988 = vadd.f32 %v986, %v987
      %v989 = vrot.slane %v988, 1
      %v990 = vadd.f32 %v988, %v989
      %v991 = vsel %vm479, %v296, 0.0
      %v992 = vrot.slane %v991, 4
      %v993 = vadd.f32 %v991, %v992
      %v994 = vrot.slane %v993, 2
      %v995 = vadd.f32 %v993, %v994
      %v996 = vrot.slane %v995, 1
      %v997 = vadd.f32 %v995, %v996
      %v998 = vsel %vm479, %v297, 0.0
      %v999 = vrot.slane %v998, 4
      %v1000 = vadd.f32 %v998, %v999
      %v1001 = vrot.slane %v1000, 2
      %v1002 = vadd.f32 %v1000, %v1001
      %v1003 = vrot.slane %v1002, 1
      %v1004 = vadd.f32 %v1002, %v1003
      %v1005 = vsel %vm479, %v298, 0.0
      %v1006 = vrot.slane %v1005, 4
      %v1007 = vadd.f32 %v1005, %v1006
      %v1008 = vrot.slane %v1007, 2
      %v1009 = vadd.f32 %v1007, %v1008
      %v1010 = vrot.slane %v1009, 1
      %v1011 = vadd.f32 %v1009, %v1010
      %v1012 = vsel %vm479, %v299, 0.0
      %v1013 = vrot.slane %v1012, 4
      %v1014 = vadd.f32 %v1012, %v1013
      %v1015 = vrot.slane %v1014, 2
      %v1016 = vadd.f32 %v1014, %v1015
      %v1017 = vrot.slane %v1016, 1
      %v1018 = vadd.f32 %v1016, %v1017
      %v1019 = vsel %vm479, %v300, 0.0
      %v1020 = vrot.slane %v1019, 4
      %v1021 = vadd.f32 %v1019, %v1020
      %v1022 = vrot.slane %v1021, 2
      %v1023 = vadd.f32 %v1021, %v1022
      %v1024 = vrot.slane %v1023, 1
      %v1025 = vadd.f32 %v1023, %v1024
      %v1026 = vsel %vm479, %v301, 0.0
      %v1027 = vrot.slane %v1026, 4
      %v1028 = vadd.f32 %v1026, %v1027
      %v1029 = vrot.slane %v1028, 2
      %v1030 = vadd.f32 %v1028, %v1029
      %v1031 = vrot.slane %v1030, 1
      %v1032 = vadd.f32 %v1030, %v1031
      %v1033 = vsel %vm479, %v302, 0.0
      %v1034 = vrot.slane %v1033, 4
      %v1035 = vadd.f32 %v1033, %v1034
      %v1036 = vrot.slane %v1035, 2
      %v1037 = vadd.f32 %v1035, %v1036
      %v1038 = vrot.slane %v1037, 1
      %v1039 = vadd.f32 %v1037, %v1038
      %v1040 = vsel %vm479, %v303, 0.0
      %v1041 = vrot.slane %v1040, 4
      %v1042 = vadd.f32 %v1040, %v1041
      %v1043 = vrot.slane %v1042, 2
      %v1044 = vadd.f32 %v1042, %v1043
      %v1045 = vrot.slane %v1044, 1
      %v1046 = vadd.f32 %v1044, %v1045
      %v1047 = vsel %vm479, %v304, 0.0
      %v1048 = vrot.slane %v1047, 4
      %v1049 = vadd.f32 %v1047, %v1048
      %v1050 = vrot.slane %v1049, 2
      %v1051 = vadd.f32 %v1049, %v1050
      %v1052 = vrot.slane %v1051, 1
      %v1053 = vadd.f32 %v1051, %v1052
      %v1054 = vsel %vm479, %v305, 0.0
      %v1055 = vrot.slane %v1054, 4
      %v1056 = vadd.f32 %v1054, %v1055
      %v1057 = vrot.slane %v1056, 2
      %v1058 = vadd.f32 %v1056, %v1057
      %v1059 = vrot.slane %v1058, 1
      %v1060 = vadd.f32 %v1058, %v1059
      %v1061 = vsel %vm479, %v306, 0.0
      %v1062 = vrot.slane %v1061, 4
      %v1063 = vadd.f32 %v1061, %v1062
      %v1064 = vrot.slane %v1063, 2
      %v1065 = vadd.f32 %v1063, %v1064
      %v1066 = vrot.slane %v1065, 1
      %v1067 = vadd.f32 %v1065, %v1066
      %v1068 = vsel %vm479, %v307, 0.0
      %v1069 = vrot.slane %v1068, 4
      %v1070 = vadd.f32 %v1068, %v1069
      %v1071 = vrot.slane %v1070, 2
      %v1072 = vadd.f32 %v1070, %v1071
      %v1073 = vrot.slane %v1072, 1
      %v1074 = vadd.f32 %v1072, %v1073
      %v1075 = vsel %vm479, %v308, 0.0
      %v1076 = vrot.slane %v1075, 4
      %v1077 = vadd.f32 %v1075, %v1076
      %v1078 = vrot.slane %v1077, 2
      %v1079 = vadd.f32 %v1077, %v1078
      %v1080 = vrot.slane %v1079, 1
      %v1081 = vadd.f32 %v1079, %v1080
      %v1082 = vsel %vm479, %v309, 0.0
      %v1083 = vrot.slane %v1082, 4
      %v1084 = vadd.f32 %v1082, %v1083
      %v1085 = vrot.slane %v1084, 2
      %v1086 = vadd.f32 %v1084, %v1085
      %v1087 = vrot.slane %v1086, 1
      %v1088 = vadd.f32 %v1086, %v1087
      %v1089 = vsel %vm479, %v310, 0.0
      %v1090 = vrot.slane %v1089, 4
      %v1091 = vadd.f32 %v1089, %v1090
      %v1092 = vrot.slane %v1091, 2
      %v1093 = vadd.f32 %v1091, %v1092
      %v1094 = vrot.slane %v1093, 1
      %v1095 = vadd.f32 %v1093, %v1094
      %v1096 = vsel %vm479, %v311, 0.0
      %v1097 = vrot.slane %v1096, 4
      %v1098 = vadd.f32 %v1096, %v1097
      %v1099 = vrot.slane %v1098, 2
      %v1100 = vadd.f32 %v1098, %v1099
      %v1101 = vrot.slane %v1100, 1
      %v1102 = vadd.f32 %v1100, %v1101
      %v1103 = vsel %vm479, %v312, 0.0
      %v1104 = vrot.slane %v1103, 4
      %v1105 = vadd.f32 %v1103, %v1104
      %v1106 = vrot.slane %v1105, 2
      %v1107 = vadd.f32 %v1105, %v1106
      %v1108 = vrot.slane %v1107, 1
      %v1109 = vadd.f32 %v1107, %v1108
      %v1110 = vsel %vm479, %v313, 0.0
      %v1111 = vrot.slane %v1110, 4
      %v1112 = vadd.f32 %v1110, %v1111
      %v1113 = vrot.slane %v1112, 2
      %v1114 = vadd.f32 %v1112, %v1113
      %v1115 = vrot.slane %v1114, 1
      %v1116 = vadd.f32 %v1114, %v1115
      %v1117 = vsel %vm479, %v314, 0.0
      %v1118 = vrot.slane %v1117, 4
      %v1119 = vadd.f32 %v1117, %v1118
      %v1120 = vrot.slane %v1119, 2
      %v1121 = vadd.f32 %v1119, %v1120
      %v1122 = vrot.slane %v1121, 1
      %v1123 = vadd.f32 %v1121, %v1122
      %v1124 = vsel %vm479, %v315, 0.0
      %v1125 = vrot.slane %v1124, 4
      %v1126 = vadd.f32 %v1124, %v1125
      %v1127 = vrot.slane %v1126, 2
      %v1128 = vadd.f32 %v1126, %v1127
      %v1129 = vrot.slane %v1128, 1
      %v1130 = vadd.f32 %v1128, %v1129
      %v1131 = vsel %vm479, %v316, 0.0
      %v1132 = vrot.slane %v1131, 4
      %v1133 = vadd.f32 %v1131, %v1132
      %v1134 = vrot.slane %v1133, 2
      %v1135 = vadd.f32 %v1133, %v1134
      %v1136 = vrot.slane %v1135, 1
      %v1137 = vadd.f32 %v1135, %v1136
      %v1138 = vsel %vm479, %v317, 0.0
      %v1139 = vrot.slane %v1138, 4
      %v1140 = vadd.f32 %v1138, %v1139
      %v1141 = vrot.slane %v1140, 2
      %v1142 = vadd.f32 %v1140, %v1141
      %v1143 = vrot.slane %v1142, 1
      %v1144 = vadd.f32 %v1142, %v1143
      %v1145 = vsel %vm479, %v318, 0.0
      %v1146 = vrot.slane %v1145, 4
      %v1147 = vadd.f32 %v1145, %v1146
      %v1148 = vrot.slane %v1147, 2
      %v1149 = vadd.f32 %v1147, %v1148
      %v1150 = vrot.slane %v1149, 1
      %v1151 = vadd.f32 %v1149, %v1150
      %v1152 = vsel %vm479, %v319, 0.0
      %v1153 = vrot.slane %v1152, 4
      %v1154 = vadd.f32 %v1152, %v1153
      %v1155 = vrot.slane %v1154, 2
      %v1156 = vadd.f32 %v1154, %v1155
      %v1157 = vrot.slane %v1156, 1
      %v1158 = vadd.f32 %v1156, %v1157
      %v1159 = vsel %vm479, %v320, 0.0
      %v1160 = vrot.slane %v1159, 4
      %v1161 = vadd.f32 %v1159, %v1160
      %v1162 = vrot.slane %v1161, 2
      %v1163 = vadd.f32 %v1161, %v1162
      %v1164 = vrot.slane %v1163, 1
      %v1165 = vadd.f32 %v1163, %v1164
      %v1166 = vsel %vm479, %v321, 0.0
      %v1167 = vrot.slane %v1166, 4
      %v1168 = vadd.f32 %v1166, %v1167
      %v1169 = vrot.slane %v1168, 2
      %v1170 = vadd.f32 %v1168, %v1169
      %v1171 = vrot.slane %v1170, 1
      %v1172 = vadd.f32 %v1170, %v1171
      %v1173 = vsel %vm479, %v322, 0.0
      %v1174 = vrot.slane %v1173, 4
      %v1175 = vadd.f32 %v1173, %v1174
      %v1176 = vrot.slane %v1175, 2
      %v1177 = vadd.f32 %v1175, %v1176
      %v1178 = vrot.slane %v1177, 1
      %v1179 = vadd.f32 %v1177, %v1178
      %v1180 = vsel %vm479, %v323, 0.0
      %v1181 = vrot.slane %v1180, 4
      %v1182 = vadd.f32 %v1180, %v1181
      %v1183 = vrot.slane %v1182, 2
      %v1184 = vadd.f32 %v1182, %v1183
      %v1185 = vrot.slane %v1184, 1
      %v1186 = vadd.f32 %v1184, %v1185
      %v1187 = vsel %vm479, %v324, 0.0
      %v1188 = vrot.slane %v1187, 4
      %v1189 = vadd.f32 %v1187, %v1188
      %v1190 = vrot.slane %v1189, 2
      %v1191 = vadd.f32 %v1189, %v1190
      %v1192 = vrot.slane %v1191, 1
      %v1193 = vadd.f32 %v1191, %v1192
      %v1194 = vsel %vm479, %v325, 0.0
      %v1195 = vrot.slane %v1194, 4
      %v1196 = vadd.f32 %v1194, %v1195
      %v1197 = vrot.slane %v1196, 2
      %v1198 = vadd.f32 %v1196, %v1197
      %v1199 = vrot.slane %v1198, 1
      %v1200 = vadd.f32 %v1198, %v1199
      %v1201 = vsel %vm479, %v326, 0.0
      %v1202 = vrot.slane %v1201, 4
      %v1203 = vadd.f32 %v1201, %v1202
      %v1204 = vrot.slane %v1203, 2
      %v1205 = vadd.f32 %v1203, %v1204
      %v1206 = vrot.slane %v1205, 1
      %v1207 = vadd.f32 %v1205, %v1206
      %v1208 = vsel %vm479, %v327, 0.0
      %v1209 = vrot.slane %v1208, 4
      %v1210 = vadd.f32 %v1208, %v1209
      %v1211 = vrot.slane %v1210, 2
      %v1212 = vadd.f32 %v1210, %v1211
      %v1213 = vrot.slane %v1212, 1
      %v1214 = vadd.f32 %v1212, %v1213
      %v1215 = vsel %vm479, %v328, 0.0
      %v1216 = vrot.slane %v1215, 4
      %v1217 = vadd.f32 %v1215, %v1216
      %v1218 = vrot.slane %v1217, 2
      %v1219 = vadd.f32 %v1217, %v1218
      %v1220 = vrot.slane %v1219, 1
      %v1221 = vadd.f32 %v1219, %v1220
      %v1222 = vsel %vm479, %v329, 0.0
      %v1223 = vrot.slane %v1222, 4
      %v1224 = vadd.f32 %v1222, %v1223
      %v1225 = vrot.slane %v1224, 2
      %v1226 = vadd.f32 %v1224, %v1225
      %v1227 = vrot.slane %v1226, 1
      %v1228 = vadd.f32 %v1226, %v1227
      %v1229 = vsel %vm479, %v330, 0.0
      %v1230 = vrot.slane %v1229, 4
      %v1231 = vadd.f32 %v1229, %v1230
      %v1232 = vrot.slane %v1231, 2
      %v1233 = vadd.f32 %v1231, %v1232
      %v1234 = vrot.slane %v1233, 1
      %v1235 = vadd.f32 %v1233, %v1234
      %v1236 = vsel %vm479, %v331, 0.0
      %v1237 = vrot.slane %v1236, 4
      %v1238 = vadd.f32 %v1236, %v1237
      %v1239 = vrot.slane %v1238, 2
      %v1240 = vadd.f32 %v1238, %v1239
      %v1241 = vrot.slane %v1240, 1
      %v1242 = vadd.f32 %v1240, %v1241
      %v1243 = vsel %vm479, %v332, 0.0
      %v1244 = vrot.slane %v1243, 4
      %v1245 = vadd.f32 %v1243, %v1244
      %v1246 = vrot.slane %v1245, 2
      %v1247 = vadd.f32 %v1245, %v1246
      %v1248 = vrot.slane %v1247, 1
      %v1249 = vadd.f32 %v1247, %v1248
      %v1250 = vsel %vm479, %v333, 0.0
      %v1251 = vrot.slane %v1250, 4
      %v1252 = vadd.f32 %v1250, %v1251
      %v1253 = vrot.slane %v1252, 2
      %v1254 = vadd.f32 %v1252, %v1253
      %v1255 = vrot.slane %v1254, 1
      %v1256 = vadd.f32 %v1254, %v1255
      %v1257 = vsel %vm479, %v334, 0.0
      %v1258 = vrot.slane %v1257, 4
      %v1259 = vadd.f32 %v1257, %v1258
      %v1260 = vrot.slane %v1259, 2
      %v1261 = vadd.f32 %v1259, %v1260
      %v1262 = vrot.slane %v1261, 1
      %v1263 = vadd.f32 %v1261, %v1262
      %v1264 = vsel %vm479, %v335, 0.0
      %v1265 = vrot.slane %v1264, 4
      %v1266 = vadd.f32 %v1264, %v1265
      %v1267 = vrot.slane %v1266, 2
      %v1268 = vadd.f32 %v1266, %v1267
      %v1269 = vrot.slane %v1268, 1
      %v1270 = vadd.f32 %v1268, %v1269
      %v1271 = vsel %vm479, %v336, 0.0
      %v1272 = vrot.slane %v1271, 4
      %v1273 = vadd.f32 %v1271, %v1272
      %v1274 = vrot.slane %v1273, 2
      %v1275 = vadd.f32 %v1273, %v1274
      %v1276 = vrot.slane %v1275, 1
      %v1277 = vadd.f32 %v1275, %v1276
      %v1278 = vsel %vm479, %v337, 0.0
      %v1279 = vrot.slane %v1278, 4
      %v1280 = vadd.f32 %v1278, %v1279
      %v1281 = vrot.slane %v1280, 2
      %v1282 = vadd.f32 %v1280, %v1281
      %v1283 = vrot.slane %v1282, 1
      %v1284 = vadd.f32 %v1282, %v1283
      %v1285 = vsel %vm479, %v338, 0.0
      %v1286 = vrot.slane %v1285, 4
      %v1287 = vadd.f32 %v1285, %v1286
      %v1288 = vrot.slane %v1287, 2
      %v1289 = vadd.f32 %v1287, %v1288
      %v1290 = vrot.slane %v1289, 1
      %v1291 = vadd.f32 %v1289, %v1290
      %v1292 = vsel %vm479, %v339, 0.0
      %v1293 = vrot.slane %v1292, 4
      %v1294 = vadd.f32 %v1292, %v1293
      %v1295 = vrot.slane %v1294, 2
      %v1296 = vadd.f32 %v1294, %v1295
      %v1297 = vrot.slane %v1296, 1
      %v1298 = vadd.f32 %v1296, %v1297
      %v1299 = vsel %vm479, %v340, 0.0
      %v1300 = vrot.slane %v1299, 4
      %v1301 = vadd.f32 %v1299, %v1300
      %v1302 = vrot.slane %v1301, 2
      %v1303 = vadd.f32 %v1301, %v1302
      %v1304 = vrot.slane %v1303, 1
      %v1305 = vadd.f32 %v1303, %v1304
      %v1306 = vsel %vm479, %v341, 0.0
      %v1307 = vrot.slane %v1306, 4
      %v1308 = vadd.f32 %v1306, %v1307
      %v1309 = vrot.slane %v1308, 2
      %v1310 = vadd.f32 %v1308, %v1309
      %v1311 = vrot.slane %v1310, 1
      %v1312 = vadd.f32 %v1310, %v1311
      %v1313 = vsel %vm479, %v342, 0.0
      %v1314 = vrot.slane %v1313, 4
      %v1315 = vadd.f32 %v1313, %v1314
      %v1316 = vrot.slane %v1315, 2
      %v1317 = vadd.f32 %v1315, %v1316
      %v1318 = vrot.slane %v1317, 1
      %v1319 = vadd.f32 %v1317, %v1318
      %v1320 = vsel %vm479, %v343, 0.0
      %v1321 = vrot.slane %v1320, 4
      %v1322 = vadd.f32 %v1320, %v1321
      %v1323 = vrot.slane %v1322, 2
      %v1324 = vadd.f32 %v1322, %v1323
      %v1325 = vrot.slane %v1324, 1
      %v1326 = vadd.f32 %v1324, %v1325
      %v1327 = vsel %vm479, %v344, 0.0
      %v1328 = vrot.slane %v1327, 4
      %v1329 = vadd.f32 %v1327, %v1328
      %v1330 = vrot.slane %v1329, 2
      %v1331 = vadd.f32 %v1329, %v1330
      %v1332 = vrot.slane %v1331, 1
      %v1333 = vadd.f32 %v1331, %v1332
      %v1334 = vsel %vm479, %v345, 0.0
      %v1335 = vrot.slane %v1334, 4
      %v1336 = vadd.f32 %v1334, %v1335
      %v1337 = vrot.slane %v1336, 2
      %v1338 = vadd.f32 %v1336, %v1337
      %v1339 = vrot.slane %v1338, 1
      %v1340 = vadd.f32 %v1338, %v1339
      %v1341 = vsel %vm479, %v346, 0.0
      %v1342 = vrot.slane %v1341, 4
      %v1343 = vadd.f32 %v1341, %v1342
      %v1344 = vrot.slane %v1343, 2
      %v1345 = vadd.f32 %v1343, %v1344
      %v1346 = vrot.slane %v1345, 1
      %v1347 = vadd.f32 %v1345, %v1346
      %v1348 = vsel %vm479, %v347, 0.0
      %v1349 = vrot.slane %v1348, 4
      %v1350 = vadd.f32 %v1348, %v1349
      %v1351 = vrot.slane %v1350, 2
      %v1352 = vadd.f32 %v1350, %v1351
      %v1353 = vrot.slane %v1352, 1
      %v1354 = vadd.f32 %v1352, %v1353
      %v1355 = vsel %vm479, %v348, 0.0
      %v1356 = vrot.slane %v1355, 4
      %v1357 = vadd.f32 %v1355, %v1356
      %v1358 = vrot.slane %v1357, 2
      %v1359 = vadd.f32 %v1357, %v1358
      %v1360 = vrot.slane %v1359, 1
      %v1361 = vadd.f32 %v1359, %v1360
      %v1362 = vsel %vm479, %v349, 0.0
      %v1363 = vrot.slane %v1362, 4
      %v1364 = vadd.f32 %v1362, %v1363
      %v1365 = vrot.slane %v1364, 2
      %v1366 = vadd.f32 %v1364, %v1365
      %v1367 = vrot.slane %v1366, 1
      %v1368 = vadd.f32 %v1366, %v1367
      %v1369 = vsel %vm479, %v350, 0.0
      %v1370 = vrot.slane %v1369, 4
      %v1371 = vadd.f32 %v1369, %v1370
      %v1372 = vrot.slane %v1371, 2
      %v1373 = vadd.f32 %v1371, %v1372
      %v1374 = vrot.slane %v1373, 1
      %v1375 = vadd.f32 %v1373, %v1374
      %v1376 = vsel %vm479, %v351, 0.0
      %v1377 = vrot.slane %v1376, 4
      %v1378 = vadd.f32 %v1376, %v1377
      %v1379 = vrot.slane %v1378, 2
      %v1380 = vadd.f32 %v1378, %v1379
      %v1381 = vrot.slane %v1380, 1
      %v1382 = vadd.f32 %v1380, %v1381
      %v1383 = vsel %vm479, %v352, 0.0
      %v1384 = vrot.slane %v1383, 4
      %v1385 = vadd.f32 %v1383, %v1384
      %v1386 = vrot.slane %v1385, 2
      %v1387 = vadd.f32 %v1385, %v1386
      %v1388 = vrot.slane %v1387, 1
      %v1389 = vadd.f32 %v1387, %v1388
      %v1390 = vsel %vm479, %v353, 0.0
      %v1391 = vrot.slane %v1390, 4
      %v1392 = vadd.f32 %v1390, %v1391
      %v1393 = vrot.slane %v1392, 2
      %v1394 = vadd.f32 %v1392, %v1393
      %v1395 = vrot.slane %v1394, 1
      %v1396 = vadd.f32 %v1394, %v1395
      %v1397 = vsel %vm479, %v354, 0.0
      %v1398 = vrot.slane %v1397, 4
      %v1399 = vadd.f32 %v1397, %v1398
      %v1400 = vrot.slane %v1399, 2
      %v1401 = vadd.f32 %v1399, %v1400
      %v1402 = vrot.slane %v1401, 1
      %v1403 = vadd.f32 %v1401, %v1402
      %v1404 = vsel %vm479, %v355, 0.0
      %v1405 = vrot.slane %v1404, 4
      %v1406 = vadd.f32 %v1404, %v1405
      %v1407 = vrot.slane %v1406, 2
      %v1408 = vadd.f32 %v1406, %v1407
      %v1409 = vrot.slane %v1408, 1
      %v1410 = vadd.f32 %v1408, %v1409
      %v1411 = vsel %vm479, %v356, 0.0
      %v1412 = vrot.slane %v1411, 4
      %v1413 = vadd.f32 %v1411, %v1412
      %v1414 = vrot.slane %v1413, 2
      %v1415 = vadd.f32 %v1413, %v1414
      %v1416 = vrot.slane %v1415, 1
      %v1417 = vadd.f32 %v1415, %v1416
      %v1418 = vsel %vm479, %v357, 0.0
      %v1419 = vrot.slane %v1418, 4
      %v1420 = vadd.f32 %v1418, %v1419
      %v1421 = vrot.slane %v1420, 2
      %v1422 = vadd.f32 %v1420, %v1421
      %v1423 = vrot.slane %v1422, 1
      %v1424 = vadd.f32 %v1422, %v1423
      %v1425 = vsel %vm479, %v358, 0.0
      %v1426 = vrot.slane %v1425, 4
      %v1427 = vadd.f32 %v1425, %v1426
      %v1428 = vrot.slane %v1427, 2
      %v1429 = vadd.f32 %v1427, %v1428
      %v1430 = vrot.slane %v1429, 1
      %v1431 = vadd.f32 %v1429, %v1430
      %v1432 = vsel %vm479, %v359, 0.0
      %v1433 = vrot.slane %v1432, 4
      %v1434 = vadd.f32 %v1432, %v1433
      %v1435 = vrot.slane %v1434, 2
      %v1436 = vadd.f32 %v1434, %v1435
      %v1437 = vrot.slane %v1436, 1
      %v1438 = vadd.f32 %v1436, %v1437
      %v1439 = vsel %vm479, %v360, 0.0
      %v1440 = vrot.slane %v1439, 4
      %v1441 = vadd.f32 %v1439, %v1440
      %v1442 = vrot.slane %v1441, 2
      %v1443 = vadd.f32 %v1441, %v1442
      %v1444 = vrot.slane %v1443, 1
      %v1445 = vadd.f32 %v1443, %v1444
      %v1446 = vsel %vm479, %v361, 0.0
      %v1447 = vrot.slane %v1446, 4
      %v1448 = vadd.f32 %v1446, %v1447
      %v1449 = vrot.slane %v1448, 2
      %v1450 = vadd.f32 %v1448, %v1449
      %v1451 = vrot.slane %v1450, 1
      %v1452 = vadd.f32 %v1450, %v1451
      %v1453 = vsel %vm479, %v362, 0.0
      %v1454 = vrot.slane %v1453, 4
      %v1455 = vadd.f32 %v1453, %v1454
      %v1456 = vrot.slane %v1455, 2
      %v1457 = vadd.f32 %v1455, %v1456
      %v1458 = vrot.slane %v1457, 1
      %v1459 = vadd.f32 %v1457, %v1458
      %v1460 = vsel %vm479, %v363, 0.0
      %v1461 = vrot.slane %v1460, 4
      %v1462 = vadd.f32 %v1460, %v1461
      %v1463 = vrot.slane %v1462, 2
      %v1464 = vadd.f32 %v1462, %v1463
      %v1465 = vrot.slane %v1464, 1
      %v1466 = vadd.f32 %v1464, %v1465
      %v1467 = vsel %vm479, %v364, 0.0
      %v1468 = vrot.slane %v1467, 4
      %v1469 = vadd.f32 %v1467, %v1468
      %v1470 = vrot.slane %v1469, 2
      %v1471 = vadd.f32 %v1469, %v1470
      %v1472 = vrot.slane %v1471, 1
      %v1473 = vadd.f32 %v1471, %v1472
      %v1474 = vsel %vm479, %v365, 0.0
      %v1475 = vrot.slane %v1474, 4
      %v1476 = vadd.f32 %v1474, %v1475
      %v1477 = vrot.slane %v1476, 2
      %v1478 = vadd.f32 %v1476, %v1477
      %v1479 = vrot.slane %v1478, 1
      %v1480 = vadd.f32 %v1478, %v1479
      %v1481 = vsel %vm479, %v366, 0.0
      %v1482 = vrot.slane %v1481, 4
      %v1483 = vadd.f32 %v1481, %v1482
      %v1484 = vrot.slane %v1483, 2
      %v1485 = vadd.f32 %v1483, %v1484
      %v1486 = vrot.slane %v1485, 1
      %v1487 = vadd.f32 %v1485, %v1486
      %v1488 = vsel %vm479, %v367, 0.0
      %v1489 = vrot.slane %v1488, 4
      %v1490 = vadd.f32 %v1488, %v1489
      %v1491 = vrot.slane %v1490, 2
      %v1492 = vadd.f32 %v1490, %v1491
      %v1493 = vrot.slane %v1492, 1
      %v1494 = vadd.f32 %v1492, %v1493
      %v1495 = vsel %vm479, %v368, 0.0
      %v1496 = vrot.slane %v1495, 4
      %v1497 = vadd.f32 %v1495, %v1496
      %v1498 = vrot.slane %v1497, 2
      %v1499 = vadd.f32 %v1497, %v1498
      %v1500 = vrot.slane %v1499, 1
      %v1501 = vadd.f32 %v1499, %v1500
      %v1502 = vsel %vm479, %v369, 0.0
      %v1503 = vrot.slane %v1502, 4
      %v1504 = vadd.f32 %v1502, %v1503
      %v1505 = vrot.slane %v1504, 2
      %v1506 = vadd.f32 %v1504, %v1505
      %v1507 = vrot.slane %v1506, 1
      %v1508 = vadd.f32 %v1506, %v1507
      %v1509 = vsel %vm479, %v370, 0.0
      %v1510 = vrot.slane %v1509, 4
      %v1511 = vadd.f32 %v1509, %v1510
      %v1512 = vrot.slane %v1511, 2
      %v1513 = vadd.f32 %v1511, %v1512
      %v1514 = vrot.slane %v1513, 1
      %v1515 = vadd.f32 %v1513, %v1514
      %v1516 = vsel %vm479, %v371, 0.0
      %v1517 = vrot.slane %v1516, 4
      %v1518 = vadd.f32 %v1516, %v1517
      %v1519 = vrot.slane %v1518, 2
      %v1520 = vadd.f32 %v1518, %v1519
      %v1521 = vrot.slane %v1520, 1
      %v1522 = vadd.f32 %v1520, %v1521
      %v1523 = vsel %vm479, %v372, 0.0
      %v1524 = vrot.slane %v1523, 4
      %v1525 = vadd.f32 %v1523, %v1524
      %v1526 = vrot.slane %v1525, 2
      %v1527 = vadd.f32 %v1525, %v1526
      %v1528 = vrot.slane %v1527, 1
      %v1529 = vadd.f32 %v1527, %v1528
      %v1530 = vsel %vm479, %v373, 0.0
      %v1531 = vrot.slane %v1530, 4
      %v1532 = vadd.f32 %v1530, %v1531
      %v1533 = vrot.slane %v1532, 2
      %v1534 = vadd.f32 %v1532, %v1533
      %v1535 = vrot.slane %v1534, 1
      %v1536 = vadd.f32 %v1534, %v1535
      %v1537 = vsel %vm479, %v374, 0.0
      %v1538 = vrot.slane %v1537, 4
      %v1539 = vadd.f32 %v1537, %v1538
      %v1540 = vrot.slane %v1539, 2
      %v1541 = vadd.f32 %v1539, %v1540
      %v1542 = vrot.slane %v1541, 1
      %v1543 = vadd.f32 %v1541, %v1542
      %v1544 = vsel %vm479, %v375, 0.0
      %v1545 = vrot.slane %v1544, 4
      %v1546 = vadd.f32 %v1544, %v1545
      %v1547 = vrot.slane %v1546, 2
      %v1548 = vadd.f32 %v1546, %v1547
      %v1549 = vrot.slane %v1548, 1
      %v1550 = vadd.f32 %v1548, %v1549
      %v1551 = vsel %vm479, %v376, 0.0
      %v1552 = vrot.slane %v1551, 4
      %v1553 = vadd.f32 %v1551, %v1552
      %v1554 = vrot.slane %v1553, 2
      %v1555 = vadd.f32 %v1553, %v1554
      %v1556 = vrot.slane %v1555, 1
      %v1557 = vadd.f32 %v1555, %v1556
      %v1558 = vsel %vm479, %v377, 0.0
      %v1559 = vrot.slane %v1558, 4
      %v1560 = vadd.f32 %v1558, %v1559
      %v1561 = vrot.slane %v1560, 2
      %v1562 = vadd.f32 %v1560, %v1561
      %v1563 = vrot.slane %v1562, 1
      %v1564 = vadd.f32 %v1562, %v1563
      %v1565 = vsel %vm479, %v378, 0.0
      %v1566 = vrot.slane %v1565, 4
      %v1567 = vadd.f32 %v1565, %v1566
      %v1568 = vrot.slane %v1567, 2
      %v1569 = vadd.f32 %v1567, %v1568
      %v1570 = vrot.slane %v1569, 1
      %v1571 = vadd.f32 %v1569, %v1570
      %v1572 = vsel %vm479, %v379, 0.0
      %v1573 = vrot.slane %v1572, 4
      %v1574 = vadd.f32 %v1572, %v1573
      %v1575 = vrot.slane %v1574, 2
      %v1576 = vadd.f32 %v1574, %v1575
      %v1577 = vrot.slane %v1576, 1
      %v1578 = vadd.f32 %v1576, %v1577
      %v1579 = vsel %vm479, %v380, 0.0
      %v1580 = vrot.slane %v1579, 4
      %v1581 = vadd.f32 %v1579, %v1580
      %v1582 = vrot.slane %v1581, 2
      %v1583 = vadd.f32 %v1581, %v1582
      %v1584 = vrot.slane %v1583, 1
      %v1585 = vadd.f32 %v1583, %v1584
      %v1586 = vsel %vm479, %v381, 0.0
      %v1587 = vrot.slane %v1586, 4
      %v1588 = vadd.f32 %v1586, %v1587
      %v1589 = vrot.slane %v1588, 2
      %v1590 = vadd.f32 %v1588, %v1589
      %v1591 = vrot.slane %v1590, 1
      %v1592 = vadd.f32 %v1590, %v1591
      %v1593 = vsel %vm479, %v382, 0.0
      %v1594 = vrot.slane %v1593, 4
      %v1595 = vadd.f32 %v1593, %v1594
      %v1596 = vrot.slane %v1595, 2
      %v1597 = vadd.f32 %v1595, %v1596
      %v1598 = vrot.slane %v1597, 1
      %v1599 = vadd.f32 %v1597, %v1598
      %v1600 = vsel %vm479, %v383, 0.0
      %v1601 = vrot.slane %v1600, 4
      %v1602 = vadd.f32 %v1600, %v1601
      %v1603 = vrot.slane %v1602, 2
      %v1604 = vadd.f32 %v1602, %v1603
      %v1605 = vrot.slane %v1604, 1
      %v1606 = vadd.f32 %v1604, %v1605
      %v1607 = vsel %vm479, %v384, 0.0
      %v1608 = vrot.slane %v1607, 4
      %v1609 = vadd.f32 %v1607, %v1608
      %v1610 = vrot.slane %v1609, 2
      %v1611 = vadd.f32 %v1609, %v1610
      %v1612 = vrot.slane %v1611, 1
      %v1613 = vadd.f32 %v1611, %v1612
      %v1614 = vsel %vm479, %v385, 0.0
      %v1615 = vrot.slane %v1614, 4
      %v1616 = vadd.f32 %v1614, %v1615
      %v1617 = vrot.slane %v1616, 2
      %v1618 = vadd.f32 %v1616, %v1617
      %v1619 = vrot.slane %v1618, 1
      %v1620 = vadd.f32 %v1618, %v1619
      %v1621 = vsel %vm479, %v386, 0.0
      %v1622 = vrot.slane %v1621, 4
      %v1623 = vadd.f32 %v1621, %v1622
      %v1624 = vrot.slane %v1623, 2
      %v1625 = vadd.f32 %v1623, %v1624
      %v1626 = vrot.slane %v1625, 1
      %v1627 = vadd.f32 %v1625, %v1626
      %v1628 = vsel %vm479, %v387, 0.0
      %v1629 = vrot.slane %v1628, 4
      %v1630 = vadd.f32 %v1628, %v1629
      %v1631 = vrot.slane %v1630, 2
      %v1632 = vadd.f32 %v1630, %v1631
      %v1633 = vrot.slane %v1632, 1
      %v1634 = vadd.f32 %v1632, %v1633
      %v1635 = vsel %vm479, %v388, 0.0
      %v1636 = vrot.slane %v1635, 4
      %v1637 = vadd.f32 %v1635, %v1636
      %v1638 = vrot.slane %v1637, 2
      %v1639 = vadd.f32 %v1637, %v1638
      %v1640 = vrot.slane %v1639, 1
      %v1641 = vadd.f32 %v1639, %v1640
      %v1642 = vsel %vm479, %v389, 0.0
      %v1643 = vrot.slane %v1642, 4
      %v1644 = vadd.f32 %v1642, %v1643
      %v1645 = vrot.slane %v1644, 2
      %v1646 = vadd.f32 %v1644, %v1645
      %v1647 = vrot.slane %v1646, 1
      %v1648 = vadd.f32 %v1646, %v1647
      %v1649 = vsel %vm479, %v390, 0.0
      %v1650 = vrot.slane %v1649, 4
      %v1651 = vadd.f32 %v1649, %v1650
      %v1652 = vrot.slane %v1651, 2
      %v1653 = vadd.f32 %v1651, %v1652
      %v1654 = vrot.slane %v1653, 1
      %v1655 = vadd.f32 %v1653, %v1654
      %v1656 = vsel %vm479, %v391, 0.0
      %v1657 = vrot.slane %v1656, 4
      %v1658 = vadd.f32 %v1656, %v1657
      %v1659 = vrot.slane %v1658, 2
      %v1660 = vadd.f32 %v1658, %v1659
      %v1661 = vrot.slane %v1660, 1
      %v1662 = vadd.f32 %v1660, %v1661
      %v1663 = vsel %vm479, %v392, 0.0
      %v1664 = vrot.slane %v1663, 4
      %v1665 = vadd.f32 %v1663, %v1664
      %v1666 = vrot.slane %v1665, 2
      %v1667 = vadd.f32 %v1665, %v1666
      %v1668 = vrot.slane %v1667, 1
      %v1669 = vadd.f32 %v1667, %v1668
      %v1670 = vsel %vm479, %v393, 0.0
      %v1671 = vrot.slane %v1670, 4
      %v1672 = vadd.f32 %v1670, %v1671
      %v1673 = vrot.slane %v1672, 2
      %v1674 = vadd.f32 %v1672, %v1673
      %v1675 = vrot.slane %v1674, 1
      %v1676 = vadd.f32 %v1674, %v1675
      %v1677 = vsel %vm479, %v394, 0.0
      %v1678 = vrot.slane %v1677, 4
      %v1679 = vadd.f32 %v1677, %v1678
      %v1680 = vrot.slane %v1679, 2
      %v1681 = vadd.f32 %v1679, %v1680
      %v1682 = vrot.slane %v1681, 1
      %v1683 = vadd.f32 %v1681, %v1682
      %v1684 = vsel %vm479, %v395, 0.0
      %v1685 = vrot.slane %v1684, 4
      %v1686 = vadd.f32 %v1684, %v1685
      %v1687 = vrot.slane %v1686, 2
      %v1688 = vadd.f32 %v1686, %v1687
      %v1689 = vrot.slane %v1688, 1
      %v1690 = vadd.f32 %v1688, %v1689
      %v1691 = vsel %vm479, %v396, 0.0
      %v1692 = vrot.slane %v1691, 4
      %v1693 = vadd.f32 %v1691, %v1692
      %v1694 = vrot.slane %v1693, 2
      %v1695 = vadd.f32 %v1693, %v1694
      %v1696 = vrot.slane %v1695, 1
      %v1697 = vadd.f32 %v1695, %v1696
      %v1698 = vsel %vm479, %v397, 0.0
      %v1699 = vrot.slane %v1698, 4
      %v1700 = vadd.f32 %v1698, %v1699
      %v1701 = vrot.slane %v1700, 2
      %v1702 = vadd.f32 %v1700, %v1701
      %v1703 = vrot.slane %v1702, 1
      %v1704 = vadd.f32 %v1702, %v1703
      %v1705 = vsel %vm479, %v398, 0.0
      %v1706 = vrot.slane %v1705, 4
      %v1707 = vadd.f32 %v1705, %v1706
      %v1708 = vrot.slane %v1707, 2
      %v1709 = vadd.f32 %v1707, %v1708
      %v1710 = vrot.slane %v1709, 1
      %v1711 = vadd.f32 %v1709, %v1710
      %v1712 = vsel %vm479, %v399, 0.0
      %v1713 = vrot.slane %v1712, 4
      %v1714 = vadd.f32 %v1712, %v1713
      %v1715 = vrot.slane %v1714, 2
      %v1716 = vadd.f32 %v1714, %v1715
      %v1717 = vrot.slane %v1716, 1
      %v1718 = vadd.f32 %v1716, %v1717
      %v1719 = vsel %vm479, %v400, 0.0
      %v1720 = vrot.slane %v1719, 4
      %v1721 = vadd.f32 %v1719, %v1720
      %v1722 = vrot.slane %v1721, 2
      %v1723 = vadd.f32 %v1721, %v1722
      %v1724 = vrot.slane %v1723, 1
      %v1725 = vadd.f32 %v1723, %v1724
      %v1726 = vsel %vm479, %v401, 0.0
      %v1727 = vrot.slane %v1726, 4
      %v1728 = vadd.f32 %v1726, %v1727
      %v1729 = vrot.slane %v1728, 2
      %v1730 = vadd.f32 %v1728, %v1729
      %v1731 = vrot.slane %v1730, 1
      %v1732 = vadd.f32 %v1730, %v1731
      %v1733 = vsel %vm479, %v402, 0.0
      %v1734 = vrot.slane %v1733, 4
      %v1735 = vadd.f32 %v1733, %v1734
      %v1736 = vrot.slane %v1735, 2
      %v1737 = vadd.f32 %v1735, %v1736
      %v1738 = vrot.slane %v1737, 1
      %v1739 = vadd.f32 %v1737, %v1738
      %v1740 = vsel %vm479, %v403, 0.0
      %v1741 = vrot.slane %v1740, 4
      %v1742 = vadd.f32 %v1740, %v1741
      %v1743 = vrot.slane %v1742, 2
      %v1744 = vadd.f32 %v1742, %v1743
      %v1745 = vrot.slane %v1744, 1
      %v1746 = vadd.f32 %v1744, %v1745
      %v1747 = vsel %vm479, %v404, 0.0
      %v1748 = vrot.slane %v1747, 4
      %v1749 = vadd.f32 %v1747, %v1748
      %v1750 = vrot.slane %v1749, 2
      %v1751 = vadd.f32 %v1749, %v1750
      %v1752 = vrot.slane %v1751, 1
      %v1753 = vadd.f32 %v1751, %v1752
      %v1754 = vsel %vm479, %v405, 0.0
      %v1755 = vrot.slane %v1754, 4
      %v1756 = vadd.f32 %v1754, %v1755
      %v1757 = vrot.slane %v1756, 2
      %v1758 = vadd.f32 %v1756, %v1757
      %v1759 = vrot.slane %v1758, 1
      %v1760 = vadd.f32 %v1758, %v1759
      %v1761 = vsel %vm479, %v406, 0.0
      %v1762 = vrot.slane %v1761, 4
      %v1763 = vadd.f32 %v1761, %v1762
      %v1764 = vrot.slane %v1763, 2
      %v1765 = vadd.f32 %v1763, %v1764
      %v1766 = vrot.slane %v1765, 1
      %v1767 = vadd.f32 %v1765, %v1766
      %v1768 = vsel %vm479, %v407, 0.0
      %v1769 = vrot.slane %v1768, 4
      %v1770 = vadd.f32 %v1768, %v1769
      %v1771 = vrot.slane %v1770, 2
      %v1772 = vadd.f32 %v1770, %v1771
      %v1773 = vrot.slane %v1772, 1
      %v1774 = vadd.f32 %v1772, %v1773
      %v1775 = vsel %vm479, %v408, 0.0
      %v1776 = vrot.slane %v1775, 4
      %v1777 = vadd.f32 %v1775, %v1776
      %v1778 = vrot.slane %v1777, 2
      %v1779 = vadd.f32 %v1777, %v1778
      %v1780 = vrot.slane %v1779, 1
      %v1781 = vadd.f32 %v1779, %v1780
      %v1782 = vsel %vm479, %v409, 0.0
      %v1783 = vrot.slane %v1782, 4
      %v1784 = vadd.f32 %v1782, %v1783
      %v1785 = vrot.slane %v1784, 2
      %v1786 = vadd.f32 %v1784, %v1785
      %v1787 = vrot.slane %v1786, 1
      %v1788 = vadd.f32 %v1786, %v1787
      %v1789 = vsel %vm479, %v410, 0.0
      %v1790 = vrot.slane %v1789, 4
      %v1791 = vadd.f32 %v1789, %v1790
      %v1792 = vrot.slane %v1791, 2
      %v1793 = vadd.f32 %v1791, %v1792
      %v1794 = vrot.slane %v1793, 1
      %v1795 = vadd.f32 %v1793, %v1794
      %v1796 = vsel %vm479, %v411, 0.0
      %v1797 = vrot.slane %v1796, 4
      %v1798 = vadd.f32 %v1796, %v1797
      %v1799 = vrot.slane %v1798, 2
      %v1800 = vadd.f32 %v1798, %v1799
      %v1801 = vrot.slane %v1800, 1
      %v1802 = vadd.f32 %v1800, %v1801
      %v1803 = vsel %vm479, %v412, 0.0
      %v1804 = vrot.slane %v1803, 4
      %v1805 = vadd.f32 %v1803, %v1804
      %v1806 = vrot.slane %v1805, 2
      %v1807 = vadd.f32 %v1805, %v1806
      %v1808 = vrot.slane %v1807, 1
      %v1809 = vadd.f32 %v1807, %v1808
      %v1810 = vsel %vm479, %v413, 0.0
      %v1811 = vrot.slane %v1810, 4
      %v1812 = vadd.f32 %v1810, %v1811
      %v1813 = vrot.slane %v1812, 2
      %v1814 = vadd.f32 %v1812, %v1813
      %v1815 = vrot.slane %v1814, 1
      %v1816 = vadd.f32 %v1814, %v1815
      %v1817 = vsel %vm479, %v414, 0.0
      %v1818 = vrot.slane %v1817, 4
      %v1819 = vadd.f32 %v1817, %v1818
      %v1820 = vrot.slane %v1819, 2
      %v1821 = vadd.f32 %v1819, %v1820
      %v1822 = vrot.slane %v1821, 1
      %v1823 = vadd.f32 %v1821, %v1822
      %v1824 = vsel %vm479, %v415, 0.0
      %v1825 = vrot.slane %v1824, 4
      %v1826 = vadd.f32 %v1824, %v1825
      %v1827 = vrot.slane %v1826, 2
      %v1828 = vadd.f32 %v1826, %v1827
      %v1829 = vrot.slane %v1828, 1
      %v1830 = vadd.f32 %v1828, %v1829
      %v1831 = vsel %vm479, %v416, 0.0
      %v1832 = vrot.slane %v1831, 4
      %v1833 = vadd.f32 %v1831, %v1832
      %v1834 = vrot.slane %v1833, 2
      %v1835 = vadd.f32 %v1833, %v1834
      %v1836 = vrot.slane %v1835, 1
      %v1837 = vadd.f32 %v1835, %v1836
      %v1838 = vsel %vm479, %v417, 0.0
      %v1839 = vrot.slane %v1838, 4
      %v1840 = vadd.f32 %v1838, %v1839
      %v1841 = vrot.slane %v1840, 2
      %v1842 = vadd.f32 %v1840, %v1841
      %v1843 = vrot.slane %v1842, 1
      %v1844 = vadd.f32 %v1842, %v1843
      %v1845 = vsel %vm479, %v418, 0.0
      %v1846 = vrot.slane %v1845, 4
      %v1847 = vadd.f32 %v1845, %v1846
      %v1848 = vrot.slane %v1847, 2
      %v1849 = vadd.f32 %v1847, %v1848
      %v1850 = vrot.slane %v1849, 1
      %v1851 = vadd.f32 %v1849, %v1850
      %v1852 = vsel %vm479, %v419, 0.0
      %v1853 = vrot.slane %v1852, 4
      %v1854 = vadd.f32 %v1852, %v1853
      %v1855 = vrot.slane %v1854, 2
      %v1856 = vadd.f32 %v1854, %v1855
      %v1857 = vrot.slane %v1856, 1
      %v1858 = vadd.f32 %v1856, %v1857
      %v1859 = vsel %vm479, %v420, 0.0
      %v1860 = vrot.slane %v1859, 4
      %v1861 = vadd.f32 %v1859, %v1860
      %v1862 = vrot.slane %v1861, 2
      %v1863 = vadd.f32 %v1861, %v1862
      %v1864 = vrot.slane %v1863, 1
      %v1865 = vadd.f32 %v1863, %v1864
      %v1866 = vsel %vm479, %v421, 0.0
      %v1867 = vrot.slane %v1866, 4
      %v1868 = vadd.f32 %v1866, %v1867
      %v1869 = vrot.slane %v1868, 2
      %v1870 = vadd.f32 %v1868, %v1869
      %v1871 = vrot.slane %v1870, 1
      %v1872 = vadd.f32 %v1870, %v1871
      %v1873 = vsel %vm479, %v422, 0.0
      %v1874 = vrot.slane %v1873, 4
      %v1875 = vadd.f32 %v1873, %v1874
      %v1876 = vrot.slane %v1875, 2
      %v1877 = vadd.f32 %v1875, %v1876
      %v1878 = vrot.slane %v1877, 1
      %v1879 = vadd.f32 %v1877, %v1878
      %v1880 = vsel %vm479, %v423, 0.0
      %v1881 = vrot.slane %v1880, 4
      %v1882 = vadd.f32 %v1880, %v1881
      %v1883 = vrot.slane %v1882, 2
      %v1884 = vadd.f32 %v1882, %v1883
      %v1885 = vrot.slane %v1884, 1
      %v1886 = vadd.f32 %v1884, %v1885
      %v1887 = vsel %vm479, %v424, 0.0
      %v1888 = vrot.slane %v1887, 4
      %v1889 = vadd.f32 %v1887, %v1888
      %v1890 = vrot.slane %v1889, 2
      %v1891 = vadd.f32 %v1889, %v1890
      %v1892 = vrot.slane %v1891, 1
      %v1893 = vadd.f32 %v1891, %v1892
      %v1894 = vsel %vm479, %v425, 0.0
      %v1895 = vrot.slane %v1894, 4
      %v1896 = vadd.f32 %v1894, %v1895
      %v1897 = vrot.slane %v1896, 2
      %v1898 = vadd.f32 %v1896, %v1897
      %v1899 = vrot.slane %v1898, 1
      %v1900 = vadd.f32 %v1898, %v1899
      %v1901 = vsel %vm479, %v426, 0.0
      %v1902 = vrot.slane %v1901, 4
      %v1903 = vadd.f32 %v1901, %v1902
      %v1904 = vrot.slane %v1903, 2
      %v1905 = vadd.f32 %v1903, %v1904
      %v1906 = vrot.slane %v1905, 1
      %v1907 = vadd.f32 %v1905, %v1906
      %v1908 = vsel %vm479, %v427, 0.0
      %v1909 = vrot.slane %v1908, 4
      %v1910 = vadd.f32 %v1908, %v1909
      %v1911 = vrot.slane %v1910, 2
      %v1912 = vadd.f32 %v1910, %v1911
      %v1913 = vrot.slane %v1912, 1
      %v1914 = vadd.f32 %v1912, %v1913
      %v1915 = vsel %vm479, %v428, 0.0
      %v1916 = vrot.slane %v1915, 4
      %v1917 = vadd.f32 %v1915, %v1916
      %v1918 = vrot.slane %v1917, 2
      %v1919 = vadd.f32 %v1917, %v1918
      %v1920 = vrot.slane %v1919, 1
      %v1921 = vadd.f32 %v1919, %v1920
      %v1922 = vsel %vm479, %v429, 0.0
      %v1923 = vrot.slane %v1922, 4
      %v1924 = vadd.f32 %v1922, %v1923
      %v1925 = vrot.slane %v1924, 2
      %v1926 = vadd.f32 %v1924, %v1925
      %v1927 = vrot.slane %v1926, 1
      %v1928 = vadd.f32 %v1926, %v1927
      %v1929 = vsel %vm479, %v430, 0.0
      %v1930 = vrot.slane %v1929, 4
      %v1931 = vadd.f32 %v1929, %v1930
      %v1932 = vrot.slane %v1931, 2
      %v1933 = vadd.f32 %v1931, %v1932
      %v1934 = vrot.slane %v1933, 1
      %v1935 = vadd.f32 %v1933, %v1934
      %v1936 = vsel %vm479, %v431, 0.0
      %v1937 = vrot.slane %v1936, 4
      %v1938 = vadd.f32 %v1936, %v1937
      %v1939 = vrot.slane %v1938, 2
      %v1940 = vadd.f32 %v1938, %v1939
      %v1941 = vrot.slane %v1940, 1
      %v1942 = vadd.f32 %v1940, %v1941
      %v1943 = vsel %vm479, %v432, 0.0
      %v1944 = vrot.slane %v1943, 4
      %v1945 = vadd.f32 %v1943, %v1944
      %v1946 = vrot.slane %v1945, 2
      %v1947 = vadd.f32 %v1945, %v1946
      %v1948 = vrot.slane %v1947, 1
      %v1949 = vadd.f32 %v1947, %v1948
      %v1950 = vsel %vm479, %v433, 0.0
      %v1951 = vrot.slane %v1950, 4
      %v1952 = vadd.f32 %v1950, %v1951
      %v1953 = vrot.slane %v1952, 2
      %v1954 = vadd.f32 %v1952, %v1953
      %v1955 = vrot.slane %v1954, 1
      %v1956 = vadd.f32 %v1954, %v1955
      %v1957 = vsel %vm479, %v434, 0.0
      %v1958 = vrot.slane %v1957, 4
      %v1959 = vadd.f32 %v1957, %v1958
      %v1960 = vrot.slane %v1959, 2
      %v1961 = vadd.f32 %v1959, %v1960
      %v1962 = vrot.slane %v1961, 1
      %v1963 = vadd.f32 %v1961, %v1962
      %v1964 = vsel %vm479, %v435, 0.0
      %v1965 = vrot.slane %v1964, 4
      %v1966 = vadd.f32 %v1964, %v1965
      %v1967 = vrot.slane %v1966, 2
      %v1968 = vadd.f32 %v1966, %v1967
      %v1969 = vrot.slane %v1968, 1
      %v1970 = vadd.f32 %v1968, %v1969
      %v1971 = vsel %vm479, %v436, 0.0
      %v1972 = vrot.slane %v1971, 4
      %v1973 = vadd.f32 %v1971, %v1972
      %v1974 = vrot.slane %v1973, 2
      %v1975 = vadd.f32 %v1973, %v1974
      %v1976 = vrot.slane %v1975, 1
      %v1977 = vadd.f32 %v1975, %v1976
      %v1978 = vsel %vm479, %v437, 0.0
      %v1979 = vrot.slane %v1978, 4
      %v1980 = vadd.f32 %v1978, %v1979
      %v1981 = vrot.slane %v1980, 2
      %v1982 = vadd.f32 %v1980, %v1981
      %v1983 = vrot.slane %v1982, 1
      %v1984 = vadd.f32 %v1982, %v1983
      %v1985 = vsel %vm479, %v438, 0.0
      %v1986 = vrot.slane %v1985, 4
      %v1987 = vadd.f32 %v1985, %v1986
      %v1988 = vrot.slane %v1987, 2
      %v1989 = vadd.f32 %v1987, %v1988
      %v1990 = vrot.slane %v1989, 1
      %v1991 = vadd.f32 %v1989, %v1990
      %v1992 = vsel %vm479, %v439, 0.0
      %v1993 = vrot.slane %v1992, 4
      %v1994 = vadd.f32 %v1992, %v1993
      %v1995 = vrot.slane %v1994, 2
      %v1996 = vadd.f32 %v1994, %v1995
      %v1997 = vrot.slane %v1996, 1
      %v1998 = vadd.f32 %v1996, %v1997
      %v1999 = vsel %vm479, %v440, 0.0
      %v2000 = vrot.slane %v1999, 4
      %v2001 = vadd.f32 %v1999, %v2000
      %v2002 = vrot.slane %v2001, 2
      %v2003 = vadd.f32 %v2001, %v2002
      %v2004 = vrot.slane %v2003, 1
      %v2005 = vadd.f32 %v2003, %v2004
      %v2006 = vsel %vm479, %v441, 0.0
      %v2007 = vrot.slane %v2006, 4
      %v2008 = vadd.f32 %v2006, %v2007
      %v2009 = vrot.slane %v2008, 2
      %v2010 = vadd.f32 %v2008, %v2009
      %v2011 = vrot.slane %v2010, 1
      %v2012 = vadd.f32 %v2010, %v2011
      %v2013 = vsel %vm479, %v442, 0.0
      %v2014 = vrot.slane %v2013, 4
      %v2015 = vadd.f32 %v2013, %v2014
      %v2016 = vrot.slane %v2015, 2
      %v2017 = vadd.f32 %v2015, %v2016
      %v2018 = vrot.slane %v2017, 1
      %v2019 = vadd.f32 %v2017, %v2018
      %v2020 = vsel %vm479, %v443, 0.0
      %v2021 = vrot.slane %v2020, 4
      %v2022 = vadd.f32 %v2020, %v2021
      %v2023 = vrot.slane %v2022, 2
      %v2024 = vadd.f32 %v2022, %v2023
      %v2025 = vrot.slane %v2024, 1
      %v2026 = vadd.f32 %v2024, %v2025
      %v2027 = vsel %vm479, %v444, 0.0
      %v2028 = vrot.slane %v2027, 4
      %v2029 = vadd.f32 %v2027, %v2028
      %v2030 = vrot.slane %v2029, 2
      %v2031 = vadd.f32 %v2029, %v2030
      %v2032 = vrot.slane %v2031, 1
      %v2033 = vadd.f32 %v2031, %v2032
      %v2034 = vsel %vm479, %v445, 0.0
      %v2035 = vrot.slane %v2034, 4
      %v2036 = vadd.f32 %v2034, %v2035
      %v2037 = vrot.slane %v2036, 2
      %v2038 = vadd.f32 %v2036, %v2037
      %v2039 = vrot.slane %v2038, 1
      %v2040 = vadd.f32 %v2038, %v2039
      %v2041 = vsel %vm479, %v446, 0.0
      %v2042 = vrot.slane %v2041, 4
      %v2043 = vadd.f32 %v2041, %v2042
      %v2044 = vrot.slane %v2043, 2
      %v2045 = vadd.f32 %v2043, %v2044
      %v2046 = vrot.slane %v2045, 1
      %v2047 = vadd.f32 %v2045, %v2046
      %v2048 = vsel %vm479, %v447, 0.0
      %v2049 = vrot.slane %v2048, 4
      %v2050 = vadd.f32 %v2048, %v2049
      %v2051 = vrot.slane %v2050, 2
      %v2052 = vadd.f32 %v2050, %v2051
      %v2053 = vrot.slane %v2052, 1
      %v2054 = vadd.f32 %v2052, %v2053
      %v2055 = vsel %vm479, %v448, 0.0
      %v2056 = vrot.slane %v2055, 4
      %v2057 = vadd.f32 %v2055, %v2056
      %v2058 = vrot.slane %v2057, 2
      %v2059 = vadd.f32 %v2057, %v2058
      %v2060 = vrot.slane %v2059, 1
      %v2061 = vadd.f32 %v2059, %v2060
      %v2062 = vsel %vm479, %v449, 0.0
      %v2063 = vrot.slane %v2062, 4
      %v2064 = vadd.f32 %v2062, %v2063
      %v2065 = vrot.slane %v2064, 2
      %v2066 = vadd.f32 %v2064, %v2065
      %v2067 = vrot.slane %v2066, 1
      %v2068 = vadd.f32 %v2066, %v2067
      %v2069 = vsel %vm479, %v450, 0.0
      %v2070 = vrot.slane %v2069, 4
      %v2071 = vadd.f32 %v2069, %v2070
      %v2072 = vrot.slane %v2071, 2
      %v2073 = vadd.f32 %v2071, %v2072
      %v2074 = vrot.slane %v2073, 1
      %v2075 = vadd.f32 %v2073, %v2074
      %v2076 = vsel %vm479, %v451, 0.0
      %v2077 = vrot.slane %v2076, 4
      %v2078 = vadd.f32 %v2076, %v2077
      %v2079 = vrot.slane %v2078, 2
      %v2080 = vadd.f32 %v2078, %v2079
      %v2081 = vrot.slane %v2080, 1
      %v2082 = vadd.f32 %v2080, %v2081
      %v2083 = vsel %vm479, %v452, 0.0
      %v2084 = vrot.slane %v2083, 4
      %v2085 = vadd.f32 %v2083, %v2084
      %v2086 = vrot.slane %v2085, 2
      %v2087 = vadd.f32 %v2085, %v2086
      %v2088 = vrot.slane %v2087, 1
      %v2089 = vadd.f32 %v2087, %v2088
      %v2090 = vsel %vm479, %v453, 0.0
      %v2091 = vrot.slane %v2090, 4
      %v2092 = vadd.f32 %v2090, %v2091
      %v2093 = vrot.slane %v2092, 2
      %v2094 = vadd.f32 %v2092, %v2093
      %v2095 = vrot.slane %v2094, 1
      %v2096 = vadd.f32 %v2094, %v2095
      %v2097 = vsel %vm479, %v454, 0.0
      %v2098 = vrot.slane %v2097, 4
      %v2099 = vadd.f32 %v2097, %v2098
      %v2100 = vrot.slane %v2099, 2
      %v2101 = vadd.f32 %v2099, %v2100
      %v2102 = vrot.slane %v2101, 1
      %v2103 = vadd.f32 %v2101, %v2102
      %v2104 = vsel %vm479, %v455, 0.0
      %v2105 = vrot.slane %v2104, 4
      %v2106 = vadd.f32 %v2104, %v2105
      %v2107 = vrot.slane %v2106, 2
      %v2108 = vadd.f32 %v2106, %v2107
      %v2109 = vrot.slane %v2108, 1
      %v2110 = vadd.f32 %v2108, %v2109
      %v2111 = vsel %vm479, %v456, 0.0
      %v2112 = vrot.slane %v2111, 4
      %v2113 = vadd.f32 %v2111, %v2112
      %v2114 = vrot.slane %v2113, 2
      %v2115 = vadd.f32 %v2113, %v2114
      %v2116 = vrot.slane %v2115, 1
      %v2117 = vadd.f32 %v2115, %v2116
      %v2118 = vsel %vm479, %v457, 0.0
      %v2119 = vrot.slane %v2118, 4
      %v2120 = vadd.f32 %v2118, %v2119
      %v2121 = vrot.slane %v2120, 2
      %v2122 = vadd.f32 %v2120, %v2121
      %v2123 = vrot.slane %v2122, 1
      %v2124 = vadd.f32 %v2122, %v2123
      %v2125 = vsel %vm479, %v458, 0.0
      %v2126 = vrot.slane %v2125, 4
      %v2127 = vadd.f32 %v2125, %v2126
      %v2128 = vrot.slane %v2127, 2
      %v2129 = vadd.f32 %v2127, %v2128
      %v2130 = vrot.slane %v2129, 1
      %v2131 = vadd.f32 %v2129, %v2130
      %v2132 = vsel %vm479, %v459, 0.0
      %v2133 = vrot.slane %v2132, 4
      %v2134 = vadd.f32 %v2132, %v2133
      %v2135 = vrot.slane %v2134, 2
      %v2136 = vadd.f32 %v2134, %v2135
      %v2137 = vrot.slane %v2136, 1
      %v2138 = vadd.f32 %v2136, %v2137
      %v2139 = vsel %vm479, %v460, 0.0
      %v2140 = vrot.slane %v2139, 4
      %v2141 = vadd.f32 %v2139, %v2140
      %v2142 = vrot.slane %v2141, 2
      %v2143 = vadd.f32 %v2141, %v2142
      %v2144 = vrot.slane %v2143, 1
      %v2145 = vadd.f32 %v2143, %v2144
      %v2146 = vsel %vm479, %v461, 0.0
      %v2147 = vrot.slane %v2146, 4
      %v2148 = vadd.f32 %v2146, %v2147
      %v2149 = vrot.slane %v2148, 2
      %v2150 = vadd.f32 %v2148, %v2149
      %v2151 = vrot.slane %v2150, 1
      %v2152 = vadd.f32 %v2150, %v2151
      %v2153 = vsel %vm479, %v462, 0.0
      %v2154 = vrot.slane %v2153, 4
      %v2155 = vadd.f32 %v2153, %v2154
      %v2156 = vrot.slane %v2155, 2
      %v2157 = vadd.f32 %v2155, %v2156
      %v2158 = vrot.slane %v2157, 1
      %v2159 = vadd.f32 %v2157, %v2158
      %v2160 = vsel %vm479, %v463, 0.0
      %v2161 = vrot.slane %v2160, 4
      %v2162 = vadd.f32 %v2160, %v2161
      %v2163 = vrot.slane %v2162, 2
      %v2164 = vadd.f32 %v2162, %v2163
      %v2165 = vrot.slane %v2164, 1
      %v2166 = vadd.f32 %v2164, %v2165
      %v2167 = vsel %vm479, %v464, 0.0
      %v2168 = vrot.slane %v2167, 4
      %v2169 = vadd.f32 %v2167, %v2168
      %v2170 = vrot.slane %v2169, 2
      %v2171 = vadd.f32 %v2169, %v2170
      %v2172 = vrot.slane %v2171, 1
      %v2173 = vadd.f32 %v2171, %v2172
      %v2174 = vsel %vm479, %v465, 0.0
      %v2175 = vrot.slane %v2174, 4
      %v2176 = vadd.f32 %v2174, %v2175
      %v2177 = vrot.slane %v2176, 2
      %v2178 = vadd.f32 %v2176, %v2177
      %v2179 = vrot.slane %v2178, 1
      %v2180 = vadd.f32 %v2178, %v2179
      %v2181 = vsel %vm479, %v466, 0.0
      %v2182 = vrot.slane %v2181, 4
      %v2183 = vadd.f32 %v2181, %v2182
      %v2184 = vrot.slane %v2183, 2
      %v2185 = vadd.f32 %v2183, %v2184
      %v2186 = vrot.slane %v2185, 1
      %v2187 = vadd.f32 %v2185, %v2186
      %v2188 = vsel %vm479, %v467, 0.0
      %v2189 = vrot.slane %v2188, 4
      %v2190 = vadd.f32 %v2188, %v2189
      %v2191 = vrot.slane %v2190, 2
      %v2192 = vadd.f32 %v2190, %v2191
      %v2193 = vrot.slane %v2192, 1
      %v2194 = vadd.f32 %v2192, %v2193
      %v2195 = vsel %vm479, %v468, 0.0
      %v2196 = vrot.slane %v2195, 4
      %v2197 = vadd.f32 %v2195, %v2196
      %v2198 = vrot.slane %v2197, 2
      %v2199 = vadd.f32 %v2197, %v2198
      %v2200 = vrot.slane %v2199, 1
      %v2201 = vadd.f32 %v2199, %v2200
      %v2202 = vsel %vm479, %v469, 0.0
      %v2203 = vrot.slane %v2202, 4
      %v2204 = vadd.f32 %v2202, %v2203
      %v2205 = vrot.slane %v2204, 2
      %v2206 = vadd.f32 %v2204, %v2205
      %v2207 = vrot.slane %v2206, 1
      %v2208 = vadd.f32 %v2206, %v2207
      %v2209 = vsel %vm479, %v470, 0.0
      %v2210 = vrot.slane %v2209, 4
      %v2211 = vadd.f32 %v2209, %v2210
      %v2212 = vrot.slane %v2211, 2
      %v2213 = vadd.f32 %v2211, %v2212
      %v2214 = vrot.slane %v2213, 1
      %v2215 = vadd.f32 %v2213, %v2214
      %v2216 = vsel %vm479, %v471, 0.0
      %v2217 = vrot.slane %v2216, 4
      %v2218 = vadd.f32 %v2216, %v2217
      %v2219 = vrot.slane %v2218, 2
      %v2220 = vadd.f32 %v2218, %v2219
      %v2221 = vrot.slane %v2220, 1
      %v2222 = vadd.f32 %v2220, %v2221
      %v2223 = vsel %vm479, %v472, 0.0
      %v2224 = vrot.slane %v2223, 4
      %v2225 = vadd.f32 %v2223, %v2224
      %v2226 = vrot.slane %v2225, 2
      %v2227 = vadd.f32 %v2225, %v2226
      %v2228 = vrot.slane %v2227, 1
      %v2229 = vadd.f32 %v2227, %v2228
      %v2230 = vsel %vm479, %v473, 0.0
      %v2231 = vrot.slane %v2230, 4
      %v2232 = vadd.f32 %v2230, %v2231
      %v2233 = vrot.slane %v2232, 2
      %v2234 = vadd.f32 %v2232, %v2233
      %v2235 = vrot.slane %v2234, 1
      %v2236 = vadd.f32 %v2234, %v2235
      %v2237 = vsel %vm479, %v474, 0.0
      %v2238 = vrot.slane %v2237, 4
      %v2239 = vadd.f32 %v2237, %v2238
      %v2240 = vrot.slane %v2239, 2
      %v2241 = vadd.f32 %v2239, %v2240
      %v2242 = vrot.slane %v2241, 1
      %v2243 = vadd.f32 %v2241, %v2242
      %v2244 = vsel %vm479, %v475, 0.0
      %v2245 = vrot.slane %v2244, 4
      %v2246 = vadd.f32 %v2244, %v2245
      %v2247 = vrot.slane %v2246, 2
      %v2248 = vadd.f32 %v2246, %v2247
      %v2249 = vrot.slane %v2248, 1
      %v2250 = vadd.f32 %v2248, %v2249
      %v2251 = vsel %vm479, %v476, 0.0
      %v2252 = vrot.slane %v2251, 4
      %v2253 = vadd.f32 %v2251, %v2252
      %v2254 = vrot.slane %v2253, 2
      %v2255 = vadd.f32 %v2253, %v2254
      %v2256 = vrot.slane %v2255, 1
      %v2257 = vadd.f32 %v2255, %v2256
      %v2258 = vsel %vm479, %v477, 0.0
      %v2259 = vrot.slane %v2258, 4
      %v2260 = vadd.f32 %v2258, %v2259
      %v2261 = vrot.slane %v2260, 2
      %v2262 = vadd.f32 %v2260, %v2261
      %v2263 = vrot.slane %v2262, 1
      %v2264 = vadd.f32 %v2262, %v2263
      %v2265 = vsel %vm479, %v478, 0.0
      %v2266 = vrot.slane %v2265, 4
      %v2267 = vadd.f32 %v2265, %v2266
      %v2268 = vrot.slane %v2267, 2
      %v2269 = vadd.f32 %v2267, %v2268
      %v2270 = vrot.slane %v2269, 1
      %v2271 = vadd.f32 %v2269, %v2270
      %v2272 = vrcp.pop 4.0
      %v2273 = vmul.f32 4.0, %v2272
      %v2274 = vsub.f32 1.0, %v2273
      %v2275 = vmul.f32 %v2272, %v2274
      %v2276 = vadd.f32 %v2272, %v2275
      %vm2277 = vweird.f32 %v2272
      %v2278 = vsel %vm2277, %v2272, %v2276
      %v2279 = vmul.f32 %v486, %v2278
      %v2280 = vmul.f32 %v493, %v2278
      %v2281 = vmul.f32 %v500, %v2278
      %v2282 = vmul.f32 %v507, %v2278
      %v2283 = vmul.f32 %v514, %v2278
      %v2284 = vmul.f32 %v521, %v2278
      %v2285 = vmul.f32 %v528, %v2278
      %v2286 = vmul.f32 %v535, %v2278
      %v2287 = vmul.f32 %v542, %v2278
      %v2288 = vmul.f32 %v549, %v2278
      %v2289 = vmul.f32 %v556, %v2278
      %v2290 = vmul.f32 %v563, %v2278
      %v2291 = vmul.f32 %v570, %v2278
      %v2292 = vmul.f32 %v577, %v2278
      %v2293 = vmul.f32 %v584, %v2278
      %v2294 = vmul.f32 %v591, %v2278
      %v2295 = vmul.f32 %v598, %v2278
      %v2296 = vmul.f32 %v605, %v2278
      %v2297 = vmul.f32 %v612, %v2278
      %v2298 = vmul.f32 %v619, %v2278
      %v2299 = vmul.f32 %v626, %v2278
      %v2300 = vmul.f32 %v633, %v2278
      %v2301 = vmul.f32 %v640, %v2278
      %v2302 = vmul.f32 %v647, %v2278
      %v2303 = vmul.f32 %v654, %v2278
      %v2304 = vmul.f32 %v661, %v2278
      %v2305 = vmul.f32 %v668, %v2278
      %v2306 = vmul.f32 %v675, %v2278
      %v2307 = vmul.f32 %v682, %v2278
      %v2308 = vmul.f32 %v689, %v2278
      %v2309 = vmul.f32 %v696, %v2278
      %v2310 = vmul.f32 %v703, %v2278
      %v2311 = vmul.f32 %v710, %v2278
      %v2312 = vmul.f32 %v717, %v2278
      %v2313 = vmul.f32 %v724, %v2278
      %v2314 = vmul.f32 %v731, %v2278
      %v2315 = vmul.f32 %v738, %v2278
      %v2316 = vmul.f32 %v745, %v2278
      %v2317 = vmul.f32 %v752, %v2278
      %v2318 = vmul.f32 %v759, %v2278
      %v2319 = vmul.f32 %v766, %v2278
      %v2320 = vmul.f32 %v773, %v2278
      %v2321 = vmul.f32 %v780, %v2278
      %v2322 = vmul.f32 %v787, %v2278
      %v2323 = vmul.f32 %v794, %v2278
      %v2324 = vmul.f32 %v801, %v2278
      %v2325 = vmul.f32 %v808, %v2278
      %v2326 = vmul.f32 %v815, %v2278
      %v2327 = vmul.f32 %v822, %v2278
      %v2328 = vmul.f32 %v829, %v2278
      %v2329 = vmul.f32 %v836, %v2278
      %v2330 = vmul.f32 %v843, %v2278
      %v2331 = vmul.f32 %v850, %v2278
      %v2332 = vmul.f32 %v857, %v2278
      %v2333 = vmul.f32 %v864, %v2278
      %v2334 = vmul.f32 %v871, %v2278
      %v2335 = vmul.f32 %v878, %v2278
      %v2336 = vmul.f32 %v885, %v2278
      %v2337 = vmul.f32 %v892, %v2278
      %v2338 = vmul.f32 %v899, %v2278
      %v2339 = vmul.f32 %v906, %v2278
      %v2340 = vmul.f32 %v913, %v2278
      %v2341 = vmul.f32 %v920, %v2278
      %v2342 = vmul.f32 %v927, %v2278
      %v2343 = vmul.f32 %v934, %v2278
      %v2344 = vmul.f32 %v941, %v2278
      %v2345 = vmul.f32 %v948, %v2278
      %v2346 = vmul.f32 %v955, %v2278
      %v2347 = vmul.f32 %v962, %v2278
      %v2348 = vmul.f32 %v969, %v2278
      %v2349 = vmul.f32 %v976, %v2278
      %v2350 = vmul.f32 %v983, %v2278
      %v2351 = vmul.f32 %v990, %v2278
      %v2352 = vmul.f32 %v997, %v2278
      %v2353 = vmul.f32 %v1004, %v2278
      %v2354 = vmul.f32 %v1011, %v2278
      %v2355 = vmul.f32 %v1018, %v2278
      %v2356 = vmul.f32 %v1025, %v2278
      %v2357 = vmul.f32 %v1032, %v2278
      %v2358 = vmul.f32 %v1039, %v2278
      %v2359 = vmul.f32 %v1046, %v2278
      %v2360 = vmul.f32 %v1053, %v2278
      %v2361 = vmul.f32 %v1060, %v2278
      %v2362 = vmul.f32 %v1067, %v2278
      %v2363 = vmul.f32 %v1074, %v2278
      %v2364 = vmul.f32 %v1081, %v2278
      %v2365 = vmul.f32 %v1088, %v2278
      %v2366 = vmul.f32 %v1095, %v2278
      %v2367 = vmul.f32 %v1102, %v2278
      %v2368 = vmul.f32 %v1109, %v2278
      %v2369 = vmul.f32 %v1116, %v2278
      %v2370 = vmul.f32 %v1123, %v2278
      %v2371 = vmul.f32 %v1130, %v2278
      %v2372 = vmul.f32 %v1137, %v2278
      %v2373 = vmul.f32 %v1144, %v2278
      %v2374 = vmul.f32 %v1151, %v2278
      %v2375 = vmul.f32 %v1158, %v2278
      %v2376 = vmul.f32 %v1165, %v2278
      %v2377 = vmul.f32 %v1172, %v2278
      %v2378 = vmul.f32 %v1179, %v2278
      %v2379 = vmul.f32 %v1186, %v2278
      %v2380 = vmul.f32 %v1193, %v2278
      %v2381 = vmul.f32 %v1200, %v2278
      %v2382 = vmul.f32 %v1207, %v2278
      %v2383 = vmul.f32 %v1214, %v2278
      %v2384 = vmul.f32 %v1221, %v2278
      %v2385 = vmul.f32 %v1228, %v2278
      %v2386 = vmul.f32 %v1235, %v2278
      %v2387 = vmul.f32 %v1242, %v2278
      %v2388 = vmul.f32 %v1249, %v2278
      %v2389 = vmul.f32 %v1256, %v2278
      %v2390 = vmul.f32 %v1263, %v2278
      %v2391 = vmul.f32 %v1270, %v2278
      %v2392 = vmul.f32 %v1277, %v2278
      %v2393 = vmul.f32 %v1284, %v2278
      %v2394 = vmul.f32 %v1291, %v2278
      %v2395 = vmul.f32 %v1298, %v2278
      %v2396 = vmul.f32 %v1305, %v2278
      %v2397 = vmul.f32 %v1312, %v2278
      %v2398 = vmul.f32 %v1319, %v2278
      %v2399 = vmul.f32 %v1326, %v2278
      %v2400 = vmul.f32 %v1333, %v2278
      %v2401 = vmul.f32 %v1340, %v2278
      %v2402 = vmul.f32 %v1347, %v2278
      %v2403 = vmul.f32 %v1354, %v2278
      %v2404 = vmul.f32 %v1361, %v2278
      %v2405 = vmul.f32 %v1368, %v2278
      %v2406 = vmul.f32 %v1375, %v2278
      %v2407 = vmul.f32 %v1382, %v2278
      %v2408 = vmul.f32 %v1389, %v2278
      %v2409 = vmul.f32 %v1396, %v2278
      %v2410 = vmul.f32 %v1403, %v2278
      %v2411 = vmul.f32 %v1410, %v2278
      %v2412 = vmul.f32 %v1417, %v2278
      %v2413 = vmul.f32 %v1424, %v2278
      %v2414 = vmul.f32 %v1431, %v2278
      %v2415 = vmul.f32 %v1438, %v2278
      %v2416 = vmul.f32 %v1445, %v2278
      %v2417 = vmul.f32 %v1452, %v2278
      %v2418 = vmul.f32 %v1459, %v2278
      %v2419 = vmul.f32 %v1466, %v2278
      %v2420 = vmul.f32 %v1473, %v2278
      %v2421 = vmul.f32 %v1480, %v2278
      %v2422 = vmul.f32 %v1487, %v2278
      %v2423 = vmul.f32 %v1494, %v2278
      %v2424 = vmul.f32 %v1501, %v2278
      %v2425 = vmul.f32 %v1508, %v2278
      %v2426 = vmul.f32 %v1515, %v2278
      %v2427 = vmul.f32 %v1522, %v2278
      %v2428 = vmul.f32 %v1529, %v2278
      %v2429 = vmul.f32 %v1536, %v2278
      %v2430 = vmul.f32 %v1543, %v2278
      %v2431 = vmul.f32 %v1550, %v2278
      %v2432 = vmul.f32 %v1557, %v2278
      %v2433 = vmul.f32 %v1564, %v2278
      %v2434 = vmul.f32 %v1571, %v2278
      %v2435 = vmul.f32 %v1578, %v2278
      %v2436 = vmul.f32 %v1585, %v2278
      %v2437 = vmul.f32 %v1592, %v2278
      %v2438 = vmul.f32 %v1599, %v2278
      %v2439 = vmul.f32 %v1606, %v2278
      %v2440 = vmul.f32 %v1613, %v2278
      %v2441 = vmul.f32 %v1620, %v2278
      %v2442 = vmul.f32 %v1627, %v2278
      %v2443 = vmul.f32 %v1634, %v2278
      %v2444 = vmul.f32 %v1641, %v2278
      %v2445 = vmul.f32 %v1648, %v2278
      %v2446 = vmul.f32 %v1655, %v2278
      %v2447 = vmul.f32 %v1662, %v2278
      %v2448 = vmul.f32 %v1669, %v2278
      %v2449 = vmul.f32 %v1676, %v2278
      %v2450 = vmul.f32 %v1683, %v2278
      %v2451 = vmul.f32 %v1690, %v2278
      %v2452 = vmul.f32 %v1697, %v2278
      %v2453 = vmul.f32 %v1704, %v2278
      %v2454 = vmul.f32 %v1711, %v2278
      %v2455 = vmul.f32 %v1718, %v2278
      %v2456 = vmul.f32 %v1725, %v2278
      %v2457 = vmul.f32 %v1732, %v2278
      %v2458 = vmul.f32 %v1739, %v2278
      %v2459 = vmul.f32 %v1746, %v2278
      %v2460 = vmul.f32 %v1753, %v2278
      %v2461 = vmul.f32 %v1760, %v2278
      %v2462 = vmul.f32 %v1767, %v2278
      %v2463 = vmul.f32 %v1774, %v2278
      %v2464 = vmul.f32 %v1781, %v2278
      %v2465 = vmul.f32 %v1788, %v2278
      %v2466 = vmul.f32 %v1795, %v2278
      %v2467 = vmul.f32 %v1802, %v2278
      %v2468 = vmul.f32 %v1809, %v2278
      %v2469 = vmul.f32 %v1816, %v2278
      %v2470 = vmul.f32 %v1823, %v2278
      %v2471 = vmul.f32 %v1830, %v2278
      %v2472 = vmul.f32 %v1837, %v2278
      %v2473 = vmul.f32 %v1844, %v2278
      %v2474 = vmul.f32 %v1851, %v2278
      %v2475 = vmul.f32 %v1858, %v2278
      %v2476 = vmul.f32 %v1865, %v2278
      %v2477 = vmul.f32 %v1872, %v2278
      %v2478 = vmul.f32 %v1879, %v2278
      %v2479 = vmul.f32 %v1886, %v2278
      %v2480 = vmul.f32 %v1893, %v2278
      %v2481 = vmul.f32 %v1900, %v2278
      %v2482 = vmul.f32 %v1907, %v2278
      %v2483 = vmul.f32 %v1914, %v2278
      %v2484 = vmul.f32 %v1921, %v2278
      %v2485 = vmul.f32 %v1928, %v2278
      %v2486 = vmul.f32 %v1935, %v2278
      %v2487 = vmul.f32 %v1942, %v2278
      %v2488 = vmul.f32 %v1949, %v2278
      %v2489 = vmul.f32 %v1956, %v2278
      %v2490 = vmul.f32 %v1963, %v2278
      %v2491 = vmul.f32 %v1970, %v2278
      %v2492 = vmul.f32 %v1977, %v2278
      %v2493 = vmul.f32 %v1984, %v2278
      %v2494 = vmul.f32 %v1991, %v2278
      %v2495 = vmul.f32 %v1998, %v2278
      %v2496 = vmul.f32 %v2005, %v2278
      %v2497 = vmul.f32 %v2012, %v2278
      %v2498 = vmul.f32 %v2019, %v2278
      %v2499 = vmul.f32 %v2026, %v2278
      %v2500 = vmul.f32 %v2033, %v2278
      %v2501 = vmul.f32 %v2040, %v2278
      %v2502 = vmul.f32 %v2047, %v2278
      %v2503 = vmul.f32 %v2054, %v2278
      %v2504 = vmul.f32 %v2061, %v2278
      %v2505 = vmul.f32 %v2068, %v2278
      %v2506 = vmul.f32 %v2075, %v2278
      %v2507 = vmul.f32 %v2082, %v2278
      %v2508 = vmul.f32 %v2089, %v2278
      %v2509 = vmul.f32 %v2096, %v2278
      %v2510 = vmul.f32 %v2103, %v2278
      %v2511 = vmul.f32 %v2110, %v2278
      %v2512 = vmul.f32 %v2117, %v2278
      %v2513 = vmul.f32 %v2124, %v2278
      %v2514 = vmul.f32 %v2131, %v2278
      %v2515 = vmul.f32 %v2138, %v2278
      %v2516 = vmul.f32 %v2145, %v2278
      %v2517 = vmul.f32 %v2152, %v2278
      %v2518 = vmul.f32 %v2159, %v2278
      %v2519 = vmul.f32 %v2166, %v2278
      %v2520 = vmul.f32 %v2173, %v2278
      %v2521 = vmul.f32 %v2180, %v2278
      %v2522 = vmul.f32 %v2187, %v2278
      %v2523 = vmul.f32 %v2194, %v2278
      %v2524 = vmul.f32 %v2201, %v2278
      %v2525 = vmul.f32 %v2208, %v2278
      %v2526 = vmul.f32 %v2215, %v2278
      %v2527 = vmul.f32 %v2222, %v2278
      %v2528 = vmul.f32 %v2229, %v2278
      %v2529 = vmul.f32 %v2236, %v2278
      %v2530 = vmul.f32 %v2243, %v2278
      %v2531 = vmul.f32 %v2250, %v2278
      %v2532 = vmul.f32 %v2257, %v2278
      %v2533 = vmul.f32 %v2264, %v2278
      %v2534 = vmul.f32 %v2271, %v2278
      %v2535 = vld [vmem:[%s2] sm:$0xf]
      %v2536 = vld [vmem:[%s3] sm:$0x1]
      %v2537 = vld [vmem:[%s215] sm:$0xff]
      %v2538 = vld [vmem:[%s215 + $0x8] sm:$0xff]
      %v2539 = vld [vmem:[%s215 + $0x10] sm:$0xff]
      %v2540 = vld [vmem:[%s215 + $0x18] sm:$0xff]
      %v2541 = vld [vmem:[%s215 + $0x20] sm:$0xff]
      %v2542 = vld [vmem:[%s215 + $0x28] sm:$0xff]
      %v2543 = vld [vmem:[%s215 + $0x30] sm:$0xff]
      %v2544 = vld [vmem:[%s215 + $0x38] sm:$0xff]
      %v2545 = vld [vmem:[%s215 + $0x40] sm:$0xff]
      %v2546 = vld [vmem:[%s215 + $0x48] sm:$0xff]
      %v2547 = vld [vmem:[%s215 + $0x50] sm:$0xff]
      %v2548 = vld [vmem:[%s215 + $0x58] sm:$0xff]
      %v2549 = vld [vmem:[%s215 + $0x60] sm:$0xff]
      %v2550 = vld [vmem:[%s215 + $0x68] sm:$0xff]
      %v2551 = vld [vmem:[%s215 + $0x70] sm:$0xff]
      %v2552 = vld [vmem:[%s215 + $0x78] sm:$0xff]
      %v2553 = vld [vmem:[%s215 + $0x80] sm:$0xff]
      %v2554 = vld [vmem:[%s215 + $0x88] sm:$0xff]
      %v2555 = vld [vmem:[%s215 + $0x90] sm:$0xff]
      %v2556 = vld [vmem:[%s215 + $0x98] sm:$0xff]
      %v2557 = vld [vmem:[%s215 + $0xa0] sm:$0xff]
      %v2558 = vld [vmem:[%s215 + $0xa8] sm:$0xff]
      %v2559 = vld [vmem:[%s215 + $0xb0] sm:$0xff]
      %v2560 = vld [vmem:[%s215 + $0xb8] sm:$0xff]
      %v2561 = vld [vmem:[%s215 + $0xc0] sm:$0xff]
      %v2562 = vld [vmem:[%s215 + $0xc8] sm:$0xff]
      %v2563 = vld [vmem:[%s215 + $0xd0] sm:$0xff]
      %v2564 = vld [vmem:[%s215 + $0xd8] sm:$0xff]
      %v2565 = vld [vmem:[%s215 + $0xe0] sm:$0xff]
      %v2566 = vld [vmem:[%s215 + $0xe8] sm:$0xff]
      %v2567 = vld [vmem:[%s215 + $0xf0] sm:$0xff]
      %v2568 = vld [vmem:[%s215 + $0xf8] sm:$0xff]
      %v2569 = vld [vmem:[%s215 + $0x100] sm:$0xff]
      %v2570 = vld [vmem:[%s215 + $0x108] sm:$0xff]
      %v2571 = vld [vmem:[%s215 + $0x110] sm:$0xff]
      %v2572 = vld [vmem:[%s215 + $0x118] sm:$0xff]
      %v2573 = vld [vmem:[%s215 + $0x120] sm:$0xff]
      %v2574 = vld [vmem:[%s215 + $0x128] sm:$0xff]
      %v2575 = vld [vmem:[%s215 + $0x130] sm:$0xff]
      %v2576 = vld [vmem:[%s215 + $0x138] sm:$0xff]
      %v2577 = vld [vmem:[%s215 + $0x140] sm:$0xff]
      %v2578 = vld [vmem:[%s215 + $0x148] sm:$0xff]
      %v2579 = vld [vmem:[%s215 + $0x150] sm:$0xff]
      %v2580 = vld [vmem:[%s215 + $0x158] sm:$0xff]
      %v2581 = vld [vmem:[%s215 + $0x160] sm:$0xff]
      %v2582 = vld [vmem:[%s215 + $0x168] sm:$0xff]
      %v2583 = vld [vmem:[%s215 + $0x170] sm:$0xff]
      %v2584 = vld [vmem:[%s215 + $0x178] sm:$0xff]
      %v2585 = vld [vmem:[%s215 + $0x180] sm:$0xff]
      %v2586 = vld [vmem:[%s215 + $0x188] sm:$0xff]
      %v2587 = vld [vmem:[%s215 + $0x190] sm:$0xff]
      %v2588 = vld [vmem:[%s215 + $0x198] sm:$0xff]
      %v2589 = vld [vmem:[%s215 + $0x1a0] sm:$0xff]
      %v2590 = vld [vmem:[%s215 + $0x1a8] sm:$0xff]
      %v2591 = vld [vmem:[%s215 + $0x1b0] sm:$0xff]
      %v2592 = vld [vmem:[%s215 + $0x1b8] sm:$0xff]
      %v2593 = vld [vmem:[%s215 + $0x1c0] sm:$0xff]
      %v2594 = vld [vmem:[%s215 + $0x1c8] sm:$0xff]
      %v2595 = vld [vmem:[%s215 + $0x1d0] sm:$0xff]
      %v2596 = vld [vmem:[%s215 + $0x1d8] sm:$0xff]
      %v2597 = vld [vmem:[%s215 + $0x1e0] sm:$0xff]
      %v2598 = vld [vmem:[%s215 + $0x1e8] sm:$0xff]
      %v2599 = vld [vmem:[%s215 + $0x1f0] sm:$0xff]
      %v2600 = vld [vmem:[%s215 + $0x1f8] sm:$0xff]
      %v2602 = vperm.slane %v2536, 0
      %vm2604 = vcmask 130048
      %v2606 = vsel %vm2604, %v2537, 0
      %v2609 = vsel %vm2604, %v2538, 0
      %v2612 = vsel %vm2604, %v2539, 0
      %v2615 = vsel %vm2604, %v2540, 0
      %v2618 = vsel %vm2604, %v2541, 0
      %v2621 = vsel %vm2604, %v2542, 0
      %v2624 = vsel %vm2604, %v2543, 0
      %v2627 = vsel %vm2604, %v2544, 0
      %v2630 = vsel %vm2604, %v2545, 0
      %v2633 = vsel %vm2604, %v2546, 0
      %v2636 = vsel %vm2604, %v2547, 0
      %v2639 = vsel %vm2604, %v2548, 0
      %v2642 = vsel %vm2604, %v2549, 0
      %v2645 = vsel %vm2604, %v2550, 0
      %v2648 = vsel %vm2604, %v2551, 0
      %v2651 = vsel %vm2604, %v2552, 0
      %v2654 = vsel %vm2604, %v2553, 0
      %v2657 = vsel %vm2604, %v2554, 0
      %v2660 = vsel %vm2604, %v2555, 0
      %v2663 = vsel %vm2604, %v2556, 0
      %v2666 = vsel %vm2604, %v2557, 0
      %v2669 = vsel %vm2604, %v2558, 0
      %v2672 = vsel %vm2604, %v2559, 0
      %v2675 = vsel %vm2604, %v2560, 0
      %v2678 = vsel %vm2604, %v2561, 0
      %v2681 = vsel %vm2604, %v2562, 0
      %v2684 = vsel %vm2604, %v2563, 0
      %v2687 = vsel %vm2604, %v2564, 0
      %v2690 = vsel %vm2604, %v2565, 0
      %v2693 = vsel %vm2604, %v2566, 0
      %v2696 = vsel %vm2604, %v2567, 0
      %v2699 = vsel %vm2604, %v2568, 0
      %v2702 = vsel %vm2604, %v2569, 0
      %v2705 = vsel %vm2604, %v2570, 0
      %v2708 = vsel %vm2604, %v2571, 0
      %v2711 = vsel %vm2604, %v2572, 0
      %v2714 = vsel %vm2604, %v2573, 0
      %v2717 = vsel %vm2604, %v2574, 0
      %v2720 = vsel %vm2604, %v2575, 0
      %v2723 = vsel %vm2604, %v2576, 0
      %v2726 = vsel %vm2604, %v2577, 0
      %v2729 = vsel %vm2604, %v2578, 0
      %v2732 = vsel %vm2604, %v2579, 0
      %v2735 = vsel %vm2604, %v2580, 0
      %v2738 = vsel %vm2604, %v2581, 0
      %v2741 = vsel %vm2604, %v2582, 0
      %v2744 = vsel %vm2604, %v2583, 0
      %v2747 = vsel %vm2604, %v2584, 0
      %v2750 = vsel %vm2604, %v2585, 0
      %v2753 = vsel %vm2604, %v2586, 0
      %v2756 = vsel %vm2604, %v2587, 0
      %v2759 = vsel %vm2604, %v2588, 0
      %v2762 = vsel %vm2604, %v2589, 0
      %v2765 = vsel %vm2604, %v2590, 0
      %v2768 = vsel %vm2604, %v2591, 0
      %v2771 = vsel %vm2604, %v2592, 0
      %v2774 = vsel %vm2604, %v2593, 0
      %v2777 = vsel %vm2604, %v2594, 0
      %v2780 = vsel %vm2604, %v2595, 0
      %v2783 = vsel %vm2604, %v2596, 0
      %v2786 = vsel %vm2604, %v2597, 0
      %v2789 = vsel %vm2604, %v2598, 0
      %v2792 = vsel %vm2604, %v2599, 0
      %v2795 = vsel %vm2604, %v2600, 0
      %v2798 = vsel %vm2604, %v2535, 0
      %2800 = vmatpush.xpose.msra.mxu0 0.0
      %2801 = vmatpush.xpose.msra.mxu0 0.0
      %2802 = vmatpush.xpose.msra.mxu0 0.0
      %2803 = vmatpush.xpose.msra.mxu0 0.0
      %2804 = vmatpush.xpose.msra.mxu0 0.0
      %2805 = vmatpush.xpose.msra.mxu0 0.0
      %2806 = vmatpush.xpose.msra.mxu0 0.0
      %2807 = vmatpush.xpose.msra.mxu0 0.0
      %2808 = vmatpush.xpose.msra.mxu0 0.0
      %2809 = vmatpush.xpose.msra.mxu0 0.0
      %2810 = vmatpush.xpose.msra.mxu0 0.0
      %2811 = vmatpush.xpose.msra.mxu0 0.0
      %2812 = vmatpush.xpose.msra.mxu0 0.0
      %2813 = vmatpush.xpose.msra.mxu0 0.0
      %2814 = vmatpush.xpose.msra.mxu0 0.0
      %2815 = vmatpush.xpose.msra.mxu0 %v2798
      %2816 = vmatmul.f32.gmra.mxu0 %v2606
      %v2817 = vpop.f32.mrf.mxu0
      %v2818 = vadd.f32 %v2602, %v2817
      %2819 = vmatmul.f32.gmra.mxu0 %v2609
      %v2820 = vpop.f32.mrf.mxu0
      %v2821 = vadd.f32 %v2602, %v2820
      %2822 = vmatmul.f32.gmra.mxu0 %v2612
      %v2823 = vpop.f32.mrf.mxu0
      %v2824 = vadd.f32 %v2602, %v2823
      %2825 = vmatmul.f32.gmra.mxu0 %v2615
      %v2826 = vpop.f32.mrf.mxu0
      %v2827 = vadd.f32 %v2602, %v2826
      %2828 = vmatmul.f32.gmra.mxu0 %v2618
      %v2829 = vpop.f32.mrf.mxu0
      %v2830 = vadd.f32 %v2602, %v2829
      %2831 = vmatmul.f32.gmra.mxu0 %v2621
      %v2832 = vpop.f32.mrf.mxu0
      %v2833 = vadd.f32 %v2602, %v2832
      %2834 = vmatmul.f32.gmra.mxu0 %v2624
      %v2835 = vpop.f32.mrf.mxu0
      %v2836 = vadd.f32 %v2602, %v2835
      %2837 = vmatmul.f32.gmra.mxu0 %v2627
      %v2838 = vpop.f32.mrf.mxu0
      %v2839 = vadd.f32 %v2602, %v2838
      %2840 = vmatmul.f32.gmra.mxu0 %v2630
      %v2841 = vpop.f32.mrf.mxu0
      %v2842 = vadd.f32 %v2602, %v2841
      %2843 = vmatmul.f32.gmra.mxu0 %v2633
      %v2844 = vpop.f32.mrf.mxu0
      %v2845 = vadd.f32 %v2602, %v2844
      %2846 = vmatmul.f32.gmra.mxu0 %v2636
      %v2847 = vpop.f32.mrf.mxu0
      %v2848 = vadd.f32 %v2602, %v2847
      %2849 = vmatmul.f32.gmra.mxu0 %v2639
      %v2850 = vpop.f32.mrf.mxu0
      %v2851 = vadd.f32 %v2602, %v2850
      %2852 = vmatmul.f32.gmra.mxu0 %v2642
      %v2853 = vpop.f32.mrf.mxu0
      %v2854 = vadd.f32 %v2602, %v2853
      %2855 = vmatmul.f32.gmra.mxu0 %v2645
      %v2856 = vpop.f32.mrf.mxu0
      %v2857 = vadd.f32 %v2602, %v2856
      %2858 = vmatmul.f32.gmra.mxu0 %v2648
      %v2859 = vpop.f32.mrf.mxu0
      %v2860 = vadd.f32 %v2602, %v2859
      %2861 = vmatmul.f32.gmra.mxu0 %v2651
      %v2862 = vpop.f32.mrf.mxu0
      %v2863 = vadd.f32 %v2602, %v2862
      %2864 = vmatmul.f32.gmra.mxu0 %v2654
      %v2865 = vpop.f32.mrf.mxu0
      %v2866 = vadd.f32 %v2602, %v2865
      %2867 = vmatmul.f32.gmra.mxu0 %v2657
      %v2868 = vpop.f32.mrf.mxu0
      %v2869 = vadd.f32 %v2602, %v2868
      %2870 = vmatmul.f32.gmra.mxu0 %v2660
      %v2871 = vpop.f32.mrf.mxu0
      %v2872 = vadd.f32 %v2602, %v2871
      %2873 = vmatmul.f32.gmra.mxu0 %v2663
      %v2874 = vpop.f32.mrf.mxu0
      %v2875 = vadd.f32 %v2602, %v2874
      %2876 = vmatmul.f32.gmra.mxu0 %v2666
      %v2877 = vpop.f32.mrf.mxu0
      %v2878 = vadd.f32 %v2602, %v2877
      %2879 = vmatmul.f32.gmra.mxu0 %v2669
      %v2880 = vpop.f32.mrf.mxu0
      %v2881 = vadd.f32 %v2602, %v2880
      %2882 = vmatmul.f32.gmra.mxu0 %v2672
      %v2883 = vpop.f32.mrf.mxu0
      %v2884 = vadd.f32 %v2602, %v2883
      %2885 = vmatmul.f32.gmra.mxu0 %v2675
      %v2886 = vpop.f32.mrf.mxu0
      %v2887 = vadd.f32 %v2602, %v2886
      %2888 = vmatmul.f32.gmra.mxu0 %v2678
      %v2889 = vpop.f32.mrf.mxu0
      %v2890 = vadd.f32 %v2602, %v2889
      %2891 = vmatmul.f32.gmra.mxu0 %v2681
      %v2892 = vpop.f32.mrf.mxu0
      %v2893 = vadd.f32 %v2602, %v2892
      %2894 = vmatmul.f32.gmra.mxu0 %v2684
      %v2895 = vpop.f32.mrf.mxu0
      %v2896 = vadd.f32 %v2602, %v2895
      %2897 = vmatmul.f32.gmra.mxu0 %v2687
      %v2898 = vpop.f32.mrf.mxu0
      %v2899 = vadd.f32 %v2602, %v2898
      %2900 = vmatmul.f32.gmra.mxu0 %v2690
      %v2901 = vpop.f32.mrf.mxu0
      %v2902 = vadd.f32 %v2602, %v2901
      %2903 = vmatmul.f32.gmra.mxu0 %v2693
      %v2904 = vpop.f32.mrf.mxu0
      %v2905 = vadd.f32 %v2602, %v2904
      %2906 = vmatmul.f32.gmra.mxu0 %v2696
      %v2907 = vpop.f32.mrf.mxu0
      %v2908 = vadd.f32 %v2602, %v2907
      %2909 = vmatmul.f32.gmra.mxu0 %v2699
      %v2910 = vpop.f32.mrf.mxu0
      %v2911 = vadd.f32 %v2602, %v2910
      %2912 = vmatmul.f32.gmra.mxu0 %v2702
      %v2913 = vpop.f32.mrf.mxu0
      %v2914 = vadd.f32 %v2602, %v2913
      %2915 = vmatmul.f32.gmra.mxu0 %v2705
      %v2916 = vpop.f32.mrf.mxu0
      %v2917 = vadd.f32 %v2602, %v2916
      %2918 = vmatmul.f32.gmra.mxu0 %v2708
      %v2919 = vpop.f32.mrf.mxu0
      %v2920 = vadd.f32 %v2602, %v2919
      %2921 = vmatmul.f32.gmra.mxu0 %v2711
      %v2922 = vpop.f32.mrf.mxu0
      %v2923 = vadd.f32 %v2602, %v2922
      %2924 = vmatmul.f32.gmra.mxu0 %v2714
      %v2925 = vpop.f32.mrf.mxu0
      %v2926 = vadd.f32 %v2602, %v2925
      %2927 = vmatmul.f32.gmra.mxu0 %v2717
      %v2928 = vpop.f32.mrf.mxu0
      %v2929 = vadd.f32 %v2602, %v2928
      %2930 = vmatmul.f32.gmra.mxu0 %v2720
      %v2931 = vpop.f32.mrf.mxu0
      %v2932 = vadd.f32 %v2602, %v2931
      %2933 = vmatmul.f32.gmra.mxu0 %v2723
      %v2934 = vpop.f32.mrf.mxu0
      %v2935 = vadd.f32 %v2602, %v2934
      %2936 = vmatmul.f32.gmra.mxu0 %v2726
      %v2937 = vpop.f32.mrf.mxu0
      %v2938 = vadd.f32 %v2602, %v2937
      %2939 = vmatmul.f32.gmra.mxu0 %v2729
      %v2940 = vpop.f32.mrf.mxu0
      %v2941 = vadd.f32 %v2602, %v2940
      %2942 = vmatmul.f32.gmra.mxu0 %v2732
      %v2943 = vpop.f32.mrf.mxu0
      %v2944 = vadd.f32 %v2602, %v2943
      %2945 = vmatmul.f32.gmra.mxu0 %v2735
      %v2946 = vpop.f32.mrf.mxu0
      %v2947 = vadd.f32 %v2602, %v2946
      %2948 = vmatmul.f32.gmra.mxu0 %v2738
      %v2949 = vpop.f32.mrf.mxu0
      %v2950 = vadd.f32 %v2602, %v2949
      %2951 = vmatmul.f32.gmra.mxu0 %v2741
      %v2952 = vpop.f32.mrf.mxu0
      %v2953 = vadd.f32 %v2602, %v2952
      %2954 = vmatmul.f32.gmra.mxu0 %v2744
      %v2955 = vpop.f32.mrf.mxu0
      %v2956 = vadd.f32 %v2602, %v2955
      %2957 = vmatmul.f32.gmra.mxu0 %v2747
      %v2958 = vpop.f32.mrf.mxu0
      %v2959 = vadd.f32 %v2602, %v2958
      %2960 = vmatmul.f32.gmra.mxu0 %v2750
      %v2961 = vpop.f32.mrf.mxu0
      %v2962 = vadd.f32 %v2602, %v2961
      %2963 = vmatmul.f32.gmra.mxu0 %v2753
      %v2964 = vpop.f32.mrf.mxu0
      %v2965 = vadd.f32 %v2602, %v2964
      %2966 = vmatmul.f32.gmra.mxu0 %v2756
      %v2967 = vpop.f32.mrf.mxu0
      %v2968 = vadd.f32 %v2602, %v2967
      %2969 = vmatmul.f32.gmra.mxu0 %v2759
      %v2970 = vpop.f32.mrf.mxu0
      %v2971 = vadd.f32 %v2602, %v2970
      %2972 = vmatmul.f32.gmra.mxu0 %v2762
      %v2973 = vpop.f32.mrf.mxu0
      %v2974 = vadd.f32 %v2602, %v2973
      %2975 = vmatmul.f32.gmra.mxu0 %v2765
      %v2976 = vpop.f32.mrf.mxu0
      %v2977 = vadd.f32 %v2602, %v2976
      %2978 = vmatmul.f32.gmra.mxu0 %v2768
      %v2979 = vpop.f32.mrf.mxu0
      %v2980 = vadd.f32 %v2602, %v2979
      %2981 = vmatmul.f32.gmra.mxu0 %v2771
      %v2982 = vpop.f32.mrf.mxu0
      %v2983 = vadd.f32 %v2602, %v2982
      %2984 = vmatmul.f32.gmra.mxu0 %v2774
      %v2985 = vpop.f32.mrf.mxu0
      %v2986 = vadd.f32 %v2602, %v2985
      %2987 = vmatmul.f32.gmra.mxu0 %v2777
      %v2988 = vpop.f32.mrf.mxu0
      %v2989 = vadd.f32 %v2602, %v2988
      %2990 = vmatmul.f32.gmra.mxu0 %v2780
      %v2991 = vpop.f32.mrf.mxu0
      %v2992 = vadd.f32 %v2602, %v2991
      %2993 = vmatmul.f32.gmra.mxu0 %v2783
      %v2994 = vpop.f32.mrf.mxu0
      %v2995 = vadd.f32 %v2602, %v2994
      %2996 = vmatmul.f32.gmra.mxu0 %v2786
      %v2997 = vpop.f32.mrf.mxu0
      %v2998 = vadd.f32 %v2602, %v2997
      %2999 = vmatmul.f32.gmra.mxu0 %v2789
      %v3000 = vpop.f32.mrf.mxu0
      %v3001 = vadd.f32 %v2602, %v3000
      %3002 = vmatmul.f32.gmra.mxu0 %v2792
      %v3003 = vpop.f32.mrf.mxu0
      %v3004 = vadd.f32 %v2602, %v3003
      %3005 = vmatmul.f32.gmra.mxu0 %v2795
      %v3006 = vpop.f32.mrf.mxu0
      %v3007 = vadd.f32 %v2602, %v3006
      %3008 = vdwg.mxu0
      %vm3265 = vcmask 1041409
      %v3266 = vsel %vm3265, %v2280, %v2279
      %vm3267 = vcmask 1042434
      %v3268 = vsel %vm3267, %v2281, %v3266
      %vm3269 = vcmask 1043459
      %v3270 = vsel %vm3269, %v2282, %v3268
      %vm3271 = vcmask 1044484
      %v3272 = vsel %vm3271, %v2283, %v3270
      %vm3273 = vcmask 1045509
      %v3274 = vsel %vm3273, %v2284, %v3272
      %vm3275 = vcmask 1046534
      %v3276 = vsel %vm3275, %v2285, %v3274
      %vm3277 = vcmask 1047559
      %v3278 = vsel %vm3277, %v2286, %v3276
      %v3279 = vsel %vm3265, %v2288, %v2287
      %v3280 = vsel %vm3267, %v2289, %v3279
      %v3281 = vsel %vm3269, %v2290, %v3280
      %v3282 = vsel %vm3271, %v2291, %v3281
      %v3283 = vsel %vm3273, %v2292, %v3282
      %v3284 = vsel %vm3275, %v2293, %v3283
      %v3285 = vsel %vm3277, %v2294, %v3284
      %v3286 = vsel %vm3265, %v2296, %v2295
      %v3287 = vsel %vm3267, %v2297, %v3286
      %v3288 = vsel %vm3269, %v2298, %v3287
      %v3289 = vsel %vm3271, %v2299, %v3288
      %v3290 = vsel %vm3273, %v2300, %v3289
      %v3291 = vsel %vm3275, %v2301, %v3290
      %v3292 = vsel %vm3277, %v2302, %v3291
      %v3293 = vsel %vm3265, %v2304, %v2303
      %v3294 = vsel %vm3267, %v2305, %v3293
      %v3295 = vsel %vm3269, %v2306, %v3294
      %v3296 = vsel %vm3271, %v2307, %v3295
      %v3297 = vsel %vm3273, %v2308, %v3296
      %v3298 = vsel %vm3275, %v2309, %v3297
      %v3299 = vsel %vm3277, %v2310, %v3298
      %v3300 = vsel %vm3265, %v2312, %v2311
      %v3301 = vsel %vm3267, %v2313, %v3300
      %v3302 = vsel %vm3269, %v2314, %v3301
      %v3303 = vsel %vm3271, %v2315, %v3302
      %v3304 = vsel %vm3273, %v2316, %v3303
      %v3305 = vsel %vm3275, %v2317, %v3304
      %v3306 = vsel %vm3277, %v2318, %v3305
      %v3307 = vsel %vm3265, %v2320, %v2319
      %v3308 = vsel %vm3267, %v2321, %v3307
      %v3309 = vsel %vm3269, %v2322, %v3308
      %v3310 = vsel %vm3271, %v2323, %v3309
      %v3311 = vsel %vm3273, %v2324, %v3310
      %v3312 = vsel %vm3275, %v2325, %v3311
      %v3313 = vsel %vm3277, %v2326, %v3312
      %v3314 = vsel %vm3265, %v2328, %v2327
      %v3315 = vsel %vm3267, %v2329, %v3314
      %v3316 = vsel %vm3269, %v2330, %v3315
      %v3317 = vsel %vm3271, %v2331, %v3316
      %v3318 = vsel %vm3273, %v2332, %v3317
      %v3319 = vsel %vm3275, %v2333, %v3318
      %v3320 = vsel %vm3277, %v2334, %v3319
      %v3321 = vsel %vm3265, %v2336, %v2335
      %v3322 = vsel %vm3267, %v2337, %v3321
      %v3323 = vsel %vm3269, %v2338, %v3322
      %v3324 = vsel %vm3271, %v2339, %v3323
      %v3325 = vsel %vm3273, %v2340, %v3324
      %v3326 = vsel %vm3275, %v2341, %v3325
      %v3327 = vsel %vm3277, %v2342, %v3326
      %v3328 = vsel %vm3265, %v2344, %v2343
      %v3329 = vsel %vm3267, %v2345, %v3328
      %v3330 = vsel %vm3269, %v2346, %v3329
      %v3331 = vsel %vm3271, %v2347, %v3330
      %v3332 = vsel %vm3273, %v2348, %v3331
      %v3333 = vsel %vm3275, %v2349, %v3332
      %v3334 = vsel %vm3277, %v2350, %v3333
      %v3335 = vsel %vm3265, %v2352, %v2351
      %v3336 = vsel %vm3267, %v2353, %v3335
      %v3337 = vsel %vm3269, %v2354, %v3336
      %v3338 = vsel %vm3271, %v2355, %v3337
      %v3339 = vsel %vm3273, %v2356, %v3338
      %v3340 = vsel %vm3275, %v2357, %v3339
      %v3341 = vsel %vm3277, %v2358, %v3340
      %v3342 = vsel %vm3265, %v2360, %v2359
      %v3343 = vsel %vm3267, %v2361, %v3342
      %v3344 = vsel %vm3269, %v2362, %v3343
      %v3345 = vsel %vm3271, %v2363, %v3344
      %v3346 = vsel %vm3273, %v2364, %v3345
      %v3347 = vsel %vm3275, %v2365, %v3346
      %v3348 = vsel %vm3277, %v2366, %v3347
      %v3349 = vsel %vm3265, %v2368, %v2367
      %v3350 = vsel %vm3267, %v2369, %v3349
      %v3351 = vsel %vm3269, %v2370, %v3350
      %v3352 = vsel %vm3271, %v2371, %v3351
      %v3353 = vsel %vm3273, %v2372, %v3352
      %v3354 = vsel %vm3275, %v2373, %v3353
      %v3355 = vsel %vm3277, %v2374, %v3354
      %v3356 = vsel %vm3265, %v2376, %v2375
      %v3357 = vsel %vm3267, %v2377, %v3356
      %v3358 = vsel %vm3269, %v2378, %v3357
      %v3359 = vsel %vm3271, %v2379, %v3358
      %v3360 = vsel %vm3273, %v2380, %v3359
      %v3361 = vsel %vm3275, %v2381, %v3360
      %v3362 = vsel %vm3277, %v2382, %v3361
      %v3363 = vsel %vm3265, %v2384, %v2383
      %v3364 = vsel %vm3267, %v2385, %v3363
      %v3365 = vsel %vm3269, %v2386, %v3364
      %v3366 = vsel %vm3271, %v2387, %v3365
      %v3367 = vsel %vm3273, %v2388, %v3366
      %v3368 = vsel %vm3275, %v2389, %v3367
      %v3369 = vsel %vm3277, %v2390, %v3368
      %v3370 = vsel %vm3265, %v2392, %v2391
      %v3371 = vsel %vm3267, %v2393, %v3370
      %v3372 = vsel %vm3269, %v2394, %v3371
      %v3373 = vsel %vm3271, %v2395, %v3372
      %v3374 = vsel %vm3273, %v2396, %v3373
      %v3375 = vsel %vm3275, %v2397, %v3374
      %v3376 = vsel %vm3277, %v2398, %v3375
      %v3377 = vsel %vm3265, %v2400, %v2399
      %v3378 = vsel %vm3267, %v2401, %v3377
      %v3379 = vsel %vm3269, %v2402, %v3378
      %v3380 = vsel %vm3271, %v2403, %v3379
      %v3381 = vsel %vm3273, %v2404, %v3380
      %v3382 = vsel %vm3275, %v2405, %v3381
      %v3383 = vsel %vm3277, %v2406, %v3382
      %v3384 = vsel %vm3265, %v2408, %v2407
      %v3385 = vsel %vm3267, %v2409, %v3384
      %v3386 = vsel %vm3269, %v2410, %v3385
      %v3387 = vsel %vm3271, %v2411, %v3386
      %v3388 = vsel %vm3273, %v2412, %v3387
      %v3389 = vsel %vm3275, %v2413, %v3388
      %v3390 = vsel %vm3277, %v2414, %v3389
      %v3391 = vsel %vm3265, %v2416, %v2415
      %v3392 = vsel %vm3267, %v2417, %v3391
      %v3393 = vsel %vm3269, %v2418, %v3392
      %v3394 = vsel %vm3271, %v2419, %v3393
      %v3395 = vsel %vm3273, %v2420, %v3394
      %v3396 = vsel %vm3275, %v2421, %v3395
      %v3397 = vsel %vm3277, %v2422, %v3396
      %v3398 = vsel %vm3265, %v2424, %v2423
      %v3399 = vsel %vm3267, %v2425, %v3398
      %v3400 = vsel %vm3269, %v2426, %v3399
      %v3401 = vsel %vm3271, %v2427, %v3400
      %v3402 = vsel %vm3273, %v2428, %v3401
      %v3403 = vsel %vm3275, %v2429, %v3402
      %v3404 = vsel %vm3277, %v2430, %v3403
      %v3405 = vsel %vm3265, %v2432, %v2431
      %v3406 = vsel %vm3267, %v2433, %v3405
      %v3407 = vsel %vm3269, %v2434, %v3406
      %v3408 = vsel %vm3271, %v2435, %v3407
      %v3409 = vsel %vm3273, %v2436, %v3408
      %v3410 = vsel %vm3275, %v2437, %v3409
      %v3411 = vsel %vm3277, %v2438, %v3410
      %v3412 = vsel %vm3265, %v2440, %v2439
      %v3413 = vsel %vm3267, %v2441, %v3412
      %v3414 = vsel %vm3269, %v2442, %v3413
      %v3415 = vsel %vm3271, %v2443, %v3414
      %v3416 = vsel %vm3273, %v2444, %v3415
      %v3417 = vsel %vm3275, %v2445, %v3416
      %v3418 = vsel %vm3277, %v2446, %v3417
      %v3419 = vsel %vm3265, %v2448, %v2447
      %v3420 = vsel %vm3267, %v2449, %v3419
      %v3421 = vsel %vm3269, %v2450, %v3420
      %v3422 = vsel %vm3271, %v2451, %v3421
      %v3423 = vsel %vm3273, %v2452, %v3422
      %v3424 = vsel %vm3275, %v2453, %v3423
      %v3425 = vsel %vm3277, %v2454, %v3424
      %v3426 = vsel %vm3265, %v2456, %v2455
      %v3427 = vsel %vm3267, %v2457, %v3426
      %v3428 = vsel %vm3269, %v2458, %v3427
      %v3429 = vsel %vm3271, %v2459, %v3428
      %v3430 = vsel %vm3273, %v2460, %v3429
      %v3431 = vsel %vm3275, %v2461, %v3430
      %v3432 = vsel %vm3277, %v2462, %v3431
      %v3433 = vsel %vm3265, %v2464, %v2463
      %v3434 = vsel %vm3267, %v2465, %v3433
      %v3435 = vsel %vm3269, %v2466, %v3434
      %v3436 = vsel %vm3271, %v2467, %v3435
      %v3437 = vsel %vm3273, %v2468, %v3436
      %v3438 = vsel %vm3275, %v2469, %v3437
      %v3439 = vsel %vm3277, %v2470, %v3438
      %v3440 = vsel %vm3265, %v2472, %v2471
      %v3441 = vsel %vm3267, %v2473, %v3440
      %v3442 = vsel %vm3269, %v2474, %v3441
      %v3443 = vsel %vm3271, %v2475, %v3442
      %v3444 = vsel %vm3273, %v2476, %v3443
      %v3445 = vsel %vm3275, %v2477, %v3444
      %v3446 = vsel %vm3277, %v2478, %v3445
      %v3447 = vsel %vm3265, %v2480, %v2479
      %v3448 = vsel %vm3267, %v2481, %v3447
      %v3449 = vsel %vm3269, %v2482, %v3448
      %v3450 = vsel %vm3271, %v2483, %v3449
      %v3451 = vsel %vm3273, %v2484, %v3450
      %v3452 = vsel %vm3275, %v2485, %v3451
      %v3453 = vsel %vm3277, %v2486, %v3452
      %v3454 = vsel %vm3265, %v2488, %v2487
      %v3455 = vsel %vm3267, %v2489, %v3454
      %v3456 = vsel %vm3269, %v2490, %v3455
      %v3457 = vsel %vm3271, %v2491, %v3456
      %v3458 = vsel %vm3273, %v2492, %v3457
      %v3459 = vsel %vm3275, %v2493, %v3458
      %v3460 = vsel %vm3277, %v2494, %v3459
      %v3461 = vsel %vm3265, %v2496, %v2495
      %v3462 = vsel %vm3267, %v2497, %v3461
      %v3463 = vsel %vm3269, %v2498, %v3462
      %v3464 = vsel %vm3271, %v2499, %v3463
      %v3465 = vsel %vm3273, %v2500, %v3464
      %v3466 = vsel %vm3275, %v2501, %v3465
      %v3467 = vsel %vm3277, %v2502, %v3466
      %v3468 = vsel %vm3265, %v2504, %v2503
      %v3469 = vsel %vm3267, %v2505, %v3468
      %v3470 = vsel %vm3269, %v2506, %v3469
      %v3471 = vsel %vm3271, %v2507, %v3470
      %v3472 = vsel %vm3273, %v2508, %v3471
      %v3473 = vsel %vm3275, %v2509, %v3472
      %v3474 = vsel %vm3277, %v2510, %v3473
      %v3475 = vsel %vm3265, %v2512, %v2511
      %v3476 = vsel %vm3267, %v2513, %v3475
      %v3477 = vsel %vm3269, %v2514, %v3476
      %v3478 = vsel %vm3271, %v2515, %v3477
      %v3479 = vsel %vm3273, %v2516, %v3478
      %v3480 = vsel %vm3275, %v2517, %v3479
      %v3481 = vsel %vm3277, %v2518, %v3480
      %v3482 = vsel %vm3265, %v2520, %v2519
      %v3483 = vsel %vm3267, %v2521, %v3482
      %v3484 = vsel %vm3269, %v2522, %v3483
      %v3485 = vsel %vm3271, %v2523, %v3484
      %v3486 = vsel %vm3273, %v2524, %v3485
      %v3487 = vsel %vm3275, %v2525, %v3486
      %v3488 = vsel %vm3277, %v2526, %v3487
      %v3489 = vsel %vm3265, %v2528, %v2527
      %v3490 = vsel %vm3267, %v2529, %v3489
      %v3491 = vsel %vm3269, %v2530, %v3490
      %v3492 = vsel %vm3271, %v2531, %v3491
      %v3493 = vsel %vm3273, %v2532, %v3492
      %v3494 = vsel %vm3275, %v2533, %v3493
      %v3495 = vsel %vm3277, %v2534, %v3494
      %v3496 = vsel %vm2604, %v3278, 0
      %v3498 = vsel %vm2604, %v3285, 0
      %v3500 = vsel %vm2604, %v3292, 0
      %v3502 = vsel %vm2604, %v3299, 0
      %v3504 = vsel %vm2604, %v3306, 0
      %v3506 = vsel %vm2604, %v3313, 0
      %v3508 = vsel %vm2604, %v3320, 0
      %v3510 = vsel %vm2604, %v3327, 0
      %v3512 = vsel %vm2604, %v3334, 0
      %v3514 = vsel %vm2604, %v3341, 0
      %v3516 = vsel %vm2604, %v3348, 0
      %v3518 = vsel %vm2604, %v3355, 0
      %v3520 = vsel %vm2604, %v3362, 0
      %v3522 = vsel %vm2604, %v3369, 0
      %v3524 = vsel %vm2604, %v3376, 0
      %v3526 = vsel %vm2604, %v3383, 0
      %v3528 = vsel %vm2604, %v3390, 0
      %v3530 = vsel %vm2604, %v3397, 0
      %v3532 = vsel %vm2604, %v3404, 0
      %v3534 = vsel %vm2604, %v3411, 0
      %v3536 = vsel %vm2604, %v3418, 0
      %v3538 = vsel %vm2604, %v3425, 0
      %v3540 = vsel %vm2604, %v3432, 0
      %v3542 = vsel %vm2604, %v3439, 0
      %v3544 = vsel %vm2604, %v3446, 0
      %v3546 = vsel %vm2604, %v3453, 0
      %v3548 = vsel %vm2604, %v3460, 0
      %v3550 = vsel %vm2604, %v3467, 0
      %v3552 = vsel %vm2604, %v3474, 0
      %v3554 = vsel %vm2604, %v3481, 0
      %v3556 = vsel %vm2604, %v3488, 0
      %v3558 = vsel %vm2604, %v3495, 0
      %3560 = vmatpush.xpose.msra.mxu0 0.0
      %3561 = vmatpush.xpose.msra.mxu0 0.0
      %3562 = vmatpush.xpose.msra.mxu0 0.0
      %3563 = vmatpush.xpose.msra.mxu0 0.0
      %3564 = vmatpush.xpose.msra.mxu0 0.0
      %3565 = vmatpush.xpose.msra.mxu0 0.0
      %3566 = vmatpush.xpose.msra.mxu0 0.0
      %3567 = vmatpush.xpose.msra.mxu0 0.0
      %3568 = vmatpush.xpose.msra.mxu0 0.0
      %3569 = vmatpush.xpose.msra.mxu0 0.0
      %3570 = vmatpush.xpose.msra.mxu0 0.0
      %3571 = vmatpush.xpose.msra.mxu0 0.0
      %3572 = vmatpush.xpose.msra.mxu0 0.0
      %3573 = vmatpush.xpose.msra.mxu0 0.0
      %3574 = vmatpush.xpose.msra.mxu0 0.0
      %3575 = vmatpush.xpose.msra.mxu0 %v2798
      %3576 = vmatmul.f32.gmra.mxu0 %v3496
      %v3577 = vpop.f32.mrf.mxu0
      %v3578 = vadd.f32 %v2602, %v3577
      %3579 = vmatmul.f32.gmra.mxu0 %v3498
      %v3580 = vpop.f32.mrf.mxu0
      %v3581 = vadd.f32 %v2602, %v3580
      %3582 = vmatmul.f32.gmra.mxu0 %v3500
      %v3583 = vpop.f32.mrf.mxu0
      %v3584 = vadd.f32 %v2602, %v3583
      %3585 = vmatmul.f32.gmra.mxu0 %v3502
      %v3586 = vpop.f32.mrf.mxu0
      %v3587 = vadd.f32 %v2602, %v3586
      %3588 = vmatmul.f32.gmra.mxu0 %v3504
      %v3589 = vpop.f32.mrf.mxu0
      %v3590 = vadd.f32 %v2602, %v3589
      %3591 = vmatmul.f32.gmra.mxu0 %v3506
      %v3592 = vpop.f32.mrf.mxu0
      %v3593 = vadd.f32 %v2602, %v3592
      %3594 = vmatmul.f32.gmra.mxu0 %v3508
      %v3595 = vpop.f32.mrf.mxu0
      %v3596 = vadd.f32 %v2602, %v3595
      %3597 = vmatmul.f32.gmra.mxu0 %v3510
      %v3598 = vpop.f32.mrf.mxu0
      %v3599 = vadd.f32 %v2602, %v3598
      %3600 = vmatmul.f32.gmra.mxu0 %v3512
      %v3601 = vpop.f32.mrf.mxu0
      %v3602 = vadd.f32 %v2602, %v3601
      %3603 = vmatmul.f32.gmra.mxu0 %v3514
      %v3604 = vpop.f32.mrf.mxu0
      %v3605 = vadd.f32 %v2602, %v3604
      %3606 = vmatmul.f32.gmra.mxu0 %v3516
      %v3607 = vpop.f32.mrf.mxu0
      %v3608 = vadd.f32 %v2602, %v3607
      %3609 = vmatmul.f32.gmra.mxu0 %v3518
      %v3610 = vpop.f32.mrf.mxu0
      %v3611 = vadd.f32 %v2602, %v3610
      %3612 = vmatmul.f32.gmra.mxu0 %v3520
      %v3613 = vpop.f32.mrf.mxu0
      %v3614 = vadd.f32 %v2602, %v3613
      %3615 = vmatmul.f32.gmra.mxu0 %v3522
      %v3616 = vpop.f32.mrf.mxu0
      %v3617 = vadd.f32 %v2602, %v3616
      %3618 = vmatmul.f32.gmra.mxu0 %v3524
      %v3619 = vpop.f32.mrf.mxu0
      %v3620 = vadd.f32 %v2602, %v3619
      %3621 = vmatmul.f32.gmra.mxu0 %v3526
      %v3622 = vpop.f32.mrf.mxu0
      %v3623 = vadd.f32 %v2602, %v3622
      %3624 = vmatmul.f32.gmra.mxu0 %v3528
      %v3625 = vpop.f32.mrf.mxu0
      %v3626 = vadd.f32 %v2602, %v3625
      %3627 = vmatmul.f32.gmra.mxu0 %v3530
      %v3628 = vpop.f32.mrf.mxu0
      %v3629 = vadd.f32 %v2602, %v3628
      %3630 = vmatmul.f32.gmra.mxu0 %v3532
      %v3631 = vpop.f32.mrf.mxu0
      %v3632 = vadd.f32 %v2602, %v3631
      %3633 = vmatmul.f32.gmra.mxu0 %v3534
      %v3634 = vpop.f32.mrf.mxu0
      %v3635 = vadd.f32 %v2602, %v3634
      %3636 = vmatmul.f32.gmra.mxu0 %v3536
      %v3637 = vpop.f32.mrf.mxu0
      %v3638 = vadd.f32 %v2602, %v3637
      %3639 = vmatmul.f32.gmra.mxu0 %v3538
      %v3640 = vpop.f32.mrf.mxu0
      %v3641 = vadd.f32 %v2602, %v3640
      %3642 = vmatmul.f32.gmra.mxu0 %v3540
      %v3643 = vpop.f32.mrf.mxu0
      %v3644 = vadd.f32 %v2602, %v3643
      %3645 = vmatmul.f32.gmra.mxu0 %v3542
      %v3646 = vpop.f32.mrf.mxu0
      %v3647 = vadd.f32 %v2602, %v3646
      %3648 = vmatmul.f32.gmra.mxu0 %v3544
      %v3649 = vpop.f32.mrf.mxu0
      %v3650 = vadd.f32 %v2602, %v3649
      %3651 = vmatmul.f32.gmra.mxu0 %v3546
      %v3652 = vpop.f32.mrf.mxu0
      %v3653 = vadd.f32 %v2602, %v3652
      %3654 = vmatmul.f32.gmra.mxu0 %v3548
      %v3655 = vpop.f32.mrf.mxu0
      %v3656 = vadd.f32 %v2602, %v3655
      %3657 = vmatmul.f32.gmra.mxu0 %v3550
      %v3658 = vpop.f32.mrf.mxu0
      %v3659 = vadd.f32 %v2602, %v3658
      %3660 = vmatmul.f32.gmra.mxu0 %v3552
      %v3661 = vpop.f32.mrf.mxu0
      %v3662 = vadd.f32 %v2602, %v3661
      %3663 = vmatmul.f32.gmra.mxu0 %v3554
      %v3664 = vpop.f32.mrf.mxu0
      %v3665 = vadd.f32 %v2602, %v3664
      %3666 = vmatmul.f32.gmra.mxu0 %v3556
      %v3667 = vpop.f32.mrf.mxu0
      %v3668 = vadd.f32 %v2602, %v3667
      %3669 = vmatmul.f32.gmra.mxu0 %v3558
      %v3670 = vpop.f32.mrf.mxu0
      %v3671 = vadd.f32 %v2602, %v3670
      %3672 = vdwg.mxu0
      %v3673 = vmul.f32 %v2818, %v2818
      %v3674 = vmul.f32 %v2821, %v2821
      %v3675 = vmul.f32 %v2824, %v2824
      %v3676 = vmul.f32 %v2827, %v2827
      %v3677 = vmul.f32 %v2830, %v2830
      %v3678 = vmul.f32 %v2833, %v2833
      %v3679 = vmul.f32 %v2836, %v2836
      %v3680 = vmul.f32 %v2839, %v2839
      %v3681 = vmul.f32 %v2842, %v2842
      %v3682 = vmul.f32 %v2845, %v2845
      %v3683 = vmul.f32 %v2848, %v2848
      %v3684 = vmul.f32 %v2851, %v2851
      %v3685 = vmul.f32 %v2854, %v2854
      %v3686 = vmul.f32 %v2857, %v2857
      %v3687 = vmul.f32 %v2860, %v2860
      %v3688 = vmul.f32 %v2863, %v2863
      %v3689 = vmul.f32 %v2866, %v2866
      %v3690 = vmul.f32 %v2869, %v2869
      %v3691 = vmul.f32 %v2872, %v2872
      %v3692 = vmul.f32 %v2875, %v2875
      %v3693 = vmul.f32 %v2878, %v2878
      %v3694 = vmul.f32 %v2881, %v2881
      %v3695 = vmul.f32 %v2884, %v2884
      %v3696 = vmul.f32 %v2887, %v2887
      %v3697 = vmul.f32 %v2890, %v2890
      %v3698 = vmul.f32 %v2893, %v2893
      %v3699 = vmul.f32 %v2896, %v2896
      %v3700 = vmul.f32 %v2899, %v2899
      %v3701 = vmul.f32 %v2902, %v2902
      %v3702 = vmul.f32 %v2905, %v2905
      %v3703 = vmul.f32 %v2908, %v2908
      %v3704 = vmul.f32 %v2911, %v2911
      %v3705 = vmul.f32 %v2914, %v2914
      %v3706 = vmul.f32 %v2917, %v2917
      %v3707 = vmul.f32 %v2920, %v2920
      %v3708 = vmul.f32 %v2923, %v2923
      %v3709 = vmul.f32 %v2926, %v2926
      %v3710 = vmul.f32 %v2929, %v2929
      %v3711 = vmul.f32 %v2932, %v2932
      %v3712 = vmul.f32 %v2935, %v2935
      %v3713 = vmul.f32 %v2938, %v2938
      %v3714 = vmul.f32 %v2941, %v2941
      %v3715 = vmul.f32 %v2944, %v2944
      %v3716 = vmul.f32 %v2947, %v2947
      %v3717 = vmul.f32 %v2950, %v2950
      %v3718 = vmul.f32 %v2953, %v2953
      %v3719 = vmul.f32 %v2956, %v2956
      %v3720 = vmul.f32 %v2959, %v2959
      %v3721 = vmul.f32 %v2962, %v2962
      %v3722 = vmul.f32 %v2965, %v2965
      %v3723 = vmul.f32 %v2968, %v2968
      %v3724 = vmul.f32 %v2971, %v2971
      %v3725 = vmul.f32 %v2974, %v2974
      %v3726 = vmul.f32 %v2977, %v2977
      %v3727 = vmul.f32 %v2980, %v2980
      %v3728 = vmul.f32 %v2983, %v2983
      %v3729 = vmul.f32 %v2986, %v2986
      %v3730 = vmul.f32 %v2989, %v2989
      %v3731 = vmul.f32 %v2992, %v2992
      %v3732 = vmul.f32 %v2995, %v2995
      %v3733 = vmul.f32 %v2998, %v2998
      %v3734 = vmul.f32 %v3001, %v3001
      %v3735 = vmul.f32 %v3004, %v3004
      %v3736 = vmul.f32 %v3007, %v3007
      %vm3737 = vcmask 31744
      %v3738 = vsel %vm3737, %v3673, 0.0
      %3739 = vadd.xlane.f32.xlu0 %v3738
      %v3740 = vpop.xlane.xlu0 %3739
      %v3741 = vsel %vm3737, %v3674, 0.0
      %3742 = vadd.xlane.f32.xlu0 %v3741
      %v3743 = vpop.xlane.xlu0 %3742
      %v3744 = vsel %vm3737, %v3675, 0.0
      %3745 = vadd.xlane.f32.xlu0 %v3744
      %v3746 = vpop.xlane.xlu0 %3745
      %v3747 = vsel %vm3737, %v3676, 0.0
      %3748 = vadd.xlane.f32.xlu0 %v3747
      %v3749 = vpop.xlane.xlu0 %3748
      %v3750 = vsel %vm3737, %v3677, 0.0
      %3751 = vadd.xlane.f32.xlu0 %v3750
      %v3752 = vpop.xlane.xlu0 %3751
      %v3753 = vsel %vm3737, %v3678, 0.0
      %3754 = vadd.xlane.f32.xlu0 %v3753
      %v3755 = vpop.xlane.xlu0 %3754
      %v3756 = vsel %vm3737, %v3679, 0.0
      %3757 = vadd.xlane.f32.xlu0 %v3756
      %v3758 = vpop.xlane.xlu0 %3757
      %v3759 = vsel %vm3737, %v3680, 0.0
      %3760 = vadd.xlane.f32.xlu0 %v3759
      %v3761 = vpop.xlane.xlu0 %3760
      %v3762 = vsel %vm3737, %v3681, 0.0
      %3763 = vadd.xlane.f32.xlu0 %v3762
      %v3764 = vpop.xlane.xlu0 %3763
      %v3765 = vsel %vm3737, %v3682, 0.0
      %3766 = vadd.xlane.f32.xlu0 %v3765
      %v3767 = vpop.xlane.xlu0 %3766
      %v3768 = vsel %vm3737, %v3683, 0.0
      %3769 = vadd.xlane.f32.xlu0 %v3768
      %v3770 = vpop.xlane.xlu0 %3769
      %v3771 = vsel %vm3737, %v3684, 0.0
      %3772 = vadd.xlane.f32.xlu0 %v3771
      %v3773 = vpop.xlane.xlu0 %3772
      %v3774 = vsel %vm3737, %v3685, 0.0
      %3775 = vadd.xlane.f32.xlu0 %v3774
      %v3776 = vpop.xlane.xlu0 %3775
      %v3777 = vsel %vm3737, %v3686, 0.0
      %3778 = vadd.xlane.f32.xlu0 %v3777
      %v3779 = vpop.xlane.xlu0 %3778
      %v3780 = vsel %vm3737, %v3687, 0.0
      %3781 = vadd.xlane.f32.xlu0 %v3780
      %v3782 = vpop.xlane.xlu0 %3781
      %v3783 = vsel %vm3737, %v3688, 0.0
      %3784 = vadd.xlane.f32.xlu0 %v3783
      %v3785 = vpop.xlane.xlu0 %3784
      %v3786 = vsel %vm3737, %v3689, 0.0
      %3787 = vadd.xlane.f32.xlu0 %v3786
      %v3788 = vpop.xlane.xlu0 %3787
      %v3789 = vsel %vm3737, %v3690, 0.0
      %3790 = vadd.xlane.f32.xlu0 %v3789
      %v3791 = vpop.xlane.xlu0 %3790
      %v3792 = vsel %vm3737, %v3691, 0.0
      %3793 = vadd.xlane.f32.xlu0 %v3792
      %v3794 = vpop.xlane.xlu0 %3793
      %v3795 = vsel %vm3737, %v3692, 0.0
      %3796 = vadd.xlane.f32.xlu0 %v3795
      %v3797 = vpop.xlane.xlu0 %3796
      %v3798 = vsel %vm3737, %v3693, 0.0
      %3799 = vadd.xlane.f32.xlu0 %v3798
      %v3800 = vpop.xlane.xlu0 %3799
      %v3801 = vsel %vm3737, %v3694, 0.0
      %3802 = vadd.xlane.f32.xlu0 %v3801
      %v3803 = vpop.xlane.xlu0 %3802
      %v3804 = vsel %vm3737, %v3695, 0.0
      %3805 = vadd.xlane.f32.xlu0 %v3804
      %v3806 = vpop.xlane.xlu0 %3805
      %v3807 = vsel %vm3737, %v3696, 0.0
      %3808 = vadd.xlane.f32.xlu0 %v3807
      %v3809 = vpop.xlane.xlu0 %3808
      %v3810 = vsel %vm3737, %v3697, 0.0
      %3811 = vadd.xlane.f32.xlu0 %v3810
      %v3812 = vpop.xlane.xlu0 %3811
      %v3813 = vsel %vm3737, %v3698, 0.0
      %3814 = vadd.xlane.f32.xlu0 %v3813
      %v3815 = vpop.xlane.xlu0 %3814
      %v3816 = vsel %vm3737, %v3699, 0.0
      %3817 = vadd.xlane.f32.xlu0 %v3816
      %v3818 = vpop.xlane.xlu0 %3817
      %v3819 = vsel %vm3737, %v3700, 0.0
      %3820 = vadd.xlane.f32.xlu0 %v3819
      %v3821 = vpop.xlane.xlu0 %3820
      %v3822 = vsel %vm3737, %v3701, 0.0
      %3823 = vadd.xlane.f32.xlu0 %v3822
      %v3824 = vpop.xlane.xlu0 %3823
      %v3825 = vsel %vm3737, %v3702, 0.0
      %3826 = vadd.xlane.f32.xlu0 %v3825
      %v3827 = vpop.xlane.xlu0 %3826
      %v3828 = vsel %vm3737, %v3703, 0.0
      %3829 = vadd.xlane.f32.xlu0 %v3828
      %v3830 = vpop.xlane.xlu0 %3829
      %v3831 = vsel %vm3737, %v3704, 0.0
      %3832 = vadd.xlane.f32.xlu0 %v3831
      %v3833 = vpop.xlane.xlu0 %3832
      %v3834 = vsel %vm3737, %v3705, 0.0
      %3835 = vadd.xlane.f32.xlu0 %v3834
      %v3836 = vpop.xlane.xlu0 %3835
      %v3837 = vsel %vm3737, %v3706, 0.0
      %3838 = vadd.xlane.f32.xlu0 %v3837
      %v3839 = vpop.xlane.xlu0 %3838
      %v3840 = vsel %vm3737, %v3707, 0.0
      %3841 = vadd.xlane.f32.xlu0 %v3840
      %v3842 = vpop.xlane.xlu0 %3841
      %v3843 = vsel %vm3737, %v3708, 0.0
      %3844 = vadd.xlane.f32.xlu0 %v3843
      %v3845 = vpop.xlane.xlu0 %3844
      %v3846 = vsel %vm3737, %v3709, 0.0
      %3847 = vadd.xlane.f32.xlu0 %v3846
      %v3848 = vpop.xlane.xlu0 %3847
      %v3849 = vsel %vm3737, %v3710, 0.0
      %3850 = vadd.xlane.f32.xlu0 %v3849
      %v3851 = vpop.xlane.xlu0 %3850
      %v3852 = vsel %vm3737, %v3711, 0.0
      %3853 = vadd.xlane.f32.xlu0 %v3852
      %v3854 = vpop.xlane.xlu0 %3853
      %v3855 = vsel %vm3737, %v3712, 0.0
      %3856 = vadd.xlane.f32.xlu0 %v3855
      %v3857 = vpop.xlane.xlu0 %3856
      %v3858 = vsel %vm3737, %v3713, 0.0
      %3859 = vadd.xlane.f32.xlu0 %v3858
      %v3860 = vpop.xlane.xlu0 %3859
      %v3861 = vsel %vm3737, %v3714, 0.0
      %3862 = vadd.xlane.f32.xlu0 %v3861
      %v3863 = vpop.xlane.xlu0 %3862
      %v3864 = vsel %vm3737, %v3715, 0.0
      %3865 = vadd.xlane.f32.xlu0 %v3864
      %v3866 = vpop.xlane.xlu0 %3865
      %v3867 = vsel %vm3737, %v3716, 0.0
      %3868 = vadd.xlane.f32.xlu0 %v3867
      %v3869 = vpop.xlane.xlu0 %3868
      %v3870 = vsel %vm3737, %v3717, 0.0
      %3871 = vadd.xlane.f32.xlu0 %v3870
      %v3872 = vpop.xlane.xlu0 %3871
      %v3873 = vsel %vm3737, %v3718, 0.0
      %3874 = vadd.xlane.f32.xlu0 %v3873
      %v3875 = vpop.xlane.xlu0 %3874
      %v3876 = vsel %vm3737, %v3719, 0.0
      %3877 = vadd.xlane.f32.xlu0 %v3876
      %v3878 = vpop.xlane.xlu0 %3877
      %v3879 = vsel %vm3737, %v3720, 0.0
      %3880 = vadd.xlane.f32.xlu0 %v3879
      %v3881 = vpop.xlane.xlu0 %3880
      %v3882 = vsel %vm3737, %v3721, 0.0
      %3883 = vadd.xlane.f32.xlu0 %v3882
      %v3884 = vpop.xlane.xlu0 %3883
      %v3885 = vsel %vm3737, %v3722, 0.0
      %3886 = vadd.xlane.f32.xlu0 %v3885
      %v3887 = vpop.xlane.xlu0 %3886
      %v3888 = vsel %vm3737, %v3723, 0.0
      %3889 = vadd.xlane.f32.xlu0 %v3888
      %v3890 = vpop.xlane.xlu0 %3889
      %v3891 = vsel %vm3737, %v3724, 0.0
      %3892 = vadd.xlane.f32.xlu0 %v3891
      %v3893 = vpop.xlane.xlu0 %3892
      %v3894 = vsel %vm3737, %v3725, 0.0
      %3895 = vadd.xlane.f32.xlu0 %v3894
      %v3896 = vpop.xlane.xlu0 %3895
      %v3897 = vsel %vm3737, %v3726, 0.0
      %3898 = vadd.xlane.f32.xlu0 %v3897
      %v3899 = vpop.xlane.xlu0 %3898
      %v3900 = vsel %vm3737, %v3727, 0.0
      %3901 = vadd.xlane.f32.xlu0 %v3900
      %v3902 = vpop.xlane.xlu0 %3901
      %v3903 = vsel %vm3737, %v3728, 0.0
      %3904 = vadd.xlane.f32.xlu0 %v3903
      %v3905 = vpop.xlane.xlu0 %3904
      %v3906 = vsel %vm3737, %v3729, 0.0
      %3907 = vadd.xlane.f32.xlu0 %v3906
      %v3908 = vpop.xlane.xlu0 %3907
      %v3909 = vsel %vm3737, %v3730, 0.0
      %3910 = vadd.xlane.f32.xlu0 %v3909
      %v3911 = vpop.xlane.xlu0 %3910
      %v3912 = vsel %vm3737, %v3731, 0.0
      %3913 = vadd.xlane.f32.xlu0 %v3912
      %v3914 = vpop.xlane.xlu0 %3913
      %v3915 = vsel %vm3737, %v3732, 0.0
      %3916 = vadd.xlane.f32.xlu0 %v3915
      %v3917 = vpop.xlane.xlu0 %3916
      %v3918 = vsel %vm3737, %v3733, 0.0
      %3919 = vadd.xlane.f32.xlu0 %v3918
      %v3920 = vpop.xlane.xlu0 %3919
      %v3921 = vsel %vm3737, %v3734, 0.0
      %3922 = vadd.xlane.f32.xlu0 %v3921
      %v3923 = vpop.xlane.xlu0 %3922
      %v3924 = vsel %vm3737, %v3735, 0.0
      %3925 = vadd.xlane.f32.xlu0 %v3924
      %v3926 = vpop.xlane.xlu0 %3925
      %v3927 = vsel %vm3737, %v3736, 0.0
      %3928 = vadd.xlane.f32.xlu0 %v3927
      %v3929 = vpop.xlane.xlu0 %3928
      %v3930 = vmax.f32 %v3740, 1e-16
      %v3931 = vmax.f32 %v3743, 1e-16
      %v3932 = vmax.f32 %v3746, 1e-16
      %v3933 = vmax.f32 %v3749, 1e-16
      %v3934 = vmax.f32 %v3752, 1e-16
      %v3935 = vmax.f32 %v3755, 1e-16
      %v3936 = vmax.f32 %v3758, 1e-16
      %v3937 = vmax.f32 %v3761, 1e-16
      %v3938 = vmax.f32 %v3764, 1e-16
      %v3939 = vmax.f32 %v3767, 1e-16
      %v3940 = vmax.f32 %v3770, 1e-16
      %v3941 = vmax.f32 %v3773, 1e-16
      %v3942 = vmax.f32 %v3776, 1e-16
      %v3943 = vmax.f32 %v3779, 1e-16
      %v3944 = vmax.f32 %v3782, 1e-16
      %v3945 = vmax.f32 %v3785, 1e-16
      %v3946 = vmax.f32 %v3788, 1e-16
      %v3947 = vmax.f32 %v3791, 1e-16
      %v3948 = vmax.f32 %v3794, 1e-16
      %v3949 = vmax.f32 %v3797, 1e-16
      %v3950 = vmax.f32 %v3800, 1e-16
      %v3951 = vmax.f32 %v3803, 1e-16
      %v3952 = vmax.f32 %v3806, 1e-16
      %v3953 = vmax.f32 %v3809, 1e-16
      %v3954 = vmax.f32 %v3812, 1e-16
      %v3955 = vmax.f32 %v3815, 1e-16
      %v3956 = vmax.f32 %v3818, 1e-16
      %v3957 = vmax.f32 %v3821, 1e-16
      %v3958 = vmax.f32 %v3824, 1e-16
      %v3959 = vmax.f32 %v3827, 1e-16
      %v3960 = vmax.f32 %v3830, 1e-16
      %v3961 = vmax.f32 %v3833, 1e-16
      %v3962 = vmax.f32 %v3836, 1e-16
      %v3963 = vmax.f32 %v3839, 1e-16
      %v3964 = vmax.f32 %v3842, 1e-16
      %v3965 = vmax.f32 %v3845, 1e-16
      %v3966 = vmax.f32 %v3848, 1e-16
      %v3967 = vmax.f32 %v3851, 1e-16
      %v3968 = vmax.f32 %v3854, 1e-16
      %v3969 = vmax.f32 %v3857, 1e-16
      %v3970 = vmax.f32 %v3860, 1e-16
      %v3971 = vmax.f32 %v3863, 1e-16
      %v3972 = vmax.f32 %v3866, 1e-16
      %v3973 = vmax.f32 %v3869, 1e-16
      %v3974 = vmax.f32 %v3872, 1e-16
      %v3975 = vmax.f32 %v3875, 1e-16
      %v3976 = vmax.f32 %v3878, 1e-16
      %v3977 = vmax.f32 %v3881, 1e-16
      %v3978 = vmax.f32 %v3884, 1e-16
      %v3979 = vmax.f32 %v3887, 1e-16
      %v3980 = vmax.f32 %v3890, 1e-16
      %v3981 = vmax.f32 %v3893, 1e-16
      %v3982 = vmax.f32 %v3896, 1e-16
      %v3983 = vmax.f32 %v3899, 1e-16
      %v3984 = vmax.f32 %v3902, 1e-16
      %v3985 = vmax.f32 %v3905, 1e-16
      %v3986 = vmax.f32 %v3908, 1e-16
      %v3987 = vmax.f32 %v3911, 1e-16
      %v3988 = vmax.f32 %v3914, 1e-16
      %v3989 = vmax.f32 %v3917, 1e-16
      %v3990 = vmax.f32 %v3920, 1e-16
      %v3991 = vmax.f32 %v3923, 1e-16
      %v3992 = vmax.f32 %v3926, 1e-16
      %v3993 = vmax.f32 %v3929, 1e-16
      %v3994 = vrsqrt.pop %v3930
      %v3995 = vmul.f32 %v3994, %v3930
      %v3996 = vmul.f32 %v3995, %v3994
      %v3997 = vmul.f32 0.5, %v3996
      %v3998 = vsub.f32 1.5, %v3997
      %v3999 = vmul.f32 %v3994, %v3998
      %vm4000 = vweird.f32 %v3930
      %vm4001 = vweird.f32 %v3994
      %vm4002 = vmor %vm4000, %vm4001
      %v4003 = vsel %vm4002, %v3994, %v3999
      %v4004 = vrsqrt.pop %v3931
      %v4005 = vmul.f32 %v4004, %v3931
      %v4006 = vmul.f32 %v4005, %v4004
      %v4007 = vmul.f32 0.5, %v4006
      %v4008 = vsub.f32 1.5, %v4007
      %v4009 = vmul.f32 %v4004, %v4008
      %vm4010 = vweird.f32 %v3931
      %vm4011 = vweird.f32 %v4004
      %vm4012 = vmor %vm4010, %vm4011
      %v4013 = vsel %vm4012, %v4004, %v4009
      %v4014 = vrsqrt.pop %v3932
      %v4015 = vmul.f32 %v4014, %v3932
      %v4016 = vmul.f32 %v4015, %v4014
      %v4017 = vmul.f32 0.5, %v4016
      %v4018 = vsub.f32 1.5, %v4017
      %v4019 = vmul.f32 %v4014, %v4018
      %vm4020 = vweird.f32 %v3932
      %vm4021 = vweird.f32 %v4014
      %vm4022 = vmor %vm4020, %vm4021
      %v4023 = vsel %vm4022, %v4014, %v4019
      %v4024 = vrsqrt.pop %v3933
      %v4025 = vmul.f32 %v4024, %v3933
      %v4026 = vmul.f32 %v4025, %v4024
      %v4027 = vmul.f32 0.5, %v4026
      %v4028 = vsub.f32 1.5, %v4027
      %v4029 = vmul.f32 %v4024, %v4028
      %vm4030 = vweird.f32 %v3933
      %vm4031 = vweird.f32 %v4024
      %vm4032 = vmor %vm4030, %vm4031
      %v4033 = vsel %vm4032, %v4024, %v4029
      %v4034 = vrsqrt.pop %v3934
      %v4035 = vmul.f32 %v4034, %v3934
      %v4036 = vmul.f32 %v4035, %v4034
      %v4037 = vmul.f32 0.5, %v4036
      %v4038 = vsub.f32 1.5, %v4037
      %v4039 = vmul.f32 %v4034, %v4038
      %vm4040 = vweird.f32 %v3934
      %vm4041 = vweird.f32 %v4034
      %vm4042 = vmor %vm4040, %vm4041
      %v4043 = vsel %vm4042, %v4034, %v4039
      %v4044 = vrsqrt.pop %v3935
      %v4045 = vmul.f32 %v4044, %v3935
      %v4046 = vmul.f32 %v4045, %v4044
      %v4047 = vmul.f32 0.5, %v4046
      %v4048 = vsub.f32 1.5, %v4047
      %v4049 = vmul.f32 %v4044, %v4048
      %vm4050 = vweird.f32 %v3935
      %vm4051 = vweird.f32 %v4044
      %vm4052 = vmor %vm4050, %vm4051
      %v4053 = vsel %vm4052, %v4044, %v4049
      %v4054 = vrsqrt.pop %v3936
      %v4055 = vmul.f32 %v4054, %v3936
      %v4056 = vmul.f32 %v4055, %v4054
      %v4057 = vmul.f32 0.5, %v4056
      %v4058 = vsub.f32 1.5, %v4057
      %v4059 = vmul.f32 %v4054, %v4058
      %vm4060 = vweird.f32 %v3936
      %vm4061 = vweird.f32 %v4054
      %vm4062 = vmor %vm4060, %vm4061
      %v4063 = vsel %vm4062, %v4054, %v4059
      %v4064 = vrsqrt.pop %v3937
      %v4065 = vmul.f32 %v4064, %v3937
      %v4066 = vmul.f32 %v4065, %v4064
      %v4067 = vmul.f32 0.5, %v4066
      %v4068 = vsub.f32 1.5, %v4067
      %v4069 = vmul.f32 %v4064, %v4068
      %vm4070 = vweird.f32 %v3937
      %vm4071 = vweird.f32 %v4064
      %vm4072 = vmor %vm4070, %vm4071
      %v4073 = vsel %vm4072, %v4064, %v4069
      %v4074 = vrsqrt.pop %v3938
      %v4075 = vmul.f32 %v4074, %v3938
      %v4076 = vmul.f32 %v4075, %v4074
      %v4077 = vmul.f32 0.5, %v4076
      %v4078 = vsub.f32 1.5, %v4077
      %v4079 = vmul.f32 %v4074, %v4078
      %vm4080 = vweird.f32 %v3938
      %vm4081 = vweird.f32 %v4074
      %vm4082 = vmor %vm4080, %vm4081
      %v4083 = vsel %vm4082, %v4074, %v4079
      %v4084 = vrsqrt.pop %v3939
      %v4085 = vmul.f32 %v4084, %v3939
      %v4086 = vmul.f32 %v4085, %v4084
      %v4087 = vmul.f32 0.5, %v4086
      %v4088 = vsub.f32 1.5, %v4087
      %v4089 = vmul.f32 %v4084, %v4088
      %vm4090 = vweird.f32 %v3939
      %vm4091 = vweird.f32 %v4084
      %vm4092 = vmor %vm4090, %vm4091
      %v4093 = vsel %vm4092, %v4084, %v4089
      %v4094 = vrsqrt.pop %v3940
      %v4095 = vmul.f32 %v4094, %v3940
      %v4096 = vmul.f32 %v4095, %v4094
      %v4097 = vmul.f32 0.5, %v4096
      %v4098 = vsub.f32 1.5, %v4097
      %v4099 = vmul.f32 %v4094, %v4098
      %vm4100 = vweird.f32 %v3940
      %vm4101 = vweird.f32 %v4094
      %vm4102 = vmor %vm4100, %vm4101
      %v4103 = vsel %vm4102, %v4094, %v4099
      %v4104 = vrsqrt.pop %v3941
      %v4105 = vmul.f32 %v4104, %v3941
      %v4106 = vmul.f32 %v4105, %v4104
      %v4107 = vmul.f32 0.5, %v4106
      %v4108 = vsub.f32 1.5, %v4107
      %v4109 = vmul.f32 %v4104, %v4108
      %vm4110 = vweird.f32 %v3941
      %vm4111 = vweird.f32 %v4104
      %vm4112 = vmor %vm4110, %vm4111
      %v4113 = vsel %vm4112, %v4104, %v4109
      %v4114 = vrsqrt.pop %v3942
      %v4115 = vmul.f32 %v4114, %v3942
      %v4116 = vmul.f32 %v4115, %v4114
      %v4117 = vmul.f32 0.5, %v4116
      %v4118 = vsub.f32 1.5, %v4117
      %v4119 = vmul.f32 %v4114, %v4118
      %vm4120 = vweird.f32 %v3942
      %vm4121 = vweird.f32 %v4114
      %vm4122 = vmor %vm4120, %vm4121
      %v4123 = vsel %vm4122, %v4114, %v4119
      %v4124 = vrsqrt.pop %v3943
      %v4125 = vmul.f32 %v4124, %v3943
      %v4126 = vmul.f32 %v4125, %v4124
      %v4127 = vmul.f32 0.5, %v4126
      %v4128 = vsub.f32 1.5, %v4127
      %v4129 = vmul.f32 %v4124, %v4128
      %vm4130 = vweird.f32 %v3943
      %vm4131 = vweird.f32 %v4124
      %vm4132 = vmor %vm4130, %vm4131
      %v4133 = vsel %vm4132, %v4124, %v4129
      %v4134 = vrsqrt.pop %v3944
      %v4135 = vmul.f32 %v4134, %v3944
      %v4136 = vmul.f32 %v4135, %v4134
      %v4137 = vmul.f32 0.5, %v4136
      %v4138 = vsub.f32 1.5, %v4137
      %v4139 = vmul.f32 %v4134, %v4138
      %vm4140 = vweird.f32 %v3944
      %vm4141 = vweird.f32 %v4134
      %vm4142 = vmor %vm4140, %vm4141
      %v4143 = vsel %vm4142, %v4134, %v4139
      %v4144 = vrsqrt.pop %v3945
      %v4145 = vmul.f32 %v4144, %v3945
      %v4146 = vmul.f32 %v4145, %v4144
      %v4147 = vmul.f32 0.5, %v4146
      %v4148 = vsub.f32 1.5, %v4147
      %v4149 = vmul.f32 %v4144, %v4148
      %vm4150 = vweird.f32 %v3945
      %vm4151 = vweird.f32 %v4144
      %vm4152 = vmor %vm4150, %vm4151
      %v4153 = vsel %vm4152, %v4144, %v4149
      %v4154 = vrsqrt.pop %v3946
      %v4155 = vmul.f32 %v4154, %v3946
      %v4156 = vmul.f32 %v4155, %v4154
      %v4157 = vmul.f32 0.5, %v4156
      %v4158 = vsub.f32 1.5, %v4157
      %v4159 = vmul.f32 %v4154, %v4158
      %vm4160 = vweird.f32 %v3946
      %vm4161 = vweird.f32 %v4154
      %vm4162 = vmor %vm4160, %vm4161
      %v4163 = vsel %vm4162, %v4154, %v4159
      %v4164 = vrsqrt.pop %v3947
      %v4165 = vmul.f32 %v4164, %v3947
      %v4166 = vmul.f32 %v4165, %v4164
      %v4167 = vmul.f32 0.5, %v4166
      %v4168 = vsub.f32 1.5, %v4167
      %v4169 = vmul.f32 %v4164, %v4168
      %vm4170 = vweird.f32 %v3947
      %vm4171 = vweird.f32 %v4164
      %vm4172 = vmor %vm4170, %vm4171
      %v4173 = vsel %vm4172, %v4164, %v4169
      %v4174 = vrsqrt.pop %v3948
      %v4175 = vmul.f32 %v4174, %v3948
      %v4176 = vmul.f32 %v4175, %v4174
      %v4177 = vmul.f32 0.5, %v4176
      %v4178 = vsub.f32 1.5, %v4177
      %v4179 = vmul.f32 %v4174, %v4178
      %vm4180 = vweird.f32 %v3948
      %vm4181 = vweird.f32 %v4174
      %vm4182 = vmor %vm4180, %vm4181
      %v4183 = vsel %vm4182, %v4174, %v4179
      %v4184 = vrsqrt.pop %v3949
      %v4185 = vmul.f32 %v4184, %v3949
      %v4186 = vmul.f32 %v4185, %v4184
      %v4187 = vmul.f32 0.5, %v4186
      %v4188 = vsub.f32 1.5, %v4187
      %v4189 = vmul.f32 %v4184, %v4188
      %vm4190 = vweird.f32 %v3949
      %vm4191 = vweird.f32 %v4184
      %vm4192 = vmor %vm4190, %vm4191
      %v4193 = vsel %vm4192, %v4184, %v4189
      %v4194 = vrsqrt.pop %v3950
      %v4195 = vmul.f32 %v4194, %v3950
      %v4196 = vmul.f32 %v4195, %v4194
      %v4197 = vmul.f32 0.5, %v4196
      %v4198 = vsub.f32 1.5, %v4197
      %v4199 = vmul.f32 %v4194, %v4198
      %vm4200 = vweird.f32 %v3950
      %vm4201 = vweird.f32 %v4194
      %vm4202 = vmor %vm4200, %vm4201
      %v4203 = vsel %vm4202, %v4194, %v4199
      %v4204 = vrsqrt.pop %v3951
      %v4205 = vmul.f32 %v4204, %v3951
      %v4206 = vmul.f32 %v4205, %v4204
      %v4207 = vmul.f32 0.5, %v4206
      %v4208 = vsub.f32 1.5, %v4207
      %v4209 = vmul.f32 %v4204, %v4208
      %vm4210 = vweird.f32 %v3951
      %vm4211 = vweird.f32 %v4204
      %vm4212 = vmor %vm4210, %vm4211
      %v4213 = vsel %vm4212, %v4204, %v4209
      %v4214 = vrsqrt.pop %v3952
      %v4215 = vmul.f32 %v4214, %v3952
      %v4216 = vmul.f32 %v4215, %v4214
      %v4217 = vmul.f32 0.5, %v4216
      %v4218 = vsub.f32 1.5, %v4217
      %v4219 = vmul.f32 %v4214, %v4218
      %vm4220 = vweird.f32 %v3952
      %vm4221 = vweird.f32 %v4214
      %vm4222 = vmor %vm4220, %vm4221
      %v4223 = vsel %vm4222, %v4214, %v4219
      %v4224 = vrsqrt.pop %v3953
      %v4225 = vmul.f32 %v4224, %v3953
      %v4226 = vmul.f32 %v4225, %v4224
      %v4227 = vmul.f32 0.5, %v4226
      %v4228 = vsub.f32 1.5, %v4227
      %v4229 = vmul.f32 %v4224, %v4228
      %vm4230 = vweird.f32 %v3953
      %vm4231 = vweird.f32 %v4224
      %vm4232 = vmor %vm4230, %vm4231
      %v4233 = vsel %vm4232, %v4224, %v4229
      %v4234 = vrsqrt.pop %v3954
      %v4235 = vmul.f32 %v4234, %v3954
      %v4236 = vmul.f32 %v4235, %v4234
      %v4237 = vmul.f32 0.5, %v4236
      %v4238 = vsub.f32 1.5, %v4237
      %v4239 = vmul.f32 %v4234, %v4238
      %vm4240 = vweird.f32 %v3954
      %vm4241 = vweird.f32 %v4234
      %vm4242 = vmor %vm4240, %vm4241
      %v4243 = vsel %vm4242, %v4234, %v4239
      %v4244 = vrsqrt.pop %v3955
      %v4245 = vmul.f32 %v4244, %v3955
      %v4246 = vmul.f32 %v4245, %v4244
      %v4247 = vmul.f32 0.5, %v4246
      %v4248 = vsub.f32 1.5, %v4247
      %v4249 = vmul.f32 %v4244, %v4248
      %vm4250 = vweird.f32 %v3955
      %vm4251 = vweird.f32 %v4244
      %vm4252 = vmor %vm4250, %vm4251
      %v4253 = vsel %vm4252, %v4244, %v4249
      %v4254 = vrsqrt.pop %v3956
      %v4255 = vmul.f32 %v4254, %v3956
      %v4256 = vmul.f32 %v4255, %v4254
      %v4257 = vmul.f32 0.5, %v4256
      %v4258 = vsub.f32 1.5, %v4257
      %v4259 = vmul.f32 %v4254, %v4258
      %vm4260 = vweird.f32 %v3956
      %vm4261 = vweird.f32 %v4254
      %vm4262 = vmor %vm4260, %vm4261
      %v4263 = vsel %vm4262, %v4254, %v4259
      %v4264 = vrsqrt.pop %v3957
      %v4265 = vmul.f32 %v4264, %v3957
      %v4266 = vmul.f32 %v4265, %v4264
      %v4267 = vmul.f32 0.5, %v4266
      %v4268 = vsub.f32 1.5, %v4267
      %v4269 = vmul.f32 %v4264, %v4268
      %vm4270 = vweird.f32 %v3957
      %vm4271 = vweird.f32 %v4264
      %vm4272 = vmor %vm4270, %vm4271
      %v4273 = vsel %vm4272, %v4264, %v4269
      %v4274 = vrsqrt.pop %v3958
      %v4275 = vmul.f32 %v4274, %v3958
      %v4276 = vmul.f32 %v4275, %v4274
      %v4277 = vmul.f32 0.5, %v4276
      %v4278 = vsub.f32 1.5, %v4277
      %v4279 = vmul.f32 %v4274, %v4278
      %vm4280 = vweird.f32 %v3958
      %vm4281 = vweird.f32 %v4274
      %vm4282 = vmor %vm4280, %vm4281
      %v4283 = vsel %vm4282, %v4274, %v4279
      %v4284 = vrsqrt.pop %v3959
      %v4285 = vmul.f32 %v4284, %v3959
      %v4286 = vmul.f32 %v4285, %v4284
      %v4287 = vmul.f32 0.5, %v4286
      %v4288 = vsub.f32 1.5, %v4287
      %v4289 = vmul.f32 %v4284, %v4288
      %vm4290 = vweird.f32 %v3959
      %vm4291 = vweird.f32 %v4284
      %vm4292 = vmor %vm4290, %vm4291
      %v4293 = vsel %vm4292, %v4284, %v4289
      %v4294 = vrsqrt.pop %v3960
      %v4295 = vmul.f32 %v4294, %v3960
      %v4296 = vmul.f32 %v4295, %v4294
      %v4297 = vmul.f32 0.5, %v4296
      %v4298 = vsub.f32 1.5, %v4297
      %v4299 = vmul.f32 %v4294, %v4298
      %vm4300 = vweird.f32 %v3960
      %vm4301 = vweird.f32 %v4294
      %vm4302 = vmor %vm4300, %vm4301
      %v4303 = vsel %vm4302, %v4294, %v4299
      %v4304 = vrsqrt.pop %v3961
      %v4305 = vmul.f32 %v4304, %v3961
      %v4306 = vmul.f32 %v4305, %v4304
      %v4307 = vmul.f32 0.5, %v4306
      %v4308 = vsub.f32 1.5, %v4307
      %v4309 = vmul.f32 %v4304, %v4308
      %vm4310 = vweird.f32 %v3961
      %vm4311 = vweird.f32 %v4304
      %vm4312 = vmor %vm4310, %vm4311
      %v4313 = vsel %vm4312, %v4304, %v4309
      %v4314 = vrsqrt.pop %v3962
      %v4315 = vmul.f32 %v4314, %v3962
      %v4316 = vmul.f32 %v4315, %v4314
      %v4317 = vmul.f32 0.5, %v4316
      %v4318 = vsub.f32 1.5, %v4317
      %v4319 = vmul.f32 %v4314, %v4318
      %vm4320 = vweird.f32 %v3962
      %vm4321 = vweird.f32 %v4314
      %vm4322 = vmor %vm4320, %vm4321
      %v4323 = vsel %vm4322, %v4314, %v4319
      %v4324 = vrsqrt.pop %v3963
      %v4325 = vmul.f32 %v4324, %v3963
      %v4326 = vmul.f32 %v4325, %v4324
      %v4327 = vmul.f32 0.5, %v4326
      %v4328 = vsub.f32 1.5, %v4327
      %v4329 = vmul.f32 %v4324, %v4328
      %vm4330 = vweird.f32 %v3963
      %vm4331 = vweird.f32 %v4324
      %vm4332 = vmor %vm4330, %vm4331
      %v4333 = vsel %vm4332, %v4324, %v4329
      %v4334 = vrsqrt.pop %v3964
      %v4335 = vmul.f32 %v4334, %v3964
      %v4336 = vmul.f32 %v4335, %v4334
      %v4337 = vmul.f32 0.5, %v4336
      %v4338 = vsub.f32 1.5, %v4337
      %v4339 = vmul.f32 %v4334, %v4338
      %vm4340 = vweird.f32 %v3964
      %vm4341 = vweird.f32 %v4334
      %vm4342 = vmor %vm4340, %vm4341
      %v4343 = vsel %vm4342, %v4334, %v4339
      %v4344 = vrsqrt.pop %v3965
      %v4345 = vmul.f32 %v4344, %v3965
      %v4346 = vmul.f32 %v4345, %v4344
      %v4347 = vmul.f32 0.5, %v4346
      %v4348 = vsub.f32 1.5, %v4347
      %v4349 = vmul.f32 %v4344, %v4348
      %vm4350 = vweird.f32 %v3965
      %vm4351 = vweird.f32 %v4344
      %vm4352 = vmor %vm4350, %vm4351
      %v4353 = vsel %vm4352, %v4344, %v4349
      %v4354 = vrsqrt.pop %v3966
      %v4355 = vmul.f32 %v4354, %v3966
      %v4356 = vmul.f32 %v4355, %v4354
      %v4357 = vmul.f32 0.5, %v4356
      %v4358 = vsub.f32 1.5, %v4357
      %v4359 = vmul.f32 %v4354, %v4358
      %vm4360 = vweird.f32 %v3966
      %vm4361 = vweird.f32 %v4354
      %vm4362 = vmor %vm4360, %vm4361
      %v4363 = vsel %vm4362, %v4354, %v4359
      %v4364 = vrsqrt.pop %v3967
      %v4365 = vmul.f32 %v4364, %v3967
      %v4366 = vmul.f32 %v4365, %v4364
      %v4367 = vmul.f32 0.5, %v4366
      %v4368 = vsub.f32 1.5, %v4367
      %v4369 = vmul.f32 %v4364, %v4368
      %vm4370 = vweird.f32 %v3967
      %vm4371 = vweird.f32 %v4364
      %vm4372 = vmor %vm4370, %vm4371
      %v4373 = vsel %vm4372, %v4364, %v4369
      %v4374 = vrsqrt.pop %v3968
      %v4375 = vmul.f32 %v4374, %v3968
      %v4376 = vmul.f32 %v4375, %v4374
      %v4377 = vmul.f32 0.5, %v4376
      %v4378 = vsub.f32 1.5, %v4377
      %v4379 = vmul.f32 %v4374, %v4378
      %vm4380 = vweird.f32 %v3968
      %vm4381 = vweird.f32 %v4374
      %vm4382 = vmor %vm4380, %vm4381
      %v4383 = vsel %vm4382, %v4374, %v4379
      %v4384 = vrsqrt.pop %v3969
      %v4385 = vmul.f32 %v4384, %v3969
      %v4386 = vmul.f32 %v4385, %v4384
      %v4387 = vmul.f32 0.5, %v4386
      %v4388 = vsub.f32 1.5, %v4387
      %v4389 = vmul.f32 %v4384, %v4388
      %vm4390 = vweird.f32 %v3969
      %vm4391 = vweird.f32 %v4384
      %vm4392 = vmor %vm4390, %vm4391
      %v4393 = vsel %vm4392, %v4384, %v4389
      %v4394 = vrsqrt.pop %v3970
      %v4395 = vmul.f32 %v4394, %v3970
      %v4396 = vmul.f32 %v4395, %v4394
      %v4397 = vmul.f32 0.5, %v4396
      %v4398 = vsub.f32 1.5, %v4397
      %v4399 = vmul.f32 %v4394, %v4398
      %vm4400 = vweird.f32 %v3970
      %vm4401 = vweird.f32 %v4394
      %vm4402 = vmor %vm4400, %vm4401
      %v4403 = vsel %vm4402, %v4394, %v4399
      %v4404 = vrsqrt.pop %v3971
      %v4405 = vmul.f32 %v4404, %v3971
      %v4406 = vmul.f32 %v4405, %v4404
      %v4407 = vmul.f32 0.5, %v4406
      %v4408 = vsub.f32 1.5, %v4407
      %v4409 = vmul.f32 %v4404, %v4408
      %vm4410 = vweird.f32 %v3971
      %vm4411 = vweird.f32 %v4404
      %vm4412 = vmor %vm4410, %vm4411
      %v4413 = vsel %vm4412, %v4404, %v4409
      %v4414 = vrsqrt.pop %v3972
      %v4415 = vmul.f32 %v4414, %v3972
      %v4416 = vmul.f32 %v4415, %v4414
      %v4417 = vmul.f32 0.5, %v4416
      %v4418 = vsub.f32 1.5, %v4417
      %v4419 = vmul.f32 %v4414, %v4418
      %vm4420 = vweird.f32 %v3972
      %vm4421 = vweird.f32 %v4414
      %vm4422 = vmor %vm4420, %vm4421
      %v4423 = vsel %vm4422, %v4414, %v4419
      %v4424 = vrsqrt.pop %v3973
      %v4425 = vmul.f32 %v4424, %v3973
      %v4426 = vmul.f32 %v4425, %v4424
      %v4427 = vmul.f32 0.5, %v4426
      %v4428 = vsub.f32 1.5, %v4427
      %v4429 = vmul.f32 %v4424, %v4428
      %vm4430 = vweird.f32 %v3973
      %vm4431 = vweird.f32 %v4424
      %vm4432 = vmor %vm4430, %vm4431
      %v4433 = vsel %vm4432, %v4424, %v4429
      %v4434 = vrsqrt.pop %v3974
      %v4435 = vmul.f32 %v4434, %v3974
      %v4436 = vmul.f32 %v4435, %v4434
      %v4437 = vmul.f32 0.5, %v4436
      %v4438 = vsub.f32 1.5, %v4437
      %v4439 = vmul.f32 %v4434, %v4438
      %vm4440 = vweird.f32 %v3974
      %vm4441 = vweird.f32 %v4434
      %vm4442 = vmor %vm4440, %vm4441
      %v4443 = vsel %vm4442, %v4434, %v4439
      %v4444 = vrsqrt.pop %v3975
      %v4445 = vmul.f32 %v4444, %v3975
      %v4446 = vmul.f32 %v4445, %v4444
      %v4447 = vmul.f32 0.5, %v4446
      %v4448 = vsub.f32 1.5, %v4447
      %v4449 = vmul.f32 %v4444, %v4448
      %vm4450 = vweird.f32 %v3975
      %vm4451 = vweird.f32 %v4444
      %vm4452 = vmor %vm4450, %vm4451
      %v4453 = vsel %vm4452, %v4444, %v4449
      %v4454 = vrsqrt.pop %v3976
      %v4455 = vmul.f32 %v4454, %v3976
      %v4456 = vmul.f32 %v4455, %v4454
      %v4457 = vmul.f32 0.5, %v4456
      %v4458 = vsub.f32 1.5, %v4457
      %v4459 = vmul.f32 %v4454, %v4458
      %vm4460 = vweird.f32 %v3976
      %vm4461 = vweird.f32 %v4454
      %vm4462 = vmor %vm4460, %vm4461
      %v4463 = vsel %vm4462, %v4454, %v4459
      %v4464 = vrsqrt.pop %v3977
      %v4465 = vmul.f32 %v4464, %v3977
      %v4466 = vmul.f32 %v4465, %v4464
      %v4467 = vmul.f32 0.5, %v4466
      %v4468 = vsub.f32 1.5, %v4467
      %v4469 = vmul.f32 %v4464, %v4468
      %vm4470 = vweird.f32 %v3977
      %vm4471 = vweird.f32 %v4464
      %vm4472 = vmor %vm4470, %vm4471
      %v4473 = vsel %vm4472, %v4464, %v4469
      %v4474 = vrsqrt.pop %v3978
      %v4475 = vmul.f32 %v4474, %v3978
      %v4476 = vmul.f32 %v4475, %v4474
      %v4477 = vmul.f32 0.5, %v4476
      %v4478 = vsub.f32 1.5, %v4477
      %v4479 = vmul.f32 %v4474, %v4478
      %vm4480 = vweird.f32 %v3978
      %vm4481 = vweird.f32 %v4474
      %vm4482 = vmor %vm4480, %vm4481
      %v4483 = vsel %vm4482, %v4474, %v4479
      %v4484 = vrsqrt.pop %v3979
      %v4485 = vmul.f32 %v4484, %v3979
      %v4486 = vmul.f32 %v4485, %v4484
      %v4487 = vmul.f32 0.5, %v4486
      %v4488 = vsub.f32 1.5, %v4487
      %v4489 = vmul.f32 %v4484, %v4488
      %vm4490 = vweird.f32 %v3979
      %vm4491 = vweird.f32 %v4484
      %vm4492 = vmor %vm4490, %vm4491
      %v4493 = vsel %vm4492, %v4484, %v4489
      %v4494 = vrsqrt.pop %v3980
      %v4495 = vmul.f32 %v4494, %v3980
      %v4496 = vmul.f32 %v4495, %v4494
      %v4497 = vmul.f32 0.5, %v4496
      %v4498 = vsub.f32 1.5, %v4497
      %v4499 = vmul.f32 %v4494, %v4498
      %vm4500 = vweird.f32 %v3980
      %vm4501 = vweird.f32 %v4494
      %vm4502 = vmor %vm4500, %vm4501
      %v4503 = vsel %vm4502, %v4494, %v4499
      %v4504 = vrsqrt.pop %v3981
      %v4505 = vmul.f32 %v4504, %v3981
      %v4506 = vmul.f32 %v4505, %v4504
      %v4507 = vmul.f32 0.5, %v4506
      %v4508 = vsub.f32 1.5, %v4507
      %v4509 = vmul.f32 %v4504, %v4508
      %vm4510 = vweird.f32 %v3981
      %vm4511 = vweird.f32 %v4504
      %vm4512 = vmor %vm4510, %vm4511
      %v4513 = vsel %vm4512, %v4504, %v4509
      %v4514 = vrsqrt.pop %v3982
      %v4515 = vmul.f32 %v4514, %v3982
      %v4516 = vmul.f32 %v4515, %v4514
      %v4517 = vmul.f32 0.5, %v4516
      %v4518 = vsub.f32 1.5, %v4517
      %v4519 = vmul.f32 %v4514, %v4518
      %vm4520 = vweird.f32 %v3982
      %vm4521 = vweird.f32 %v4514
      %vm4522 = vmor %vm4520, %vm4521
      %v4523 = vsel %vm4522, %v4514, %v4519
      %v4524 = vrsqrt.pop %v3983
      %v4525 = vmul.f32 %v4524, %v3983
      %v4526 = vmul.f32 %v4525, %v4524
      %v4527 = vmul.f32 0.5, %v4526
      %v4528 = vsub.f32 1.5, %v4527
      %v4529 = vmul.f32 %v4524, %v4528
      %vm4530 = vweird.f32 %v3983
      %vm4531 = vweird.f32 %v4524
      %vm4532 = vmor %vm4530, %vm4531
      %v4533 = vsel %vm4532, %v4524, %v4529
      %v4534 = vrsqrt.pop %v3984
      %v4535 = vmul.f32 %v4534, %v3984
      %v4536 = vmul.f32 %v4535, %v4534
      %v4537 = vmul.f32 0.5, %v4536
      %v4538 = vsub.f32 1.5, %v4537
      %v4539 = vmul.f32 %v4534, %v4538
      %vm4540 = vweird.f32 %v3984
      %vm4541 = vweird.f32 %v4534
      %vm4542 = vmor %vm4540, %vm4541
      %v4543 = vsel %vm4542, %v4534, %v4539
      %v4544 = vrsqrt.pop %v3985
      %v4545 = vmul.f32 %v4544, %v3985
      %v4546 = vmul.f32 %v4545, %v4544
      %v4547 = vmul.f32 0.5, %v4546
      %v4548 = vsub.f32 1.5, %v4547
      %v4549 = vmul.f32 %v4544, %v4548
      %vm4550 = vweird.f32 %v3985
      %vm4551 = vweird.f32 %v4544
      %vm4552 = vmor %vm4550, %vm4551
      %v4553 = vsel %vm4552, %v4544, %v4549
      %v4554 = vrsqrt.pop %v3986
      %v4555 = vmul.f32 %v4554, %v3986
      %v4556 = vmul.f32 %v4555, %v4554
      %v4557 = vmul.f32 0.5, %v4556
      %v4558 = vsub.f32 1.5, %v4557
      %v4559 = vmul.f32 %v4554, %v4558
      %vm4560 = vweird.f32 %v3986
      %vm4561 = vweird.f32 %v4554
      %vm4562 = vmor %vm4560, %vm4561
      %v4563 = vsel %vm4562, %v4554, %v4559
      %v4564 = vrsqrt.pop %v3987
      %v4565 = vmul.f32 %v4564, %v3987
      %v4566 = vmul.f32 %v4565, %v4564
      %v4567 = vmul.f32 0.5, %v4566
      %v4568 = vsub.f32 1.5, %v4567
      %v4569 = vmul.f32 %v4564, %v4568
      %vm4570 = vweird.f32 %v3987
      %vm4571 = vweird.f32 %v4564
      %vm4572 = vmor %vm4570, %vm4571
      %v4573 = vsel %vm4572, %v4564, %v4569
      %v4574 = vrsqrt.pop %v3988
      %v4575 = vmul.f32 %v4574, %v3988
      %v4576 = vmul.f32 %v4575, %v4574
      %v4577 = vmul.f32 0.5, %v4576
      %v4578 = vsub.f32 1.5, %v4577
      %v4579 = vmul.f32 %v4574, %v4578
      %vm4580 = vweird.f32 %v3988
      %vm4581 = vweird.f32 %v4574
      %vm4582 = vmor %vm4580, %vm4581
      %v4583 = vsel %vm4582, %v4574, %v4579
      %v4584 = vrsqrt.pop %v3989
      %v4585 = vmul.f32 %v4584, %v3989
      %v4586 = vmul.f32 %v4585, %v4584
      %v4587 = vmul.f32 0.5, %v4586
      %v4588 = vsub.f32 1.5, %v4587
      %v4589 = vmul.f32 %v4584, %v4588
      %vm4590 = vweird.f32 %v3989
      %vm4591 = vweird.f32 %v4584
      %vm4592 = vmor %vm4590, %vm4591
      %v4593 = vsel %vm4592, %v4584, %v4589
      %v4594 = vrsqrt.pop %v3990
      %v4595 = vmul.f32 %v4594, %v3990
      %v4596 = vmul.f32 %v4595, %v4594
      %v4597 = vmul.f32 0.5, %v4596
      %v4598 = vsub.f32 1.5, %v4597
      %v4599 = vmul.f32 %v4594, %v4598
      %vm4600 = vweird.f32 %v3990
      %vm4601 = vweird.f32 %v4594
      %vm4602 = vmor %vm4600, %vm4601
      %v4603 = vsel %vm4602, %v4594, %v4599
      %v4604 = vrsqrt.pop %v3991
      %v4605 = vmul.f32 %v4604, %v3991
      %v4606 = vmul.f32 %v4605, %v4604
      %v4607 = vmul.f32 0.5, %v4606
      %v4608 = vsub.f32 1.5, %v4607
      %v4609 = vmul.f32 %v4604, %v4608
      %vm4610 = vweird.f32 %v3991
      %vm4611 = vweird.f32 %v4604
      %vm4612 = vmor %vm4610, %vm4611
      %v4613 = vsel %vm4612, %v4604, %v4609
      %v4614 = vrsqrt.pop %v3992
      %v4615 = vmul.f32 %v4614, %v3992
      %v4616 = vmul.f32 %v4615, %v4614
      %v4617 = vmul.f32 0.5, %v4616
      %v4618 = vsub.f32 1.5, %v4617
      %v4619 = vmul.f32 %v4614, %v4618
      %vm4620 = vweird.f32 %v3992
      %vm4621 = vweird.f32 %v4614
      %vm4622 = vmor %vm4620, %vm4621
      %v4623 = vsel %vm4622, %v4614, %v4619
      %v4624 = vrsqrt.pop %v3993
      %v4625 = vmul.f32 %v4624, %v3993
      %v4626 = vmul.f32 %v4625, %v4624
      %v4627 = vmul.f32 0.5, %v4626
      %v4628 = vsub.f32 1.5, %v4627
      %v4629 = vmul.f32 %v4624, %v4628
      %vm4630 = vweird.f32 %v3993
      %vm4631 = vweird.f32 %v4624
      %vm4632 = vmor %vm4630, %vm4631
      %v4633 = vsel %vm4632, %v4624, %v4629
      %v4634 = vmul.f32 %v3578, %v3578
      %v4635 = vmul.f32 %v3581, %v3581
      %v4636 = vmul.f32 %v3584, %v3584
      %v4637 = vmul.f32 %v3587, %v3587
      %v4638 = vmul.f32 %v3590, %v3590
      %v4639 = vmul.f32 %v3593, %v3593
      %v4640 = vmul.f32 %v3596, %v3596
      %v4641 = vmul.f32 %v3599, %v3599
      %v4642 = vmul.f32 %v3602, %v3602
      %v4643 = vmul.f32 %v3605, %v3605
      %v4644 = vmul.f32 %v3608, %v3608
      %v4645 = vmul.f32 %v3611, %v3611
      %v4646 = vmul.f32 %v3614, %v3614
      %v4647 = vmul.f32 %v3617, %v3617
      %v4648 = vmul.f32 %v3620, %v3620
      %v4649 = vmul.f32 %v3623, %v3623
      %v4650 = vmul.f32 %v3626, %v3626
      %v4651 = vmul.f32 %v3629, %v3629
      %v4652 = vmul.f32 %v3632, %v3632
      %v4653 = vmul.f32 %v3635, %v3635
      %v4654 = vmul.f32 %v3638, %v3638
      %v4655 = vmul.f32 %v3641, %v3641
      %v4656 = vmul.f32 %v3644, %v3644
      %v4657 = vmul.f32 %v3647, %v3647
      %v4658 = vmul.f32 %v3650, %v3650
      %v4659 = vmul.f32 %v3653, %v3653
      %v4660 = vmul.f32 %v3656, %v3656
      %v4661 = vmul.f32 %v3659, %v3659
      %v4662 = vmul.f32 %v3662, %v3662
      %v4663 = vmul.f32 %v3665, %v3665
      %v4664 = vmul.f32 %v3668, %v3668
      %v4665 = vmul.f32 %v3671, %v3671
      %v4666 = vsel %vm3737, %v4634, 0.0
      %4667 = vadd.xlane.f32.xlu0 %v4666
      %v4668 = vpop.xlane.xlu0 %4667
      %v4669 = vsel %vm3737, %v4635, 0.0
      %4670 = vadd.xlane.f32.xlu0 %v4669
      %v4671 = vpop.xlane.xlu0 %4670
      %v4672 = vsel %vm3737, %v4636, 0.0
      %4673 = vadd.xlane.f32.xlu0 %v4672
      %v4674 = vpop.xlane.xlu0 %4673
      %v4675 = vsel %vm3737, %v4637, 0.0
      %4676 = vadd.xlane.f32.xlu0 %v4675
      %v4677 = vpop.xlane.xlu0 %4676
      %v4678 = vsel %vm3737, %v4638, 0.0
      %4679 = vadd.xlane.f32.xlu0 %v4678
      %v4680 = vpop.xlane.xlu0 %4679
      %v4681 = vsel %vm3737, %v4639, 0.0
      %4682 = vadd.xlane.f32.xlu0 %v4681
      %v4683 = vpop.xlane.xlu0 %4682
      %v4684 = vsel %vm3737, %v4640, 0.0
      %4685 = vadd.xlane.f32.xlu0 %v4684
      %v4686 = vpop.xlane.xlu0 %4685
      %v4687 = vsel %vm3737, %v4641, 0.0
      %4688 = vadd.xlane.f32.xlu0 %v4687
      %v4689 = vpop.xlane.xlu0 %4688
      %v4690 = vsel %vm3737, %v4642, 0.0
      %4691 = vadd.xlane.f32.xlu0 %v4690
      %v4692 = vpop.xlane.xlu0 %4691
      %v4693 = vsel %vm3737, %v4643, 0.0
      %4694 = vadd.xlane.f32.xlu0 %v4693
      %v4695 = vpop.xlane.xlu0 %4694
      %v4696 = vsel %vm3737, %v4644, 0.0
      %4697 = vadd.xlane.f32.xlu0 %v4696
      %v4698 = vpop.xlane.xlu0 %4697
      %v4699 = vsel %vm3737, %v4645, 0.0
      %4700 = vadd.xlane.f32.xlu0 %v4699
      %v4701 = vpop.xlane.xlu0 %4700
      %v4702 = vsel %vm3737, %v4646, 0.0
      %4703 = vadd.xlane.f32.xlu0 %v4702
      %v4704 = vpop.xlane.xlu0 %4703
      %v4705 = vsel %vm3737, %v4647, 0.0
      %4706 = vadd.xlane.f32.xlu0 %v4705
      %v4707 = vpop.xlane.xlu0 %4706
      %v4708 = vsel %vm3737, %v4648, 0.0
      %4709 = vadd.xlane.f32.xlu0 %v4708
      %v4710 = vpop.xlane.xlu0 %4709
      %v4711 = vsel %vm3737, %v4649, 0.0
      %4712 = vadd.xlane.f32.xlu0 %v4711
      %v4713 = vpop.xlane.xlu0 %4712
      %v4714 = vsel %vm3737, %v4650, 0.0
      %4715 = vadd.xlane.f32.xlu0 %v4714
      %v4716 = vpop.xlane.xlu0 %4715
      %v4717 = vsel %vm3737, %v4651, 0.0
      %4718 = vadd.xlane.f32.xlu0 %v4717
      %v4719 = vpop.xlane.xlu0 %4718
      %v4720 = vsel %vm3737, %v4652, 0.0
      %4721 = vadd.xlane.f32.xlu0 %v4720
      %v4722 = vpop.xlane.xlu0 %4721
      %v4723 = vsel %vm3737, %v4653, 0.0
      %4724 = vadd.xlane.f32.xlu0 %v4723
      %v4725 = vpop.xlane.xlu0 %4724
      %v4726 = vsel %vm3737, %v4654, 0.0
      %4727 = vadd.xlane.f32.xlu0 %v4726
      %v4728 = vpop.xlane.xlu0 %4727
      %v4729 = vsel %vm3737, %v4655, 0.0
      %4730 = vadd.xlane.f32.xlu0 %v4729
      %v4731 = vpop.xlane.xlu0 %4730
      %v4732 = vsel %vm3737, %v4656, 0.0
      %4733 = vadd.xlane.f32.xlu0 %v4732
      %v4734 = vpop.xlane.xlu0 %4733
      %v4735 = vsel %vm3737, %v4657, 0.0
      %4736 = vadd.xlane.f32.xlu0 %v4735
      %v4737 = vpop.xlane.xlu0 %4736
      %v4738 = vsel %vm3737, %v4658, 0.0
      %4739 = vadd.xlane.f32.xlu0 %v4738
      %v4740 = vpop.xlane.xlu0 %4739
      %v4741 = vsel %vm3737, %v4659, 0.0
      %4742 = vadd.xlane.f32.xlu0 %v4741
      %v4743 = vpop.xlane.xlu0 %4742
      %v4744 = vsel %vm3737, %v4660, 0.0
      %4745 = vadd.xlane.f32.xlu0 %v4744
      %v4746 = vpop.xlane.xlu0 %4745
      %v4747 = vsel %vm3737, %v4661, 0.0
      %4748 = vadd.xlane.f32.xlu0 %v4747
      %v4749 = vpop.xlane.xlu0 %4748
      %v4750 = vsel %vm3737, %v4662, 0.0
      %4751 = vadd.xlane.f32.xlu0 %v4750
      %v4752 = vpop.xlane.xlu0 %4751
      %v4753 = vsel %vm3737, %v4663, 0.0
      %4754 = vadd.xlane.f32.xlu0 %v4753
      %v4755 = vpop.xlane.xlu0 %4754
      %v4756 = vsel %vm3737, %v4664, 0.0
      %4757 = vadd.xlane.f32.xlu0 %v4756
      %v4758 = vpop.xlane.xlu0 %4757
      %v4759 = vsel %vm3737, %v4665, 0.0
      %4760 = vadd.xlane.f32.xlu0 %v4759
      %v4761 = vpop.xlane.xlu0 %4760
      %v4762 = vmax.f32 %v4668, 1e-16
      %v4763 = vmax.f32 %v4671, 1e-16
      %v4764 = vmax.f32 %v4674, 1e-16
      %v4765 = vmax.f32 %v4677, 1e-16
      %v4766 = vmax.f32 %v4680, 1e-16
      %v4767 = vmax.f32 %v4683, 1e-16
      %v4768 = vmax.f32 %v4686, 1e-16
      %v4769 = vmax.f32 %v4689, 1e-16
      %v4770 = vmax.f32 %v4692, 1e-16
      %v4771 = vmax.f32 %v4695, 1e-16
      %v4772 = vmax.f32 %v4698, 1e-16
      %v4773 = vmax.f32 %v4701, 1e-16
      %v4774 = vmax.f32 %v4704, 1e-16
      %v4775 = vmax.f32 %v4707, 1e-16
      %v4776 = vmax.f32 %v4710, 1e-16
      %v4777 = vmax.f32 %v4713, 1e-16
      %v4778 = vmax.f32 %v4716, 1e-16
      %v4779 = vmax.f32 %v4719, 1e-16
      %v4780 = vmax.f32 %v4722, 1e-16
      %v4781 = vmax.f32 %v4725, 1e-16
      %v4782 = vmax.f32 %v4728, 1e-16
      %v4783 = vmax.f32 %v4731, 1e-16
      %v4784 = vmax.f32 %v4734, 1e-16
      %v4785 = vmax.f32 %v4737, 1e-16
      %v4786 = vmax.f32 %v4740, 1e-16
      %v4787 = vmax.f32 %v4743, 1e-16
      %v4788 = vmax.f32 %v4746, 1e-16
      %v4789 = vmax.f32 %v4749, 1e-16
      %v4790 = vmax.f32 %v4752, 1e-16
      %v4791 = vmax.f32 %v4755, 1e-16
      %v4792 = vmax.f32 %v4758, 1e-16
      %v4793 = vmax.f32 %v4761, 1e-16
      %v4794 = vrsqrt.pop %v4762
      %v4795 = vmul.f32 %v4794, %v4762
      %v4796 = vmul.f32 %v4795, %v4794
      %v4797 = vmul.f32 0.5, %v4796
      %v4798 = vsub.f32 1.5, %v4797
      %v4799 = vmul.f32 %v4794, %v4798
      %vm4800 = vweird.f32 %v4762
      %vm4801 = vweird.f32 %v4794
      %vm4802 = vmor %vm4800, %vm4801
      %v4803 = vsel %vm4802, %v4794, %v4799
      %v4804 = vrsqrt.pop %v4763
      %v4805 = vmul.f32 %v4804, %v4763
      %v4806 = vmul.f32 %v4805, %v4804
      %v4807 = vmul.f32 0.5, %v4806
      %v4808 = vsub.f32 1.5, %v4807
      %v4809 = vmul.f32 %v4804, %v4808
      %vm4810 = vweird.f32 %v4763
      %vm4811 = vweird.f32 %v4804
      %vm4812 = vmor %vm4810, %vm4811
      %v4813 = vsel %vm4812, %v4804, %v4809
      %v4814 = vrsqrt.pop %v4764
      %v4815 = vmul.f32 %v4814, %v4764
      %v4816 = vmul.f32 %v4815, %v4814
      %v4817 = vmul.f32 0.5, %v4816
      %v4818 = vsub.f32 1.5, %v4817
      %v4819 = vmul.f32 %v4814, %v4818
      %vm4820 = vweird.f32 %v4764
      %vm4821 = vweird.f32 %v4814
      %vm4822 = vmor %vm4820, %vm4821
      %v4823 = vsel %vm4822, %v4814, %v4819
      %v4824 = vrsqrt.pop %v4765
      %v4825 = vmul.f32 %v4824, %v4765
      %v4826 = vmul.f32 %v4825, %v4824
      %v4827 = vmul.f32 0.5, %v4826
      %v4828 = vsub.f32 1.5, %v4827
      %v4829 = vmul.f32 %v4824, %v4828
      %vm4830 = vweird.f32 %v4765
      %vm4831 = vweird.f32 %v4824
      %vm4832 = vmor %vm4830, %vm4831
      %v4833 = vsel %vm4832, %v4824, %v4829
      %v4834 = vrsqrt.pop %v4766
      %v4835 = vmul.f32 %v4834, %v4766
      %v4836 = vmul.f32 %v4835, %v4834
      %v4837 = vmul.f32 0.5, %v4836
      %v4838 = vsub.f32 1.5, %v4837
      %v4839 = vmul.f32 %v4834, %v4838
      %vm4840 = vweird.f32 %v4766
      %vm4841 = vweird.f32 %v4834
      %vm4842 = vmor %vm4840, %vm4841
      %v4843 = vsel %vm4842, %v4834, %v4839
      %v4844 = vrsqrt.pop %v4767
      %v4845 = vmul.f32 %v4844, %v4767
      %v4846 = vmul.f32 %v4845, %v4844
      %v4847 = vmul.f32 0.5, %v4846
      %v4848 = vsub.f32 1.5, %v4847
      %v4849 = vmul.f32 %v4844, %v4848
      %vm4850 = vweird.f32 %v4767
      %vm4851 = vweird.f32 %v4844
      %vm4852 = vmor %vm4850, %vm4851
      %v4853 = vsel %vm4852, %v4844, %v4849
      %v4854 = vrsqrt.pop %v4768
      %v4855 = vmul.f32 %v4854, %v4768
      %v4856 = vmul.f32 %v4855, %v4854
      %v4857 = vmul.f32 0.5, %v4856
      %v4858 = vsub.f32 1.5, %v4857
      %v4859 = vmul.f32 %v4854, %v4858
      %vm4860 = vweird.f32 %v4768
      %vm4861 = vweird.f32 %v4854
      %vm4862 = vmor %vm4860, %vm4861
      %v4863 = vsel %vm4862, %v4854, %v4859
      %v4864 = vrsqrt.pop %v4769
      %v4865 = vmul.f32 %v4864, %v4769
      %v4866 = vmul.f32 %v4865, %v4864
      %v4867 = vmul.f32 0.5, %v4866
      %v4868 = vsub.f32 1.5, %v4867
      %v4869 = vmul.f32 %v4864, %v4868
      %vm4870 = vweird.f32 %v4769
      %vm4871 = vweird.f32 %v4864
      %vm4872 = vmor %vm4870, %vm4871
      %v4873 = vsel %vm4872, %v4864, %v4869
      %v4874 = vrsqrt.pop %v4770
      %v4875 = vmul.f32 %v4874, %v4770
      %v4876 = vmul.f32 %v4875, %v4874
      %v4877 = vmul.f32 0.5, %v4876
      %v4878 = vsub.f32 1.5, %v4877
      %v4879 = vmul.f32 %v4874, %v4878
      %vm4880 = vweird.f32 %v4770
      %vm4881 = vweird.f32 %v4874
      %vm4882 = vmor %vm4880, %vm4881
      %v4883 = vsel %vm4882, %v4874, %v4879
      %v4884 = vrsqrt.pop %v4771
      %v4885 = vmul.f32 %v4884, %v4771
      %v4886 = vmul.f32 %v4885, %v4884
      %v4887 = vmul.f32 0.5, %v4886
      %v4888 = vsub.f32 1.5, %v4887
      %v4889 = vmul.f32 %v4884, %v4888
      %vm4890 = vweird.f32 %v4771
      %vm4891 = vweird.f32 %v4884
      %vm4892 = vmor %vm4890, %vm4891
      %v4893 = vsel %vm4892, %v4884, %v4889
      %v4894 = vrsqrt.pop %v4772
      %v4895 = vmul.f32 %v4894, %v4772
      %v4896 = vmul.f32 %v4895, %v4894
      %v4897 = vmul.f32 0.5, %v4896
      %v4898 = vsub.f32 1.5, %v4897
      %v4899 = vmul.f32 %v4894, %v4898
      %vm4900 = vweird.f32 %v4772
      %vm4901 = vweird.f32 %v4894
      %vm4902 = vmor %vm4900, %vm4901
      %v4903 = vsel %vm4902, %v4894, %v4899
      %v4904 = vrsqrt.pop %v4773
      %v4905 = vmul.f32 %v4904, %v4773
      %v4906 = vmul.f32 %v4905, %v4904
      %v4907 = vmul.f32 0.5, %v4906
      %v4908 = vsub.f32 1.5, %v4907
      %v4909 = vmul.f32 %v4904, %v4908
      %vm4910 = vweird.f32 %v4773
      %vm4911 = vweird.f32 %v4904
      %vm4912 = vmor %vm4910, %vm4911
      %v4913 = vsel %vm4912, %v4904, %v4909
      %v4914 = vrsqrt.pop %v4774
      %v4915 = vmul.f32 %v4914, %v4774
      %v4916 = vmul.f32 %v4915, %v4914
      %v4917 = vmul.f32 0.5, %v4916
      %v4918 = vsub.f32 1.5, %v4917
      %v4919 = vmul.f32 %v4914, %v4918
      %vm4920 = vweird.f32 %v4774
      %vm4921 = vweird.f32 %v4914
      %vm4922 = vmor %vm4920, %vm4921
      %v4923 = vsel %vm4922, %v4914, %v4919
      %v4924 = vrsqrt.pop %v4775
      %v4925 = vmul.f32 %v4924, %v4775
      %v4926 = vmul.f32 %v4925, %v4924
      %v4927 = vmul.f32 0.5, %v4926
      %v4928 = vsub.f32 1.5, %v4927
      %v4929 = vmul.f32 %v4924, %v4928
      %vm4930 = vweird.f32 %v4775
      %vm4931 = vweird.f32 %v4924
      %vm4932 = vmor %vm4930, %vm4931
      %v4933 = vsel %vm4932, %v4924, %v4929
      %v4934 = vrsqrt.pop %v4776
      %v4935 = vmul.f32 %v4934, %v4776
      %v4936 = vmul.f32 %v4935, %v4934
      %v4937 = vmul.f32 0.5, %v4936
      %v4938 = vsub.f32 1.5, %v4937
      %v4939 = vmul.f32 %v4934, %v4938
      %vm4940 = vweird.f32 %v4776
      %vm4941 = vweird.f32 %v4934
      %vm4942 = vmor %vm4940, %vm4941
      %v4943 = vsel %vm4942, %v4934, %v4939
      %v4944 = vrsqrt.pop %v4777
      %v4945 = vmul.f32 %v4944, %v4777
      %v4946 = vmul.f32 %v4945, %v4944
      %v4947 = vmul.f32 0.5, %v4946
      %v4948 = vsub.f32 1.5, %v4947
      %v4949 = vmul.f32 %v4944, %v4948
      %vm4950 = vweird.f32 %v4777
      %vm4951 = vweird.f32 %v4944
      %vm4952 = vmor %vm4950, %vm4951
      %v4953 = vsel %vm4952, %v4944, %v4949
      %v4954 = vrsqrt.pop %v4778
      %v4955 = vmul.f32 %v4954, %v4778
      %v4956 = vmul.f32 %v4955, %v4954
      %v4957 = vmul.f32 0.5, %v4956
      %v4958 = vsub.f32 1.5, %v4957
      %v4959 = vmul.f32 %v4954, %v4958
      %vm4960 = vweird.f32 %v4778
      %vm4961 = vweird.f32 %v4954
      %vm4962 = vmor %vm4960, %vm4961
      %v4963 = vsel %vm4962, %v4954, %v4959
      %v4964 = vrsqrt.pop %v4779
      %v4965 = vmul.f32 %v4964, %v4779
      %v4966 = vmul.f32 %v4965, %v4964
      %v4967 = vmul.f32 0.5, %v4966
      %v4968 = vsub.f32 1.5, %v4967
      %v4969 = vmul.f32 %v4964, %v4968
      %vm4970 = vweird.f32 %v4779
      %vm4971 = vweird.f32 %v4964
      %vm4972 = vmor %vm4970, %vm4971
      %v4973 = vsel %vm4972, %v4964, %v4969
      %v4974 = vrsqrt.pop %v4780
      %v4975 = vmul.f32 %v4974, %v4780
      %v4976 = vmul.f32 %v4975, %v4974
      %v4977 = vmul.f32 0.5, %v4976
      %v4978 = vsub.f32 1.5, %v4977
      %v4979 = vmul.f32 %v4974, %v4978
      %vm4980 = vweird.f32 %v4780
      %vm4981 = vweird.f32 %v4974
      %vm4982 = vmor %vm4980, %vm4981
      %v4983 = vsel %vm4982, %v4974, %v4979
      %v4984 = vrsqrt.pop %v4781
      %v4985 = vmul.f32 %v4984, %v4781
      %v4986 = vmul.f32 %v4985, %v4984
      %v4987 = vmul.f32 0.5, %v4986
      %v4988 = vsub.f32 1.5, %v4987
      %v4989 = vmul.f32 %v4984, %v4988
      %vm4990 = vweird.f32 %v4781
      %vm4991 = vweird.f32 %v4984
      %vm4992 = vmor %vm4990, %vm4991
      %v4993 = vsel %vm4992, %v4984, %v4989
      %v4994 = vrsqrt.pop %v4782
      %v4995 = vmul.f32 %v4994, %v4782
      %v4996 = vmul.f32 %v4995, %v4994
      %v4997 = vmul.f32 0.5, %v4996
      %v4998 = vsub.f32 1.5, %v4997
      %v4999 = vmul.f32 %v4994, %v4998
      %vm5000 = vweird.f32 %v4782
      %vm5001 = vweird.f32 %v4994
      %vm5002 = vmor %vm5000, %vm5001
      %v5003 = vsel %vm5002, %v4994, %v4999
      %v5004 = vrsqrt.pop %v4783
      %v5005 = vmul.f32 %v5004, %v4783
      %v5006 = vmul.f32 %v5005, %v5004
      %v5007 = vmul.f32 0.5, %v5006
      %v5008 = vsub.f32 1.5, %v5007
      %v5009 = vmul.f32 %v5004, %v5008
      %vm5010 = vweird.f32 %v4783
      %vm5011 = vweird.f32 %v5004
      %vm5012 = vmor %vm5010, %vm5011
      %v5013 = vsel %vm5012, %v5004, %v5009
      %v5014 = vrsqrt.pop %v4784
      %v5015 = vmul.f32 %v5014, %v4784
      %v5016 = vmul.f32 %v5015, %v5014
      %v5017 = vmul.f32 0.5, %v5016
      %v5018 = vsub.f32 1.5, %v5017
      %v5019 = vmul.f32 %v5014, %v5018
      %vm5020 = vweird.f32 %v4784
      %vm5021 = vweird.f32 %v5014
      %vm5022 = vmor %vm5020, %vm5021
      %v5023 = vsel %vm5022, %v5014, %v5019
      %v5024 = vrsqrt.pop %v4785
      %v5025 = vmul.f32 %v5024, %v4785
      %v5026 = vmul.f32 %v5025, %v5024
      %v5027 = vmul.f32 0.5, %v5026
      %v5028 = vsub.f32 1.5, %v5027
      %v5029 = vmul.f32 %v5024, %v5028
      %vm5030 = vweird.f32 %v4785
      %vm5031 = vweird.f32 %v5024
      %vm5032 = vmor %vm5030, %vm5031
      %v5033 = vsel %vm5032, %v5024, %v5029
      %v5034 = vrsqrt.pop %v4786
      %v5035 = vmul.f32 %v5034, %v4786
      %v5036 = vmul.f32 %v5035, %v5034
      %v5037 = vmul.f32 0.5, %v5036
      %v5038 = vsub.f32 1.5, %v5037
      %v5039 = vmul.f32 %v5034, %v5038
      %vm5040 = vweird.f32 %v4786
      %vm5041 = vweird.f32 %v5034
      %vm5042 = vmor %vm5040, %vm5041
      %v5043 = vsel %vm5042, %v5034, %v5039
      %v5044 = vrsqrt.pop %v4787
      %v5045 = vmul.f32 %v5044, %v4787
      %v5046 = vmul.f32 %v5045, %v5044
      %v5047 = vmul.f32 0.5, %v5046
      %v5048 = vsub.f32 1.5, %v5047
      %v5049 = vmul.f32 %v5044, %v5048
      %vm5050 = vweird.f32 %v4787
      %vm5051 = vweird.f32 %v5044
      %vm5052 = vmor %vm5050, %vm5051
      %v5053 = vsel %vm5052, %v5044, %v5049
      %v5054 = vrsqrt.pop %v4788
      %v5055 = vmul.f32 %v5054, %v4788
      %v5056 = vmul.f32 %v5055, %v5054
      %v5057 = vmul.f32 0.5, %v5056
      %v5058 = vsub.f32 1.5, %v5057
      %v5059 = vmul.f32 %v5054, %v5058
      %vm5060 = vweird.f32 %v4788
      %vm5061 = vweird.f32 %v5054
      %vm5062 = vmor %vm5060, %vm5061
      %v5063 = vsel %vm5062, %v5054, %v5059
      %v5064 = vrsqrt.pop %v4789
      %v5065 = vmul.f32 %v5064, %v4789
      %v5066 = vmul.f32 %v5065, %v5064
      %v5067 = vmul.f32 0.5, %v5066
      %v5068 = vsub.f32 1.5, %v5067
      %v5069 = vmul.f32 %v5064, %v5068
      %vm5070 = vweird.f32 %v4789
      %vm5071 = vweird.f32 %v5064
      %vm5072 = vmor %vm5070, %vm5071
      %v5073 = vsel %vm5072, %v5064, %v5069
      %v5074 = vrsqrt.pop %v4790
      %v5075 = vmul.f32 %v5074, %v4790
      %v5076 = vmul.f32 %v5075, %v5074
      %v5077 = vmul.f32 0.5, %v5076
      %v5078 = vsub.f32 1.5, %v5077
      %v5079 = vmul.f32 %v5074, %v5078
      %vm5080 = vweird.f32 %v4790
      %vm5081 = vweird.f32 %v5074
      %vm5082 = vmor %vm5080, %vm5081
      %v5083 = vsel %vm5082, %v5074, %v5079
      %v5084 = vrsqrt.pop %v4791
      %v5085 = vmul.f32 %v5084, %v4791
      %v5086 = vmul.f32 %v5085, %v5084
      %v5087 = vmul.f32 0.5, %v5086
      %v5088 = vsub.f32 1.5, %v5087
      %v5089 = vmul.f32 %v5084, %v5088
      %vm5090 = vweird.f32 %v4791
      %vm5091 = vweird.f32 %v5084
      %vm5092 = vmor %vm5090, %vm5091
      %v5093 = vsel %vm5092, %v5084, %v5089
      %v5094 = vrsqrt.pop %v4792
      %v5095 = vmul.f32 %v5094, %v4792
      %v5096 = vmul.f32 %v5095, %v5094
      %v5097 = vmul.f32 0.5, %v5096
      %v5098 = vsub.f32 1.5, %v5097
      %v5099 = vmul.f32 %v5094, %v5098
      %vm5100 = vweird.f32 %v4792
      %vm5101 = vweird.f32 %v5094
      %vm5102 = vmor %vm5100, %vm5101
      %v5103 = vsel %vm5102, %v5094, %v5099
      %v5104 = vrsqrt.pop %v4793
      %v5105 = vmul.f32 %v5104, %v4793
      %v5106 = vmul.f32 %v5105, %v5104
      %v5107 = vmul.f32 0.5, %v5106
      %v5108 = vsub.f32 1.5, %v5107
      %v5109 = vmul.f32 %v5104, %v5108
      %vm5110 = vweird.f32 %v4793
      %vm5111 = vweird.f32 %v5104
      %vm5112 = vmor %vm5110, %vm5111
      %v5113 = vsel %vm5112, %v5104, %v5109
      %v5114 = vmul.f32 %v2818, %v4003
      %v5115 = vmul.f32 %v2821, %v4013
      %v5116 = vmul.f32 %v2824, %v4023
      %v5117 = vmul.f32 %v2827, %v4033
      %v5118 = vmul.f32 %v2830, %v4043
      %v5119 = vmul.f32 %v2833, %v4053
      %v5120 = vmul.f32 %v2836, %v4063
      %v5121 = vmul.f32 %v2839, %v4073
      %v5122 = vmul.f32 %v2842, %v4083
      %v5123 = vmul.f32 %v2845, %v4093
      %v5124 = vmul.f32 %v2848, %v4103
      %v5125 = vmul.f32 %v2851, %v4113
      %v5126 = vmul.f32 %v2854, %v4123
      %v5127 = vmul.f32 %v2857, %v4133
      %v5128 = vmul.f32 %v2860, %v4143
      %v5129 = vmul.f32 %v2863, %v4153
      %v5130 = vmul.f32 %v2866, %v4163
      %v5131 = vmul.f32 %v2869, %v4173
      %v5132 = vmul.f32 %v2872, %v4183
      %v5133 = vmul.f32 %v2875, %v4193
      %v5134 = vmul.f32 %v2878, %v4203
      %v5135 = vmul.f32 %v2881, %v4213
      %v5136 = vmul.f32 %v2884, %v4223
      %v5137 = vmul.f32 %v2887, %v4233
      %v5138 = vmul.f32 %v2890, %v4243
      %v5139 = vmul.f32 %v2893, %v4253
      %v5140 = vmul.f32 %v2896, %v4263
      %v5141 = vmul.f32 %v2899, %v4273
      %v5142 = vmul.f32 %v2902, %v4283
      %v5143 = vmul.f32 %v2905, %v4293
      %v5144 = vmul.f32 %v2908, %v4303
      %v5145 = vmul.f32 %v2911, %v4313
      %v5146 = vmul.f32 %v2914, %v4323
      %v5147 = vmul.f32 %v2917, %v4333
      %v5148 = vmul.f32 %v2920, %v4343
      %v5149 = vmul.f32 %v2923, %v4353
      %v5150 = vmul.f32 %v2926, %v4363
      %v5151 = vmul.f32 %v2929, %v4373
      %v5152 = vmul.f32 %v2932, %v4383
      %v5153 = vmul.f32 %v2935, %v4393
      %v5154 = vmul.f32 %v2938, %v4403
      %v5155 = vmul.f32 %v2941, %v4413
      %v5156 = vmul.f32 %v2944, %v4423
      %v5157 = vmul.f32 %v2947, %v4433
      %v5158 = vmul.f32 %v2950, %v4443
      %v5159 = vmul.f32 %v2953, %v4453
      %v5160 = vmul.f32 %v2956, %v4463
      %v5161 = vmul.f32 %v2959, %v4473
      %v5162 = vmul.f32 %v2962, %v4483
      %v5163 = vmul.f32 %v2965, %v4493
      %v5164 = vmul.f32 %v2968, %v4503
      %v5165 = vmul.f32 %v2971, %v4513
      %v5166 = vmul.f32 %v2974, %v4523
      %v5167 = vmul.f32 %v2977, %v4533
      %v5168 = vmul.f32 %v2980, %v4543
      %v5169 = vmul.f32 %v2983, %v4553
      %v5170 = vmul.f32 %v2986, %v4563
      %v5171 = vmul.f32 %v2989, %v4573
      %v5172 = vmul.f32 %v2992, %v4583
      %v5173 = vmul.f32 %v2995, %v4593
      %v5174 = vmul.f32 %v2998, %v4603
      %v5175 = vmul.f32 %v3001, %v4613
      %v5176 = vmul.f32 %v3004, %v4623
      %v5177 = vmul.f32 %v3007, %v4633
      %v5242 = vrot.slane %v5114, 4
      %v5243 = vrot.slane %v5115, 4
      %v5244 = vrot.slane %v5116, 4
      %v5245 = vrot.slane %v5117, 4
      %v5246 = vrot.slane %v5118, 4
      %v5247 = vrot.slane %v5119, 4
      %v5248 = vrot.slane %v5120, 4
      %v5249 = vrot.slane %v5121, 4
      %v5250 = vrot.slane %v5122, 4
      %v5251 = vrot.slane %v5123, 4
      %v5252 = vrot.slane %v5124, 4
      %v5253 = vrot.slane %v5125, 4
      %v5254 = vrot.slane %v5126, 4
      %v5255 = vrot.slane %v5127, 4
      %v5256 = vrot.slane %v5128, 4
      %v5257 = vrot.slane %v5129, 4
      %v5258 = vrot.slane %v5130, 4
      %v5259 = vrot.slane %v5131, 4
      %v5260 = vrot.slane %v5132, 4
      %v5261 = vrot.slane %v5133, 4
      %v5262 = vrot.slane %v5134, 4
      %v5263 = vrot.slane %v5135, 4
      %v5264 = vrot.slane %v5136, 4
      %v5265 = vrot.slane %v5137, 4
      %v5266 = vrot.slane %v5138, 4
      %v5267 = vrot.slane %v5139, 4
      %v5268 = vrot.slane %v5140, 4
      %v5269 = vrot.slane %v5141, 4
      %v5270 = vrot.slane %v5142, 4
      %v5271 = vrot.slane %v5143, 4
      %v5272 = vrot.slane %v5144, 4
      %v5273 = vrot.slane %v5145, 4
      %v5274 = vrot.slane %v5146, 4
      %v5275 = vrot.slane %v5147, 4
      %v5276 = vrot.slane %v5148, 4
      %v5277 = vrot.slane %v5149, 4
      %v5278 = vrot.slane %v5150, 4
      %v5279 = vrot.slane %v5151, 4
      %v5280 = vrot.slane %v5152, 4
      %v5281 = vrot.slane %v5153, 4
      %v5282 = vrot.slane %v5154, 4
      %v5283 = vrot.slane %v5155, 4
      %v5284 = vrot.slane %v5156, 4
      %v5285 = vrot.slane %v5157, 4
      %v5286 = vrot.slane %v5158, 4
      %v5287 = vrot.slane %v5159, 4
      %v5288 = vrot.slane %v5160, 4
      %v5289 = vrot.slane %v5161, 4
      %v5290 = vrot.slane %v5162, 4
      %v5291 = vrot.slane %v5163, 4
      %v5292 = vrot.slane %v5164, 4
      %v5293 = vrot.slane %v5165, 4
      %v5294 = vrot.slane %v5166, 4
      %v5295 = vrot.slane %v5167, 4
      %v5296 = vrot.slane %v5168, 4
      %v5297 = vrot.slane %v5169, 4
      %v5298 = vrot.slane %v5170, 4
      %v5299 = vrot.slane %v5171, 4
      %v5300 = vrot.slane %v5172, 4
      %v5301 = vrot.slane %v5173, 4
      %v5302 = vrot.slane %v5174, 4
      %v5303 = vrot.slane %v5175, 4
      %v5304 = vrot.slane %v5176, 4
      %v5305 = vrot.slane %v5177, 4
      %v5306 = vmul.f32 %v3578, %v4803
      %v5307 = vmul.f32 %v3581, %v4813
      %v5308 = vmul.f32 %v3584, %v4823
      %v5309 = vmul.f32 %v3587, %v4833
      %v5310 = vmul.f32 %v3590, %v4843
      %v5311 = vmul.f32 %v3593, %v4853
      %v5312 = vmul.f32 %v3596, %v4863
      %v5313 = vmul.f32 %v3599, %v4873
      %v5314 = vmul.f32 %v3602, %v4883
      %v5315 = vmul.f32 %v3605, %v4893
      %v5316 = vmul.f32 %v3608, %v4903
      %v5317 = vmul.f32 %v3611, %v4913
      %v5318 = vmul.f32 %v3614, %v4923
      %v5319 = vmul.f32 %v3617, %v4933
      %v5320 = vmul.f32 %v3620, %v4943
      %v5321 = vmul.f32 %v3623, %v4953
      %v5322 = vmul.f32 %v3626, %v4963
      %v5323 = vmul.f32 %v3629, %v4973
      %v5324 = vmul.f32 %v3632, %v4983
      %v5325 = vmul.f32 %v3635, %v4993
      %v5326 = vmul.f32 %v3638, %v5003
      %v5327 = vmul.f32 %v3641, %v5013
      %v5328 = vmul.f32 %v3644, %v5023
      %v5329 = vmul.f32 %v3647, %v5033
      %v5330 = vmul.f32 %v3650, %v5043
      %v5331 = vmul.f32 %v3653, %v5053
      %v5332 = vmul.f32 %v3656, %v5063
      %v5333 = vmul.f32 %v3659, %v5073
      %v5334 = vmul.f32 %v3662, %v5083
      %v5335 = vmul.f32 %v3665, %v5093
      %v5336 = vmul.f32 %v3668, %v5103
      %v5337 = vmul.f32 %v3671, %v5113
      %v5370 = vrot.slane %v5306, 2
      %v5371 = vrot.slane %v5306, 4
      %v5372 = vrot.slane %v5306, 6
      %v5373 = vrot.slane %v5307, 2
      %v5374 = vrot.slane %v5307, 4
      %v5375 = vrot.slane %v5307, 6
      %v5376 = vrot.slane %v5308, 2
      %v5377 = vrot.slane %v5308, 4
      %v5378 = vrot.slane %v5308, 6
      %v5379 = vrot.slane %v5309, 2
      %v5380 = vrot.slane %v5309, 4
      %v5381 = vrot.slane %v5309, 6
      %v5382 = vrot.slane %v5310, 2
      %v5383 = vrot.slane %v5310, 4
      %v5384 = vrot.slane %v5310, 6
      %v5385 = vrot.slane %v5311, 2
      %v5386 = vrot.slane %v5311, 4
      %v5387 = vrot.slane %v5311, 6
      %v5388 = vrot.slane %v5312, 2
      %v5389 = vrot.slane %v5312, 4
      %v5390 = vrot.slane %v5312, 6
      %v5391 = vrot.slane %v5313, 2
      %v5392 = vrot.slane %v5313, 4
      %v5393 = vrot.slane %v5313, 6
      %v5394 = vrot.slane %v5314, 2
      %v5395 = vrot.slane %v5314, 4
      %v5396 = vrot.slane %v5314, 6
      %v5397 = vrot.slane %v5315, 2
      %v5398 = vrot.slane %v5315, 4
      %v5399 = vrot.slane %v5315, 6
      %v5400 = vrot.slane %v5316, 2
      %v5401 = vrot.slane %v5316, 4
      %v5402 = vrot.slane %v5316, 6
      %v5403 = vrot.slane %v5317, 2
      %v5404 = vrot.slane %v5317, 4
      %v5405 = vrot.slane %v5317, 6
      %v5406 = vrot.slane %v5318, 2
      %v5407 = vrot.slane %v5318, 4
      %v5408 = vrot.slane %v5318, 6
      %v5409 = vrot.slane %v5319, 2
      %v5410 = vrot.slane %v5319, 4
      %v5411 = vrot.slane %v5319, 6
      %v5412 = vrot.slane %v5320, 2
      %v5413 = vrot.slane %v5320, 4
      %v5414 = vrot.slane %v5320, 6
      %v5415 = vrot.slane %v5321, 2
      %v5416 = vrot.slane %v5321, 4
      %v5417 = vrot.slane %v5321, 6
      %v5418 = vrot.slane %v5322, 2
      %v5419 = vrot.slane %v5322, 4
      %v5420 = vrot.slane %v5322, 6
      %v5421 = vrot.slane %v5323, 2
      %v5422 = vrot.slane %v5323, 4
      %v5423 = vrot.slane %v5323, 6
      %v5424 = vrot.slane %v5324, 2
      %v5425 = vrot.slane %v5324, 4
      %v5426 = vrot.slane %v5324, 6
      %v5427 = vrot.slane %v5325, 2
      %v5428 = vrot.slane %v5325, 4
      %v5429 = vrot.slane %v5325, 6
      %v5430 = vrot.slane %v5326, 2
      %v5431 = vrot.slane %v5326, 4
      %v5432 = vrot.slane %v5326, 6
      %v5433 = vrot.slane %v5327, 2
      %v5434 = vrot.slane %v5327, 4
      %v5435 = vrot.slane %v5327, 6
      %v5436 = vrot.slane %v5328, 2
      %v5437 = vrot.slane %v5328, 4
      %v5438 = vrot.slane %v5328, 6
      %v5439 = vrot.slane %v5329, 2
      %v5440 = vrot.slane %v5329, 4
      %v5441 = vrot.slane %v5329, 6
      %v5442 = vrot.slane %v5330, 2
      %v5443 = vrot.slane %v5330, 4
      %v5444 = vrot.slane %v5330, 6
      %v5445 = vrot.slane %v5331, 2
      %v5446 = vrot.slane %v5331, 4
      %v5447 = vrot.slane %v5331, 6
      %v5448 = vrot.slane %v5332, 2
      %v5449 = vrot.slane %v5332, 4
      %v5450 = vrot.slane %v5332, 6
      %v5451 = vrot.slane %v5333, 2
      %v5452 = vrot.slane %v5333, 4
      %v5453 = vrot.slane %v5333, 6
      %v5454 = vrot.slane %v5334, 2
      %v5455 = vrot.slane %v5334, 4
      %v5456 = vrot.slane %v5334, 6
      %v5457 = vrot.slane %v5335, 2
      %v5458 = vrot.slane %v5335, 4
      %v5459 = vrot.slane %v5335, 6
      %v5460 = vrot.slane %v5336, 2
      %v5461 = vrot.slane %v5336, 4
      %v5462 = vrot.slane %v5336, 6
      %v5463 = vrot.slane %v5337, 2
      %v5464 = vrot.slane %v5337, 4
      %v5465 = vrot.slane %v5337, 6
      %v5466 = vsel %vm3737, %v5114, 0
      %v5468 = vsel %vm3737, %v5306, 0
      %5470 = vmatpush.xpose.msra.mxu0 0.0
      %5471 = vmatpush.xpose.msra.mxu0 0.0
      %5472 = vmatpush.xpose.msra.mxu0 0.0
      %5473 = vmatpush.xpose.msra.mxu0 0.0
      %5474 = vmatpush.xpose.msra.mxu0 0.0
      %5475 = vmatpush.xpose.msra.mxu0 0.0
      %5476 = vmatpush.xpose.msra.mxu0 0.0
      %5477 = vmatpush.xpose.msra.mxu0 0.0
      %5478 = vmatpush.xpose.msra.mxu0 0.0
      %5479 = vmatpush.xpose.msra.mxu0 0.0
      %5480 = vmatpush.xpose.msra.mxu0 0.0
      %5481 = vmatpush.xpose.msra.mxu0 0.0
      %5482 = vmatpush.xpose.msra.mxu0 0.0
      %5483 = vmatpush.xpose.msra.mxu0 0.0
      %5484 = vmatpush.xpose.msra.mxu0 0.0
      %5485 = vmatpush.xpose.msra.mxu0 %v5468
      %5486 = vmatmul.f32.gmra.mxu0 %v5466
      %v5487 = vpop.f32.mrf.mxu0
      %v5488 = vadd.f32 0.0, %v5487
      %5489 = vdwg.mxu0
      %v5490 = vsel %vm3737, %v5242, 0
      %v5492 = vsel %vm3737, %v5370, 0
      %5494 = vmatpush.xpose.msra.mxu0 0.0
      %5495 = vmatpush.xpose.msra.mxu0 0.0
      %5496 = vmatpush.xpose.msra.mxu0 0.0
      %5497 = vmatpush.xpose.msra.mxu0 0.0
      %5498 = vmatpush.xpose.msra.mxu0 0.0
      %5499 = vmatpush.xpose.msra.mxu0 0.0
      %5500 = vmatpush.xpose.msra.mxu0 0.0
      %5501 = vmatpush.xpose.msra.mxu0 0.0
      %5502 = vmatpush.xpose.msra.mxu0 0.0
      %5503 = vmatpush.xpose.msra.mxu0 0.0
      %5504 = vmatpush.xpose.msra.mxu0 0.0
      %5505 = vmatpush.xpose.msra.mxu0 0.0
      %5506 = vmatpush.xpose.msra.mxu0 0.0
      %5507 = vmatpush.xpose.msra.mxu0 0.0
      %5508 = vmatpush.xpose.msra.mxu0 0.0
      %5509 = vmatpush.xpose.msra.mxu0 %v5492
      %5510 = vmatmul.f32.gmra.mxu0 %v5490
      %v5511 = vpop.f32.mrf.mxu0
      %v5512 = vadd.f32 0.0, %v5511
      %5513 = vdwg.mxu0
      %v5514 = vsel %vm3737, %v5115, 0
      %v5516 = vsel %vm3737, %v5371, 0
      %5518 = vmatpush.xpose.msra.mxu0 0.0
      %5519 = vmatpush.xpose.msra.mxu0 0.0
      %5520 = vmatpush.xpose.msra.mxu0 0.0
      %5521 = vmatpush.xpose.msra.mxu0 0.0
      %5522 = vmatpush.xpose.msra.mxu0 0.0
      %5523 = vmatpush.xpose.msra.mxu0 0.0
      %5524 = vmatpush.xpose.msra.mxu0 0.0
      %5525 = vmatpush.xpose.msra.mxu0 0.0
      %5526 = vmatpush.xpose.msra.mxu0 0.0
      %5527 = vmatpush.xpose.msra.mxu0 0.0
      %5528 = vmatpush.xpose.msra.mxu0 0.0
      %5529 = vmatpush.xpose.msra.mxu0 0.0
      %5530 = vmatpush.xpose.msra.mxu0 0.0
      %5531 = vmatpush.xpose.msra.mxu0 0.0
      %5532 = vmatpush.xpose.msra.mxu0 0.0
      %5533 = vmatpush.xpose.msra.mxu0 %v5516
      %5534 = vmatmul.f32.gmra.mxu0 %v5514
      %v5535 = vpop.f32.mrf.mxu0
      %v5536 = vadd.f32 0.0, %v5535
      %5537 = vdwg.mxu0
      %v5538 = vsel %vm3737, %v5243, 0
      %v5540 = vsel %vm3737, %v5372, 0
      %5542 = vmatpush.xpose.msra.mxu0 0.0
      %5543 = vmatpush.xpose.msra.mxu0 0.0
      %5544 = vmatpush.xpose.msra.mxu0 0.0
      %5545 = vmatpush.xpose.msra.mxu0 0.0
      %5546 = vmatpush.xpose.msra.mxu0 0.0
      %5547 = vmatpush.xpose.msra.mxu0 0.0
      %5548 = vmatpush.xpose.msra.mxu0 0.0
      %5549 = vmatpush.xpose.msra.mxu0 0.0
      %5550 = vmatpush.xpose.msra.mxu0 0.0
      %5551 = vmatpush.xpose.msra.mxu0 0.0
      %5552 = vmatpush.xpose.msra.mxu0 0.0
      %5553 = vmatpush.xpose.msra.mxu0 0.0
      %5554 = vmatpush.xpose.msra.mxu0 0.0
      %5555 = vmatpush.xpose.msra.mxu0 0.0
      %5556 = vmatpush.xpose.msra.mxu0 0.0
      %5557 = vmatpush.xpose.msra.mxu0 %v5540
      %5558 = vmatmul.f32.gmra.mxu0 %v5538
      %v5559 = vpop.f32.mrf.mxu0
      %v5560 = vadd.f32 0.0, %v5559
      %5561 = vdwg.mxu0
      %v5562 = vsel %vm3737, %v5116, 0
      %v5564 = vsel %vm3737, %v5307, 0
      %5566 = vmatpush.xpose.msra.mxu0 0.0
      %5567 = vmatpush.xpose.msra.mxu0 0.0
      %5568 = vmatpush.xpose.msra.mxu0 0.0
      %5569 = vmatpush.xpose.msra.mxu0 0.0
      %5570 = vmatpush.xpose.msra.mxu0 0.0
      %5571 = vmatpush.xpose.msra.mxu0 0.0
      %5572 = vmatpush.xpose.msra.mxu0 0.0
      %5573 = vmatpush.xpose.msra.mxu0 0.0
      %5574 = vmatpush.xpose.msra.mxu0 0.0
      %5575 = vmatpush.xpose.msra.mxu0 0.0
      %5576 = vmatpush.xpose.msra.mxu0 0.0
      %5577 = vmatpush.xpose.msra.mxu0 0.0
      %5578 = vmatpush.xpose.msra.mxu0 0.0
      %5579 = vmatpush.xpose.msra.mxu0 0.0
      %5580 = vmatpush.xpose.msra.mxu0 0.0
      %5581 = vmatpush.xpose.msra.mxu0 %v5564
      %5582 = vmatmul.f32.gmra.mxu0 %v5562
      %v5583 = vpop.f32.mrf.mxu0
      %v5584 = vadd.f32 0.0, %v5583
      %5585 = vdwg.mxu0
      %v5586 = vsel %vm3737, %v5244, 0
      %v5588 = vsel %vm3737, %v5373, 0
      %5590 = vmatpush.xpose.msra.mxu0 0.0
      %5591 = vmatpush.xpose.msra.mxu0 0.0
      %5592 = vmatpush.xpose.msra.mxu0 0.0
      %5593 = vmatpush.xpose.msra.mxu0 0.0
      %5594 = vmatpush.xpose.msra.mxu0 0.0
      %5595 = vmatpush.xpose.msra.mxu0 0.0
      %5596 = vmatpush.xpose.msra.mxu0 0.0
      %5597 = vmatpush.xpose.msra.mxu0 0.0
      %5598 = vmatpush.xpose.msra.mxu0 0.0
      %5599 = vmatpush.xpose.msra.mxu0 0.0
      %5600 = vmatpush.xpose.msra.mxu0 0.0
      %5601 = vmatpush.xpose.msra.mxu0 0.0
      %5602 = vmatpush.xpose.msra.mxu0 0.0
      %5603 = vmatpush.xpose.msra.mxu0 0.0
      %5604 = vmatpush.xpose.msra.mxu0 0.0
      %5605 = vmatpush.xpose.msra.mxu0 %v5588
      %5606 = vmatmul.f32.gmra.mxu0 %v5586
      %v5607 = vpop.f32.mrf.mxu0
      %v5608 = vadd.f32 0.0, %v5607
      %5609 = vdwg.mxu0
      %v5610 = vsel %vm3737, %v5117, 0
      %v5612 = vsel %vm3737, %v5374, 0
      %5614 = vmatpush.xpose.msra.mxu0 0.0
      %5615 = vmatpush.xpose.msra.mxu0 0.0
      %5616 = vmatpush.xpose.msra.mxu0 0.0
      %5617 = vmatpush.xpose.msra.mxu0 0.0
      %5618 = vmatpush.xpose.msra.mxu0 0.0
      %5619 = vmatpush.xpose.msra.mxu0 0.0
      %5620 = vmatpush.xpose.msra.mxu0 0.0
      %5621 = vmatpush.xpose.msra.mxu0 0.0
      %5622 = vmatpush.xpose.msra.mxu0 0.0
      %5623 = vmatpush.xpose.msra.mxu0 0.0
      %5624 = vmatpush.xpose.msra.mxu0 0.0
      %5625 = vmatpush.xpose.msra.mxu0 0.0
      %5626 = vmatpush.xpose.msra.mxu0 0.0
      %5627 = vmatpush.xpose.msra.mxu0 0.0
      %5628 = vmatpush.xpose.msra.mxu0 0.0
      %5629 = vmatpush.xpose.msra.mxu0 %v5612
      %5630 = vmatmul.f32.gmra.mxu0 %v5610
      %v5631 = vpop.f32.mrf.mxu0
      %v5632 = vadd.f32 0.0, %v5631
      %5633 = vdwg.mxu0
      %v5634 = vsel %vm3737, %v5245, 0
      %v5636 = vsel %vm3737, %v5375, 0
      %5638 = vmatpush.xpose.msra.mxu0 0.0
      %5639 = vmatpush.xpose.msra.mxu0 0.0
      %5640 = vmatpush.xpose.msra.mxu0 0.0
      %5641 = vmatpush.xpose.msra.mxu0 0.0
      %5642 = vmatpush.xpose.msra.mxu0 0.0
      %5643 = vmatpush.xpose.msra.mxu0 0.0
      %5644 = vmatpush.xpose.msra.mxu0 0.0
      %5645 = vmatpush.xpose.msra.mxu0 0.0
      %5646 = vmatpush.xpose.msra.mxu0 0.0
      %5647 = vmatpush.xpose.msra.mxu0 0.0
      %5648 = vmatpush.xpose.msra.mxu0 0.0
      %5649 = vmatpush.xpose.msra.mxu0 0.0
      %5650 = vmatpush.xpose.msra.mxu0 0.0
      %5651 = vmatpush.xpose.msra.mxu0 0.0
      %5652 = vmatpush.xpose.msra.mxu0 0.0
      %5653 = vmatpush.xpose.msra.mxu0 %v5636
      %5654 = vmatmul.f32.gmra.mxu0 %v5634
      %v5655 = vpop.f32.mrf.mxu0
      %v5656 = vadd.f32 0.0, %v5655
      %5657 = vdwg.mxu0
      %v5658 = vsel %vm3737, %v5118, 0
      %v5660 = vsel %vm3737, %v5308, 0
      %5662 = vmatpush.xpose.msra.mxu0 0.0
      %5663 = vmatpush.xpose.msra.mxu0 0.0
      %5664 = vmatpush.xpose.msra.mxu0 0.0
      %5665 = vmatpush.xpose.msra.mxu0 0.0
      %5666 = vmatpush.xpose.msra.mxu0 0.0
      %5667 = vmatpush.xpose.msra.mxu0 0.0
      %5668 = vmatpush.xpose.msra.mxu0 0.0
      %5669 = vmatpush.xpose.msra.mxu0 0.0
      %5670 = vmatpush.xpose.msra.mxu0 0.0
      %5671 = vmatpush.xpose.msra.mxu0 0.0
      %5672 = vmatpush.xpose.msra.mxu0 0.0
      %5673 = vmatpush.xpose.msra.mxu0 0.0
      %5674 = vmatpush.xpose.msra.mxu0 0.0
      %5675 = vmatpush.xpose.msra.mxu0 0.0
      %5676 = vmatpush.xpose.msra.mxu0 0.0
      %5677 = vmatpush.xpose.msra.mxu0 %v5660
      %5678 = vmatmul.f32.gmra.mxu0 %v5658
      %v5679 = vpop.f32.mrf.mxu0
      %v5680 = vadd.f32 0.0, %v5679
      %5681 = vdwg.mxu0
      %v5682 = vsel %vm3737, %v5246, 0
      %v5684 = vsel %vm3737, %v5376, 0
      %5686 = vmatpush.xpose.msra.mxu0 0.0
      %5687 = vmatpush.xpose.msra.mxu0 0.0
      %5688 = vmatpush.xpose.msra.mxu0 0.0
      %5689 = vmatpush.xpose.msra.mxu0 0.0
      %5690 = vmatpush.xpose.msra.mxu0 0.0
      %5691 = vmatpush.xpose.msra.mxu0 0.0
      %5692 = vmatpush.xpose.msra.mxu0 0.0
      %5693 = vmatpush.xpose.msra.mxu0 0.0
      %5694 = vmatpush.xpose.msra.mxu0 0.0
      %5695 = vmatpush.xpose.msra.mxu0 0.0
      %5696 = vmatpush.xpose.msra.mxu0 0.0
      %5697 = vmatpush.xpose.msra.mxu0 0.0
      %5698 = vmatpush.xpose.msra.mxu0 0.0
      %5699 = vmatpush.xpose.msra.mxu0 0.0
      %5700 = vmatpush.xpose.msra.mxu0 0.0
      %5701 = vmatpush.xpose.msra.mxu0 %v5684
      %5702 = vmatmul.f32.gmra.mxu0 %v5682
      %v5703 = vpop.f32.mrf.mxu0
      %v5704 = vadd.f32 0.0, %v5703
      %5705 = vdwg.mxu0
      %v5706 = vsel %vm3737, %v5119, 0
      %v5708 = vsel %vm3737, %v5377, 0
      %5710 = vmatpush.xpose.msra.mxu0 0.0
      %5711 = vmatpush.xpose.msra.mxu0 0.0
      %5712 = vmatpush.xpose.msra.mxu0 0.0
      %5713 = vmatpush.xpose.msra.mxu0 0.0
      %5714 = vmatpush.xpose.msra.mxu0 0.0
      %5715 = vmatpush.xpose.msra.mxu0 0.0
      %5716 = vmatpush.xpose.msra.mxu0 0.0
      %5717 = vmatpush.xpose.msra.mxu0 0.0
      %5718 = vmatpush.xpose.msra.mxu0 0.0
      %5719 = vmatpush.xpose.msra.mxu0 0.0
      %5720 = vmatpush.xpose.msra.mxu0 0.0
      %5721 = vmatpush.xpose.msra.mxu0 0.0
      %5722 = vmatpush.xpose.msra.mxu0 0.0
      %5723 = vmatpush.xpose.msra.mxu0 0.0
      %5724 = vmatpush.xpose.msra.mxu0 0.0
      %5725 = vmatpush.xpose.msra.mxu0 %v5708
      %5726 = vmatmul.f32.gmra.mxu0 %v5706
      %v5727 = vpop.f32.mrf.mxu0
      %v5728 = vadd.f32 0.0, %v5727
      %5729 = vdwg.mxu0
      %v5730 = vsel %vm3737, %v5247, 0
      %v5732 = vsel %vm3737, %v5378, 0
      %5734 = vmatpush.xpose.msra.mxu0 0.0
      %5735 = vmatpush.xpose.msra.mxu0 0.0
      %5736 = vmatpush.xpose.msra.mxu0 0.0
      %5737 = vmatpush.xpose.msra.mxu0 0.0
      %5738 = vmatpush.xpose.msra.mxu0 0.0
      %5739 = vmatpush.xpose.msra.mxu0 0.0
      %5740 = vmatpush.xpose.msra.mxu0 0.0
      %5741 = vmatpush.xpose.msra.mxu0 0.0
      %5742 = vmatpush.xpose.msra.mxu0 0.0
      %5743 = vmatpush.xpose.msra.mxu0 0.0
      %5744 = vmatpush.xpose.msra.mxu0 0.0
      %5745 = vmatpush.xpose.msra.mxu0 0.0
      %5746 = vmatpush.xpose.msra.mxu0 0.0
      %5747 = vmatpush.xpose.msra.mxu0 0.0
      %5748 = vmatpush.xpose.msra.mxu0 0.0
      %5749 = vmatpush.xpose.msra.mxu0 %v5732
      %5750 = vmatmul.f32.gmra.mxu0 %v5730
      %v5751 = vpop.f32.mrf.mxu0
      %v5752 = vadd.f32 0.0, %v5751
      %5753 = vdwg.mxu0
      %v5754 = vsel %vm3737, %v5120, 0
      %v5756 = vsel %vm3737, %v5309, 0
      %5758 = vmatpush.xpose.msra.mxu0 0.0
      %5759 = vmatpush.xpose.msra.mxu0 0.0
      %5760 = vmatpush.xpose.msra.mxu0 0.0
      %5761 = vmatpush.xpose.msra.mxu0 0.0
      %5762 = vmatpush.xpose.msra.mxu0 0.0
      %5763 = vmatpush.xpose.msra.mxu0 0.0
      %5764 = vmatpush.xpose.msra.mxu0 0.0
      %5765 = vmatpush.xpose.msra.mxu0 0.0
      %5766 = vmatpush.xpose.msra.mxu0 0.0
      %5767 = vmatpush.xpose.msra.mxu0 0.0
      %5768 = vmatpush.xpose.msra.mxu0 0.0
      %5769 = vmatpush.xpose.msra.mxu0 0.0
      %5770 = vmatpush.xpose.msra.mxu0 0.0
      %5771 = vmatpush.xpose.msra.mxu0 0.0
      %5772 = vmatpush.xpose.msra.mxu0 0.0
      %5773 = vmatpush.xpose.msra.mxu0 %v5756
      %5774 = vmatmul.f32.gmra.mxu0 %v5754
      %v5775 = vpop.f32.mrf.mxu0
      %v5776 = vadd.f32 0.0, %v5775
      %5777 = vdwg.mxu0
      %v5778 = vsel %vm3737, %v5248, 0
      %v5780 = vsel %vm3737, %v5379, 0
      %5782 = vmatpush.xpose.msra.mxu0 0.0
      %5783 = vmatpush.xpose.msra.mxu0 0.0
      %5784 = vmatpush.xpose.msra.mxu0 0.0
      %5785 = vmatpush.xpose.msra.mxu0 0.0
      %5786 = vmatpush.xpose.msra.mxu0 0.0
      %5787 = vmatpush.xpose.msra.mxu0 0.0
      %5788 = vmatpush.xpose.msra.mxu0 0.0
      %5789 = vmatpush.xpose.msra.mxu0 0.0
      %5790 = vmatpush.xpose.msra.mxu0 0.0
      %5791 = vmatpush.xpose.msra.mxu0 0.0
      %5792 = vmatpush.xpose.msra.mxu0 0.0
      %5793 = vmatpush.xpose.msra.mxu0 0.0
      %5794 = vmatpush.xpose.msra.mxu0 0.0
      %5795 = vmatpush.xpose.msra.mxu0 0.0
      %5796 = vmatpush.xpose.msra.mxu0 0.0
      %5797 = vmatpush.xpose.msra.mxu0 %v5780
      %5798 = vmatmul.f32.gmra.mxu0 %v5778
      %v5799 = vpop.f32.mrf.mxu0
      %v5800 = vadd.f32 0.0, %v5799
      %5801 = vdwg.mxu0
      %v5802 = vsel %vm3737, %v5121, 0
      %v5804 = vsel %vm3737, %v5380, 0
      %5806 = vmatpush.xpose.msra.mxu0 0.0
      %5807 = vmatpush.xpose.msra.mxu0 0.0
      %5808 = vmatpush.xpose.msra.mxu0 0.0
      %5809 = vmatpush.xpose.msra.mxu0 0.0
      %5810 = vmatpush.xpose.msra.mxu0 0.0
      %5811 = vmatpush.xpose.msra.mxu0 0.0
      %5812 = vmatpush.xpose.msra.mxu0 0.0
      %5813 = vmatpush.xpose.msra.mxu0 0.0
      %5814 = vmatpush.xpose.msra.mxu0 0.0
      %5815 = vmatpush.xpose.msra.mxu0 0.0
      %5816 = vmatpush.xpose.msra.mxu0 0.0
      %5817 = vmatpush.xpose.msra.mxu0 0.0
      %5818 = vmatpush.xpose.msra.mxu0 0.0
      %5819 = vmatpush.xpose.msra.mxu0 0.0
      %5820 = vmatpush.xpose.msra.mxu0 0.0
      %5821 = vmatpush.xpose.msra.mxu0 %v5804
      %5822 = vmatmul.f32.gmra.mxu0 %v5802
      %v5823 = vpop.f32.mrf.mxu0
      %v5824 = vadd.f32 0.0, %v5823
      %5825 = vdwg.mxu0
      %v5826 = vsel %vm3737, %v5249, 0
      %v5828 = vsel %vm3737, %v5381, 0
      %5830 = vmatpush.xpose.msra.mxu0 0.0
      %5831 = vmatpush.xpose.msra.mxu0 0.0
      %5832 = vmatpush.xpose.msra.mxu0 0.0
      %5833 = vmatpush.xpose.msra.mxu0 0.0
      %5834 = vmatpush.xpose.msra.mxu0 0.0
      %5835 = vmatpush.xpose.msra.mxu0 0.0
      %5836 = vmatpush.xpose.msra.mxu0 0.0
      %5837 = vmatpush.xpose.msra.mxu0 0.0
      %5838 = vmatpush.xpose.msra.mxu0 0.0
      %5839 = vmatpush.xpose.msra.mxu0 0.0
      %5840 = vmatpush.xpose.msra.mxu0 0.0
      %5841 = vmatpush.xpose.msra.mxu0 0.0
      %5842 = vmatpush.xpose.msra.mxu0 0.0
      %5843 = vmatpush.xpose.msra.mxu0 0.0
      %5844 = vmatpush.xpose.msra.mxu0 0.0
      %5845 = vmatpush.xpose.msra.mxu0 %v5828
      %5846 = vmatmul.f32.gmra.mxu0 %v5826
      %v5847 = vpop.f32.mrf.mxu0
      %v5848 = vadd.f32 0.0, %v5847
      %5849 = vdwg.mxu0
      %v5850 = vsel %vm3737, %v5122, 0
      %v5852 = vsel %vm3737, %v5310, 0
      %5854 = vmatpush.xpose.msra.mxu0 0.0
      %5855 = vmatpush.xpose.msra.mxu0 0.0
      %5856 = vmatpush.xpose.msra.mxu0 0.0
      %5857 = vmatpush.xpose.msra.mxu0 0.0
      %5858 = vmatpush.xpose.msra.mxu0 0.0
      %5859 = vmatpush.xpose.msra.mxu0 0.0
      %5860 = vmatpush.xpose.msra.mxu0 0.0
      %5861 = vmatpush.xpose.msra.mxu0 0.0
      %5862 = vmatpush.xpose.msra.mxu0 0.0
      %5863 = vmatpush.xpose.msra.mxu0 0.0
      %5864 = vmatpush.xpose.msra.mxu0 0.0
      %5865 = vmatpush.xpose.msra.mxu0 0.0
      %5866 = vmatpush.xpose.msra.mxu0 0.0
      %5867 = vmatpush.xpose.msra.mxu0 0.0
      %5868 = vmatpush.xpose.msra.mxu0 0.0
      %5869 = vmatpush.xpose.msra.mxu0 %v5852
      %5870 = vmatmul.f32.gmra.mxu0 %v5850
      %v5871 = vpop.f32.mrf.mxu0
      %v5872 = vadd.f32 0.0, %v5871
      %5873 = vdwg.mxu0
      %v5874 = vsel %vm3737, %v5250, 0
      %v5876 = vsel %vm3737, %v5382, 0
      %5878 = vmatpush.xpose.msra.mxu0 0.0
      %5879 = vmatpush.xpose.msra.mxu0 0.0
      %5880 = vmatpush.xpose.msra.mxu0 0.0
      %5881 = vmatpush.xpose.msra.mxu0 0.0
      %5882 = vmatpush.xpose.msra.mxu0 0.0
      %5883 = vmatpush.xpose.msra.mxu0 0.0
      %5884 = vmatpush.xpose.msra.mxu0 0.0
      %5885 = vmatpush.xpose.msra.mxu0 0.0
      %5886 = vmatpush.xpose.msra.mxu0 0.0
      %5887 = vmatpush.xpose.msra.mxu0 0.0
      %5888 = vmatpush.xpose.msra.mxu0 0.0
      %5889 = vmatpush.xpose.msra.mxu0 0.0
      %5890 = vmatpush.xpose.msra.mxu0 0.0
      %5891 = vmatpush.xpose.msra.mxu0 0.0
      %5892 = vmatpush.xpose.msra.mxu0 0.0
      %5893 = vmatpush.xpose.msra.mxu0 %v5876
      %5894 = vmatmul.f32.gmra.mxu0 %v5874
      %v5895 = vpop.f32.mrf.mxu0
      %v5896 = vadd.f32 0.0, %v5895
      %5897 = vdwg.mxu0
      %v5898 = vsel %vm3737, %v5123, 0
      %v5900 = vsel %vm3737, %v5383, 0
      %5902 = vmatpush.xpose.msra.mxu0 0.0
      %5903 = vmatpush.xpose.msra.mxu0 0.0
      %5904 = vmatpush.xpose.msra.mxu0 0.0
      %5905 = vmatpush.xpose.msra.mxu0 0.0
      %5906 = vmatpush.xpose.msra.mxu0 0.0
      %5907 = vmatpush.xpose.msra.mxu0 0.0
      %5908 = vmatpush.xpose.msra.mxu0 0.0
      %5909 = vmatpush.xpose.msra.mxu0 0.0
      %5910 = vmatpush.xpose.msra.mxu0 0.0
      %5911 = vmatpush.xpose.msra.mxu0 0.0
      %5912 = vmatpush.xpose.msra.mxu0 0.0
      %5913 = vmatpush.xpose.msra.mxu0 0.0
      %5914 = vmatpush.xpose.msra.mxu0 0.0
      %5915 = vmatpush.xpose.msra.mxu0 0.0
      %5916 = vmatpush.xpose.msra.mxu0 0.0
      %5917 = vmatpush.xpose.msra.mxu0 %v5900
      %5918 = vmatmul.f32.gmra.mxu0 %v5898
      %v5919 = vpop.f32.mrf.mxu0
      %v5920 = vadd.f32 0.0, %v5919
      %5921 = vdwg.mxu0
      %v5922 = vsel %vm3737, %v5251, 0
      %v5924 = vsel %vm3737, %v5384, 0
      %5926 = vmatpush.xpose.msra.mxu0 0.0
      %5927 = vmatpush.xpose.msra.mxu0 0.0
      %5928 = vmatpush.xpose.msra.mxu0 0.0
      %5929 = vmatpush.xpose.msra.mxu0 0.0
      %5930 = vmatpush.xpose.msra.mxu0 0.0
      %5931 = vmatpush.xpose.msra.mxu0 0.0
      %5932 = vmatpush.xpose.msra.mxu0 0.0
      %5933 = vmatpush.xpose.msra.mxu0 0.0
      %5934 = vmatpush.xpose.msra.mxu0 0.0
      %5935 = vmatpush.xpose.msra.mxu0 0.0
      %5936 = vmatpush.xpose.msra.mxu0 0.0
      %5937 = vmatpush.xpose.msra.mxu0 0.0
      %5938 = vmatpush.xpose.msra.mxu0 0.0
      %5939 = vmatpush.xpose.msra.mxu0 0.0
      %5940 = vmatpush.xpose.msra.mxu0 0.0
      %5941 = vmatpush.xpose.msra.mxu0 %v5924
      %5942 = vmatmul.f32.gmra.mxu0 %v5922
      %v5943 = vpop.f32.mrf.mxu0
      %v5944 = vadd.f32 0.0, %v5943
      %5945 = vdwg.mxu0
      %v5946 = vsel %vm3737, %v5124, 0
      %v5948 = vsel %vm3737, %v5311, 0
      %5950 = vmatpush.xpose.msra.mxu0 0.0
      %5951 = vmatpush.xpose.msra.mxu0 0.0
      %5952 = vmatpush.xpose.msra.mxu0 0.0
      %5953 = vmatpush.xpose.msra.mxu0 0.0
      %5954 = vmatpush.xpose.msra.mxu0 0.0
      %5955 = vmatpush.xpose.msra.mxu0 0.0
      %5956 = vmatpush.xpose.msra.mxu0 0.0
      %5957 = vmatpush.xpose.msra.mxu0 0.0
      %5958 = vmatpush.xpose.msra.mxu0 0.0
      %5959 = vmatpush.xpose.msra.mxu0 0.0
      %5960 = vmatpush.xpose.msra.mxu0 0.0
      %5961 = vmatpush.xpose.msra.mxu0 0.0
      %5962 = vmatpush.xpose.msra.mxu0 0.0
      %5963 = vmatpush.xpose.msra.mxu0 0.0
      %5964 = vmatpush.xpose.msra.mxu0 0.0
      %5965 = vmatpush.xpose.msra.mxu0 %v5948
      %5966 = vmatmul.f32.gmra.mxu0 %v5946
      %v5967 = vpop.f32.mrf.mxu0
      %v5968 = vadd.f32 0.0, %v5967
      %5969 = vdwg.mxu0
      %v5970 = vsel %vm3737, %v5252, 0
      %v5972 = vsel %vm3737, %v5385, 0
      %5974 = vmatpush.xpose.msra.mxu0 0.0
      %5975 = vmatpush.xpose.msra.mxu0 0.0
      %5976 = vmatpush.xpose.msra.mxu0 0.0
      %5977 = vmatpush.xpose.msra.mxu0 0.0
      %5978 = vmatpush.xpose.msra.mxu0 0.0
      %5979 = vmatpush.xpose.msra.mxu0 0.0
      %5980 = vmatpush.xpose.msra.mxu0 0.0
      %5981 = vmatpush.xpose.msra.mxu0 0.0
      %5982 = vmatpush.xpose.msra.mxu0 0.0
      %5983 = vmatpush.xpose.msra.mxu0 0.0
      %5984 = vmatpush.xpose.msra.mxu0 0.0
      %5985 = vmatpush.xpose.msra.mxu0 0.0
      %5986 = vmatpush.xpose.msra.mxu0 0.0
      %5987 = vmatpush.xpose.msra.mxu0 0.0
      %5988 = vmatpush.xpose.msra.mxu0 0.0
      %5989 = vmatpush.xpose.msra.mxu0 %v5972
      %5990 = vmatmul.f32.gmra.mxu0 %v5970
      %v5991 = vpop.f32.mrf.mxu0
      %v5992 = vadd.f32 0.0, %v5991
      %5993 = vdwg.mxu0
      %v5994 = vsel %vm3737, %v5125, 0
      %v5996 = vsel %vm3737, %v5386, 0
      %5998 = vmatpush.xpose.msra.mxu0 0.0
      %5999 = vmatpush.xpose.msra.mxu0 0.0
      %6000 = vmatpush.xpose.msra.mxu0 0.0
      %6001 = vmatpush.xpose.msra.mxu0 0.0
      %6002 = vmatpush.xpose.msra.mxu0 0.0
      %6003 = vmatpush.xpose.msra.mxu0 0.0
      %6004 = vmatpush.xpose.msra.mxu0 0.0
      %6005 = vmatpush.xpose.msra.mxu0 0.0
      %6006 = vmatpush.xpose.msra.mxu0 0.0
      %6007 = vmatpush.xpose.msra.mxu0 0.0
      %6008 = vmatpush.xpose.msra.mxu0 0.0
      %6009 = vmatpush.xpose.msra.mxu0 0.0
      %6010 = vmatpush.xpose.msra.mxu0 0.0
      %6011 = vmatpush.xpose.msra.mxu0 0.0
      %6012 = vmatpush.xpose.msra.mxu0 0.0
      %6013 = vmatpush.xpose.msra.mxu0 %v5996
      %6014 = vmatmul.f32.gmra.mxu0 %v5994
      %v6015 = vpop.f32.mrf.mxu0
      %v6016 = vadd.f32 0.0, %v6015
      %6017 = vdwg.mxu0
      %v6018 = vsel %vm3737, %v5253, 0
      %v6020 = vsel %vm3737, %v5387, 0
      %6022 = vmatpush.xpose.msra.mxu0 0.0
      %6023 = vmatpush.xpose.msra.mxu0 0.0
      %6024 = vmatpush.xpose.msra.mxu0 0.0
      %6025 = vmatpush.xpose.msra.mxu0 0.0
      %6026 = vmatpush.xpose.msra.mxu0 0.0
      %6027 = vmatpush.xpose.msra.mxu0 0.0
      %6028 = vmatpush.xpose.msra.mxu0 0.0
      %6029 = vmatpush.xpose.msra.mxu0 0.0
      %6030 = vmatpush.xpose.msra.mxu0 0.0
      %6031 = vmatpush.xpose.msra.mxu0 0.0
      %6032 = vmatpush.xpose.msra.mxu0 0.0
      %6033 = vmatpush.xpose.msra.mxu0 0.0
      %6034 = vmatpush.xpose.msra.mxu0 0.0
      %6035 = vmatpush.xpose.msra.mxu0 0.0
      %6036 = vmatpush.xpose.msra.mxu0 0.0
      %6037 = vmatpush.xpose.msra.mxu0 %v6020
      %6038 = vmatmul.f32.gmra.mxu0 %v6018
      %v6039 = vpop.f32.mrf.mxu0
      %v6040 = vadd.f32 0.0, %v6039
      %6041 = vdwg.mxu0
      %v6042 = vsel %vm3737, %v5126, 0
      %v6044 = vsel %vm3737, %v5312, 0
      %6046 = vmatpush.xpose.msra.mxu0 0.0
      %6047 = vmatpush.xpose.msra.mxu0 0.0
      %6048 = vmatpush.xpose.msra.mxu0 0.0
      %6049 = vmatpush.xpose.msra.mxu0 0.0
      %6050 = vmatpush.xpose.msra.mxu0 0.0
      %6051 = vmatpush.xpose.msra.mxu0 0.0
      %6052 = vmatpush.xpose.msra.mxu0 0.0
      %6053 = vmatpush.xpose.msra.mxu0 0.0
      %6054 = vmatpush.xpose.msra.mxu0 0.0
      %6055 = vmatpush.xpose.msra.mxu0 0.0
      %6056 = vmatpush.xpose.msra.mxu0 0.0
      %6057 = vmatpush.xpose.msra.mxu0 0.0
      %6058 = vmatpush.xpose.msra.mxu0 0.0
      %6059 = vmatpush.xpose.msra.mxu0 0.0
      %6060 = vmatpush.xpose.msra.mxu0 0.0
      %6061 = vmatpush.xpose.msra.mxu0 %v6044
      %6062 = vmatmul.f32.gmra.mxu0 %v6042
      %v6063 = vpop.f32.mrf.mxu0
      %v6064 = vadd.f32 0.0, %v6063
      %6065 = vdwg.mxu0
      %v6066 = vsel %vm3737, %v5254, 0
      %v6068 = vsel %vm3737, %v5388, 0
      %6070 = vmatpush.xpose.msra.mxu0 0.0
      %6071 = vmatpush.xpose.msra.mxu0 0.0
      %6072 = vmatpush.xpose.msra.mxu0 0.0
      %6073 = vmatpush.xpose.msra.mxu0 0.0
      %6074 = vmatpush.xpose.msra.mxu0 0.0
      %6075 = vmatpush.xpose.msra.mxu0 0.0
      %6076 = vmatpush.xpose.msra.mxu0 0.0
      %6077 = vmatpush.xpose.msra.mxu0 0.0
      %6078 = vmatpush.xpose.msra.mxu0 0.0
      %6079 = vmatpush.xpose.msra.mxu0 0.0
      %6080 = vmatpush.xpose.msra.mxu0 0.0
      %6081 = vmatpush.xpose.msra.mxu0 0.0
      %6082 = vmatpush.xpose.msra.mxu0 0.0
      %6083 = vmatpush.xpose.msra.mxu0 0.0
      %6084 = vmatpush.xpose.msra.mxu0 0.0
      %6085 = vmatpush.xpose.msra.mxu0 %v6068
      %6086 = vmatmul.f32.gmra.mxu0 %v6066
      %v6087 = vpop.f32.mrf.mxu0
      %v6088 = vadd.f32 0.0, %v6087
      %6089 = vdwg.mxu0
      %v6090 = vsel %vm3737, %v5127, 0
      %v6092 = vsel %vm3737, %v5389, 0
      %6094 = vmatpush.xpose.msra.mxu0 0.0
      %6095 = vmatpush.xpose.msra.mxu0 0.0
      %6096 = vmatpush.xpose.msra.mxu0 0.0
      %6097 = vmatpush.xpose.msra.mxu0 0.0
      %6098 = vmatpush.xpose.msra.mxu0 0.0
      %6099 = vmatpush.xpose.msra.mxu0 0.0
      %6100 = vmatpush.xpose.msra.mxu0 0.0
      %6101 = vmatpush.xpose.msra.mxu0 0.0
      %6102 = vmatpush.xpose.msra.mxu0 0.0
      %6103 = vmatpush.xpose.msra.mxu0 0.0
      %6104 = vmatpush.xpose.msra.mxu0 0.0
      %6105 = vmatpush.xpose.msra.mxu0 0.0
      %6106 = vmatpush.xpose.msra.mxu0 0.0
      %6107 = vmatpush.xpose.msra.mxu0 0.0
      %6108 = vmatpush.xpose.msra.mxu0 0.0
      %6109 = vmatpush.xpose.msra.mxu0 %v6092
      %6110 = vmatmul.f32.gmra.mxu0 %v6090
      %v6111 = vpop.f32.mrf.mxu0
      %v6112 = vadd.f32 0.0, %v6111
      %6113 = vdwg.mxu0
      %v6114 = vsel %vm3737, %v5255, 0
      %v6116 = vsel %vm3737, %v5390, 0
      %6118 = vmatpush.xpose.msra.mxu0 0.0
      %6119 = vmatpush.xpose.msra.mxu0 0.0
      %6120 = vmatpush.xpose.msra.mxu0 0.0
      %6121 = vmatpush.xpose.msra.mxu0 0.0
      %6122 = vmatpush.xpose.msra.mxu0 0.0
      %6123 = vmatpush.xpose.msra.mxu0 0.0
      %6124 = vmatpush.xpose.msra.mxu0 0.0
      %6125 = vmatpush.xpose.msra.mxu0 0.0
      %6126 = vmatpush.xpose.msra.mxu0 0.0
      %6127 = vmatpush.xpose.msra.mxu0 0.0
      %6128 = vmatpush.xpose.msra.mxu0 0.0
      %6129 = vmatpush.xpose.msra.mxu0 0.0
      %6130 = vmatpush.xpose.msra.mxu0 0.0
      %6131 = vmatpush.xpose.msra.mxu0 0.0
      %6132 = vmatpush.xpose.msra.mxu0 0.0
      %6133 = vmatpush.xpose.msra.mxu0 %v6116
      %6134 = vmatmul.f32.gmra.mxu0 %v6114
      %v6135 = vpop.f32.mrf.mxu0
      %v6136 = vadd.f32 0.0, %v6135
      %6137 = vdwg.mxu0
      %v6138 = vsel %vm3737, %v5128, 0
      %v6140 = vsel %vm3737, %v5313, 0
      %6142 = vmatpush.xpose.msra.mxu0 0.0
      %6143 = vmatpush.xpose.msra.mxu0 0.0
      %6144 = vmatpush.xpose.msra.mxu0 0.0
      %6145 = vmatpush.xpose.msra.mxu0 0.0
      %6146 = vmatpush.xpose.msra.mxu0 0.0
      %6147 = vmatpush.xpose.msra.mxu0 0.0
      %6148 = vmatpush.xpose.msra.mxu0 0.0
      %6149 = vmatpush.xpose.msra.mxu0 0.0
      %6150 = vmatpush.xpose.msra.mxu0 0.0
      %6151 = vmatpush.xpose.msra.mxu0 0.0
      %6152 = vmatpush.xpose.msra.mxu0 0.0
      %6153 = vmatpush.xpose.msra.mxu0 0.0
      %6154 = vmatpush.xpose.msra.mxu0 0.0
      %6155 = vmatpush.xpose.msra.mxu0 0.0
      %6156 = vmatpush.xpose.msra.mxu0 0.0
      %6157 = vmatpush.xpose.msra.mxu0 %v6140
      %6158 = vmatmul.f32.gmra.mxu0 %v6138
      %v6159 = vpop.f32.mrf.mxu0
      %v6160 = vadd.f32 0.0, %v6159
      %6161 = vdwg.mxu0
      %v6162 = vsel %vm3737, %v5256, 0
      %v6164 = vsel %vm3737, %v5391, 0
      %6166 = vmatpush.xpose.msra.mxu0 0.0
      %6167 = vmatpush.xpose.msra.mxu0 0.0
      %6168 = vmatpush.xpose.msra.mxu0 0.0
      %6169 = vmatpush.xpose.msra.mxu0 0.0
      %6170 = vmatpush.xpose.msra.mxu0 0.0
      %6171 = vmatpush.xpose.msra.mxu0 0.0
      %6172 = vmatpush.xpose.msra.mxu0 0.0
      %6173 = vmatpush.xpose.msra.mxu0 0.0
      %6174 = vmatpush.xpose.msra.mxu0 0.0
      %6175 = vmatpush.xpose.msra.mxu0 0.0
      %6176 = vmatpush.xpose.msra.mxu0 0.0
      %6177 = vmatpush.xpose.msra.mxu0 0.0
      %6178 = vmatpush.xpose.msra.mxu0 0.0
      %6179 = vmatpush.xpose.msra.mxu0 0.0
      %6180 = vmatpush.xpose.msra.mxu0 0.0
      %6181 = vmatpush.xpose.msra.mxu0 %v6164
      %6182 = vmatmul.f32.gmra.mxu0 %v6162
      %v6183 = vpop.f32.mrf.mxu0
      %v6184 = vadd.f32 0.0, %v6183
      %6185 = vdwg.mxu0
      %v6186 = vsel %vm3737, %v5129, 0
      %v6188 = vsel %vm3737, %v5392, 0
      %6190 = vmatpush.xpose.msra.mxu0 0.0
      %6191 = vmatpush.xpose.msra.mxu0 0.0
      %6192 = vmatpush.xpose.msra.mxu0 0.0
      %6193 = vmatpush.xpose.msra.mxu0 0.0
      %6194 = vmatpush.xpose.msra.mxu0 0.0
      %6195 = vmatpush.xpose.msra.mxu0 0.0
      %6196 = vmatpush.xpose.msra.mxu0 0.0
      %6197 = vmatpush.xpose.msra.mxu0 0.0
      %6198 = vmatpush.xpose.msra.mxu0 0.0
      %6199 = vmatpush.xpose.msra.mxu0 0.0
      %6200 = vmatpush.xpose.msra.mxu0 0.0
      %6201 = vmatpush.xpose.msra.mxu0 0.0
      %6202 = vmatpush.xpose.msra.mxu0 0.0
      %6203 = vmatpush.xpose.msra.mxu0 0.0
      %6204 = vmatpush.xpose.msra.mxu0 0.0
      %6205 = vmatpush.xpose.msra.mxu0 %v6188
      %6206 = vmatmul.f32.gmra.mxu0 %v6186
      %v6207 = vpop.f32.mrf.mxu0
      %v6208 = vadd.f32 0.0, %v6207
      %6209 = vdwg.mxu0
      %v6210 = vsel %vm3737, %v5257, 0
      %v6212 = vsel %vm3737, %v5393, 0
      %6214 = vmatpush.xpose.msra.mxu0 0.0
      %6215 = vmatpush.xpose.msra.mxu0 0.0
      %6216 = vmatpush.xpose.msra.mxu0 0.0
      %6217 = vmatpush.xpose.msra.mxu0 0.0
      %6218 = vmatpush.xpose.msra.mxu0 0.0
      %6219 = vmatpush.xpose.msra.mxu0 0.0
      %6220 = vmatpush.xpose.msra.mxu0 0.0
      %6221 = vmatpush.xpose.msra.mxu0 0.0
      %6222 = vmatpush.xpose.msra.mxu0 0.0
      %6223 = vmatpush.xpose.msra.mxu0 0.0
      %6224 = vmatpush.xpose.msra.mxu0 0.0
      %6225 = vmatpush.xpose.msra.mxu0 0.0
      %6226 = vmatpush.xpose.msra.mxu0 0.0
      %6227 = vmatpush.xpose.msra.mxu0 0.0
      %6228 = vmatpush.xpose.msra.mxu0 0.0
      %6229 = vmatpush.xpose.msra.mxu0 %v6212
      %6230 = vmatmul.f32.gmra.mxu0 %v6210
      %v6231 = vpop.f32.mrf.mxu0
      %v6232 = vadd.f32 0.0, %v6231
      %6233 = vdwg.mxu0
      %v6234 = vsel %vm3737, %v5130, 0
      %v6236 = vsel %vm3737, %v5314, 0
      %6238 = vmatpush.xpose.msra.mxu0 0.0
      %6239 = vmatpush.xpose.msra.mxu0 0.0
      %6240 = vmatpush.xpose.msra.mxu0 0.0
      %6241 = vmatpush.xpose.msra.mxu0 0.0
      %6242 = vmatpush.xpose.msra.mxu0 0.0
      %6243 = vmatpush.xpose.msra.mxu0 0.0
      %6244 = vmatpush.xpose.msra.mxu0 0.0
      %6245 = vmatpush.xpose.msra.mxu0 0.0
      %6246 = vmatpush.xpose.msra.mxu0 0.0
      %6247 = vmatpush.xpose.msra.mxu0 0.0
      %6248 = vmatpush.xpose.msra.mxu0 0.0
      %6249 = vmatpush.xpose.msra.mxu0 0.0
      %6250 = vmatpush.xpose.msra.mxu0 0.0
      %6251 = vmatpush.xpose.msra.mxu0 0.0
      %6252 = vmatpush.xpose.msra.mxu0 0.0
      %6253 = vmatpush.xpose.msra.mxu0 %v6236
      %6254 = vmatmul.f32.gmra.mxu0 %v6234
      %v6255 = vpop.f32.mrf.mxu0
      %v6256 = vadd.f32 0.0, %v6255
      %6257 = vdwg.mxu0
      %v6258 = vsel %vm3737, %v5258, 0
      %v6260 = vsel %vm3737, %v5394, 0
      %6262 = vmatpush.xpose.msra.mxu0 0.0
      %6263 = vmatpush.xpose.msra.mxu0 0.0
      %6264 = vmatpush.xpose.msra.mxu0 0.0
      %6265 = vmatpush.xpose.msra.mxu0 0.0
      %6266 = vmatpush.xpose.msra.mxu0 0.0
      %6267 = vmatpush.xpose.msra.mxu0 0.0
      %6268 = vmatpush.xpose.msra.mxu0 0.0
      %6269 = vmatpush.xpose.msra.mxu0 0.0
      %6270 = vmatpush.xpose.msra.mxu0 0.0
      %6271 = vmatpush.xpose.msra.mxu0 0.0
      %6272 = vmatpush.xpose.msra.mxu0 0.0
      %6273 = vmatpush.xpose.msra.mxu0 0.0
      %6274 = vmatpush.xpose.msra.mxu0 0.0
      %6275 = vmatpush.xpose.msra.mxu0 0.0
      %6276 = vmatpush.xpose.msra.mxu0 0.0
      %6277 = vmatpush.xpose.msra.mxu0 %v6260
      %6278 = vmatmul.f32.gmra.mxu0 %v6258
      %v6279 = vpop.f32.mrf.mxu0
      %v6280 = vadd.f32 0.0, %v6279
      %6281 = vdwg.mxu0
      %v6282 = vsel %vm3737, %v5131, 0
      %v6284 = vsel %vm3737, %v5395, 0
      %6286 = vmatpush.xpose.msra.mxu0 0.0
      %6287 = vmatpush.xpose.msra.mxu0 0.0
      %6288 = vmatpush.xpose.msra.mxu0 0.0
      %6289 = vmatpush.xpose.msra.mxu0 0.0
      %6290 = vmatpush.xpose.msra.mxu0 0.0
      %6291 = vmatpush.xpose.msra.mxu0 0.0
      %6292 = vmatpush.xpose.msra.mxu0 0.0
      %6293 = vmatpush.xpose.msra.mxu0 0.0
      %6294 = vmatpush.xpose.msra.mxu0 0.0
      %6295 = vmatpush.xpose.msra.mxu0 0.0
      %6296 = vmatpush.xpose.msra.mxu0 0.0
      %6297 = vmatpush.xpose.msra.mxu0 0.0
      %6298 = vmatpush.xpose.msra.mxu0 0.0
      %6299 = vmatpush.xpose.msra.mxu0 0.0
      %6300 = vmatpush.xpose.msra.mxu0 0.0
      %6301 = vmatpush.xpose.msra.mxu0 %v6284
      %6302 = vmatmul.f32.gmra.mxu0 %v6282
      %v6303 = vpop.f32.mrf.mxu0
      %v6304 = vadd.f32 0.0, %v6303
      %6305 = vdwg.mxu0
      %v6306 = vsel %vm3737, %v5259, 0
      %v6308 = vsel %vm3737, %v5396, 0
      %6310 = vmatpush.xpose.msra.mxu0 0.0
      %6311 = vmatpush.xpose.msra.mxu0 0.0
      %6312 = vmatpush.xpose.msra.mxu0 0.0
      %6313 = vmatpush.xpose.msra.mxu0 0.0
      %6314 = vmatpush.xpose.msra.mxu0 0.0
      %6315 = vmatpush.xpose.msra.mxu0 0.0
      %6316 = vmatpush.xpose.msra.mxu0 0.0
      %6317 = vmatpush.xpose.msra.mxu0 0.0
      %6318 = vmatpush.xpose.msra.mxu0 0.0
      %6319 = vmatpush.xpose.msra.mxu0 0.0
      %6320 = vmatpush.xpose.msra.mxu0 0.0
      %6321 = vmatpush.xpose.msra.mxu0 0.0
      %6322 = vmatpush.xpose.msra.mxu0 0.0
      %6323 = vmatpush.xpose.msra.mxu0 0.0
      %6324 = vmatpush.xpose.msra.mxu0 0.0
      %6325 = vmatpush.xpose.msra.mxu0 %v6308
      %6326 = vmatmul.f32.gmra.mxu0 %v6306
      %v6327 = vpop.f32.mrf.mxu0
      %v6328 = vadd.f32 0.0, %v6327
      %6329 = vdwg.mxu0
      %v6330 = vsel %vm3737, %v5132, 0
      %v6332 = vsel %vm3737, %v5315, 0
      %6334 = vmatpush.xpose.msra.mxu0 0.0
      %6335 = vmatpush.xpose.msra.mxu0 0.0
      %6336 = vmatpush.xpose.msra.mxu0 0.0
      %6337 = vmatpush.xpose.msra.mxu0 0.0
      %6338 = vmatpush.xpose.msra.mxu0 0.0
      %6339 = vmatpush.xpose.msra.mxu0 0.0
      %6340 = vmatpush.xpose.msra.mxu0 0.0
      %6341 = vmatpush.xpose.msra.mxu0 0.0
      %6342 = vmatpush.xpose.msra.mxu0 0.0
      %6343 = vmatpush.xpose.msra.mxu0 0.0
      %6344 = vmatpush.xpose.msra.mxu0 0.0
      %6345 = vmatpush.xpose.msra.mxu0 0.0
      %6346 = vmatpush.xpose.msra.mxu0 0.0
      %6347 = vmatpush.xpose.msra.mxu0 0.0
      %6348 = vmatpush.xpose.msra.mxu0 0.0
      %6349 = vmatpush.xpose.msra.mxu0 %v6332
      %6350 = vmatmul.f32.gmra.mxu0 %v6330
      %v6351 = vpop.f32.mrf.mxu0
      %v6352 = vadd.f32 0.0, %v6351
      %6353 = vdwg.mxu0
      %v6354 = vsel %vm3737, %v5260, 0
      %v6356 = vsel %vm3737, %v5397, 0
      %6358 = vmatpush.xpose.msra.mxu0 0.0
      %6359 = vmatpush.xpose.msra.mxu0 0.0
      %6360 = vmatpush.xpose.msra.mxu0 0.0
      %6361 = vmatpush.xpose.msra.mxu0 0.0
      %6362 = vmatpush.xpose.msra.mxu0 0.0
      %6363 = vmatpush.xpose.msra.mxu0 0.0
      %6364 = vmatpush.xpose.msra.mxu0 0.0
      %6365 = vmatpush.xpose.msra.mxu0 0.0
      %6366 = vmatpush.xpose.msra.mxu0 0.0
      %6367 = vmatpush.xpose.msra.mxu0 0.0
      %6368 = vmatpush.xpose.msra.mxu0 0.0
      %6369 = vmatpush.xpose.msra.mxu0 0.0
      %6370 = vmatpush.xpose.msra.mxu0 0.0
      %6371 = vmatpush.xpose.msra.mxu0 0.0
      %6372 = vmatpush.xpose.msra.mxu0 0.0
      %6373 = vmatpush.xpose.msra.mxu0 %v6356
      %6374 = vmatmul.f32.gmra.mxu0 %v6354
      %v6375 = vpop.f32.mrf.mxu0
      %v6376 = vadd.f32 0.0, %v6375
      %6377 = vdwg.mxu0
      %v6378 = vsel %vm3737, %v5133, 0
      %v6380 = vsel %vm3737, %v5398, 0
      %6382 = vmatpush.xpose.msra.mxu0 0.0
      %6383 = vmatpush.xpose.msra.mxu0 0.0
      %6384 = vmatpush.xpose.msra.mxu0 0.0
      %6385 = vmatpush.xpose.msra.mxu0 0.0
      %6386 = vmatpush.xpose.msra.mxu0 0.0
      %6387 = vmatpush.xpose.msra.mxu0 0.0
      %6388 = vmatpush.xpose.msra.mxu0 0.0
      %6389 = vmatpush.xpose.msra.mxu0 0.0
      %6390 = vmatpush.xpose.msra.mxu0 0.0
      %6391 = vmatpush.xpose.msra.mxu0 0.0
      %6392 = vmatpush.xpose.msra.mxu0 0.0
      %6393 = vmatpush.xpose.msra.mxu0 0.0
      %6394 = vmatpush.xpose.msra.mxu0 0.0
      %6395 = vmatpush.xpose.msra.mxu0 0.0
      %6396 = vmatpush.xpose.msra.mxu0 0.0
      %6397 = vmatpush.xpose.msra.mxu0 %v6380
      %6398 = vmatmul.f32.gmra.mxu0 %v6378
      %v6399 = vpop.f32.mrf.mxu0
      %v6400 = vadd.f32 0.0, %v6399
      %6401 = vdwg.mxu0
      %v6402 = vsel %vm3737, %v5261, 0
      %v6404 = vsel %vm3737, %v5399, 0
      %6406 = vmatpush.xpose.msra.mxu0 0.0
      %6407 = vmatpush.xpose.msra.mxu0 0.0
      %6408 = vmatpush.xpose.msra.mxu0 0.0
      %6409 = vmatpush.xpose.msra.mxu0 0.0
      %6410 = vmatpush.xpose.msra.mxu0 0.0
      %6411 = vmatpush.xpose.msra.mxu0 0.0
      %6412 = vmatpush.xpose.msra.mxu0 0.0
      %6413 = vmatpush.xpose.msra.mxu0 0.0
      %6414 = vmatpush.xpose.msra.mxu0 0.0
      %6415 = vmatpush.xpose.msra.mxu0 0.0
      %6416 = vmatpush.xpose.msra.mxu0 0.0
      %6417 = vmatpush.xpose.msra.mxu0 0.0
      %6418 = vmatpush.xpose.msra.mxu0 0.0
      %6419 = vmatpush.xpose.msra.mxu0 0.0
      %6420 = vmatpush.xpose.msra.mxu0 0.0
      %6421 = vmatpush.xpose.msra.mxu0 %v6404
      %6422 = vmatmul.f32.gmra.mxu0 %v6402
      %v6423 = vpop.f32.mrf.mxu0
      %v6424 = vadd.f32 0.0, %v6423
      %6425 = vdwg.mxu0
      %v6426 = vsel %vm3737, %v5134, 0
      %v6428 = vsel %vm3737, %v5316, 0
      %6430 = vmatpush.xpose.msra.mxu0 0.0
      %6431 = vmatpush.xpose.msra.mxu0 0.0
      %6432 = vmatpush.xpose.msra.mxu0 0.0
      %6433 = vmatpush.xpose.msra.mxu0 0.0
      %6434 = vmatpush.xpose.msra.mxu0 0.0
      %6435 = vmatpush.xpose.msra.mxu0 0.0
      %6436 = vmatpush.xpose.msra.mxu0 0.0
      %6437 = vmatpush.xpose.msra.mxu0 0.0
      %6438 = vmatpush.xpose.msra.mxu0 0.0
      %6439 = vmatpush.xpose.msra.mxu0 0.0
      %6440 = vmatpush.xpose.msra.mxu0 0.0
      %6441 = vmatpush.xpose.msra.mxu0 0.0
      %6442 = vmatpush.xpose.msra.mxu0 0.0
      %6443 = vmatpush.xpose.msra.mxu0 0.0
      %6444 = vmatpush.xpose.msra.mxu0 0.0
      %6445 = vmatpush.xpose.msra.mxu0 %v6428
      %6446 = vmatmul.f32.gmra.mxu0 %v6426
      %v6447 = vpop.f32.mrf.mxu0
      %v6448 = vadd.f32 0.0, %v6447
      %6449 = vdwg.mxu0
      %v6450 = vsel %vm3737, %v5262, 0
      %v6452 = vsel %vm3737, %v5400, 0
      %6454 = vmatpush.xpose.msra.mxu0 0.0
      %6455 = vmatpush.xpose.msra.mxu0 0.0
      %6456 = vmatpush.xpose.msra.mxu0 0.0
      %6457 = vmatpush.xpose.msra.mxu0 0.0
      %6458 = vmatpush.xpose.msra.mxu0 0.0
      %6459 = vmatpush.xpose.msra.mxu0 0.0
      %6460 = vmatpush.xpose.msra.mxu0 0.0
      %6461 = vmatpush.xpose.msra.mxu0 0.0
      %6462 = vmatpush.xpose.msra.mxu0 0.0
      %6463 = vmatpush.xpose.msra.mxu0 0.0
      %6464 = vmatpush.xpose.msra.mxu0 0.0
      %6465 = vmatpush.xpose.msra.mxu0 0.0
      %6466 = vmatpush.xpose.msra.mxu0 0.0
      %6467 = vmatpush.xpose.msra.mxu0 0.0
      %6468 = vmatpush.xpose.msra.mxu0 0.0
      %6469 = vmatpush.xpose.msra.mxu0 %v6452
      %6470 = vmatmul.f32.gmra.mxu0 %v6450
      %v6471 = vpop.f32.mrf.mxu0
      %v6472 = vadd.f32 0.0, %v6471
      %6473 = vdwg.mxu0
      %v6474 = vsel %vm3737, %v5135, 0
      %v6476 = vsel %vm3737, %v5401, 0
      %6478 = vmatpush.xpose.msra.mxu0 0.0
      %6479 = vmatpush.xpose.msra.mxu0 0.0
      %6480 = vmatpush.xpose.msra.mxu0 0.0
      %6481 = vmatpush.xpose.msra.mxu0 0.0
      %6482 = vmatpush.xpose.msra.mxu0 0.0
      %6483 = vmatpush.xpose.msra.mxu0 0.0
      %6484 = vmatpush.xpose.msra.mxu0 0.0
      %6485 = vmatpush.xpose.msra.mxu0 0.0
      %6486 = vmatpush.xpose.msra.mxu0 0.0
      %6487 = vmatpush.xpose.msra.mxu0 0.0
      %6488 = vmatpush.xpose.msra.mxu0 0.0
      %6489 = vmatpush.xpose.msra.mxu0 0.0
      %6490 = vmatpush.xpose.msra.mxu0 0.0
      %6491 = vmatpush.xpose.msra.mxu0 0.0
      %6492 = vmatpush.xpose.msra.mxu0 0.0
      %6493 = vmatpush.xpose.msra.mxu0 %v6476
      %6494 = vmatmul.f32.gmra.mxu0 %v6474
      %v6495 = vpop.f32.mrf.mxu0
      %v6496 = vadd.f32 0.0, %v6495
      %6497 = vdwg.mxu0
      %v6498 = vsel %vm3737, %v5263, 0
      %v6500 = vsel %vm3737, %v5402, 0
      %6502 = vmatpush.xpose.msra.mxu0 0.0
      %6503 = vmatpush.xpose.msra.mxu0 0.0
      %6504 = vmatpush.xpose.msra.mxu0 0.0
      %6505 = vmatpush.xpose.msra.mxu0 0.0
      %6506 = vmatpush.xpose.msra.mxu0 0.0
      %6507 = vmatpush.xpose.msra.mxu0 0.0
      %6508 = vmatpush.xpose.msra.mxu0 0.0
      %6509 = vmatpush.xpose.msra.mxu0 0.0
      %6510 = vmatpush.xpose.msra.mxu0 0.0
      %6511 = vmatpush.xpose.msra.mxu0 0.0
      %6512 = vmatpush.xpose.msra.mxu0 0.0
      %6513 = vmatpush.xpose.msra.mxu0 0.0
      %6514 = vmatpush.xpose.msra.mxu0 0.0
      %6515 = vmatpush.xpose.msra.mxu0 0.0
      %6516 = vmatpush.xpose.msra.mxu0 0.0
      %6517 = vmatpush.xpose.msra.mxu0 %v6500
      %6518 = vmatmul.f32.gmra.mxu0 %v6498
      %v6519 = vpop.f32.mrf.mxu0
      %v6520 = vadd.f32 0.0, %v6519
      %6521 = vdwg.mxu0
      %v6522 = vsel %vm3737, %v5136, 0
      %v6524 = vsel %vm3737, %v5317, 0
      %6526 = vmatpush.xpose.msra.mxu0 0.0
      %6527 = vmatpush.xpose.msra.mxu0 0.0
      %6528 = vmatpush.xpose.msra.mxu0 0.0
      %6529 = vmatpush.xpose.msra.mxu0 0.0
      %6530 = vmatpush.xpose.msra.mxu0 0.0
      %6531 = vmatpush.xpose.msra.mxu0 0.0
      %6532 = vmatpush.xpose.msra.mxu0 0.0
      %6533 = vmatpush.xpose.msra.mxu0 0.0
      %6534 = vmatpush.xpose.msra.mxu0 0.0
      %6535 = vmatpush.xpose.msra.mxu0 0.0
      %6536 = vmatpush.xpose.msra.mxu0 0.0
      %6537 = vmatpush.xpose.msra.mxu0 0.0
      %6538 = vmatpush.xpose.msra.mxu0 0.0
      %6539 = vmatpush.xpose.msra.mxu0 0.0
      %6540 = vmatpush.xpose.msra.mxu0 0.0
      %6541 = vmatpush.xpose.msra.mxu0 %v6524
      %6542 = vmatmul.f32.gmra.mxu0 %v6522
      %v6543 = vpop.f32.mrf.mxu0
      %v6544 = vadd.f32 0.0, %v6543
      %6545 = vdwg.mxu0
      %v6546 = vsel %vm3737, %v5264, 0
      %v6548 = vsel %vm3737, %v5403, 0
      %6550 = vmatpush.xpose.msra.mxu0 0.0
      %6551 = vmatpush.xpose.msra.mxu0 0.0
      %6552 = vmatpush.xpose.msra.mxu0 0.0
      %6553 = vmatpush.xpose.msra.mxu0 0.0
      %6554 = vmatpush.xpose.msra.mxu0 0.0
      %6555 = vmatpush.xpose.msra.mxu0 0.0
      %6556 = vmatpush.xpose.msra.mxu0 0.0
      %6557 = vmatpush.xpose.msra.mxu0 0.0
      %6558 = vmatpush.xpose.msra.mxu0 0.0
      %6559 = vmatpush.xpose.msra.mxu0 0.0
      %6560 = vmatpush.xpose.msra.mxu0 0.0
      %6561 = vmatpush.xpose.msra.mxu0 0.0
      %6562 = vmatpush.xpose.msra.mxu0 0.0
      %6563 = vmatpush.xpose.msra.mxu0 0.0
      %6564 = vmatpush.xpose.msra.mxu0 0.0
      %6565 = vmatpush.xpose.msra.mxu0 %v6548
      %6566 = vmatmul.f32.gmra.mxu0 %v6546
      %v6567 = vpop.f32.mrf.mxu0
      %v6568 = vadd.f32 0.0, %v6567
      %6569 = vdwg.mxu0
      %v6570 = vsel %vm3737, %v5137, 0
      %v6572 = vsel %vm3737, %v5404, 0
      %6574 = vmatpush.xpose.msra.mxu0 0.0
      %6575 = vmatpush.xpose.msra.mxu0 0.0
      %6576 = vmatpush.xpose.msra.mxu0 0.0
      %6577 = vmatpush.xpose.msra.mxu0 0.0
      %6578 = vmatpush.xpose.msra.mxu0 0.0
      %6579 = vmatpush.xpose.msra.mxu0 0.0
      %6580 = vmatpush.xpose.msra.mxu0 0.0
      %6581 = vmatpush.xpose.msra.mxu0 0.0
      %6582 = vmatpush.xpose.msra.mxu0 0.0
      %6583 = vmatpush.xpose.msra.mxu0 0.0
      %6584 = vmatpush.xpose.msra.mxu0 0.0
      %6585 = vmatpush.xpose.msra.mxu0 0.0
      %6586 = vmatpush.xpose.msra.mxu0 0.0
      %6587 = vmatpush.xpose.msra.mxu0 0.0
      %6588 = vmatpush.xpose.msra.mxu0 0.0
      %6589 = vmatpush.xpose.msra.mxu0 %v6572
      %6590 = vmatmul.f32.gmra.mxu0 %v6570
      %v6591 = vpop.f32.mrf.mxu0
      %v6592 = vadd.f32 0.0, %v6591
      %6593 = vdwg.mxu0
      %v6594 = vsel %vm3737, %v5265, 0
      %v6596 = vsel %vm3737, %v5405, 0
      %6598 = vmatpush.xpose.msra.mxu0 0.0
      %6599 = vmatpush.xpose.msra.mxu0 0.0
      %6600 = vmatpush.xpose.msra.mxu0 0.0
      %6601 = vmatpush.xpose.msra.mxu0 0.0
      %6602 = vmatpush.xpose.msra.mxu0 0.0
      %6603 = vmatpush.xpose.msra.mxu0 0.0
      %6604 = vmatpush.xpose.msra.mxu0 0.0
      %6605 = vmatpush.xpose.msra.mxu0 0.0
      %6606 = vmatpush.xpose.msra.mxu0 0.0
      %6607 = vmatpush.xpose.msra.mxu0 0.0
      %6608 = vmatpush.xpose.msra.mxu0 0.0
      %6609 = vmatpush.xpose.msra.mxu0 0.0
      %6610 = vmatpush.xpose.msra.mxu0 0.0
      %6611 = vmatpush.xpose.msra.mxu0 0.0
      %6612 = vmatpush.xpose.msra.mxu0 0.0
      %6613 = vmatpush.xpose.msra.mxu0 %v6596
      %6614 = vmatmul.f32.gmra.mxu0 %v6594
      %v6615 = vpop.f32.mrf.mxu0
      %v6616 = vadd.f32 0.0, %v6615
      %6617 = vdwg.mxu0
      %v6618 = vsel %vm3737, %v5138, 0
      %v6620 = vsel %vm3737, %v5318, 0
      %6622 = vmatpush.xpose.msra.mxu0 0.0
      %6623 = vmatpush.xpose.msra.mxu0 0.0
      %6624 = vmatpush.xpose.msra.mxu0 0.0
      %6625 = vmatpush.xpose.msra.mxu0 0.0
      %6626 = vmatpush.xpose.msra.mxu0 0.0
      %6627 = vmatpush.xpose.msra.mxu0 0.0
      %6628 = vmatpush.xpose.msra.mxu0 0.0
      %6629 = vmatpush.xpose.msra.mxu0 0.0
      %6630 = vmatpush.xpose.msra.mxu0 0.0
      %6631 = vmatpush.xpose.msra.mxu0 0.0
      %6632 = vmatpush.xpose.msra.mxu0 0.0
      %6633 = vmatpush.xpose.msra.mxu0 0.0
      %6634 = vmatpush.xpose.msra.mxu0 0.0
      %6635 = vmatpush.xpose.msra.mxu0 0.0
      %6636 = vmatpush.xpose.msra.mxu0 0.0
      %6637 = vmatpush.xpose.msra.mxu0 %v6620
      %6638 = vmatmul.f32.gmra.mxu0 %v6618
      %v6639 = vpop.f32.mrf.mxu0
      %v6640 = vadd.f32 0.0, %v6639
      %6641 = vdwg.mxu0
      %v6642 = vsel %vm3737, %v5266, 0
      %v6644 = vsel %vm3737, %v5406, 0
      %6646 = vmatpush.xpose.msra.mxu0 0.0
      %6647 = vmatpush.xpose.msra.mxu0 0.0
      %6648 = vmatpush.xpose.msra.mxu0 0.0
      %6649 = vmatpush.xpose.msra.mxu0 0.0
      %6650 = vmatpush.xpose.msra.mxu0 0.0
      %6651 = vmatpush.xpose.msra.mxu0 0.0
      %6652 = vmatpush.xpose.msra.mxu0 0.0
      %6653 = vmatpush.xpose.msra.mxu0 0.0
      %6654 = vmatpush.xpose.msra.mxu0 0.0
      %6655 = vmatpush.xpose.msra.mxu0 0.0
      %6656 = vmatpush.xpose.msra.mxu0 0.0
      %6657 = vmatpush.xpose.msra.mxu0 0.0
      %6658 = vmatpush.xpose.msra.mxu0 0.0
      %6659 = vmatpush.xpose.msra.mxu0 0.0
      %6660 = vmatpush.xpose.msra.mxu0 0.0
      %6661 = vmatpush.xpose.msra.mxu0 %v6644
      %6662 = vmatmul.f32.gmra.mxu0 %v6642
      %v6663 = vpop.f32.mrf.mxu0
      %v6664 = vadd.f32 0.0, %v6663
      %6665 = vdwg.mxu0
      %v6666 = vsel %vm3737, %v5139, 0
      %v6668 = vsel %vm3737, %v5407, 0
      %6670 = vmatpush.xpose.msra.mxu0 0.0
      %6671 = vmatpush.xpose.msra.mxu0 0.0
      %6672 = vmatpush.xpose.msra.mxu0 0.0
      %6673 = vmatpush.xpose.msra.mxu0 0.0
      %6674 = vmatpush.xpose.msra.mxu0 0.0
      %6675 = vmatpush.xpose.msra.mxu0 0.0
      %6676 = vmatpush.xpose.msra.mxu0 0.0
      %6677 = vmatpush.xpose.msra.mxu0 0.0
      %6678 = vmatpush.xpose.msra.mxu0 0.0
      %6679 = vmatpush.xpose.msra.mxu0 0.0
      %6680 = vmatpush.xpose.msra.mxu0 0.0
      %6681 = vmatpush.xpose.msra.mxu0 0.0
      %6682 = vmatpush.xpose.msra.mxu0 0.0
      %6683 = vmatpush.xpose.msra.mxu0 0.0
      %6684 = vmatpush.xpose.msra.mxu0 0.0
      %6685 = vmatpush.xpose.msra.mxu0 %v6668
      %6686 = vmatmul.f32.gmra.mxu0 %v6666
      %v6687 = vpop.f32.mrf.mxu0
      %v6688 = vadd.f32 0.0, %v6687
      %6689 = vdwg.mxu0
      %v6690 = vsel %vm3737, %v5267, 0
      %v6692 = vsel %vm3737, %v5408, 0
      %6694 = vmatpush.xpose.msra.mxu0 0.0
      %6695 = vmatpush.xpose.msra.mxu0 0.0
      %6696 = vmatpush.xpose.msra.mxu0 0.0
      %6697 = vmatpush.xpose.msra.mxu0 0.0
      %6698 = vmatpush.xpose.msra.mxu0 0.0
      %6699 = vmatpush.xpose.msra.mxu0 0.0
      %6700 = vmatpush.xpose.msra.mxu0 0.0
      %6701 = vmatpush.xpose.msra.mxu0 0.0
      %6702 = vmatpush.xpose.msra.mxu0 0.0
      %6703 = vmatpush.xpose.msra.mxu0 0.0
      %6704 = vmatpush.xpose.msra.mxu0 0.0
      %6705 = vmatpush.xpose.msra.mxu0 0.0
      %6706 = vmatpush.xpose.msra.mxu0 0.0
      %6707 = vmatpush.xpose.msra.mxu0 0.0
      %6708 = vmatpush.xpose.msra.mxu0 0.0
      %6709 = vmatpush.xpose.msra.mxu0 %v6692
      %6710 = vmatmul.f32.gmra.mxu0 %v6690
      %v6711 = vpop.f32.mrf.mxu0
      %v6712 = vadd.f32 0.0, %v6711
      %6713 = vdwg.mxu0
      %v6714 = vsel %vm3737, %v5140, 0
      %v6716 = vsel %vm3737, %v5319, 0
      %6718 = vmatpush.xpose.msra.mxu0 0.0
      %6719 = vmatpush.xpose.msra.mxu0 0.0
      %6720 = vmatpush.xpose.msra.mxu0 0.0
      %6721 = vmatpush.xpose.msra.mxu0 0.0
      %6722 = vmatpush.xpose.msra.mxu0 0.0
      %6723 = vmatpush.xpose.msra.mxu0 0.0
      %6724 = vmatpush.xpose.msra.mxu0 0.0
      %6725 = vmatpush.xpose.msra.mxu0 0.0
      %6726 = vmatpush.xpose.msra.mxu0 0.0
      %6727 = vmatpush.xpose.msra.mxu0 0.0
      %6728 = vmatpush.xpose.msra.mxu0 0.0
      %6729 = vmatpush.xpose.msra.mxu0 0.0
      %6730 = vmatpush.xpose.msra.mxu0 0.0
      %6731 = vmatpush.xpose.msra.mxu0 0.0
      %6732 = vmatpush.xpose.msra.mxu0 0.0
      %6733 = vmatpush.xpose.msra.mxu0 %v6716
      %6734 = vmatmul.f32.gmra.mxu0 %v6714
      %v6735 = vpop.f32.mrf.mxu0
      %v6736 = vadd.f32 0.0, %v6735
      %6737 = vdwg.mxu0
      %v6738 = vsel %vm3737, %v5268, 0
      %v6740 = vsel %vm3737, %v5409, 0
      %6742 = vmatpush.xpose.msra.mxu0 0.0
      %6743 = vmatpush.xpose.msra.mxu0 0.0
      %6744 = vmatpush.xpose.msra.mxu0 0.0
      %6745 = vmatpush.xpose.msra.mxu0 0.0
      %6746 = vmatpush.xpose.msra.mxu0 0.0
      %6747 = vmatpush.xpose.msra.mxu0 0.0
      %6748 = vmatpush.xpose.msra.mxu0 0.0
      %6749 = vmatpush.xpose.msra.mxu0 0.0
      %6750 = vmatpush.xpose.msra.mxu0 0.0
      %6751 = vmatpush.xpose.msra.mxu0 0.0
      %6752 = vmatpush.xpose.msra.mxu0 0.0
      %6753 = vmatpush.xpose.msra.mxu0 0.0
      %6754 = vmatpush.xpose.msra.mxu0 0.0
      %6755 = vmatpush.xpose.msra.mxu0 0.0
      %6756 = vmatpush.xpose.msra.mxu0 0.0
      %6757 = vmatpush.xpose.msra.mxu0 %v6740
      %6758 = vmatmul.f32.gmra.mxu0 %v6738
      %v6759 = vpop.f32.mrf.mxu0
      %v6760 = vadd.f32 0.0, %v6759
      %6761 = vdwg.mxu0
      %v6762 = vsel %vm3737, %v5141, 0
      %v6764 = vsel %vm3737, %v5410, 0
      %6766 = vmatpush.xpose.msra.mxu0 0.0
      %6767 = vmatpush.xpose.msra.mxu0 0.0
      %6768 = vmatpush.xpose.msra.mxu0 0.0
      %6769 = vmatpush.xpose.msra.mxu0 0.0
      %6770 = vmatpush.xpose.msra.mxu0 0.0
      %6771 = vmatpush.xpose.msra.mxu0 0.0
      %6772 = vmatpush.xpose.msra.mxu0 0.0
      %6773 = vmatpush.xpose.msra.mxu0 0.0
      %6774 = vmatpush.xpose.msra.mxu0 0.0
      %6775 = vmatpush.xpose.msra.mxu0 0.0
      %6776 = vmatpush.xpose.msra.mxu0 0.0
      %6777 = vmatpush.xpose.msra.mxu0 0.0
      %6778 = vmatpush.xpose.msra.mxu0 0.0
      %6779 = vmatpush.xpose.msra.mxu0 0.0
      %6780 = vmatpush.xpose.msra.mxu0 0.0
      %6781 = vmatpush.xpose.msra.mxu0 %v6764
      %6782 = vmatmul.f32.gmra.mxu0 %v6762
      %v6783 = vpop.f32.mrf.mxu0
      %v6784 = vadd.f32 0.0, %v6783
      %6785 = vdwg.mxu0
      %v6786 = vsel %vm3737, %v5269, 0
      %v6788 = vsel %vm3737, %v5411, 0
      %6790 = vmatpush.xpose.msra.mxu0 0.0
      %6791 = vmatpush.xpose.msra.mxu0 0.0
      %6792 = vmatpush.xpose.msra.mxu0 0.0
      %6793 = vmatpush.xpose.msra.mxu0 0.0
      %6794 = vmatpush.xpose.msra.mxu0 0.0
      %6795 = vmatpush.xpose.msra.mxu0 0.0
      %6796 = vmatpush.xpose.msra.mxu0 0.0
      %6797 = vmatpush.xpose.msra.mxu0 0.0
      %6798 = vmatpush.xpose.msra.mxu0 0.0
      %6799 = vmatpush.xpose.msra.mxu0 0.0
      %6800 = vmatpush.xpose.msra.mxu0 0.0
      %6801 = vmatpush.xpose.msra.mxu0 0.0
      %6802 = vmatpush.xpose.msra.mxu0 0.0
      %6803 = vmatpush.xpose.msra.mxu0 0.0
      %6804 = vmatpush.xpose.msra.mxu0 0.0
      %6805 = vmatpush.xpose.msra.mxu0 %v6788
      %6806 = vmatmul.f32.gmra.mxu0 %v6786
      %v6807 = vpop.f32.mrf.mxu0
      %v6808 = vadd.f32 0.0, %v6807
      %6809 = vdwg.mxu0
      %v6810 = vsel %vm3737, %v5142, 0
      %v6812 = vsel %vm3737, %v5320, 0
      %6814 = vmatpush.xpose.msra.mxu0 0.0
      %6815 = vmatpush.xpose.msra.mxu0 0.0
      %6816 = vmatpush.xpose.msra.mxu0 0.0
      %6817 = vmatpush.xpose.msra.mxu0 0.0
      %6818 = vmatpush.xpose.msra.mxu0 0.0
      %6819 = vmatpush.xpose.msra.mxu0 0.0
      %6820 = vmatpush.xpose.msra.mxu0 0.0
      %6821 = vmatpush.xpose.msra.mxu0 0.0
      %6822 = vmatpush.xpose.msra.mxu0 0.0
      %6823 = vmatpush.xpose.msra.mxu0 0.0
      %6824 = vmatpush.xpose.msra.mxu0 0.0
      %6825 = vmatpush.xpose.msra.mxu0 0.0
      %6826 = vmatpush.xpose.msra.mxu0 0.0
      %6827 = vmatpush.xpose.msra.mxu0 0.0
      %6828 = vmatpush.xpose.msra.mxu0 0.0
      %6829 = vmatpush.xpose.msra.mxu0 %v6812
      %6830 = vmatmul.f32.gmra.mxu0 %v6810
      %v6831 = vpop.f32.mrf.mxu0
      %v6832 = vadd.f32 0.0, %v6831
      %6833 = vdwg.mxu0
      %v6834 = vsel %vm3737, %v5270, 0
      %v6836 = vsel %vm3737, %v5412, 0
      %6838 = vmatpush.xpose.msra.mxu0 0.0
      %6839 = vmatpush.xpose.msra.mxu0 0.0
      %6840 = vmatpush.xpose.msra.mxu0 0.0
      %6841 = vmatpush.xpose.msra.mxu0 0.0
      %6842 = vmatpush.xpose.msra.mxu0 0.0
      %6843 = vmatpush.xpose.msra.mxu0 0.0
      %6844 = vmatpush.xpose.msra.mxu0 0.0
      %6845 = vmatpush.xpose.msra.mxu0 0.0
      %6846 = vmatpush.xpose.msra.mxu0 0.0
      %6847 = vmatpush.xpose.msra.mxu0 0.0
      %6848 = vmatpush.xpose.msra.mxu0 0.0
      %6849 = vmatpush.xpose.msra.mxu0 0.0
      %6850 = vmatpush.xpose.msra.mxu0 0.0
      %6851 = vmatpush.xpose.msra.mxu0 0.0
      %6852 = vmatpush.xpose.msra.mxu0 0.0
      %6853 = vmatpush.xpose.msra.mxu0 %v6836
      %6854 = vmatmul.f32.gmra.mxu0 %v6834
      %v6855 = vpop.f32.mrf.mxu0
      %v6856 = vadd.f32 0.0, %v6855
      %6857 = vdwg.mxu0
      %v6858 = vsel %vm3737, %v5143, 0
      %v6860 = vsel %vm3737, %v5413, 0
      %6862 = vmatpush.xpose.msra.mxu0 0.0
      %6863 = vmatpush.xpose.msra.mxu0 0.0
      %6864 = vmatpush.xpose.msra.mxu0 0.0
      %6865 = vmatpush.xpose.msra.mxu0 0.0
      %6866 = vmatpush.xpose.msra.mxu0 0.0
      %6867 = vmatpush.xpose.msra.mxu0 0.0
      %6868 = vmatpush.xpose.msra.mxu0 0.0
      %6869 = vmatpush.xpose.msra.mxu0 0.0
      %6870 = vmatpush.xpose.msra.mxu0 0.0
      %6871 = vmatpush.xpose.msra.mxu0 0.0
      %6872 = vmatpush.xpose.msra.mxu0 0.0
      %6873 = vmatpush.xpose.msra.mxu0 0.0
      %6874 = vmatpush.xpose.msra.mxu0 0.0
      %6875 = vmatpush.xpose.msra.mxu0 0.0
      %6876 = vmatpush.xpose.msra.mxu0 0.0
      %6877 = vmatpush.xpose.msra.mxu0 %v6860
      %6878 = vmatmul.f32.gmra.mxu0 %v6858
      %v6879 = vpop.f32.mrf.mxu0
      %v6880 = vadd.f32 0.0, %v6879
      %6881 = vdwg.mxu0
      %v6882 = vsel %vm3737, %v5271, 0
      %v6884 = vsel %vm3737, %v5414, 0
      %6886 = vmatpush.xpose.msra.mxu0 0.0
      %6887 = vmatpush.xpose.msra.mxu0 0.0
      %6888 = vmatpush.xpose.msra.mxu0 0.0
      %6889 = vmatpush.xpose.msra.mxu0 0.0
      %6890 = vmatpush.xpose.msra.mxu0 0.0
      %6891 = vmatpush.xpose.msra.mxu0 0.0
      %6892 = vmatpush.xpose.msra.mxu0 0.0
      %6893 = vmatpush.xpose.msra.mxu0 0.0
      %6894 = vmatpush.xpose.msra.mxu0 0.0
      %6895 = vmatpush.xpose.msra.mxu0 0.0
      %6896 = vmatpush.xpose.msra.mxu0 0.0
      %6897 = vmatpush.xpose.msra.mxu0 0.0
      %6898 = vmatpush.xpose.msra.mxu0 0.0
      %6899 = vmatpush.xpose.msra.mxu0 0.0
      %6900 = vmatpush.xpose.msra.mxu0 0.0
      %6901 = vmatpush.xpose.msra.mxu0 %v6884
      %6902 = vmatmul.f32.gmra.mxu0 %v6882
      %v6903 = vpop.f32.mrf.mxu0
      %v6904 = vadd.f32 0.0, %v6903
      %6905 = vdwg.mxu0
      %v6906 = vsel %vm3737, %v5144, 0
      %v6908 = vsel %vm3737, %v5321, 0
      %6910 = vmatpush.xpose.msra.mxu0 0.0
      %6911 = vmatpush.xpose.msra.mxu0 0.0
      %6912 = vmatpush.xpose.msra.mxu0 0.0
      %6913 = vmatpush.xpose.msra.mxu0 0.0
      %6914 = vmatpush.xpose.msra.mxu0 0.0
      %6915 = vmatpush.xpose.msra.mxu0 0.0
      %6916 = vmatpush.xpose.msra.mxu0 0.0
      %6917 = vmatpush.xpose.msra.mxu0 0.0
      %6918 = vmatpush.xpose.msra.mxu0 0.0
      %6919 = vmatpush.xpose.msra.mxu0 0.0
      %6920 = vmatpush.xpose.msra.mxu0 0.0
      %6921 = vmatpush.xpose.msra.mxu0 0.0
      %6922 = vmatpush.xpose.msra.mxu0 0.0
      %6923 = vmatpush.xpose.msra.mxu0 0.0
      %6924 = vmatpush.xpose.msra.mxu0 0.0
      %6925 = vmatpush.xpose.msra.mxu0 %v6908
      %6926 = vmatmul.f32.gmra.mxu0 %v6906
      %v6927 = vpop.f32.mrf.mxu0
      %v6928 = vadd.f32 0.0, %v6927
      %6929 = vdwg.mxu0
      %v6930 = vsel %vm3737, %v5272, 0
      %v6932 = vsel %vm3737, %v5415, 0
      %6934 = vmatpush.xpose.msra.mxu0 0.0
      %6935 = vmatpush.xpose.msra.mxu0 0.0
      %6936 = vmatpush.xpose.msra.mxu0 0.0
      %6937 = vmatpush.xpose.msra.mxu0 0.0
      %6938 = vmatpush.xpose.msra.mxu0 0.0
      %6939 = vmatpush.xpose.msra.mxu0 0.0
      %6940 = vmatpush.xpose.msra.mxu0 0.0
      %6941 = vmatpush.xpose.msra.mxu0 0.0
      %6942 = vmatpush.xpose.msra.mxu0 0.0
      %6943 = vmatpush.xpose.msra.mxu0 0.0
      %6944 = vmatpush.xpose.msra.mxu0 0.0
      %6945 = vmatpush.xpose.msra.mxu0 0.0
      %6946 = vmatpush.xpose.msra.mxu0 0.0
      %6947 = vmatpush.xpose.msra.mxu0 0.0
      %6948 = vmatpush.xpose.msra.mxu0 0.0
      %6949 = vmatpush.xpose.msra.mxu0 %v6932
      %6950 = vmatmul.f32.gmra.mxu0 %v6930
      %v6951 = vpop.f32.mrf.mxu0
      %v6952 = vadd.f32 0.0, %v6951
      %6953 = vdwg.mxu0
      %v6954 = vsel %vm3737, %v5145, 0
      %v6956 = vsel %vm3737, %v5416, 0
      %6958 = vmatpush.xpose.msra.mxu0 0.0
      %6959 = vmatpush.xpose.msra.mxu0 0.0
      %6960 = vmatpush.xpose.msra.mxu0 0.0
      %6961 = vmatpush.xpose.msra.mxu0 0.0
      %6962 = vmatpush.xpose.msra.mxu0 0.0
      %6963 = vmatpush.xpose.msra.mxu0 0.0
      %6964 = vmatpush.xpose.msra.mxu0 0.0
      %6965 = vmatpush.xpose.msra.mxu0 0.0
      %6966 = vmatpush.xpose.msra.mxu0 0.0
      %6967 = vmatpush.xpose.msra.mxu0 0.0
      %6968 = vmatpush.xpose.msra.mxu0 0.0
      %6969 = vmatpush.xpose.msra.mxu0 0.0
      %6970 = vmatpush.xpose.msra.mxu0 0.0
      %6971 = vmatpush.xpose.msra.mxu0 0.0
      %6972 = vmatpush.xpose.msra.mxu0 0.0
      %6973 = vmatpush.xpose.msra.mxu0 %v6956
      %6974 = vmatmul.f32.gmra.mxu0 %v6954
      %v6975 = vpop.f32.mrf.mxu0
      %v6976 = vadd.f32 0.0, %v6975
      %6977 = vdwg.mxu0
      %v6978 = vsel %vm3737, %v5273, 0
      %v6980 = vsel %vm3737, %v5417, 0
      %6982 = vmatpush.xpose.msra.mxu0 0.0
      %6983 = vmatpush.xpose.msra.mxu0 0.0
      %6984 = vmatpush.xpose.msra.mxu0 0.0
      %6985 = vmatpush.xpose.msra.mxu0 0.0
      %6986 = vmatpush.xpose.msra.mxu0 0.0
      %6987 = vmatpush.xpose.msra.mxu0 0.0
      %6988 = vmatpush.xpose.msra.mxu0 0.0
      %6989 = vmatpush.xpose.msra.mxu0 0.0
      %6990 = vmatpush.xpose.msra.mxu0 0.0
      %6991 = vmatpush.xpose.msra.mxu0 0.0
      %6992 = vmatpush.xpose.msra.mxu0 0.0
      %6993 = vmatpush.xpose.msra.mxu0 0.0
      %6994 = vmatpush.xpose.msra.mxu0 0.0
      %6995 = vmatpush.xpose.msra.mxu0 0.0
      %6996 = vmatpush.xpose.msra.mxu0 0.0
      %6997 = vmatpush.xpose.msra.mxu0 %v6980
      %6998 = vmatmul.f32.gmra.mxu0 %v6978
      %v6999 = vpop.f32.mrf.mxu0
      %v7000 = vadd.f32 0.0, %v6999
      %7001 = vdwg.mxu0
      %v7002 = vsel %vm3737, %v5146, 0
      %v7004 = vsel %vm3737, %v5322, 0
      %7006 = vmatpush.xpose.msra.mxu0 0.0
      %7007 = vmatpush.xpose.msra.mxu0 0.0
      %7008 = vmatpush.xpose.msra.mxu0 0.0
      %7009 = vmatpush.xpose.msra.mxu0 0.0
      %7010 = vmatpush.xpose.msra.mxu0 0.0
      %7011 = vmatpush.xpose.msra.mxu0 0.0
      %7012 = vmatpush.xpose.msra.mxu0 0.0
      %7013 = vmatpush.xpose.msra.mxu0 0.0
      %7014 = vmatpush.xpose.msra.mxu0 0.0
      %7015 = vmatpush.xpose.msra.mxu0 0.0
      %7016 = vmatpush.xpose.msra.mxu0 0.0
      %7017 = vmatpush.xpose.msra.mxu0 0.0
      %7018 = vmatpush.xpose.msra.mxu0 0.0
      %7019 = vmatpush.xpose.msra.mxu0 0.0
      %7020 = vmatpush.xpose.msra.mxu0 0.0
      %7021 = vmatpush.xpose.msra.mxu0 %v7004
      %7022 = vmatmul.f32.gmra.mxu0 %v7002
      %v7023 = vpop.f32.mrf.mxu0
      %v7024 = vadd.f32 0.0, %v7023
      %7025 = vdwg.mxu0
      %v7026 = vsel %vm3737, %v5274, 0
      %v7028 = vsel %vm3737, %v5418, 0
      %7030 = vmatpush.xpose.msra.mxu0 0.0
      %7031 = vmatpush.xpose.msra.mxu0 0.0
      %7032 = vmatpush.xpose.msra.mxu0 0.0
      %7033 = vmatpush.xpose.msra.mxu0 0.0
      %7034 = vmatpush.xpose.msra.mxu0 0.0
      %7035 = vmatpush.xpose.msra.mxu0 0.0
      %7036 = vmatpush.xpose.msra.mxu0 0.0
      %7037 = vmatpush.xpose.msra.mxu0 0.0
      %7038 = vmatpush.xpose.msra.mxu0 0.0
      %7039 = vmatpush.xpose.msra.mxu0 0.0
      %7040 = vmatpush.xpose.msra.mxu0 0.0
      %7041 = vmatpush.xpose.msra.mxu0 0.0
      %7042 = vmatpush.xpose.msra.mxu0 0.0
      %7043 = vmatpush.xpose.msra.mxu0 0.0
      %7044 = vmatpush.xpose.msra.mxu0 0.0
      %7045 = vmatpush.xpose.msra.mxu0 %v7028
      %7046 = vmatmul.f32.gmra.mxu0 %v7026
      %v7047 = vpop.f32.mrf.mxu0
      %v7048 = vadd.f32 0.0, %v7047
      %7049 = vdwg.mxu0
      %v7050 = vsel %vm3737, %v5147, 0
      %v7052 = vsel %vm3737, %v5419, 0
      %7054 = vmatpush.xpose.msra.mxu0 0.0
      %7055 = vmatpush.xpose.msra.mxu0 0.0
      %7056 = vmatpush.xpose.msra.mxu0 0.0
      %7057 = vmatpush.xpose.msra.mxu0 0.0
      %7058 = vmatpush.xpose.msra.mxu0 0.0
      %7059 = vmatpush.xpose.msra.mxu0 0.0
      %7060 = vmatpush.xpose.msra.mxu0 0.0
      %7061 = vmatpush.xpose.msra.mxu0 0.0
      %7062 = vmatpush.xpose.msra.mxu0 0.0
      %7063 = vmatpush.xpose.msra.mxu0 0.0
      %7064 = vmatpush.xpose.msra.mxu0 0.0
      %7065 = vmatpush.xpose.msra.mxu0 0.0
      %7066 = vmatpush.xpose.msra.mxu0 0.0
      %7067 = vmatpush.xpose.msra.mxu0 0.0
      %7068 = vmatpush.xpose.msra.mxu0 0.0
      %7069 = vmatpush.xpose.msra.mxu0 %v7052
      %7070 = vmatmul.f32.gmra.mxu0 %v7050
      %v7071 = vpop.f32.mrf.mxu0
      %v7072 = vadd.f32 0.0, %v7071
      %7073 = vdwg.mxu0
      %v7074 = vsel %vm3737, %v5275, 0
      %v7076 = vsel %vm3737, %v5420, 0
      %7078 = vmatpush.xpose.msra.mxu0 0.0
      %7079 = vmatpush.xpose.msra.mxu0 0.0
      %7080 = vmatpush.xpose.msra.mxu0 0.0
      %7081 = vmatpush.xpose.msra.mxu0 0.0
      %7082 = vmatpush.xpose.msra.mxu0 0.0
      %7083 = vmatpush.xpose.msra.mxu0 0.0
      %7084 = vmatpush.xpose.msra.mxu0 0.0
      %7085 = vmatpush.xpose.msra.mxu0 0.0
      %7086 = vmatpush.xpose.msra.mxu0 0.0
      %7087 = vmatpush.xpose.msra.mxu0 0.0
      %7088 = vmatpush.xpose.msra.mxu0 0.0
      %7089 = vmatpush.xpose.msra.mxu0 0.0
      %7090 = vmatpush.xpose.msra.mxu0 0.0
      %7091 = vmatpush.xpose.msra.mxu0 0.0
      %7092 = vmatpush.xpose.msra.mxu0 0.0
      %7093 = vmatpush.xpose.msra.mxu0 %v7076
      %7094 = vmatmul.f32.gmra.mxu0 %v7074
      %v7095 = vpop.f32.mrf.mxu0
      %v7096 = vadd.f32 0.0, %v7095
      %7097 = vdwg.mxu0
      %v7098 = vsel %vm3737, %v5148, 0
      %v7100 = vsel %vm3737, %v5323, 0
      %7102 = vmatpush.xpose.msra.mxu0 0.0
      %7103 = vmatpush.xpose.msra.mxu0 0.0
      %7104 = vmatpush.xpose.msra.mxu0 0.0
      %7105 = vmatpush.xpose.msra.mxu0 0.0
      %7106 = vmatpush.xpose.msra.mxu0 0.0
      %7107 = vmatpush.xpose.msra.mxu0 0.0
      %7108 = vmatpush.xpose.msra.mxu0 0.0
      %7109 = vmatpush.xpose.msra.mxu0 0.0
      %7110 = vmatpush.xpose.msra.mxu0 0.0
      %7111 = vmatpush.xpose.msra.mxu0 0.0
      %7112 = vmatpush.xpose.msra.mxu0 0.0
      %7113 = vmatpush.xpose.msra.mxu0 0.0
      %7114 = vmatpush.xpose.msra.mxu0 0.0
      %7115 = vmatpush.xpose.msra.mxu0 0.0
      %7116 = vmatpush.xpose.msra.mxu0 0.0
      %7117 = vmatpush.xpose.msra.mxu0 %v7100
      %7118 = vmatmul.f32.gmra.mxu0 %v7098
      %v7119 = vpop.f32.mrf.mxu0
      %v7120 = vadd.f32 0.0, %v7119
      %7121 = vdwg.mxu0
      %v7122 = vsel %vm3737, %v5276, 0
      %v7124 = vsel %vm3737, %v5421, 0
      %7126 = vmatpush.xpose.msra.mxu0 0.0
      %7127 = vmatpush.xpose.msra.mxu0 0.0
      %7128 = vmatpush.xpose.msra.mxu0 0.0
      %7129 = vmatpush.xpose.msra.mxu0 0.0
      %7130 = vmatpush.xpose.msra.mxu0 0.0
      %7131 = vmatpush.xpose.msra.mxu0 0.0
      %7132 = vmatpush.xpose.msra.mxu0 0.0
      %7133 = vmatpush.xpose.msra.mxu0 0.0
      %7134 = vmatpush.xpose.msra.mxu0 0.0
      %7135 = vmatpush.xpose.msra.mxu0 0.0
      %7136 = vmatpush.xpose.msra.mxu0 0.0
      %7137 = vmatpush.xpose.msra.mxu0 0.0
      %7138 = vmatpush.xpose.msra.mxu0 0.0
      %7139 = vmatpush.xpose.msra.mxu0 0.0
      %7140 = vmatpush.xpose.msra.mxu0 0.0
      %7141 = vmatpush.xpose.msra.mxu0 %v7124
      %7142 = vmatmul.f32.gmra.mxu0 %v7122
      %v7143 = vpop.f32.mrf.mxu0
      %v7144 = vadd.f32 0.0, %v7143
      %7145 = vdwg.mxu0
      %v7146 = vsel %vm3737, %v5149, 0
      %v7148 = vsel %vm3737, %v5422, 0
      %7150 = vmatpush.xpose.msra.mxu0 0.0
      %7151 = vmatpush.xpose.msra.mxu0 0.0
      %7152 = vmatpush.xpose.msra.mxu0 0.0
      %7153 = vmatpush.xpose.msra.mxu0 0.0
      %7154 = vmatpush.xpose.msra.mxu0 0.0
      %7155 = vmatpush.xpose.msra.mxu0 0.0
      %7156 = vmatpush.xpose.msra.mxu0 0.0
      %7157 = vmatpush.xpose.msra.mxu0 0.0
      %7158 = vmatpush.xpose.msra.mxu0 0.0
      %7159 = vmatpush.xpose.msra.mxu0 0.0
      %7160 = vmatpush.xpose.msra.mxu0 0.0
      %7161 = vmatpush.xpose.msra.mxu0 0.0
      %7162 = vmatpush.xpose.msra.mxu0 0.0
      %7163 = vmatpush.xpose.msra.mxu0 0.0
      %7164 = vmatpush.xpose.msra.mxu0 0.0
      %7165 = vmatpush.xpose.msra.mxu0 %v7148
      %7166 = vmatmul.f32.gmra.mxu0 %v7146
      %v7167 = vpop.f32.mrf.mxu0
      %v7168 = vadd.f32 0.0, %v7167
      %7169 = vdwg.mxu0
      %v7170 = vsel %vm3737, %v5277, 0
      %v7172 = vsel %vm3737, %v5423, 0
      %7174 = vmatpush.xpose.msra.mxu0 0.0
      %7175 = vmatpush.xpose.msra.mxu0 0.0
      %7176 = vmatpush.xpose.msra.mxu0 0.0
      %7177 = vmatpush.xpose.msra.mxu0 0.0
      %7178 = vmatpush.xpose.msra.mxu0 0.0
      %7179 = vmatpush.xpose.msra.mxu0 0.0
      %7180 = vmatpush.xpose.msra.mxu0 0.0
      %7181 = vmatpush.xpose.msra.mxu0 0.0
      %7182 = vmatpush.xpose.msra.mxu0 0.0
      %7183 = vmatpush.xpose.msra.mxu0 0.0
      %7184 = vmatpush.xpose.msra.mxu0 0.0
      %7185 = vmatpush.xpose.msra.mxu0 0.0
      %7186 = vmatpush.xpose.msra.mxu0 0.0
      %7187 = vmatpush.xpose.msra.mxu0 0.0
      %7188 = vmatpush.xpose.msra.mxu0 0.0
      %7189 = vmatpush.xpose.msra.mxu0 %v7172
      %7190 = vmatmul.f32.gmra.mxu0 %v7170
      %v7191 = vpop.f32.mrf.mxu0
      %v7192 = vadd.f32 0.0, %v7191
      %7193 = vdwg.mxu0
      %v7194 = vsel %vm3737, %v5150, 0
      %v7196 = vsel %vm3737, %v5324, 0
      %7198 = vmatpush.xpose.msra.mxu0 0.0
      %7199 = vmatpush.xpose.msra.mxu0 0.0
      %7200 = vmatpush.xpose.msra.mxu0 0.0
      %7201 = vmatpush.xpose.msra.mxu0 0.0
      %7202 = vmatpush.xpose.msra.mxu0 0.0
      %7203 = vmatpush.xpose.msra.mxu0 0.0
      %7204 = vmatpush.xpose.msra.mxu0 0.0
      %7205 = vmatpush.xpose.msra.mxu0 0.0
      %7206 = vmatpush.xpose.msra.mxu0 0.0
      %7207 = vmatpush.xpose.msra.mxu0 0.0
      %7208 = vmatpush.xpose.msra.mxu0 0.0
      %7209 = vmatpush.xpose.msra.mxu0 0.0
      %7210 = vmatpush.xpose.msra.mxu0 0.0
      %7211 = vmatpush.xpose.msra.mxu0 0.0
      %7212 = vmatpush.xpose.msra.mxu0 0.0
      %7213 = vmatpush.xpose.msra.mxu0 %v7196
      %7214 = vmatmul.f32.gmra.mxu0 %v7194
      %v7215 = vpop.f32.mrf.mxu0
      %v7216 = vadd.f32 0.0, %v7215
      %7217 = vdwg.mxu0
      %v7218 = vsel %vm3737, %v5278, 0
      %v7220 = vsel %vm3737, %v5424, 0
      %7222 = vmatpush.xpose.msra.mxu0 0.0
      %7223 = vmatpush.xpose.msra.mxu0 0.0
      %7224 = vmatpush.xpose.msra.mxu0 0.0
      %7225 = vmatpush.xpose.msra.mxu0 0.0
      %7226 = vmatpush.xpose.msra.mxu0 0.0
      %7227 = vmatpush.xpose.msra.mxu0 0.0
      %7228 = vmatpush.xpose.msra.mxu0 0.0
      %7229 = vmatpush.xpose.msra.mxu0 0.0
      %7230 = vmatpush.xpose.msra.mxu0 0.0
      %7231 = vmatpush.xpose.msra.mxu0 0.0
      %7232 = vmatpush.xpose.msra.mxu0 0.0
      %7233 = vmatpush.xpose.msra.mxu0 0.0
      %7234 = vmatpush.xpose.msra.mxu0 0.0
      %7235 = vmatpush.xpose.msra.mxu0 0.0
      %7236 = vmatpush.xpose.msra.mxu0 0.0
      %7237 = vmatpush.xpose.msra.mxu0 %v7220
      %7238 = vmatmul.f32.gmra.mxu0 %v7218
      %v7239 = vpop.f32.mrf.mxu0
      %v7240 = vadd.f32 0.0, %v7239
      %7241 = vdwg.mxu0
      %v7242 = vsel %vm3737, %v5151, 0
      %v7244 = vsel %vm3737, %v5425, 0
      %7246 = vmatpush.xpose.msra.mxu0 0.0
      %7247 = vmatpush.xpose.msra.mxu0 0.0
      %7248 = vmatpush.xpose.msra.mxu0 0.0
      %7249 = vmatpush.xpose.msra.mxu0 0.0
      %7250 = vmatpush.xpose.msra.mxu0 0.0
      %7251 = vmatpush.xpose.msra.mxu0 0.0
      %7252 = vmatpush.xpose.msra.mxu0 0.0
      %7253 = vmatpush.xpose.msra.mxu0 0.0
      %7254 = vmatpush.xpose.msra.mxu0 0.0
      %7255 = vmatpush.xpose.msra.mxu0 0.0
      %7256 = vmatpush.xpose.msra.mxu0 0.0
      %7257 = vmatpush.xpose.msra.mxu0 0.0
      %7258 = vmatpush.xpose.msra.mxu0 0.0
      %7259 = vmatpush.xpose.msra.mxu0 0.0
      %7260 = vmatpush.xpose.msra.mxu0 0.0
      %7261 = vmatpush.xpose.msra.mxu0 %v7244
      %7262 = vmatmul.f32.gmra.mxu0 %v7242
      %v7263 = vpop.f32.mrf.mxu0
      %v7264 = vadd.f32 0.0, %v7263
      %7265 = vdwg.mxu0
      %v7266 = vsel %vm3737, %v5279, 0
      %v7268 = vsel %vm3737, %v5426, 0
      %7270 = vmatpush.xpose.msra.mxu0 0.0
      %7271 = vmatpush.xpose.msra.mxu0 0.0
      %7272 = vmatpush.xpose.msra.mxu0 0.0
      %7273 = vmatpush.xpose.msra.mxu0 0.0
      %7274 = vmatpush.xpose.msra.mxu0 0.0
      %7275 = vmatpush.xpose.msra.mxu0 0.0
      %7276 = vmatpush.xpose.msra.mxu0 0.0
      %7277 = vmatpush.xpose.msra.mxu0 0.0
      %7278 = vmatpush.xpose.msra.mxu0 0.0
      %7279 = vmatpush.xpose.msra.mxu0 0.0
      %7280 = vmatpush.xpose.msra.mxu0 0.0
      %7281 = vmatpush.xpose.msra.mxu0 0.0
      %7282 = vmatpush.xpose.msra.mxu0 0.0
      %7283 = vmatpush.xpose.msra.mxu0 0.0
      %7284 = vmatpush.xpose.msra.mxu0 0.0
      %7285 = vmatpush.xpose.msra.mxu0 %v7268
      %7286 = vmatmul.f32.gmra.mxu0 %v7266
      %v7287 = vpop.f32.mrf.mxu0
      %v7288 = vadd.f32 0.0, %v7287
      %7289 = vdwg.mxu0
      %v7290 = vsel %vm3737, %v5152, 0
      %v7292 = vsel %vm3737, %v5325, 0
      %7294 = vmatpush.xpose.msra.mxu0 0.0
      %7295 = vmatpush.xpose.msra.mxu0 0.0
      %7296 = vmatpush.xpose.msra.mxu0 0.0
      %7297 = vmatpush.xpose.msra.mxu0 0.0
      %7298 = vmatpush.xpose.msra.mxu0 0.0
      %7299 = vmatpush.xpose.msra.mxu0 0.0
      %7300 = vmatpush.xpose.msra.mxu0 0.0
      %7301 = vmatpush.xpose.msra.mxu0 0.0
      %7302 = vmatpush.xpose.msra.mxu0 0.0
      %7303 = vmatpush.xpose.msra.mxu0 0.0
      %7304 = vmatpush.xpose.msra.mxu0 0.0
      %7305 = vmatpush.xpose.msra.mxu0 0.0
      %7306 = vmatpush.xpose.msra.mxu0 0.0
      %7307 = vmatpush.xpose.msra.mxu0 0.0
      %7308 = vmatpush.xpose.msra.mxu0 0.0
      %7309 = vmatpush.xpose.msra.mxu0 %v7292
      %7310 = vmatmul.f32.gmra.mxu0 %v7290
      %v7311 = vpop.f32.mrf.mxu0
      %v7312 = vadd.f32 0.0, %v7311
      %7313 = vdwg.mxu0
      %v7314 = vsel %vm3737, %v5280, 0
      %v7316 = vsel %vm3737, %v5427, 0
      %7318 = vmatpush.xpose.msra.mxu0 0.0
      %7319 = vmatpush.xpose.msra.mxu0 0.0
      %7320 = vmatpush.xpose.msra.mxu0 0.0
      %7321 = vmatpush.xpose.msra.mxu0 0.0
      %7322 = vmatpush.xpose.msra.mxu0 0.0
      %7323 = vmatpush.xpose.msra.mxu0 0.0
      %7324 = vmatpush.xpose.msra.mxu0 0.0
      %7325 = vmatpush.xpose.msra.mxu0 0.0
      %7326 = vmatpush.xpose.msra.mxu0 0.0
      %7327 = vmatpush.xpose.msra.mxu0 0.0
      %7328 = vmatpush.xpose.msra.mxu0 0.0
      %7329 = vmatpush.xpose.msra.mxu0 0.0
      %7330 = vmatpush.xpose.msra.mxu0 0.0
      %7331 = vmatpush.xpose.msra.mxu0 0.0
      %7332 = vmatpush.xpose.msra.mxu0 0.0
      %7333 = vmatpush.xpose.msra.mxu0 %v7316
      %7334 = vmatmul.f32.gmra.mxu0 %v7314
      %v7335 = vpop.f32.mrf.mxu0
      %v7336 = vadd.f32 0.0, %v7335
      %7337 = vdwg.mxu0
      %v7338 = vsel %vm3737, %v5153, 0
      %v7340 = vsel %vm3737, %v5428, 0
      %7342 = vmatpush.xpose.msra.mxu0 0.0
      %7343 = vmatpush.xpose.msra.mxu0 0.0
      %7344 = vmatpush.xpose.msra.mxu0 0.0
      %7345 = vmatpush.xpose.msra.mxu0 0.0
      %7346 = vmatpush.xpose.msra.mxu0 0.0
      %7347 = vmatpush.xpose.msra.mxu0 0.0
      %7348 = vmatpush.xpose.msra.mxu0 0.0
      %7349 = vmatpush.xpose.msra.mxu0 0.0
      %7350 = vmatpush.xpose.msra.mxu0 0.0
      %7351 = vmatpush.xpose.msra.mxu0 0.0
      %7352 = vmatpush.xpose.msra.mxu0 0.0
      %7353 = vmatpush.xpose.msra.mxu0 0.0
      %7354 = vmatpush.xpose.msra.mxu0 0.0
      %7355 = vmatpush.xpose.msra.mxu0 0.0
      %7356 = vmatpush.xpose.msra.mxu0 0.0
      %7357 = vmatpush.xpose.msra.mxu0 %v7340
      %7358 = vmatmul.f32.gmra.mxu0 %v7338
      %v7359 = vpop.f32.mrf.mxu0
      %v7360 = vadd.f32 0.0, %v7359
      %7361 = vdwg.mxu0
      %v7362 = vsel %vm3737, %v5281, 0
      %v7364 = vsel %vm3737, %v5429, 0
      %7366 = vmatpush.xpose.msra.mxu0 0.0
      %7367 = vmatpush.xpose.msra.mxu0 0.0
      %7368 = vmatpush.xpose.msra.mxu0 0.0
      %7369 = vmatpush.xpose.msra.mxu0 0.0
      %7370 = vmatpush.xpose.msra.mxu0 0.0
      %7371 = vmatpush.xpose.msra.mxu0 0.0
      %7372 = vmatpush.xpose.msra.mxu0 0.0
      %7373 = vmatpush.xpose.msra.mxu0 0.0
      %7374 = vmatpush.xpose.msra.mxu0 0.0
      %7375 = vmatpush.xpose.msra.mxu0 0.0
      %7376 = vmatpush.xpose.msra.mxu0 0.0
      %7377 = vmatpush.xpose.msra.mxu0 0.0
      %7378 = vmatpush.xpose.msra.mxu0 0.0
      %7379 = vmatpush.xpose.msra.mxu0 0.0
      %7380 = vmatpush.xpose.msra.mxu0 0.0
      %7381 = vmatpush.xpose.msra.mxu0 %v7364
      %7382 = vmatmul.f32.gmra.mxu0 %v7362
      %v7383 = vpop.f32.mrf.mxu0
      %v7384 = vadd.f32 0.0, %v7383
      %7385 = vdwg.mxu0
      %v7386 = vsel %vm3737, %v5154, 0
      %v7388 = vsel %vm3737, %v5326, 0
      %7390 = vmatpush.xpose.msra.mxu0 0.0
      %7391 = vmatpush.xpose.msra.mxu0 0.0
      %7392 = vmatpush.xpose.msra.mxu0 0.0
      %7393 = vmatpush.xpose.msra.mxu0 0.0
      %7394 = vmatpush.xpose.msra.mxu0 0.0
      %7395 = vmatpush.xpose.msra.mxu0 0.0
      %7396 = vmatpush.xpose.msra.mxu0 0.0
      %7397 = vmatpush.xpose.msra.mxu0 0.0
      %7398 = vmatpush.xpose.msra.mxu0 0.0
      %7399 = vmatpush.xpose.msra.mxu0 0.0
      %7400 = vmatpush.xpose.msra.mxu0 0.0
      %7401 = vmatpush.xpose.msra.mxu0 0.0
      %7402 = vmatpush.xpose.msra.mxu0 0.0
      %7403 = vmatpush.xpose.msra.mxu0 0.0
      %7404 = vmatpush.xpose.msra.mxu0 0.0
      %7405 = vmatpush.xpose.msra.mxu0 %v7388
      %7406 = vmatmul.f32.gmra.mxu0 %v7386
      %v7407 = vpop.f32.mrf.mxu0
      %v7408 = vadd.f32 0.0, %v7407
      %7409 = vdwg.mxu0
      %v7410 = vsel %vm3737, %v5282, 0
      %v7412 = vsel %vm3737, %v5430, 0
      %7414 = vmatpush.xpose.msra.mxu0 0.0
      %7415 = vmatpush.xpose.msra.mxu0 0.0
      %7416 = vmatpush.xpose.msra.mxu0 0.0
      %7417 = vmatpush.xpose.msra.mxu0 0.0
      %7418 = vmatpush.xpose.msra.mxu0 0.0
      %7419 = vmatpush.xpose.msra.mxu0 0.0
      %7420 = vmatpush.xpose.msra.mxu0 0.0
      %7421 = vmatpush.xpose.msra.mxu0 0.0
      %7422 = vmatpush.xpose.msra.mxu0 0.0
      %7423 = vmatpush.xpose.msra.mxu0 0.0
      %7424 = vmatpush.xpose.msra.mxu0 0.0
      %7425 = vmatpush.xpose.msra.mxu0 0.0
      %7426 = vmatpush.xpose.msra.mxu0 0.0
      %7427 = vmatpush.xpose.msra.mxu0 0.0
      %7428 = vmatpush.xpose.msra.mxu0 0.0
      %7429 = vmatpush.xpose.msra.mxu0 %v7412
      %7430 = vmatmul.f32.gmra.mxu0 %v7410
      %v7431 = vpop.f32.mrf.mxu0
      %v7432 = vadd.f32 0.0, %v7431
      %7433 = vdwg.mxu0
      %v7434 = vsel %vm3737, %v5155, 0
      %v7436 = vsel %vm3737, %v5431, 0
      %7438 = vmatpush.xpose.msra.mxu0 0.0
      %7439 = vmatpush.xpose.msra.mxu0 0.0
      %7440 = vmatpush.xpose.msra.mxu0 0.0
      %7441 = vmatpush.xpose.msra.mxu0 0.0
      %7442 = vmatpush.xpose.msra.mxu0 0.0
      %7443 = vmatpush.xpose.msra.mxu0 0.0
      %7444 = vmatpush.xpose.msra.mxu0 0.0
      %7445 = vmatpush.xpose.msra.mxu0 0.0
      %7446 = vmatpush.xpose.msra.mxu0 0.0
      %7447 = vmatpush.xpose.msra.mxu0 0.0
      %7448 = vmatpush.xpose.msra.mxu0 0.0
      %7449 = vmatpush.xpose.msra.mxu0 0.0
      %7450 = vmatpush.xpose.msra.mxu0 0.0
      %7451 = vmatpush.xpose.msra.mxu0 0.0
      %7452 = vmatpush.xpose.msra.mxu0 0.0
      %7453 = vmatpush.xpose.msra.mxu0 %v7436
      %7454 = vmatmul.f32.gmra.mxu0 %v7434
      %v7455 = vpop.f32.mrf.mxu0
      %v7456 = vadd.f32 0.0, %v7455
      %7457 = vdwg.mxu0
      %v7458 = vsel %vm3737, %v5283, 0
      %v7460 = vsel %vm3737, %v5432, 0
      %7462 = vmatpush.xpose.msra.mxu0 0.0
      %7463 = vmatpush.xpose.msra.mxu0 0.0
      %7464 = vmatpush.xpose.msra.mxu0 0.0
      %7465 = vmatpush.xpose.msra.mxu0 0.0
      %7466 = vmatpush.xpose.msra.mxu0 0.0
      %7467 = vmatpush.xpose.msra.mxu0 0.0
      %7468 = vmatpush.xpose.msra.mxu0 0.0
      %7469 = vmatpush.xpose.msra.mxu0 0.0
      %7470 = vmatpush.xpose.msra.mxu0 0.0
      %7471 = vmatpush.xpose.msra.mxu0 0.0
      %7472 = vmatpush.xpose.msra.mxu0 0.0
      %7473 = vmatpush.xpose.msra.mxu0 0.0
      %7474 = vmatpush.xpose.msra.mxu0 0.0
      %7475 = vmatpush.xpose.msra.mxu0 0.0
      %7476 = vmatpush.xpose.msra.mxu0 0.0
      %7477 = vmatpush.xpose.msra.mxu0 %v7460
      %7478 = vmatmul.f32.gmra.mxu0 %v7458
      %v7479 = vpop.f32.mrf.mxu0
      %v7480 = vadd.f32 0.0, %v7479
      %7481 = vdwg.mxu0
      %v7482 = vsel %vm3737, %v5156, 0
      %v7484 = vsel %vm3737, %v5327, 0
      %7486 = vmatpush.xpose.msra.mxu0 0.0
      %7487 = vmatpush.xpose.msra.mxu0 0.0
      %7488 = vmatpush.xpose.msra.mxu0 0.0
      %7489 = vmatpush.xpose.msra.mxu0 0.0
      %7490 = vmatpush.xpose.msra.mxu0 0.0
      %7491 = vmatpush.xpose.msra.mxu0 0.0
      %7492 = vmatpush.xpose.msra.mxu0 0.0
      %7493 = vmatpush.xpose.msra.mxu0 0.0
      %7494 = vmatpush.xpose.msra.mxu0 0.0
      %7495 = vmatpush.xpose.msra.mxu0 0.0
      %7496 = vmatpush.xpose.msra.mxu0 0.0
      %7497 = vmatpush.xpose.msra.mxu0 0.0
      %7498 = vmatpush.xpose.msra.mxu0 0.0
      %7499 = vmatpush.xpose.msra.mxu0 0.0
      %7500 = vmatpush.xpose.msra.mxu0 0.0
      %7501 = vmatpush.xpose.msra.mxu0 %v7484
      %7502 = vmatmul.f32.gmra.mxu0 %v7482
      %v7503 = vpop.f32.mrf.mxu0
      %v7504 = vadd.f32 0.0, %v7503
      %7505 = vdwg.mxu0
      %v7506 = vsel %vm3737, %v5284, 0
      %v7508 = vsel %vm3737, %v5433, 0
      %7510 = vmatpush.xpose.msra.mxu0 0.0
      %7511 = vmatpush.xpose.msra.mxu0 0.0
      %7512 = vmatpush.xpose.msra.mxu0 0.0
      %7513 = vmatpush.xpose.msra.mxu0 0.0
      %7514 = vmatpush.xpose.msra.mxu0 0.0
      %7515 = vmatpush.xpose.msra.mxu0 0.0
      %7516 = vmatpush.xpose.msra.mxu0 0.0
      %7517 = vmatpush.xpose.msra.mxu0 0.0
      %7518 = vmatpush.xpose.msra.mxu0 0.0
      %7519 = vmatpush.xpose.msra.mxu0 0.0
      %7520 = vmatpush.xpose.msra.mxu0 0.0
      %7521 = vmatpush.xpose.msra.mxu0 0.0
      %7522 = vmatpush.xpose.msra.mxu0 0.0
      %7523 = vmatpush.xpose.msra.mxu0 0.0
      %7524 = vmatpush.xpose.msra.mxu0 0.0
      %7525 = vmatpush.xpose.msra.mxu0 %v7508
      %7526 = vmatmul.f32.gmra.mxu0 %v7506
      %v7527 = vpop.f32.mrf.mxu0
      %v7528 = vadd.f32 0.0, %v7527
      %7529 = vdwg.mxu0
      %v7530 = vsel %vm3737, %v5157, 0
      %v7532 = vsel %vm3737, %v5434, 0
      %7534 = vmatpush.xpose.msra.mxu0 0.0
      %7535 = vmatpush.xpose.msra.mxu0 0.0
      %7536 = vmatpush.xpose.msra.mxu0 0.0
      %7537 = vmatpush.xpose.msra.mxu0 0.0
      %7538 = vmatpush.xpose.msra.mxu0 0.0
      %7539 = vmatpush.xpose.msra.mxu0 0.0
      %7540 = vmatpush.xpose.msra.mxu0 0.0
      %7541 = vmatpush.xpose.msra.mxu0 0.0
      %7542 = vmatpush.xpose.msra.mxu0 0.0
      %7543 = vmatpush.xpose.msra.mxu0 0.0
      %7544 = vmatpush.xpose.msra.mxu0 0.0
      %7545 = vmatpush.xpose.msra.mxu0 0.0
      %7546 = vmatpush.xpose.msra.mxu0 0.0
      %7547 = vmatpush.xpose.msra.mxu0 0.0
      %7548 = vmatpush.xpose.msra.mxu0 0.0
      %7549 = vmatpush.xpose.msra.mxu0 %v7532
      %7550 = vmatmul.f32.gmra.mxu0 %v7530
      %v7551 = vpop.f32.mrf.mxu0
      %v7552 = vadd.f32 0.0, %v7551
      %7553 = vdwg.mxu0
      %v7554 = vsel %vm3737, %v5285, 0
      %v7556 = vsel %vm3737, %v5435, 0
      %7558 = vmatpush.xpose.msra.mxu0 0.0
      %7559 = vmatpush.xpose.msra.mxu0 0.0
      %7560 = vmatpush.xpose.msra.mxu0 0.0
      %7561 = vmatpush.xpose.msra.mxu0 0.0
      %7562 = vmatpush.xpose.msra.mxu0 0.0
      %7563 = vmatpush.xpose.msra.mxu0 0.0
      %7564 = vmatpush.xpose.msra.mxu0 0.0
      %7565 = vmatpush.xpose.msra.mxu0 0.0
      %7566 = vmatpush.xpose.msra.mxu0 0.0
      %7567 = vmatpush.xpose.msra.mxu0 0.0
      %7568 = vmatpush.xpose.msra.mxu0 0.0
      %7569 = vmatpush.xpose.msra.mxu0 0.0
      %7570 = vmatpush.xpose.msra.mxu0 0.0
      %7571 = vmatpush.xpose.msra.mxu0 0.0
      %7572 = vmatpush.xpose.msra.mxu0 0.0
      %7573 = vmatpush.xpose.msra.mxu0 %v7556
      %7574 = vmatmul.f32.gmra.mxu0 %v7554
      %v7575 = vpop.f32.mrf.mxu0
      %v7576 = vadd.f32 0.0, %v7575
      %7577 = vdwg.mxu0
      %v7578 = vsel %vm3737, %v5158, 0
      %v7580 = vsel %vm3737, %v5328, 0
      %7582 = vmatpush.xpose.msra.mxu0 0.0
      %7583 = vmatpush.xpose.msra.mxu0 0.0
      %7584 = vmatpush.xpose.msra.mxu0 0.0
      %7585 = vmatpush.xpose.msra.mxu0 0.0
      %7586 = vmatpush.xpose.msra.mxu0 0.0
      %7587 = vmatpush.xpose.msra.mxu0 0.0
      %7588 = vmatpush.xpose.msra.mxu0 0.0
      %7589 = vmatpush.xpose.msra.mxu0 0.0
      %7590 = vmatpush.xpose.msra.mxu0 0.0
      %7591 = vmatpush.xpose.msra.mxu0 0.0
      %7592 = vmatpush.xpose.msra.mxu0 0.0
      %7593 = vmatpush.xpose.msra.mxu0 0.0
      %7594 = vmatpush.xpose.msra.mxu0 0.0
      %7595 = vmatpush.xpose.msra.mxu0 0.0
      %7596 = vmatpush.xpose.msra.mxu0 0.0
      %7597 = vmatpush.xpose.msra.mxu0 %v7580
      %7598 = vmatmul.f32.gmra.mxu0 %v7578
      %v7599 = vpop.f32.mrf.mxu0
      %v7600 = vadd.f32 0.0, %v7599
      %7601 = vdwg.mxu0
      %v7602 = vsel %vm3737, %v5286, 0
      %v7604 = vsel %vm3737, %v5436, 0
      %7606 = vmatpush.xpose.msra.mxu0 0.0
      %7607 = vmatpush.xpose.msra.mxu0 0.0
      %7608 = vmatpush.xpose.msra.mxu0 0.0
      %7609 = vmatpush.xpose.msra.mxu0 0.0
      %7610 = vmatpush.xpose.msra.mxu0 0.0
      %7611 = vmatpush.xpose.msra.mxu0 0.0
      %7612 = vmatpush.xpose.msra.mxu0 0.0
      %7613 = vmatpush.xpose.msra.mxu0 0.0
      %7614 = vmatpush.xpose.msra.mxu0 0.0
      %7615 = vmatpush.xpose.msra.mxu0 0.0
      %7616 = vmatpush.xpose.msra.mxu0 0.0
      %7617 = vmatpush.xpose.msra.mxu0 0.0
      %7618 = vmatpush.xpose.msra.mxu0 0.0
      %7619 = vmatpush.xpose.msra.mxu0 0.0
      %7620 = vmatpush.xpose.msra.mxu0 0.0
      %7621 = vmatpush.xpose.msra.mxu0 %v7604
      %7622 = vmatmul.f32.gmra.mxu0 %v7602
      %v7623 = vpop.f32.mrf.mxu0
      %v7624 = vadd.f32 0.0, %v7623
      %7625 = vdwg.mxu0
      %v7626 = vsel %vm3737, %v5159, 0
      %v7628 = vsel %vm3737, %v5437, 0
      %7630 = vmatpush.xpose.msra.mxu0 0.0
      %7631 = vmatpush.xpose.msra.mxu0 0.0
      %7632 = vmatpush.xpose.msra.mxu0 0.0
      %7633 = vmatpush.xpose.msra.mxu0 0.0
      %7634 = vmatpush.xpose.msra.mxu0 0.0
      %7635 = vmatpush.xpose.msra.mxu0 0.0
      %7636 = vmatpush.xpose.msra.mxu0 0.0
      %7637 = vmatpush.xpose.msra.mxu0 0.0
      %7638 = vmatpush.xpose.msra.mxu0 0.0
      %7639 = vmatpush.xpose.msra.mxu0 0.0
      %7640 = vmatpush.xpose.msra.mxu0 0.0
      %7641 = vmatpush.xpose.msra.mxu0 0.0
      %7642 = vmatpush.xpose.msra.mxu0 0.0
      %7643 = vmatpush.xpose.msra.mxu0 0.0
      %7644 = vmatpush.xpose.msra.mxu0 0.0
      %7645 = vmatpush.xpose.msra.mxu0 %v7628
      %7646 = vmatmul.f32.gmra.mxu0 %v7626
      %v7647 = vpop.f32.mrf.mxu0
      %v7648 = vadd.f32 0.0, %v7647
      %7649 = vdwg.mxu0
      %v7650 = vsel %vm3737, %v5287, 0
      %v7652 = vsel %vm3737, %v5438, 0
      %7654 = vmatpush.xpose.msra.mxu0 0.0
      %7655 = vmatpush.xpose.msra.mxu0 0.0
      %7656 = vmatpush.xpose.msra.mxu0 0.0
      %7657 = vmatpush.xpose.msra.mxu0 0.0
      %7658 = vmatpush.xpose.msra.mxu0 0.0
      %7659 = vmatpush.xpose.msra.mxu0 0.0
      %7660 = vmatpush.xpose.msra.mxu0 0.0
      %7661 = vmatpush.xpose.msra.mxu0 0.0
      %7662 = vmatpush.xpose.msra.mxu0 0.0
      %7663 = vmatpush.xpose.msra.mxu0 0.0
      %7664 = vmatpush.xpose.msra.mxu0 0.0
      %7665 = vmatpush.xpose.msra.mxu0 0.0
      %7666 = vmatpush.xpose.msra.mxu0 0.0
      %7667 = vmatpush.xpose.msra.mxu0 0.0
      %7668 = vmatpush.xpose.msra.mxu0 0.0
      %7669 = vmatpush.xpose.msra.mxu0 %v7652
      %7670 = vmatmul.f32.gmra.mxu0 %v7650
      %v7671 = vpop.f32.mrf.mxu0
      %v7672 = vadd.f32 0.0, %v7671
      %7673 = vdwg.mxu0
      %v7674 = vsel %vm3737, %v5160, 0
      %v7676 = vsel %vm3737, %v5329, 0
      %7678 = vmatpush.xpose.msra.mxu0 0.0
      %7679 = vmatpush.xpose.msra.mxu0 0.0
      %7680 = vmatpush.xpose.msra.mxu0 0.0
      %7681 = vmatpush.xpose.msra.mxu0 0.0
      %7682 = vmatpush.xpose.msra.mxu0 0.0
      %7683 = vmatpush.xpose.msra.mxu0 0.0
      %7684 = vmatpush.xpose.msra.mxu0 0.0
      %7685 = vmatpush.xpose.msra.mxu0 0.0
      %7686 = vmatpush.xpose.msra.mxu0 0.0
      %7687 = vmatpush.xpose.msra.mxu0 0.0
      %7688 = vmatpush.xpose.msra.mxu0 0.0
      %7689 = vmatpush.xpose.msra.mxu0 0.0
      %7690 = vmatpush.xpose.msra.mxu0 0.0
      %7691 = vmatpush.xpose.msra.mxu0 0.0
      %7692 = vmatpush.xpose.msra.mxu0 0.0
      %7693 = vmatpush.xpose.msra.mxu0 %v7676
      %7694 = vmatmul.f32.gmra.mxu0 %v7674
      %v7695 = vpop.f32.mrf.mxu0
      %v7696 = vadd.f32 0.0, %v7695
      %7697 = vdwg.mxu0
      %v7698 = vsel %vm3737, %v5288, 0
      %v7700 = vsel %vm3737, %v5439, 0
      %7702 = vmatpush.xpose.msra.mxu0 0.0
      %7703 = vmatpush.xpose.msra.mxu0 0.0
      %7704 = vmatpush.xpose.msra.mxu0 0.0
      %7705 = vmatpush.xpose.msra.mxu0 0.0
      %7706 = vmatpush.xpose.msra.mxu0 0.0
      %7707 = vmatpush.xpose.msra.mxu0 0.0
      %7708 = vmatpush.xpose.msra.mxu0 0.0
      %7709 = vmatpush.xpose.msra.mxu0 0.0
      %7710 = vmatpush.xpose.msra.mxu0 0.0
      %7711 = vmatpush.xpose.msra.mxu0 0.0
      %7712 = vmatpush.xpose.msra.mxu0 0.0
      %7713 = vmatpush.xpose.msra.mxu0 0.0
      %7714 = vmatpush.xpose.msra.mxu0 0.0
      %7715 = vmatpush.xpose.msra.mxu0 0.0
      %7716 = vmatpush.xpose.msra.mxu0 0.0
      %7717 = vmatpush.xpose.msra.mxu0 %v7700
      %7718 = vmatmul.f32.gmra.mxu0 %v7698
      %v7719 = vpop.f32.mrf.mxu0
      %v7720 = vadd.f32 0.0, %v7719
      %7721 = vdwg.mxu0
      %v7722 = vsel %vm3737, %v5161, 0
      %v7724 = vsel %vm3737, %v5440, 0
      %7726 = vmatpush.xpose.msra.mxu0 0.0
      %7727 = vmatpush.xpose.msra.mxu0 0.0
      %7728 = vmatpush.xpose.msra.mxu0 0.0
      %7729 = vmatpush.xpose.msra.mxu0 0.0
      %7730 = vmatpush.xpose.msra.mxu0 0.0
      %7731 = vmatpush.xpose.msra.mxu0 0.0
      %7732 = vmatpush.xpose.msra.mxu0 0.0
      %7733 = vmatpush.xpose.msra.mxu0 0.0
      %7734 = vmatpush.xpose.msra.mxu0 0.0
      %7735 = vmatpush.xpose.msra.mxu0 0.0
      %7736 = vmatpush.xpose.msra.mxu0 0.0
      %7737 = vmatpush.xpose.msra.mxu0 0.0
      %7738 = vmatpush.xpose.msra.mxu0 0.0
      %7739 = vmatpush.xpose.msra.mxu0 0.0
      %7740 = vmatpush.xpose.msra.mxu0 0.0
      %7741 = vmatpush.xpose.msra.mxu0 %v7724
      %7742 = vmatmul.f32.gmra.mxu0 %v7722
      %v7743 = vpop.f32.mrf.mxu0
      %v7744 = vadd.f32 0.0, %v7743
      %7745 = vdwg.mxu0
      %v7746 = vsel %vm3737, %v5289, 0
      %v7748 = vsel %vm3737, %v5441, 0
      %7750 = vmatpush.xpose.msra.mxu0 0.0
      %7751 = vmatpush.xpose.msra.mxu0 0.0
      %7752 = vmatpush.xpose.msra.mxu0 0.0
      %7753 = vmatpush.xpose.msra.mxu0 0.0
      %7754 = vmatpush.xpose.msra.mxu0 0.0
      %7755 = vmatpush.xpose.msra.mxu0 0.0
      %7756 = vmatpush.xpose.msra.mxu0 0.0
      %7757 = vmatpush.xpose.msra.mxu0 0.0
      %7758 = vmatpush.xpose.msra.mxu0 0.0
      %7759 = vmatpush.xpose.msra.mxu0 0.0
      %7760 = vmatpush.xpose.msra.mxu0 0.0
      %7761 = vmatpush.xpose.msra.mxu0 0.0
      %7762 = vmatpush.xpose.msra.mxu0 0.0
      %7763 = vmatpush.xpose.msra.mxu0 0.0
      %7764 = vmatpush.xpose.msra.mxu0 0.0
      %7765 = vmatpush.xpose.msra.mxu0 %v7748
      %7766 = vmatmul.f32.gmra.mxu0 %v7746
      %v7767 = vpop.f32.mrf.mxu0
      %v7768 = vadd.f32 0.0, %v7767
      %7769 = vdwg.mxu0
      %v7770 = vsel %vm3737, %v5162, 0
      %v7772 = vsel %vm3737, %v5330, 0
      %7774 = vmatpush.xpose.msra.mxu0 0.0
      %7775 = vmatpush.xpose.msra.mxu0 0.0
      %7776 = vmatpush.xpose.msra.mxu0 0.0
      %7777 = vmatpush.xpose.msra.mxu0 0.0
      %7778 = vmatpush.xpose.msra.mxu0 0.0
      %7779 = vmatpush.xpose.msra.mxu0 0.0
      %7780 = vmatpush.xpose.msra.mxu0 0.0
      %7781 = vmatpush.xpose.msra.mxu0 0.0
      %7782 = vmatpush.xpose.msra.mxu0 0.0
      %7783 = vmatpush.xpose.msra.mxu0 0.0
      %7784 = vmatpush.xpose.msra.mxu0 0.0
      %7785 = vmatpush.xpose.msra.mxu0 0.0
      %7786 = vmatpush.xpose.msra.mxu0 0.0
      %7787 = vmatpush.xpose.msra.mxu0 0.0
      %7788 = vmatpush.xpose.msra.mxu0 0.0
      %7789 = vmatpush.xpose.msra.mxu0 %v7772
      %7790 = vmatmul.f32.gmra.mxu0 %v7770
      %v7791 = vpop.f32.mrf.mxu0
      %v7792 = vadd.f32 0.0, %v7791
      %7793 = vdwg.mxu0
      %v7794 = vsel %vm3737, %v5290, 0
      %v7796 = vsel %vm3737, %v5442, 0
      %7798 = vmatpush.xpose.msra.mxu0 0.0
      %7799 = vmatpush.xpose.msra.mxu0 0.0
      %7800 = vmatpush.xpose.msra.mxu0 0.0
      %7801 = vmatpush.xpose.msra.mxu0 0.0
      %7802 = vmatpush.xpose.msra.mxu0 0.0
      %7803 = vmatpush.xpose.msra.mxu0 0.0
      %7804 = vmatpush.xpose.msra.mxu0 0.0
      %7805 = vmatpush.xpose.msra.mxu0 0.0
      %7806 = vmatpush.xpose.msra.mxu0 0.0
      %7807 = vmatpush.xpose.msra.mxu0 0.0
      %7808 = vmatpush.xpose.msra.mxu0 0.0
      %7809 = vmatpush.xpose.msra.mxu0 0.0
      %7810 = vmatpush.xpose.msra.mxu0 0.0
      %7811 = vmatpush.xpose.msra.mxu0 0.0
      %7812 = vmatpush.xpose.msra.mxu0 0.0
      %7813 = vmatpush.xpose.msra.mxu0 %v7796
      %7814 = vmatmul.f32.gmra.mxu0 %v7794
      %v7815 = vpop.f32.mrf.mxu0
      %v7816 = vadd.f32 0.0, %v7815
      %7817 = vdwg.mxu0
      %v7818 = vsel %vm3737, %v5163, 0
      %v7820 = vsel %vm3737, %v5443, 0
      %7822 = vmatpush.xpose.msra.mxu0 0.0
      %7823 = vmatpush.xpose.msra.mxu0 0.0
      %7824 = vmatpush.xpose.msra.mxu0 0.0
      %7825 = vmatpush.xpose.msra.mxu0 0.0
      %7826 = vmatpush.xpose.msra.mxu0 0.0
      %7827 = vmatpush.xpose.msra.mxu0 0.0
      %7828 = vmatpush.xpose.msra.mxu0 0.0
      %7829 = vmatpush.xpose.msra.mxu0 0.0
      %7830 = vmatpush.xpose.msra.mxu0 0.0
      %7831 = vmatpush.xpose.msra.mxu0 0.0
      %7832 = vmatpush.xpose.msra.mxu0 0.0
      %7833 = vmatpush.xpose.msra.mxu0 0.0
      %7834 = vmatpush.xpose.msra.mxu0 0.0
      %7835 = vmatpush.xpose.msra.mxu0 0.0
      %7836 = vmatpush.xpose.msra.mxu0 0.0
      %7837 = vmatpush.xpose.msra.mxu0 %v7820
      %7838 = vmatmul.f32.gmra.mxu0 %v7818
      %v7839 = vpop.f32.mrf.mxu0
      %v7840 = vadd.f32 0.0, %v7839
      %7841 = vdwg.mxu0
      %v7842 = vsel %vm3737, %v5291, 0
      %v7844 = vsel %vm3737, %v5444, 0
      %7846 = vmatpush.xpose.msra.mxu0 0.0
      %7847 = vmatpush.xpose.msra.mxu0 0.0
      %7848 = vmatpush.xpose.msra.mxu0 0.0
      %7849 = vmatpush.xpose.msra.mxu0 0.0
      %7850 = vmatpush.xpose.msra.mxu0 0.0
      %7851 = vmatpush.xpose.msra.mxu0 0.0
      %7852 = vmatpush.xpose.msra.mxu0 0.0
      %7853 = vmatpush.xpose.msra.mxu0 0.0
      %7854 = vmatpush.xpose.msra.mxu0 0.0
      %7855 = vmatpush.xpose.msra.mxu0 0.0
      %7856 = vmatpush.xpose.msra.mxu0 0.0
      %7857 = vmatpush.xpose.msra.mxu0 0.0
      %7858 = vmatpush.xpose.msra.mxu0 0.0
      %7859 = vmatpush.xpose.msra.mxu0 0.0
      %7860 = vmatpush.xpose.msra.mxu0 0.0
      %7861 = vmatpush.xpose.msra.mxu0 %v7844
      %7862 = vmatmul.f32.gmra.mxu0 %v7842
      %v7863 = vpop.f32.mrf.mxu0
      %v7864 = vadd.f32 0.0, %v7863
      %7865 = vdwg.mxu0
      %v7866 = vsel %vm3737, %v5164, 0
      %v7868 = vsel %vm3737, %v5331, 0
      %7870 = vmatpush.xpose.msra.mxu0 0.0
      %7871 = vmatpush.xpose.msra.mxu0 0.0
      %7872 = vmatpush.xpose.msra.mxu0 0.0
      %7873 = vmatpush.xpose.msra.mxu0 0.0
      %7874 = vmatpush.xpose.msra.mxu0 0.0
      %7875 = vmatpush.xpose.msra.mxu0 0.0
      %7876 = vmatpush.xpose.msra.mxu0 0.0
      %7877 = vmatpush.xpose.msra.mxu0 0.0
      %7878 = vmatpush.xpose.msra.mxu0 0.0
      %7879 = vmatpush.xpose.msra.mxu0 0.0
      %7880 = vmatpush.xpose.msra.mxu0 0.0
      %7881 = vmatpush.xpose.msra.mxu0 0.0
      %7882 = vmatpush.xpose.msra.mxu0 0.0
      %7883 = vmatpush.xpose.msra.mxu0 0.0
      %7884 = vmatpush.xpose.msra.mxu0 0.0
      %7885 = vmatpush.xpose.msra.mxu0 %v7868
      %7886 = vmatmul.f32.gmra.mxu0 %v7866
      %v7887 = vpop.f32.mrf.mxu0
      %v7888 = vadd.f32 0.0, %v7887
      %7889 = vdwg.mxu0
      %v7890 = vsel %vm3737, %v5292, 0
      %v7892 = vsel %vm3737, %v5445, 0
      %7894 = vmatpush.xpose.msra.mxu0 0.0
      %7895 = vmatpush.xpose.msra.mxu0 0.0
      %7896 = vmatpush.xpose.msra.mxu0 0.0
      %7897 = vmatpush.xpose.msra.mxu0 0.0
      %7898 = vmatpush.xpose.msra.mxu0 0.0
      %7899 = vmatpush.xpose.msra.mxu0 0.0
      %7900 = vmatpush.xpose.msra.mxu0 0.0
      %7901 = vmatpush.xpose.msra.mxu0 0.0
      %7902 = vmatpush.xpose.msra.mxu0 0.0
      %7903 = vmatpush.xpose.msra.mxu0 0.0
      %7904 = vmatpush.xpose.msra.mxu0 0.0
      %7905 = vmatpush.xpose.msra.mxu0 0.0
      %7906 = vmatpush.xpose.msra.mxu0 0.0
      %7907 = vmatpush.xpose.msra.mxu0 0.0
      %7908 = vmatpush.xpose.msra.mxu0 0.0
      %7909 = vmatpush.xpose.msra.mxu0 %v7892
      %7910 = vmatmul.f32.gmra.mxu0 %v7890
      %v7911 = vpop.f32.mrf.mxu0
      %v7912 = vadd.f32 0.0, %v7911
      %7913 = vdwg.mxu0
      %v7914 = vsel %vm3737, %v5165, 0
      %v7916 = vsel %vm3737, %v5446, 0
      %7918 = vmatpush.xpose.msra.mxu0 0.0
      %7919 = vmatpush.xpose.msra.mxu0 0.0
      %7920 = vmatpush.xpose.msra.mxu0 0.0
      %7921 = vmatpush.xpose.msra.mxu0 0.0
      %7922 = vmatpush.xpose.msra.mxu0 0.0
      %7923 = vmatpush.xpose.msra.mxu0 0.0
      %7924 = vmatpush.xpose.msra.mxu0 0.0
      %7925 = vmatpush.xpose.msra.mxu0 0.0
      %7926 = vmatpush.xpose.msra.mxu0 0.0
      %7927 = vmatpush.xpose.msra.mxu0 0.0
      %7928 = vmatpush.xpose.msra.mxu0 0.0
      %7929 = vmatpush.xpose.msra.mxu0 0.0
      %7930 = vmatpush.xpose.msra.mxu0 0.0
      %7931 = vmatpush.xpose.msra.mxu0 0.0
      %7932 = vmatpush.xpose.msra.mxu0 0.0
      %7933 = vmatpush.xpose.msra.mxu0 %v7916
      %7934 = vmatmul.f32.gmra.mxu0 %v7914
      %v7935 = vpop.f32.mrf.mxu0
      %v7936 = vadd.f32 0.0, %v7935
      %7937 = vdwg.mxu0
      %v7938 = vsel %vm3737, %v5293, 0
      %v7940 = vsel %vm3737, %v5447, 0
      %7942 = vmatpush.xpose.msra.mxu0 0.0
      %7943 = vmatpush.xpose.msra.mxu0 0.0
      %7944 = vmatpush.xpose.msra.mxu0 0.0
      %7945 = vmatpush.xpose.msra.mxu0 0.0
      %7946 = vmatpush.xpose.msra.mxu0 0.0
      %7947 = vmatpush.xpose.msra.mxu0 0.0
      %7948 = vmatpush.xpose.msra.mxu0 0.0
      %7949 = vmatpush.xpose.msra.mxu0 0.0
      %7950 = vmatpush.xpose.msra.mxu0 0.0
      %7951 = vmatpush.xpose.msra.mxu0 0.0
      %7952 = vmatpush.xpose.msra.mxu0 0.0
      %7953 = vmatpush.xpose.msra.mxu0 0.0
      %7954 = vmatpush.xpose.msra.mxu0 0.0
      %7955 = vmatpush.xpose.msra.mxu0 0.0
      %7956 = vmatpush.xpose.msra.mxu0 0.0
      %7957 = vmatpush.xpose.msra.mxu0 %v7940
      %7958 = vmatmul.f32.gmra.mxu0 %v7938
      %v7959 = vpop.f32.mrf.mxu0
      %v7960 = vadd.f32 0.0, %v7959
      %7961 = vdwg.mxu0
      %v7962 = vsel %vm3737, %v5166, 0
      %v7964 = vsel %vm3737, %v5332, 0
      %7966 = vmatpush.xpose.msra.mxu0 0.0
      %7967 = vmatpush.xpose.msra.mxu0 0.0
      %7968 = vmatpush.xpose.msra.mxu0 0.0
      %7969 = vmatpush.xpose.msra.mxu0 0.0
      %7970 = vmatpush.xpose.msra.mxu0 0.0
      %7971 = vmatpush.xpose.msra.mxu0 0.0
      %7972 = vmatpush.xpose.msra.mxu0 0.0
      %7973 = vmatpush.xpose.msra.mxu0 0.0
      %7974 = vmatpush.xpose.msra.mxu0 0.0
      %7975 = vmatpush.xpose.msra.mxu0 0.0
      %7976 = vmatpush.xpose.msra.mxu0 0.0
      %7977 = vmatpush.xpose.msra.mxu0 0.0
      %7978 = vmatpush.xpose.msra.mxu0 0.0
      %7979 = vmatpush.xpose.msra.mxu0 0.0
      %7980 = vmatpush.xpose.msra.mxu0 0.0
      %7981 = vmatpush.xpose.msra.mxu0 %v7964
      %7982 = vmatmul.f32.gmra.mxu0 %v7962
      %v7983 = vpop.f32.mrf.mxu0
      %v7984 = vadd.f32 0.0, %v7983
      %7985 = vdwg.mxu0
      %v7986 = vsel %vm3737, %v5294, 0
      %v7988 = vsel %vm3737, %v5448, 0
      %7990 = vmatpush.xpose.msra.mxu0 0.0
      %7991 = vmatpush.xpose.msra.mxu0 0.0
      %7992 = vmatpush.xpose.msra.mxu0 0.0
      %7993 = vmatpush.xpose.msra.mxu0 0.0
      %7994 = vmatpush.xpose.msra.mxu0 0.0
      %7995 = vmatpush.xpose.msra.mxu0 0.0
      %7996 = vmatpush.xpose.msra.mxu0 0.0
      %7997 = vmatpush.xpose.msra.mxu0 0.0
      %7998 = vmatpush.xpose.msra.mxu0 0.0
      %7999 = vmatpush.xpose.msra.mxu0 0.0
      %8000 = vmatpush.xpose.msra.mxu0 0.0
      %8001 = vmatpush.xpose.msra.mxu0 0.0
      %8002 = vmatpush.xpose.msra.mxu0 0.0
      %8003 = vmatpush.xpose.msra.mxu0 0.0
      %8004 = vmatpush.xpose.msra.mxu0 0.0
      %8005 = vmatpush.xpose.msra.mxu0 %v7988
      %8006 = vmatmul.f32.gmra.mxu0 %v7986
      %v8007 = vpop.f32.mrf.mxu0
      %v8008 = vadd.f32 0.0, %v8007
      %8009 = vdwg.mxu0
      %v8010 = vsel %vm3737, %v5167, 0
      %v8012 = vsel %vm3737, %v5449, 0
      %8014 = vmatpush.xpose.msra.mxu0 0.0
      %8015 = vmatpush.xpose.msra.mxu0 0.0
      %8016 = vmatpush.xpose.msra.mxu0 0.0
      %8017 = vmatpush.xpose.msra.mxu0 0.0
      %8018 = vmatpush.xpose.msra.mxu0 0.0
      %8019 = vmatpush.xpose.msra.mxu0 0.0
      %8020 = vmatpush.xpose.msra.mxu0 0.0
      %8021 = vmatpush.xpose.msra.mxu0 0.0
      %8022 = vmatpush.xpose.msra.mxu0 0.0
      %8023 = vmatpush.xpose.msra.mxu0 0.0
      %8024 = vmatpush.xpose.msra.mxu0 0.0
      %8025 = vmatpush.xpose.msra.mxu0 0.0
      %8026 = vmatpush.xpose.msra.mxu0 0.0
      %8027 = vmatpush.xpose.msra.mxu0 0.0
      %8028 = vmatpush.xpose.msra.mxu0 0.0
      %8029 = vmatpush.xpose.msra.mxu0 %v8012
      %8030 = vmatmul.f32.gmra.mxu0 %v8010
      %v8031 = vpop.f32.mrf.mxu0
      %v8032 = vadd.f32 0.0, %v8031
      %8033 = vdwg.mxu0
      %v8034 = vsel %vm3737, %v5295, 0
      %v8036 = vsel %vm3737, %v5450, 0
      %8038 = vmatpush.xpose.msra.mxu0 0.0
      %8039 = vmatpush.xpose.msra.mxu0 0.0
      %8040 = vmatpush.xpose.msra.mxu0 0.0
      %8041 = vmatpush.xpose.msra.mxu0 0.0
      %8042 = vmatpush.xpose.msra.mxu0 0.0
      %8043 = vmatpush.xpose.msra.mxu0 0.0
      %8044 = vmatpush.xpose.msra.mxu0 0.0
      %8045 = vmatpush.xpose.msra.mxu0 0.0
      %8046 = vmatpush.xpose.msra.mxu0 0.0
      %8047 = vmatpush.xpose.msra.mxu0 0.0
      %8048 = vmatpush.xpose.msra.mxu0 0.0
      %8049 = vmatpush.xpose.msra.mxu0 0.0
      %8050 = vmatpush.xpose.msra.mxu0 0.0
      %8051 = vmatpush.xpose.msra.mxu0 0.0
      %8052 = vmatpush.xpose.msra.mxu0 0.0
      %8053 = vmatpush.xpose.msra.mxu0 %v8036
      %8054 = vmatmul.f32.gmra.mxu0 %v8034
      %v8055 = vpop.f32.mrf.mxu0
      %v8056 = vadd.f32 0.0, %v8055
      %8057 = vdwg.mxu0
      %v8058 = vsel %vm3737, %v5168, 0
      %v8060 = vsel %vm3737, %v5333, 0
      %8062 = vmatpush.xpose.msra.mxu0 0.0
      %8063 = vmatpush.xpose.msra.mxu0 0.0
      %8064 = vmatpush.xpose.msra.mxu0 0.0
      %8065 = vmatpush.xpose.msra.mxu0 0.0
      %8066 = vmatpush.xpose.msra.mxu0 0.0
      %8067 = vmatpush.xpose.msra.mxu0 0.0
      %8068 = vmatpush.xpose.msra.mxu0 0.0
      %8069 = vmatpush.xpose.msra.mxu0 0.0
      %8070 = vmatpush.xpose.msra.mxu0 0.0
      %8071 = vmatpush.xpose.msra.mxu0 0.0
      %8072 = vmatpush.xpose.msra.mxu0 0.0
      %8073 = vmatpush.xpose.msra.mxu0 0.0
      %8074 = vmatpush.xpose.msra.mxu0 0.0
      %8075 = vmatpush.xpose.msra.mxu0 0.0
      %8076 = vmatpush.xpose.msra.mxu0 0.0
      %8077 = vmatpush.xpose.msra.mxu0 %v8060
      %8078 = vmatmul.f32.gmra.mxu0 %v8058
      %v8079 = vpop.f32.mrf.mxu0
      %v8080 = vadd.f32 0.0, %v8079
      %8081 = vdwg.mxu0
      %v8082 = vsel %vm3737, %v5296, 0
      %v8084 = vsel %vm3737, %v5451, 0
      %8086 = vmatpush.xpose.msra.mxu0 0.0
      %8087 = vmatpush.xpose.msra.mxu0 0.0
      %8088 = vmatpush.xpose.msra.mxu0 0.0
      %8089 = vmatpush.xpose.msra.mxu0 0.0
      %8090 = vmatpush.xpose.msra.mxu0 0.0
      %8091 = vmatpush.xpose.msra.mxu0 0.0
      %8092 = vmatpush.xpose.msra.mxu0 0.0
      %8093 = vmatpush.xpose.msra.mxu0 0.0
      %8094 = vmatpush.xpose.msra.mxu0 0.0
      %8095 = vmatpush.xpose.msra.mxu0 0.0
      %8096 = vmatpush.xpose.msra.mxu0 0.0
      %8097 = vmatpush.xpose.msra.mxu0 0.0
      %8098 = vmatpush.xpose.msra.mxu0 0.0
      %8099 = vmatpush.xpose.msra.mxu0 0.0
      %8100 = vmatpush.xpose.msra.mxu0 0.0
      %8101 = vmatpush.xpose.msra.mxu0 %v8084
      %8102 = vmatmul.f32.gmra.mxu0 %v8082
      %v8103 = vpop.f32.mrf.mxu0
      %v8104 = vadd.f32 0.0, %v8103
      %8105 = vdwg.mxu0
      %v8106 = vsel %vm3737, %v5169, 0
      %v8108 = vsel %vm3737, %v5452, 0
      %8110 = vmatpush.xpose.msra.mxu0 0.0
      %8111 = vmatpush.xpose.msra.mxu0 0.0
      %8112 = vmatpush.xpose.msra.mxu0 0.0
      %8113 = vmatpush.xpose.msra.mxu0 0.0
      %8114 = vmatpush.xpose.msra.mxu0 0.0
      %8115 = vmatpush.xpose.msra.mxu0 0.0
      %8116 = vmatpush.xpose.msra.mxu0 0.0
      %8117 = vmatpush.xpose.msra.mxu0 0.0
      %8118 = vmatpush.xpose.msra.mxu0 0.0
      %8119 = vmatpush.xpose.msra.mxu0 0.0
      %8120 = vmatpush.xpose.msra.mxu0 0.0
      %8121 = vmatpush.xpose.msra.mxu0 0.0
      %8122 = vmatpush.xpose.msra.mxu0 0.0
      %8123 = vmatpush.xpose.msra.mxu0 0.0
      %8124 = vmatpush.xpose.msra.mxu0 0.0
      %8125 = vmatpush.xpose.msra.mxu0 %v8108
      %8126 = vmatmul.f32.gmra.mxu0 %v8106
      %v8127 = vpop.f32.mrf.mxu0
      %v8128 = vadd.f32 0.0, %v8127
      %8129 = vdwg.mxu0
      %v8130 = vsel %vm3737, %v5297, 0
      %v8132 = vsel %vm3737, %v5453, 0
      %8134 = vmatpush.xpose.msra.mxu0 0.0
      %8135 = vmatpush.xpose.msra.mxu0 0.0
      %8136 = vmatpush.xpose.msra.mxu0 0.0
      %8137 = vmatpush.xpose.msra.mxu0 0.0
      %8138 = vmatpush.xpose.msra.mxu0 0.0
      %8139 = vmatpush.xpose.msra.mxu0 0.0
      %8140 = vmatpush.xpose.msra.mxu0 0.0
      %8141 = vmatpush.xpose.msra.mxu0 0.0
      %8142 = vmatpush.xpose.msra.mxu0 0.0
      %8143 = vmatpush.xpose.msra.mxu0 0.0
      %8144 = vmatpush.xpose.msra.mxu0 0.0
      %8145 = vmatpush.xpose.msra.mxu0 0.0
      %8146 = vmatpush.xpose.msra.mxu0 0.0
      %8147 = vmatpush.xpose.msra.mxu0 0.0
      %8148 = vmatpush.xpose.msra.mxu0 0.0
      %8149 = vmatpush.xpose.msra.mxu0 %v8132
      %8150 = vmatmul.f32.gmra.mxu0 %v8130
      %v8151 = vpop.f32.mrf.mxu0
      %v8152 = vadd.f32 0.0, %v8151
      %8153 = vdwg.mxu0
      %v8154 = vsel %vm3737, %v5170, 0
      %v8156 = vsel %vm3737, %v5334, 0
      %8158 = vmatpush.xpose.msra.mxu0 0.0
      %8159 = vmatpush.xpose.msra.mxu0 0.0
      %8160 = vmatpush.xpose.msra.mxu0 0.0
      %8161 = vmatpush.xpose.msra.mxu0 0.0
      %8162 = vmatpush.xpose.msra.mxu0 0.0
      %8163 = vmatpush.xpose.msra.mxu0 0.0
      %8164 = vmatpush.xpose.msra.mxu0 0.0
      %8165 = vmatpush.xpose.msra.mxu0 0.0
      %8166 = vmatpush.xpose.msra.mxu0 0.0
      %8167 = vmatpush.xpose.msra.mxu0 0.0
      %8168 = vmatpush.xpose.msra.mxu0 0.0
      %8169 = vmatpush.xpose.msra.mxu0 0.0
      %8170 = vmatpush.xpose.msra.mxu0 0.0
      %8171 = vmatpush.xpose.msra.mxu0 0.0
      %8172 = vmatpush.xpose.msra.mxu0 0.0
      %8173 = vmatpush.xpose.msra.mxu0 %v8156
      %8174 = vmatmul.f32.gmra.mxu0 %v8154
      %v8175 = vpop.f32.mrf.mxu0
      %v8176 = vadd.f32 0.0, %v8175
      %8177 = vdwg.mxu0
      %v8178 = vsel %vm3737, %v5298, 0
      %v8180 = vsel %vm3737, %v5454, 0
      %8182 = vmatpush.xpose.msra.mxu0 0.0
      %8183 = vmatpush.xpose.msra.mxu0 0.0
      %8184 = vmatpush.xpose.msra.mxu0 0.0
      %8185 = vmatpush.xpose.msra.mxu0 0.0
      %8186 = vmatpush.xpose.msra.mxu0 0.0
      %8187 = vmatpush.xpose.msra.mxu0 0.0
      %8188 = vmatpush.xpose.msra.mxu0 0.0
      %8189 = vmatpush.xpose.msra.mxu0 0.0
      %8190 = vmatpush.xpose.msra.mxu0 0.0
      %8191 = vmatpush.xpose.msra.mxu0 0.0
      %8192 = vmatpush.xpose.msra.mxu0 0.0
      %8193 = vmatpush.xpose.msra.mxu0 0.0
      %8194 = vmatpush.xpose.msra.mxu0 0.0
      %8195 = vmatpush.xpose.msra.mxu0 0.0
      %8196 = vmatpush.xpose.msra.mxu0 0.0
      %8197 = vmatpush.xpose.msra.mxu0 %v8180
      %8198 = vmatmul.f32.gmra.mxu0 %v8178
      %v8199 = vpop.f32.mrf.mxu0
      %v8200 = vadd.f32 0.0, %v8199
      %8201 = vdwg.mxu0
      %v8202 = vsel %vm3737, %v5171, 0
      %v8204 = vsel %vm3737, %v5455, 0
      %8206 = vmatpush.xpose.msra.mxu0 0.0
      %8207 = vmatpush.xpose.msra.mxu0 0.0
      %8208 = vmatpush.xpose.msra.mxu0 0.0
      %8209 = vmatpush.xpose.msra.mxu0 0.0
      %8210 = vmatpush.xpose.msra.mxu0 0.0
      %8211 = vmatpush.xpose.msra.mxu0 0.0
      %8212 = vmatpush.xpose.msra.mxu0 0.0
      %8213 = vmatpush.xpose.msra.mxu0 0.0
      %8214 = vmatpush.xpose.msra.mxu0 0.0
      %8215 = vmatpush.xpose.msra.mxu0 0.0
      %8216 = vmatpush.xpose.msra.mxu0 0.0
      %8217 = vmatpush.xpose.msra.mxu0 0.0
      %8218 = vmatpush.xpose.msra.mxu0 0.0
      %8219 = vmatpush.xpose.msra.mxu0 0.0
      %8220 = vmatpush.xpose.msra.mxu0 0.0
      %8221 = vmatpush.xpose.msra.mxu0 %v8204
      %8222 = vmatmul.f32.gmra.mxu0 %v8202
      %v8223 = vpop.f32.mrf.mxu0
      %v8224 = vadd.f32 0.0, %v8223
      %8225 = vdwg.mxu0
      %v8226 = vsel %vm3737, %v5299, 0
      %v8228 = vsel %vm3737, %v5456, 0
      %8230 = vmatpush.xpose.msra.mxu0 0.0
      %8231 = vmatpush.xpose.msra.mxu0 0.0
      %8232 = vmatpush.xpose.msra.mxu0 0.0
      %8233 = vmatpush.xpose.msra.mxu0 0.0
      %8234 = vmatpush.xpose.msra.mxu0 0.0
      %8235 = vmatpush.xpose.msra.mxu0 0.0
      %8236 = vmatpush.xpose.msra.mxu0 0.0
      %8237 = vmatpush.xpose.msra.mxu0 0.0
      %8238 = vmatpush.xpose.msra.mxu0 0.0
      %8239 = vmatpush.xpose.msra.mxu0 0.0
      %8240 = vmatpush.xpose.msra.mxu0 0.0
      %8241 = vmatpush.xpose.msra.mxu0 0.0
      %8242 = vmatpush.xpose.msra.mxu0 0.0
      %8243 = vmatpush.xpose.msra.mxu0 0.0
      %8244 = vmatpush.xpose.msra.mxu0 0.0
      %8245 = vmatpush.xpose.msra.mxu0 %v8228
      %8246 = vmatmul.f32.gmra.mxu0 %v8226
      %v8247 = vpop.f32.mrf.mxu0
      %v8248 = vadd.f32 0.0, %v8247
      %8249 = vdwg.mxu0
      %v8250 = vsel %vm3737, %v5172, 0
      %v8252 = vsel %vm3737, %v5335, 0
      %8254 = vmatpush.xpose.msra.mxu0 0.0
      %8255 = vmatpush.xpose.msra.mxu0 0.0
      %8256 = vmatpush.xpose.msra.mxu0 0.0
      %8257 = vmatpush.xpose.msra.mxu0 0.0
      %8258 = vmatpush.xpose.msra.mxu0 0.0
      %8259 = vmatpush.xpose.msra.mxu0 0.0
      %8260 = vmatpush.xpose.msra.mxu0 0.0
      %8261 = vmatpush.xpose.msra.mxu0 0.0
      %8262 = vmatpush.xpose.msra.mxu0 0.0
      %8263 = vmatpush.xpose.msra.mxu0 0.0
      %8264 = vmatpush.xpose.msra.mxu0 0.0
      %8265 = vmatpush.xpose.msra.mxu0 0.0
      %8266 = vmatpush.xpose.msra.mxu0 0.0
      %8267 = vmatpush.xpose.msra.mxu0 0.0
      %8268 = vmatpush.xpose.msra.mxu0 0.0
      %8269 = vmatpush.xpose.msra.mxu0 %v8252
      %8270 = vmatmul.f32.gmra.mxu0 %v8250
      %v8271 = vpop.f32.mrf.mxu0
      %v8272 = vadd.f32 0.0, %v8271
      %8273 = vdwg.mxu0
      %v8274 = vsel %vm3737, %v5300, 0
      %v8276 = vsel %vm3737, %v5457, 0
      %8278 = vmatpush.xpose.msra.mxu0 0.0
      %8279 = vmatpush.xpose.msra.mxu0 0.0
      %8280 = vmatpush.xpose.msra.mxu0 0.0
      %8281 = vmatpush.xpose.msra.mxu0 0.0
      %8282 = vmatpush.xpose.msra.mxu0 0.0
      %8283 = vmatpush.xpose.msra.mxu0 0.0
      %8284 = vmatpush.xpose.msra.mxu0 0.0
      %8285 = vmatpush.xpose.msra.mxu0 0.0
      %8286 = vmatpush.xpose.msra.mxu0 0.0
      %8287 = vmatpush.xpose.msra.mxu0 0.0
      %8288 = vmatpush.xpose.msra.mxu0 0.0
      %8289 = vmatpush.xpose.msra.mxu0 0.0
      %8290 = vmatpush.xpose.msra.mxu0 0.0
      %8291 = vmatpush.xpose.msra.mxu0 0.0
      %8292 = vmatpush.xpose.msra.mxu0 0.0
      %8293 = vmatpush.xpose.msra.mxu0 %v8276
      %8294 = vmatmul.f32.gmra.mxu0 %v8274
      %v8295 = vpop.f32.mrf.mxu0
      %v8296 = vadd.f32 0.0, %v8295
      %8297 = vdwg.mxu0
      %v8298 = vsel %vm3737, %v5173, 0
      %v8300 = vsel %vm3737, %v5458, 0
      %8302 = vmatpush.xpose.msra.mxu0 0.0
      %8303 = vmatpush.xpose.msra.mxu0 0.0
      %8304 = vmatpush.xpose.msra.mxu0 0.0
      %8305 = vmatpush.xpose.msra.mxu0 0.0
      %8306 = vmatpush.xpose.msra.mxu0 0.0
      %8307 = vmatpush.xpose.msra.mxu0 0.0
      %8308 = vmatpush.xpose.msra.mxu0 0.0
      %8309 = vmatpush.xpose.msra.mxu0 0.0
      %8310 = vmatpush.xpose.msra.mxu0 0.0
      %8311 = vmatpush.xpose.msra.mxu0 0.0
      %8312 = vmatpush.xpose.msra.mxu0 0.0
      %8313 = vmatpush.xpose.msra.mxu0 0.0
      %8314 = vmatpush.xpose.msra.mxu0 0.0
      %8315 = vmatpush.xpose.msra.mxu0 0.0
      %8316 = vmatpush.xpose.msra.mxu0 0.0
      %8317 = vmatpush.xpose.msra.mxu0 %v8300
      %8318 = vmatmul.f32.gmra.mxu0 %v8298
      %v8319 = vpop.f32.mrf.mxu0
      %v8320 = vadd.f32 0.0, %v8319
      %8321 = vdwg.mxu0
      %v8322 = vsel %vm3737, %v5301, 0
      %v8324 = vsel %vm3737, %v5459, 0
      %8326 = vmatpush.xpose.msra.mxu0 0.0
      %8327 = vmatpush.xpose.msra.mxu0 0.0
      %8328 = vmatpush.xpose.msra.mxu0 0.0
      %8329 = vmatpush.xpose.msra.mxu0 0.0
      %8330 = vmatpush.xpose.msra.mxu0 0.0
      %8331 = vmatpush.xpose.msra.mxu0 0.0
      %8332 = vmatpush.xpose.msra.mxu0 0.0
      %8333 = vmatpush.xpose.msra.mxu0 0.0
      %8334 = vmatpush.xpose.msra.mxu0 0.0
      %8335 = vmatpush.xpose.msra.mxu0 0.0
      %8336 = vmatpush.xpose.msra.mxu0 0.0
      %8337 = vmatpush.xpose.msra.mxu0 0.0
      %8338 = vmatpush.xpose.msra.mxu0 0.0
      %8339 = vmatpush.xpose.msra.mxu0 0.0
      %8340 = vmatpush.xpose.msra.mxu0 0.0
      %8341 = vmatpush.xpose.msra.mxu0 %v8324
      %8342 = vmatmul.f32.gmra.mxu0 %v8322
      %v8343 = vpop.f32.mrf.mxu0
      %v8344 = vadd.f32 0.0, %v8343
      %8345 = vdwg.mxu0
      %v8346 = vsel %vm3737, %v5174, 0
      %v8348 = vsel %vm3737, %v5336, 0
      %8350 = vmatpush.xpose.msra.mxu0 0.0
      %8351 = vmatpush.xpose.msra.mxu0 0.0
      %8352 = vmatpush.xpose.msra.mxu0 0.0
      %8353 = vmatpush.xpose.msra.mxu0 0.0
      %8354 = vmatpush.xpose.msra.mxu0 0.0
      %8355 = vmatpush.xpose.msra.mxu0 0.0
      %8356 = vmatpush.xpose.msra.mxu0 0.0
      %8357 = vmatpush.xpose.msra.mxu0 0.0
      %8358 = vmatpush.xpose.msra.mxu0 0.0
      %8359 = vmatpush.xpose.msra.mxu0 0.0
      %8360 = vmatpush.xpose.msra.mxu0 0.0
      %8361 = vmatpush.xpose.msra.mxu0 0.0
      %8362 = vmatpush.xpose.msra.mxu0 0.0
      %8363 = vmatpush.xpose.msra.mxu0 0.0
      %8364 = vmatpush.xpose.msra.mxu0 0.0
      %8365 = vmatpush.xpose.msra.mxu0 %v8348
      %8366 = vmatmul.f32.gmra.mxu0 %v8346
      %v8367 = vpop.f32.mrf.mxu0
      %v8368 = vadd.f32 0.0, %v8367
      %8369 = vdwg.mxu0
      %v8370 = vsel %vm3737, %v5302, 0
      %v8372 = vsel %vm3737, %v5460, 0
      %8374 = vmatpush.xpose.msra.mxu0 0.0
      %8375 = vmatpush.xpose.msra.mxu0 0.0
      %8376 = vmatpush.xpose.msra.mxu0 0.0
      %8377 = vmatpush.xpose.msra.mxu0 0.0
      %8378 = vmatpush.xpose.msra.mxu0 0.0
      %8379 = vmatpush.xpose.msra.mxu0 0.0
      %8380 = vmatpush.xpose.msra.mxu0 0.0
      %8381 = vmatpush.xpose.msra.mxu0 0.0
      %8382 = vmatpush.xpose.msra.mxu0 0.0
      %8383 = vmatpush.xpose.msra.mxu0 0.0
      %8384 = vmatpush.xpose.msra.mxu0 0.0
      %8385 = vmatpush.xpose.msra.mxu0 0.0
      %8386 = vmatpush.xpose.msra.mxu0 0.0
      %8387 = vmatpush.xpose.msra.mxu0 0.0
      %8388 = vmatpush.xpose.msra.mxu0 0.0
      %8389 = vmatpush.xpose.msra.mxu0 %v8372
      %8390 = vmatmul.f32.gmra.mxu0 %v8370
      %v8391 = vpop.f32.mrf.mxu0
      %v8392 = vadd.f32 0.0, %v8391
      %8393 = vdwg.mxu0
      %v8394 = vsel %vm3737, %v5175, 0
      %v8396 = vsel %vm3737, %v5461, 0
      %8398 = vmatpush.xpose.msra.mxu0 0.0
      %8399 = vmatpush.xpose.msra.mxu0 0.0
      %8400 = vmatpush.xpose.msra.mxu0 0.0
      %8401 = vmatpush.xpose.msra.mxu0 0.0
      %8402 = vmatpush.xpose.msra.mxu0 0.0
      %8403 = vmatpush.xpose.msra.mxu0 0.0
      %8404 = vmatpush.xpose.msra.mxu0 0.0
      %8405 = vmatpush.xpose.msra.mxu0 0.0
      %8406 = vmatpush.xpose.msra.mxu0 0.0
      %8407 = vmatpush.xpose.msra.mxu0 0.0
      %8408 = vmatpush.xpose.msra.mxu0 0.0
      %8409 = vmatpush.xpose.msra.mxu0 0.0
      %8410 = vmatpush.xpose.msra.mxu0 0.0
      %8411 = vmatpush.xpose.msra.mxu0 0.0
      %8412 = vmatpush.xpose.msra.mxu0 0.0
      %8413 = vmatpush.xpose.msra.mxu0 %v8396
      %8414 = vmatmul.f32.gmra.mxu0 %v8394
      %v8415 = vpop.f32.mrf.mxu0
      %v8416 = vadd.f32 0.0, %v8415
      %8417 = vdwg.mxu0
      %v8418 = vsel %vm3737, %v5303, 0
      %v8420 = vsel %vm3737, %v5462, 0
      %8422 = vmatpush.xpose.msra.mxu0 0.0
      %8423 = vmatpush.xpose.msra.mxu0 0.0
      %8424 = vmatpush.xpose.msra.mxu0 0.0
      %8425 = vmatpush.xpose.msra.mxu0 0.0
      %8426 = vmatpush.xpose.msra.mxu0 0.0
      %8427 = vmatpush.xpose.msra.mxu0 0.0
      %8428 = vmatpush.xpose.msra.mxu0 0.0
      %8429 = vmatpush.xpose.msra.mxu0 0.0
      %8430 = vmatpush.xpose.msra.mxu0 0.0
      %8431 = vmatpush.xpose.msra.mxu0 0.0
      %8432 = vmatpush.xpose.msra.mxu0 0.0
      %8433 = vmatpush.xpose.msra.mxu0 0.0
      %8434 = vmatpush.xpose.msra.mxu0 0.0
      %8435 = vmatpush.xpose.msra.mxu0 0.0
      %8436 = vmatpush.xpose.msra.mxu0 0.0
      %8437 = vmatpush.xpose.msra.mxu0 %v8420
      %8438 = vmatmul.f32.gmra.mxu0 %v8418
      %v8439 = vpop.f32.mrf.mxu0
      %v8440 = vadd.f32 0.0, %v8439
      %8441 = vdwg.mxu0
      %v8442 = vsel %vm3737, %v5176, 0
      %v8444 = vsel %vm3737, %v5337, 0
      %8446 = vmatpush.xpose.msra.mxu0 0.0
      %8447 = vmatpush.xpose.msra.mxu0 0.0
      %8448 = vmatpush.xpose.msra.mxu0 0.0
      %8449 = vmatpush.xpose.msra.mxu0 0.0
      %8450 = vmatpush.xpose.msra.mxu0 0.0
      %8451 = vmatpush.xpose.msra.mxu0 0.0
      %8452 = vmatpush.xpose.msra.mxu0 0.0
      %8453 = vmatpush.xpose.msra.mxu0 0.0
      %8454 = vmatpush.xpose.msra.mxu0 0.0
      %8455 = vmatpush.xpose.msra.mxu0 0.0
      %8456 = vmatpush.xpose.msra.mxu0 0.0
      %8457 = vmatpush.xpose.msra.mxu0 0.0
      %8458 = vmatpush.xpose.msra.mxu0 0.0
      %8459 = vmatpush.xpose.msra.mxu0 0.0
      %8460 = vmatpush.xpose.msra.mxu0 0.0
      %8461 = vmatpush.xpose.msra.mxu0 %v8444
      %8462 = vmatmul.f32.gmra.mxu0 %v8442
      %v8463 = vpop.f32.mrf.mxu0
      %v8464 = vadd.f32 0.0, %v8463
      %8465 = vdwg.mxu0
      %v8466 = vsel %vm3737, %v5304, 0
      %v8468 = vsel %vm3737, %v5463, 0
      %8470 = vmatpush.xpose.msra.mxu0 0.0
      %8471 = vmatpush.xpose.msra.mxu0 0.0
      %8472 = vmatpush.xpose.msra.mxu0 0.0
      %8473 = vmatpush.xpose.msra.mxu0 0.0
      %8474 = vmatpush.xpose.msra.mxu0 0.0
      %8475 = vmatpush.xpose.msra.mxu0 0.0
      %8476 = vmatpush.xpose.msra.mxu0 0.0
      %8477 = vmatpush.xpose.msra.mxu0 0.0
      %8478 = vmatpush.xpose.msra.mxu0 0.0
      %8479 = vmatpush.xpose.msra.mxu0 0.0
      %8480 = vmatpush.xpose.msra.mxu0 0.0
      %8481 = vmatpush.xpose.msra.mxu0 0.0
      %8482 = vmatpush.xpose.msra.mxu0 0.0
      %8483 = vmatpush.xpose.msra.mxu0 0.0
      %8484 = vmatpush.xpose.msra.mxu0 0.0
      %8485 = vmatpush.xpose.msra.mxu0 %v8468
      %8486 = vmatmul.f32.gmra.mxu0 %v8466
      %v8487 = vpop.f32.mrf.mxu0
      %v8488 = vadd.f32 0.0, %v8487
      %8489 = vdwg.mxu0
      %v8490 = vsel %vm3737, %v5177, 0
      %v8492 = vsel %vm3737, %v5464, 0
      %8494 = vmatpush.xpose.msra.mxu0 0.0
      %8495 = vmatpush.xpose.msra.mxu0 0.0
      %8496 = vmatpush.xpose.msra.mxu0 0.0
      %8497 = vmatpush.xpose.msra.mxu0 0.0
      %8498 = vmatpush.xpose.msra.mxu0 0.0
      %8499 = vmatpush.xpose.msra.mxu0 0.0
      %8500 = vmatpush.xpose.msra.mxu0 0.0
      %8501 = vmatpush.xpose.msra.mxu0 0.0
      %8502 = vmatpush.xpose.msra.mxu0 0.0
      %8503 = vmatpush.xpose.msra.mxu0 0.0
      %8504 = vmatpush.xpose.msra.mxu0 0.0
      %8505 = vmatpush.xpose.msra.mxu0 0.0
      %8506 = vmatpush.xpose.msra.mxu0 0.0
      %8507 = vmatpush.xpose.msra.mxu0 0.0
      %8508 = vmatpush.xpose.msra.mxu0 0.0
      %8509 = vmatpush.xpose.msra.mxu0 %v8492
      %8510 = vmatmul.f32.gmra.mxu0 %v8490
      %v8511 = vpop.f32.mrf.mxu0
      %v8512 = vadd.f32 0.0, %v8511
      %8513 = vdwg.mxu0
      %v8514 = vsel %vm3737, %v5305, 0
      %v8516 = vsel %vm3737, %v5465, 0
      %8518 = vmatpush.xpose.msra.mxu0 0.0
      %8519 = vmatpush.xpose.msra.mxu0 0.0
      %8520 = vmatpush.xpose.msra.mxu0 0.0
      %8521 = vmatpush.xpose.msra.mxu0 0.0
      %8522 = vmatpush.xpose.msra.mxu0 0.0
      %8523 = vmatpush.xpose.msra.mxu0 0.0
      %8524 = vmatpush.xpose.msra.mxu0 0.0
      %8525 = vmatpush.xpose.msra.mxu0 0.0
      %8526 = vmatpush.xpose.msra.mxu0 0.0
      %8527 = vmatpush.xpose.msra.mxu0 0.0
      %8528 = vmatpush.xpose.msra.mxu0 0.0
      %8529 = vmatpush.xpose.msra.mxu0 0.0
      %8530 = vmatpush.xpose.msra.mxu0 0.0
      %8531 = vmatpush.xpose.msra.mxu0 0.0
      %8532 = vmatpush.xpose.msra.mxu0 0.0
      %8533 = vmatpush.xpose.msra.mxu0 %v8516
      %8534 = vmatmul.f32.gmra.mxu0 %v8514
      %v8535 = vpop.f32.mrf.mxu0
      %v8536 = vadd.f32 0.0, %v8535
      %8537 = vdwg.mxu0
      %v8538 = vmul.f32 %v5488, 1.442695
      %v8539 = vpow.pop %v8538
      %v8540 = vmul.f32 %v5512, 1.442695
      %v8541 = vpow.pop %v8540
      %v8542 = vmul.f32 %v5536, 1.442695
      %v8543 = vpow.pop %v8542
      %v8544 = vmul.f32 %v5560, 1.442695
      %v8545 = vpow.pop %v8544
      %v8546 = vmul.f32 %v5584, 1.442695
      %v8547 = vpow.pop %v8546
      %v8548 = vmul.f32 %v5608, 1.442695
      %v8549 = vpow.pop %v8548
      %v8550 = vmul.f32 %v5632, 1.442695
      %v8551 = vpow.pop %v8550
      %v8552 = vmul.f32 %v5656, 1.442695
      %v8553 = vpow.pop %v8552
      %v8554 = vmul.f32 %v5680, 1.442695
      %v8555 = vpow.pop %v8554
      %v8556 = vmul.f32 %v5704, 1.442695
      %v8557 = vpow.pop %v8556
      %v8558 = vmul.f32 %v5728, 1.442695
      %v8559 = vpow.pop %v8558
      %v8560 = vmul.f32 %v5752, 1.442695
      %v8561 = vpow.pop %v8560
      %v8562 = vmul.f32 %v5776, 1.442695
      %v8563 = vpow.pop %v8562
      %v8564 = vmul.f32 %v5800, 1.442695
      %v8565 = vpow.pop %v8564
      %v8566 = vmul.f32 %v5824, 1.442695
      %v8567 = vpow.pop %v8566
      %v8568 = vmul.f32 %v5848, 1.442695
      %v8569 = vpow.pop %v8568
      %v8570 = vmul.f32 %v5872, 1.442695
      %v8571 = vpow.pop %v8570
      %v8572 = vmul.f32 %v5896, 1.442695
      %v8573 = vpow.pop %v8572
      %v8574 = vmul.f32 %v5920, 1.442695
      %v8575 = vpow.pop %v8574
      %v8576 = vmul.f32 %v5944, 1.442695
      %v8577 = vpow.pop %v8576
      %v8578 = vmul.f32 %v5968, 1.442695
      %v8579 = vpow.pop %v8578
      %v8580 = vmul.f32 %v5992, 1.442695
      %v8581 = vpow.pop %v8580
      %v8582 = vmul.f32 %v6016, 1.442695
      %v8583 = vpow.pop %v8582
      %v8584 = vmul.f32 %v6040, 1.442695
      %v8585 = vpow.pop %v8584
      %v8586 = vmul.f32 %v6064, 1.442695
      %v8587 = vpow.pop %v8586
      %v8588 = vmul.f32 %v6088, 1.442695
      %v8589 = vpow.pop %v8588
      %v8590 = vmul.f32 %v6112, 1.442695
      %v8591 = vpow.pop %v8590
      %v8592 = vmul.f32 %v6136, 1.442695
      %v8593 = vpow.pop %v8592
      %v8594 = vmul.f32 %v6160, 1.442695
      %v8595 = vpow.pop %v8594
      %v8596 = vmul.f32 %v6184, 1.442695
      %v8597 = vpow.pop %v8596
      %v8598 = vmul.f32 %v6208, 1.442695
      %v8599 = vpow.pop %v8598
      %v8600 = vmul.f32 %v6232, 1.442695
      %v8601 = vpow.pop %v8600
      %v8602 = vmul.f32 %v6256, 1.442695
      %v8603 = vpow.pop %v8602
      %v8604 = vmul.f32 %v6280, 1.442695
      %v8605 = vpow.pop %v8604
      %v8606 = vmul.f32 %v6304, 1.442695
      %v8607 = vpow.pop %v8606
      %v8608 = vmul.f32 %v6328, 1.442695
      %v8609 = vpow.pop %v8608
      %v8610 = vmul.f32 %v6352, 1.442695
      %v8611 = vpow.pop %v8610
      %v8612 = vmul.f32 %v6376, 1.442695
      %v8613 = vpow.pop %v8612
      %v8614 = vmul.f32 %v6400, 1.442695
      %v8615 = vpow.pop %v8614
      %v8616 = vmul.f32 %v6424, 1.442695
      %v8617 = vpow.pop %v8616
      %v8618 = vmul.f32 %v6448, 1.442695
      %v8619 = vpow.pop %v8618
      %v8620 = vmul.f32 %v6472, 1.442695
      %v8621 = vpow.pop %v8620
      %v8622 = vmul.f32 %v6496, 1.442695
      %v8623 = vpow.pop %v8622
      %v8624 = vmul.f32 %v6520, 1.442695
      %v8625 = vpow.pop %v8624
      %v8626 = vmul.f32 %v6544, 1.442695
      %v8627 = vpow.pop %v8626
      %v8628 = vmul.f32 %v6568, 1.442695
      %v8629 = vpow.pop %v8628
      %v8630 = vmul.f32 %v6592, 1.442695
      %v8631 = vpow.pop %v8630
      %v8632 = vmul.f32 %v6616, 1.442695
      %v8633 = vpow.pop %v8632
      %v8634 = vmul.f32 %v6640, 1.442695
      %v8635 = vpow.pop %v8634
      %v8636 = vmul.f32 %v6664, 1.442695
      %v8637 = vpow.pop %v8636
      %v8638 = vmul.f32 %v6688, 1.442695
      %v8639 = vpow.pop %v8638
      %v8640 = vmul.f32 %v6712, 1.442695
      %v8641 = vpow.pop %v8640
      %v8642 = vmul.f32 %v6736, 1.442695
      %v8643 = vpow.pop %v8642
      %v8644 = vmul.f32 %v6760, 1.442695
      %v8645 = vpow.pop %v8644
      %v8646 = vmul.f32 %v6784, 1.442695
      %v8647 = vpow.pop %v8646
      %v8648 = vmul.f32 %v6808, 1.442695
      %v8649 = vpow.pop %v8648
      %v8650 = vmul.f32 %v6832, 1.442695
      %v8651 = vpow.pop %v8650
      %v8652 = vmul.f32 %v6856, 1.442695
      %v8653 = vpow.pop %v8652
      %v8654 = vmul.f32 %v6880, 1.442695
      %v8655 = vpow.pop %v8654
      %v8656 = vmul.f32 %v6904, 1.442695
      %v8657 = vpow.pop %v8656
      %v8658 = vmul.f32 %v6928, 1.442695
      %v8659 = vpow.pop %v8658
      %v8660 = vmul.f32 %v6952, 1.442695
      %v8661 = vpow.pop %v8660
      %v8662 = vmul.f32 %v6976, 1.442695
      %v8663 = vpow.pop %v8662
      %v8664 = vmul.f32 %v7000, 1.442695
      %v8665 = vpow.pop %v8664
      %v8666 = vmul.f32 %v7024, 1.442695
      %v8667 = vpow.pop %v8666
      %v8668 = vmul.f32 %v7048, 1.442695
      %v8669 = vpow.pop %v8668
      %v8670 = vmul.f32 %v7072, 1.442695
      %v8671 = vpow.pop %v8670
      %v8672 = vmul.f32 %v7096, 1.442695
      %v8673 = vpow.pop %v8672
      %v8674 = vmul.f32 %v7120, 1.442695
      %v8675 = vpow.pop %v8674
      %v8676 = vmul.f32 %v7144, 1.442695
      %v8677 = vpow.pop %v8676
      %v8678 = vmul.f32 %v7168, 1.442695
      %v8679 = vpow.pop %v8678
      %v8680 = vmul.f32 %v7192, 1.442695
      %v8681 = vpow.pop %v8680
      %v8682 = vmul.f32 %v7216, 1.442695
      %v8683 = vpow.pop %v8682
      %v8684 = vmul.f32 %v7240, 1.442695
      %v8685 = vpow.pop %v8684
      %v8686 = vmul.f32 %v7264, 1.442695
      %v8687 = vpow.pop %v8686
      %v8688 = vmul.f32 %v7288, 1.442695
      %v8689 = vpow.pop %v8688
      %v8690 = vmul.f32 %v7312, 1.442695
      %v8691 = vpow.pop %v8690
      %v8692 = vmul.f32 %v7336, 1.442695
      %v8693 = vpow.pop %v8692
      %v8694 = vmul.f32 %v7360, 1.442695
      %v8695 = vpow.pop %v8694
      %v8696 = vmul.f32 %v7384, 1.442695
      %v8697 = vpow.pop %v8696
      %v8698 = vmul.f32 %v7408, 1.442695
      %v8699 = vpow.pop %v8698
      %v8700 = vmul.f32 %v7432, 1.442695
      %v8701 = vpow.pop %v8700
      %v8702 = vmul.f32 %v7456, 1.442695
      %v8703 = vpow.pop %v8702
      %v8704 = vmul.f32 %v7480, 1.442695
      %v8705 = vpow.pop %v8704
      %v8706 = vmul.f32 %v7504, 1.442695
      %v8707 = vpow.pop %v8706
      %v8708 = vmul.f32 %v7528, 1.442695
      %v8709 = vpow.pop %v8708
      %v8710 = vmul.f32 %v7552, 1.442695
      %v8711 = vpow.pop %v8710
      %v8712 = vmul.f32 %v7576, 1.442695
      %v8713 = vpow.pop %v8712
      %v8714 = vmul.f32 %v7600, 1.442695
      %v8715 = vpow.pop %v8714
      %v8716 = vmul.f32 %v7624, 1.442695
      %v8717 = vpow.pop %v8716
      %v8718 = vmul.f32 %v7648, 1.442695
      %v8719 = vpow.pop %v8718
      %v8720 = vmul.f32 %v7672, 1.442695
      %v8721 = vpow.pop %v8720
      %v8722 = vmul.f32 %v7696, 1.442695
      %v8723 = vpow.pop %v8722
      %v8724 = vmul.f32 %v7720, 1.442695
      %v8725 = vpow.pop %v8724
      %v8726 = vmul.f32 %v7744, 1.442695
      %v8727 = vpow.pop %v8726
      %v8728 = vmul.f32 %v7768, 1.442695
      %v8729 = vpow.pop %v8728
      %v8730 = vmul.f32 %v7792, 1.442695
      %v8731 = vpow.pop %v8730
      %v8732 = vmul.f32 %v7816, 1.442695
      %v8733 = vpow.pop %v8732
      %v8734 = vmul.f32 %v7840, 1.442695
      %v8735 = vpow.pop %v8734
      %v8736 = vmul.f32 %v7864, 1.442695
      %v8737 = vpow.pop %v8736
      %v8738 = vmul.f32 %v7888, 1.442695
      %v8739 = vpow.pop %v8738
      %v8740 = vmul.f32 %v7912, 1.442695
      %v8741 = vpow.pop %v8740
      %v8742 = vmul.f32 %v7936, 1.442695
      %v8743 = vpow.pop %v8742
      %v8744 = vmul.f32 %v7960, 1.442695
      %v8745 = vpow.pop %v8744
      %v8746 = vmul.f32 %v7984, 1.442695
      %v8747 = vpow.pop %v8746
      %v8748 = vmul.f32 %v8008, 1.442695
      %v8749 = vpow.pop %v8748
      %v8750 = vmul.f32 %v8032, 1.442695
      %v8751 = vpow.pop %v8750
      %v8752 = vmul.f32 %v8056, 1.442695
      %v8753 = vpow.pop %v8752
      %v8754 = vmul.f32 %v8080, 1.442695
      %v8755 = vpow.pop %v8754
      %v8756 = vmul.f32 %v8104, 1.442695
      %v8757 = vpow.pop %v8756
      %v8758 = vmul.f32 %v8128, 1.442695
      %v8759 = vpow.pop %v8758
      %v8760 = vmul.f32 %v8152, 1.442695
      %v8761 = vpow.pop %v8760
      %v8762 = vmul.f32 %v8176, 1.442695
      %v8763 = vpow.pop %v8762
      %v8764 = vmul.f32 %v8200, 1.442695
      %v8765 = vpow.pop %v8764
      %v8766 = vmul.f32 %v8224, 1.442695
      %v8767 = vpow.pop %v8766
      %v8768 = vmul.f32 %v8248, 1.442695
      %v8769 = vpow.pop %v8768
      %v8770 = vmul.f32 %v8272, 1.442695
      %v8771 = vpow.pop %v8770
      %v8772 = vmul.f32 %v8296, 1.442695
      %v8773 = vpow.pop %v8772
      %v8774 = vmul.f32 %v8320, 1.442695
      %v8775 = vpow.pop %v8774
      %v8776 = vmul.f32 %v8344, 1.442695
      %v8777 = vpow.pop %v8776
      %v8778 = vmul.f32 %v8368, 1.442695
      %v8779 = vpow.pop %v8778
      %v8780 = vmul.f32 %v8392, 1.442695
      %v8781 = vpow.pop %v8780
      %v8782 = vmul.f32 %v8416, 1.442695
      %v8783 = vpow.pop %v8782
      %v8784 = vmul.f32 %v8440, 1.442695
      %v8785 = vpow.pop %v8784
      %v8786 = vmul.f32 %v8464, 1.442695
      %v8787 = vpow.pop %v8786
      %v8788 = vmul.f32 %v8488, 1.442695
      %v8789 = vpow.pop %v8788
      %v8790 = vmul.f32 %v8512, 1.442695
      %v8791 = vpow.pop %v8790
      %v8792 = vmul.f32 %v8536, 1.442695
      %v8793 = vpow.pop %v8792
      %vm8794 = vcmask 11264
      %v8795 = vsel %vm8794, %v8539, 0.0
      %8796 = vadd.xlane.f32.xlu0 %v8795
      %v8797 = vpop.xlane.xlu0 %8796
      %v8798 = vsel %vm8794, %v8541, 0.0
      %8799 = vadd.xlane.f32.xlu0 %v8798
      %v8800 = vpop.xlane.xlu0 %8799
      %v8801 = vsel %vm8794, %v8543, 0.0
      %8802 = vadd.xlane.f32.xlu0 %v8801
      %v8803 = vpop.xlane.xlu0 %8802
      %v8804 = vsel %vm8794, %v8545, 0.0
      %8805 = vadd.xlane.f32.xlu0 %v8804
      %v8806 = vpop.xlane.xlu0 %8805
      %v8807 = vsel %vm8794, %v8547, 0.0
      %8808 = vadd.xlane.f32.xlu0 %v8807
      %v8809 = vpop.xlane.xlu0 %8808
      %v8810 = vsel %vm8794, %v8549, 0.0
      %8811 = vadd.xlane.f32.xlu0 %v8810
      %v8812 = vpop.xlane.xlu0 %8811
      %v8813 = vsel %vm8794, %v8551, 0.0
      %8814 = vadd.xlane.f32.xlu0 %v8813
      %v8815 = vpop.xlane.xlu0 %8814
      %v8816 = vsel %vm8794, %v8553, 0.0
      %8817 = vadd.xlane.f32.xlu0 %v8816
      %v8818 = vpop.xlane.xlu0 %8817
      %v8819 = vsel %vm8794, %v8555, 0.0
      %8820 = vadd.xlane.f32.xlu0 %v8819
      %v8821 = vpop.xlane.xlu0 %8820
      %v8822 = vsel %vm8794, %v8557, 0.0
      %8823 = vadd.xlane.f32.xlu0 %v8822
      %v8824 = vpop.xlane.xlu0 %8823
      %v8825 = vsel %vm8794, %v8559, 0.0
      %8826 = vadd.xlane.f32.xlu0 %v8825
      %v8827 = vpop.xlane.xlu0 %8826
      %v8828 = vsel %vm8794, %v8561, 0.0
      %8829 = vadd.xlane.f32.xlu0 %v8828
      %v8830 = vpop.xlane.xlu0 %8829
      %v8831 = vsel %vm8794, %v8563, 0.0
      %8832 = vadd.xlane.f32.xlu0 %v8831
      %v8833 = vpop.xlane.xlu0 %8832
      %v8834 = vsel %vm8794, %v8565, 0.0
      %8835 = vadd.xlane.f32.xlu0 %v8834
      %v8836 = vpop.xlane.xlu0 %8835
      %v8837 = vsel %vm8794, %v8567, 0.0
      %8838 = vadd.xlane.f32.xlu0 %v8837
      %v8839 = vpop.xlane.xlu0 %8838
      %v8840 = vsel %vm8794, %v8569, 0.0
      %8841 = vadd.xlane.f32.xlu0 %v8840
      %v8842 = vpop.xlane.xlu0 %8841
      %v8843 = vsel %vm8794, %v8571, 0.0
      %8844 = vadd.xlane.f32.xlu0 %v8843
      %v8845 = vpop.xlane.xlu0 %8844
      %v8846 = vsel %vm8794, %v8573, 0.0
      %8847 = vadd.xlane.f32.xlu0 %v8846
      %v8848 = vpop.xlane.xlu0 %8847
      %v8849 = vsel %vm8794, %v8575, 0.0
      %8850 = vadd.xlane.f32.xlu0 %v8849
      %v8851 = vpop.xlane.xlu0 %8850
      %v8852 = vsel %vm8794, %v8577, 0.0
      %8853 = vadd.xlane.f32.xlu0 %v8852
      %v8854 = vpop.xlane.xlu0 %8853
      %v8855 = vsel %vm8794, %v8579, 0.0
      %8856 = vadd.xlane.f32.xlu0 %v8855
      %v8857 = vpop.xlane.xlu0 %8856
      %v8858 = vsel %vm8794, %v8581, 0.0
      %8859 = vadd.xlane.f32.xlu0 %v8858
      %v8860 = vpop.xlane.xlu0 %8859
      %v8861 = vsel %vm8794, %v8583, 0.0
      %8862 = vadd.xlane.f32.xlu0 %v8861
      %v8863 = vpop.xlane.xlu0 %8862
      %v8864 = vsel %vm8794, %v8585, 0.0
      %8865 = vadd.xlane.f32.xlu0 %v8864
      %v8866 = vpop.xlane.xlu0 %8865
      %v8867 = vsel %vm8794, %v8587, 0.0
      %8868 = vadd.xlane.f32.xlu0 %v8867
      %v8869 = vpop.xlane.xlu0 %8868
      %v8870 = vsel %vm8794, %v8589, 0.0
      %8871 = vadd.xlane.f32.xlu0 %v8870
      %v8872 = vpop.xlane.xlu0 %8871
      %v8873 = vsel %vm8794, %v8591, 0.0
      %8874 = vadd.xlane.f32.xlu0 %v8873
      %v8875 = vpop.xlane.xlu0 %8874
      %v8876 = vsel %vm8794, %v8593, 0.0
      %8877 = vadd.xlane.f32.xlu0 %v8876
      %v8878 = vpop.xlane.xlu0 %8877
      %v8879 = vsel %vm8794, %v8595, 0.0
      %8880 = vadd.xlane.f32.xlu0 %v8879
      %v8881 = vpop.xlane.xlu0 %8880
      %v8882 = vsel %vm8794, %v8597, 0.0
      %8883 = vadd.xlane.f32.xlu0 %v8882
      %v8884 = vpop.xlane.xlu0 %8883
      %v8885 = vsel %vm8794, %v8599, 0.0
      %8886 = vadd.xlane.f32.xlu0 %v8885
      %v8887 = vpop.xlane.xlu0 %8886
      %v8888 = vsel %vm8794, %v8601, 0.0
      %8889 = vadd.xlane.f32.xlu0 %v8888
      %v8890 = vpop.xlane.xlu0 %8889
      %v8891 = vsel %vm8794, %v8603, 0.0
      %8892 = vadd.xlane.f32.xlu0 %v8891
      %v8893 = vpop.xlane.xlu0 %8892
      %v8894 = vsel %vm8794, %v8605, 0.0
      %8895 = vadd.xlane.f32.xlu0 %v8894
      %v8896 = vpop.xlane.xlu0 %8895
      %v8897 = vsel %vm8794, %v8607, 0.0
      %8898 = vadd.xlane.f32.xlu0 %v8897
      %v8899 = vpop.xlane.xlu0 %8898
      %v8900 = vsel %vm8794, %v8609, 0.0
      %8901 = vadd.xlane.f32.xlu0 %v8900
      %v8902 = vpop.xlane.xlu0 %8901
      %v8903 = vsel %vm8794, %v8611, 0.0
      %8904 = vadd.xlane.f32.xlu0 %v8903
      %v8905 = vpop.xlane.xlu0 %8904
      %v8906 = vsel %vm8794, %v8613, 0.0
      %8907 = vadd.xlane.f32.xlu0 %v8906
      %v8908 = vpop.xlane.xlu0 %8907
      %v8909 = vsel %vm8794, %v8615, 0.0
      %8910 = vadd.xlane.f32.xlu0 %v8909
      %v8911 = vpop.xlane.xlu0 %8910
      %v8912 = vsel %vm8794, %v8617, 0.0
      %8913 = vadd.xlane.f32.xlu0 %v8912
      %v8914 = vpop.xlane.xlu0 %8913
      %v8915 = vsel %vm8794, %v8619, 0.0
      %8916 = vadd.xlane.f32.xlu0 %v8915
      %v8917 = vpop.xlane.xlu0 %8916
      %v8918 = vsel %vm8794, %v8621, 0.0
      %8919 = vadd.xlane.f32.xlu0 %v8918
      %v8920 = vpop.xlane.xlu0 %8919
      %v8921 = vsel %vm8794, %v8623, 0.0
      %8922 = vadd.xlane.f32.xlu0 %v8921
      %v8923 = vpop.xlane.xlu0 %8922
      %v8924 = vsel %vm8794, %v8625, 0.0
      %8925 = vadd.xlane.f32.xlu0 %v8924
      %v8926 = vpop.xlane.xlu0 %8925
      %v8927 = vsel %vm8794, %v8627, 0.0
      %8928 = vadd.xlane.f32.xlu0 %v8927
      %v8929 = vpop.xlane.xlu0 %8928
      %v8930 = vsel %vm8794, %v8629, 0.0
      %8931 = vadd.xlane.f32.xlu0 %v8930
      %v8932 = vpop.xlane.xlu0 %8931
      %v8933 = vsel %vm8794, %v8631, 0.0
      %8934 = vadd.xlane.f32.xlu0 %v8933
      %v8935 = vpop.xlane.xlu0 %8934
      %v8936 = vsel %vm8794, %v8633, 0.0
      %8937 = vadd.xlane.f32.xlu0 %v8936
      %v8938 = vpop.xlane.xlu0 %8937
      %v8939 = vsel %vm8794, %v8635, 0.0
      %8940 = vadd.xlane.f32.xlu0 %v8939
      %v8941 = vpop.xlane.xlu0 %8940
      %v8942 = vsel %vm8794, %v8637, 0.0
      %8943 = vadd.xlane.f32.xlu0 %v8942
      %v8944 = vpop.xlane.xlu0 %8943
      %v8945 = vsel %vm8794, %v8639, 0.0
      %8946 = vadd.xlane.f32.xlu0 %v8945
      %v8947 = vpop.xlane.xlu0 %8946
      %v8948 = vsel %vm8794, %v8641, 0.0
      %8949 = vadd.xlane.f32.xlu0 %v8948
      %v8950 = vpop.xlane.xlu0 %8949
      %v8951 = vsel %vm8794, %v8643, 0.0
      %8952 = vadd.xlane.f32.xlu0 %v8951
      %v8953 = vpop.xlane.xlu0 %8952
      %v8954 = vsel %vm8794, %v8645, 0.0
      %8955 = vadd.xlane.f32.xlu0 %v8954
      %v8956 = vpop.xlane.xlu0 %8955
      %v8957 = vsel %vm8794, %v8647, 0.0
      %8958 = vadd.xlane.f32.xlu0 %v8957
      %v8959 = vpop.xlane.xlu0 %8958
      %v8960 = vsel %vm8794, %v8649, 0.0
      %8961 = vadd.xlane.f32.xlu0 %v8960
      %v8962 = vpop.xlane.xlu0 %8961
      %v8963 = vsel %vm8794, %v8651, 0.0
      %8964 = vadd.xlane.f32.xlu0 %v8963
      %v8965 = vpop.xlane.xlu0 %8964
      %v8966 = vsel %vm8794, %v8653, 0.0
      %8967 = vadd.xlane.f32.xlu0 %v8966
      %v8968 = vpop.xlane.xlu0 %8967
      %v8969 = vsel %vm8794, %v8655, 0.0
      %8970 = vadd.xlane.f32.xlu0 %v8969
      %v8971 = vpop.xlane.xlu0 %8970
      %v8972 = vsel %vm8794, %v8657, 0.0
      %8973 = vadd.xlane.f32.xlu0 %v8972
      %v8974 = vpop.xlane.xlu0 %8973
      %v8975 = vsel %vm8794, %v8659, 0.0
      %8976 = vadd.xlane.f32.xlu0 %v8975
      %v8977 = vpop.xlane.xlu0 %8976
      %v8978 = vsel %vm8794, %v8661, 0.0
      %8979 = vadd.xlane.f32.xlu0 %v8978
      %v8980 = vpop.xlane.xlu0 %8979
      %v8981 = vsel %vm8794, %v8663, 0.0
      %8982 = vadd.xlane.f32.xlu0 %v8981
      %v8983 = vpop.xlane.xlu0 %8982
      %v8984 = vsel %vm8794, %v8665, 0.0
      %8985 = vadd.xlane.f32.xlu0 %v8984
      %v8986 = vpop.xlane.xlu0 %8985
      %v8987 = vsel %vm8794, %v8667, 0.0
      %8988 = vadd.xlane.f32.xlu0 %v8987
      %v8989 = vpop.xlane.xlu0 %8988
      %v8990 = vsel %vm8794, %v8669, 0.0
      %8991 = vadd.xlane.f32.xlu0 %v8990
      %v8992 = vpop.xlane.xlu0 %8991
      %v8993 = vsel %vm8794, %v8671, 0.0
      %8994 = vadd.xlane.f32.xlu0 %v8993
      %v8995 = vpop.xlane.xlu0 %8994
      %v8996 = vsel %vm8794, %v8673, 0.0
      %8997 = vadd.xlane.f32.xlu0 %v8996
      %v8998 = vpop.xlane.xlu0 %8997
      %v8999 = vsel %vm8794, %v8675, 0.0
      %9000 = vadd.xlane.f32.xlu0 %v8999
      %v9001 = vpop.xlane.xlu0 %9000
      %v9002 = vsel %vm8794, %v8677, 0.0
      %9003 = vadd.xlane.f32.xlu0 %v9002
      %v9004 = vpop.xlane.xlu0 %9003
      %v9005 = vsel %vm8794, %v8679, 0.0
      %9006 = vadd.xlane.f32.xlu0 %v9005
      %v9007 = vpop.xlane.xlu0 %9006
      %v9008 = vsel %vm8794, %v8681, 0.0
      %9009 = vadd.xlane.f32.xlu0 %v9008
      %v9010 = vpop.xlane.xlu0 %9009
      %v9011 = vsel %vm8794, %v8683, 0.0
      %9012 = vadd.xlane.f32.xlu0 %v9011
      %v9013 = vpop.xlane.xlu0 %9012
      %v9014 = vsel %vm8794, %v8685, 0.0
      %9015 = vadd.xlane.f32.xlu0 %v9014
      %v9016 = vpop.xlane.xlu0 %9015
      %v9017 = vsel %vm8794, %v8687, 0.0
      %9018 = vadd.xlane.f32.xlu0 %v9017
      %v9019 = vpop.xlane.xlu0 %9018
      %v9020 = vsel %vm8794, %v8689, 0.0
      %9021 = vadd.xlane.f32.xlu0 %v9020
      %v9022 = vpop.xlane.xlu0 %9021
      %v9023 = vsel %vm8794, %v8691, 0.0
      %9024 = vadd.xlane.f32.xlu0 %v9023
      %v9025 = vpop.xlane.xlu0 %9024
      %v9026 = vsel %vm8794, %v8693, 0.0
      %9027 = vadd.xlane.f32.xlu0 %v9026
      %v9028 = vpop.xlane.xlu0 %9027
      %v9029 = vsel %vm8794, %v8695, 0.0
      %9030 = vadd.xlane.f32.xlu0 %v9029
      %v9031 = vpop.xlane.xlu0 %9030
      %v9032 = vsel %vm8794, %v8697, 0.0
      %9033 = vadd.xlane.f32.xlu0 %v9032
      %v9034 = vpop.xlane.xlu0 %9033
      %v9035 = vsel %vm8794, %v8699, 0.0
      %9036 = vadd.xlane.f32.xlu0 %v9035
      %v9037 = vpop.xlane.xlu0 %9036
      %v9038 = vsel %vm8794, %v8701, 0.0
      %9039 = vadd.xlane.f32.xlu0 %v9038
      %v9040 = vpop.xlane.xlu0 %9039
      %v9041 = vsel %vm8794, %v8703, 0.0
      %9042 = vadd.xlane.f32.xlu0 %v9041
      %v9043 = vpop.xlane.xlu0 %9042
      %v9044 = vsel %vm8794, %v8705, 0.0
      %9045 = vadd.xlane.f32.xlu0 %v9044
      %v9046 = vpop.xlane.xlu0 %9045
      %v9047 = vsel %vm8794, %v8707, 0.0
      %9048 = vadd.xlane.f32.xlu0 %v9047
      %v9049 = vpop.xlane.xlu0 %9048
      %v9050 = vsel %vm8794, %v8709, 0.0
      %9051 = vadd.xlane.f32.xlu0 %v9050
      %v9052 = vpop.xlane.xlu0 %9051
      %v9053 = vsel %vm8794, %v8711, 0.0
      %9054 = vadd.xlane.f32.xlu0 %v9053
      %v9055 = vpop.xlane.xlu0 %9054
      %v9056 = vsel %vm8794, %v8713, 0.0
      %9057 = vadd.xlane.f32.xlu0 %v9056
      %v9058 = vpop.xlane.xlu0 %9057
      %v9059 = vsel %vm8794, %v8715, 0.0
      %9060 = vadd.xlane.f32.xlu0 %v9059
      %v9061 = vpop.xlane.xlu0 %9060
      %v9062 = vsel %vm8794, %v8717, 0.0
      %9063 = vadd.xlane.f32.xlu0 %v9062
      %v9064 = vpop.xlane.xlu0 %9063
      %v9065 = vsel %vm8794, %v8719, 0.0
      %9066 = vadd.xlane.f32.xlu0 %v9065
      %v9067 = vpop.xlane.xlu0 %9066
      %v9068 = vsel %vm8794, %v8721, 0.0
      %9069 = vadd.xlane.f32.xlu0 %v9068
      %v9070 = vpop.xlane.xlu0 %9069
      %v9071 = vsel %vm8794, %v8723, 0.0
      %9072 = vadd.xlane.f32.xlu0 %v9071
      %v9073 = vpop.xlane.xlu0 %9072
      %v9074 = vsel %vm8794, %v8725, 0.0
      %9075 = vadd.xlane.f32.xlu0 %v9074
      %v9076 = vpop.xlane.xlu0 %9075
      %v9077 = vsel %vm8794, %v8727, 0.0
      %9078 = vadd.xlane.f32.xlu0 %v9077
      %v9079 = vpop.xlane.xlu0 %9078
      %v9080 = vsel %vm8794, %v8729, 0.0
      %9081 = vadd.xlane.f32.xlu0 %v9080
      %v9082 = vpop.xlane.xlu0 %9081
      %v9083 = vsel %vm8794, %v8731, 0.0
      %9084 = vadd.xlane.f32.xlu0 %v9083
      %v9085 = vpop.xlane.xlu0 %9084
      %v9086 = vsel %vm8794, %v8733, 0.0
      %9087 = vadd.xlane.f32.xlu0 %v9086
      %v9088 = vpop.xlane.xlu0 %9087
      %v9089 = vsel %vm8794, %v8735, 0.0
      %9090 = vadd.xlane.f32.xlu0 %v9089
      %v9091 = vpop.xlane.xlu0 %9090
      %v9092 = vsel %vm8794, %v8737, 0.0
      %9093 = vadd.xlane.f32.xlu0 %v9092
      %v9094 = vpop.xlane.xlu0 %9093
      %v9095 = vsel %vm8794, %v8739, 0.0
      %9096 = vadd.xlane.f32.xlu0 %v9095
      %v9097 = vpop.xlane.xlu0 %9096
      %v9098 = vsel %vm8794, %v8741, 0.0
      %9099 = vadd.xlane.f32.xlu0 %v9098
      %v9100 = vpop.xlane.xlu0 %9099
      %v9101 = vsel %vm8794, %v8743, 0.0
      %9102 = vadd.xlane.f32.xlu0 %v9101
      %v9103 = vpop.xlane.xlu0 %9102
      %v9104 = vsel %vm8794, %v8745, 0.0
      %9105 = vadd.xlane.f32.xlu0 %v9104
      %v9106 = vpop.xlane.xlu0 %9105
      %v9107 = vsel %vm8794, %v8747, 0.0
      %9108 = vadd.xlane.f32.xlu0 %v9107
      %v9109 = vpop.xlane.xlu0 %9108
      %v9110 = vsel %vm8794, %v8749, 0.0
      %9111 = vadd.xlane.f32.xlu0 %v9110
      %v9112 = vpop.xlane.xlu0 %9111
      %v9113 = vsel %vm8794, %v8751, 0.0
      %9114 = vadd.xlane.f32.xlu0 %v9113
      %v9115 = vpop.xlane.xlu0 %9114
      %v9116 = vsel %vm8794, %v8753, 0.0
      %9117 = vadd.xlane.f32.xlu0 %v9116
      %v9118 = vpop.xlane.xlu0 %9117
      %v9119 = vsel %vm8794, %v8755, 0.0
      %9120 = vadd.xlane.f32.xlu0 %v9119
      %v9121 = vpop.xlane.xlu0 %9120
      %v9122 = vsel %vm8794, %v8757, 0.0
      %9123 = vadd.xlane.f32.xlu0 %v9122
      %v9124 = vpop.xlane.xlu0 %9123
      %v9125 = vsel %vm8794, %v8759, 0.0
      %9126 = vadd.xlane.f32.xlu0 %v9125
      %v9127 = vpop.xlane.xlu0 %9126
      %v9128 = vsel %vm8794, %v8761, 0.0
      %9129 = vadd.xlane.f32.xlu0 %v9128
      %v9130 = vpop.xlane.xlu0 %9129
      %v9131 = vsel %vm8794, %v8763, 0.0
      %9132 = vadd.xlane.f32.xlu0 %v9131
      %v9133 = vpop.xlane.xlu0 %9132
      %v9134 = vsel %vm8794, %v8765, 0.0
      %9135 = vadd.xlane.f32.xlu0 %v9134
      %v9136 = vpop.xlane.xlu0 %9135
      %v9137 = vsel %vm8794, %v8767, 0.0
      %9138 = vadd.xlane.f32.xlu0 %v9137
      %v9139 = vpop.xlane.xlu0 %9138
      %v9140 = vsel %vm8794, %v8769, 0.0
      %9141 = vadd.xlane.f32.xlu0 %v9140
      %v9142 = vpop.xlane.xlu0 %9141
      %v9143 = vsel %vm8794, %v8771, 0.0
      %9144 = vadd.xlane.f32.xlu0 %v9143
      %v9145 = vpop.xlane.xlu0 %9144
      %v9146 = vsel %vm8794, %v8773, 0.0
      %9147 = vadd.xlane.f32.xlu0 %v9146
      %v9148 = vpop.xlane.xlu0 %9147
      %v9149 = vsel %vm8794, %v8775, 0.0
      %9150 = vadd.xlane.f32.xlu0 %v9149
      %v9151 = vpop.xlane.xlu0 %9150
      %v9152 = vsel %vm8794, %v8777, 0.0
      %9153 = vadd.xlane.f32.xlu0 %v9152
      %v9154 = vpop.xlane.xlu0 %9153
      %v9155 = vsel %vm8794, %v8779, 0.0
      %9156 = vadd.xlane.f32.xlu0 %v9155
      %v9157 = vpop.xlane.xlu0 %9156
      %v9158 = vsel %vm8794, %v8781, 0.0
      %9159 = vadd.xlane.f32.xlu0 %v9158
      %v9160 = vpop.xlane.xlu0 %9159
      %v9161 = vsel %vm8794, %v8783, 0.0
      %9162 = vadd.xlane.f32.xlu0 %v9161
      %v9163 = vpop.xlane.xlu0 %9162
      %v9164 = vsel %vm8794, %v8785, 0.0
      %9165 = vadd.xlane.f32.xlu0 %v9164
      %v9166 = vpop.xlane.xlu0 %9165
      %v9167 = vsel %vm8794, %v8787, 0.0
      %9168 = vadd.xlane.f32.xlu0 %v9167
      %v9169 = vpop.xlane.xlu0 %9168
      %v9170 = vsel %vm8794, %v8789, 0.0
      %9171 = vadd.xlane.f32.xlu0 %v9170
      %v9172 = vpop.xlane.xlu0 %9171
      %v9173 = vsel %vm8794, %v8791, 0.0
      %9174 = vadd.xlane.f32.xlu0 %v9173
      %v9175 = vpop.xlane.xlu0 %9174
      %v9176 = vsel %vm8794, %v8793, 0.0
      %9177 = vadd.xlane.f32.xlu0 %v9176
      %v9178 = vpop.xlane.xlu0 %9177
      %v9179 = vlog2.pop %v8797
      %v9180 = vmul.f32 %v9179, 0.6931472
      %v9181 = vlog2.pop %v8800
      %v9182 = vmul.f32 %v9181, 0.6931472
      %v9183 = vlog2.pop %v8803
      %v9184 = vmul.f32 %v9183, 0.6931472
      %v9185 = vlog2.pop %v8806
      %v9186 = vmul.f32 %v9185, 0.6931472
      %v9187 = vlog2.pop %v8809
      %v9188 = vmul.f32 %v9187, 0.6931472
      %v9189 = vlog2.pop %v8812
      %v9190 = vmul.f32 %v9189, 0.6931472
      %v9191 = vlog2.pop %v8815
      %v9192 = vmul.f32 %v9191, 0.6931472
      %v9193 = vlog2.pop %v8818
      %v9194 = vmul.f32 %v9193, 0.6931472
      %v9195 = vlog2.pop %v8821
      %v9196 = vmul.f32 %v9195, 0.6931472
      %v9197 = vlog2.pop %v8824
      %v9198 = vmul.f32 %v9197, 0.6931472
      %v9199 = vlog2.pop %v8827
      %v9200 = vmul.f32 %v9199, 0.6931472
      %v9201 = vlog2.pop %v8830
      %v9202 = vmul.f32 %v9201, 0.6931472
      %v9203 = vlog2.pop %v8833
      %v9204 = vmul.f32 %v9203, 0.6931472
      %v9205 = vlog2.pop %v8836
      %v9206 = vmul.f32 %v9205, 0.6931472
      %v9207 = vlog2.pop %v8839
      %v9208 = vmul.f32 %v9207, 0.6931472
      %v9209 = vlog2.pop %v8842
      %v9210 = vmul.f32 %v9209, 0.6931472
      %v9211 = vlog2.pop %v8845
      %v9212 = vmul.f32 %v9211, 0.6931472
      %v9213 = vlog2.pop %v8848
      %v9214 = vmul.f32 %v9213, 0.6931472
      %v9215 = vlog2.pop %v8851
      %v9216 = vmul.f32 %v9215, 0.6931472
      %v9217 = vlog2.pop %v8854
      %v9218 = vmul.f32 %v9217, 0.6931472
      %v9219 = vlog2.pop %v8857
      %v9220 = vmul.f32 %v9219, 0.6931472
      %v9221 = vlog2.pop %v8860
      %v9222 = vmul.f32 %v9221, 0.6931472
      %v9223 = vlog2.pop %v8863
      %v9224 = vmul.f32 %v9223, 0.6931472
      %v9225 = vlog2.pop %v8866
      %v9226 = vmul.f32 %v9225, 0.6931472
      %v9227 = vlog2.pop %v8869
      %v9228 = vmul.f32 %v9227, 0.6931472
      %v9229 = vlog2.pop %v8872
      %v9230 = vmul.f32 %v9229, 0.6931472
      %v9231 = vlog2.pop %v8875
      %v9232 = vmul.f32 %v9231, 0.6931472
      %v9233 = vlog2.pop %v8878
      %v9234 = vmul.f32 %v9233, 0.6931472
      %v9235 = vlog2.pop %v8881
      %v9236 = vmul.f32 %v9235, 0.6931472
      %v9237 = vlog2.pop %v8884
      %v9238 = vmul.f32 %v9237, 0.6931472
      %v9239 = vlog2.pop %v8887
      %v9240 = vmul.f32 %v9239, 0.6931472
      %v9241 = vlog2.pop %v8890
      %v9242 = vmul.f32 %v9241, 0.6931472
      %v9243 = vlog2.pop %v8893
      %v9244 = vmul.f32 %v9243, 0.6931472
      %v9245 = vlog2.pop %v8896
      %v9246 = vmul.f32 %v9245, 0.6931472
      %v9247 = vlog2.pop %v8899
      %v9248 = vmul.f32 %v9247, 0.6931472
      %v9249 = vlog2.pop %v8902
      %v9250 = vmul.f32 %v9249, 0.6931472
      %v9251 = vlog2.pop %v8905
      %v9252 = vmul.f32 %v9251, 0.6931472
      %v9253 = vlog2.pop %v8908
      %v9254 = vmul.f32 %v9253, 0.6931472
      %v9255 = vlog2.pop %v8911
      %v9256 = vmul.f32 %v9255, 0.6931472
      %v9257 = vlog2.pop %v8914
      %v9258 = vmul.f32 %v9257, 0.6931472
      %v9259 = vlog2.pop %v8917
      %v9260 = vmul.f32 %v9259, 0.6931472
      %v9261 = vlog2.pop %v8920
      %v9262 = vmul.f32 %v9261, 0.6931472
      %v9263 = vlog2.pop %v8923
      %v9264 = vmul.f32 %v9263, 0.6931472
      %v9265 = vlog2.pop %v8926
      %v9266 = vmul.f32 %v9265, 0.6931472
      %v9267 = vlog2.pop %v8929
      %v9268 = vmul.f32 %v9267, 0.6931472
      %v9269 = vlog2.pop %v8932
      %v9270 = vmul.f32 %v9269, 0.6931472
      %v9271 = vlog2.pop %v8935
      %v9272 = vmul.f32 %v9271, 0.6931472
      %v9273 = vlog2.pop %v8938
      %v9274 = vmul.f32 %v9273, 0.6931472
      %v9275 = vlog2.pop %v8941
      %v9276 = vmul.f32 %v9275, 0.6931472
      %v9277 = vlog2.pop %v8944
      %v9278 = vmul.f32 %v9277, 0.6931472
      %v9279 = vlog2.pop %v8947
      %v9280 = vmul.f32 %v9279, 0.6931472
      %v9281 = vlog2.pop %v8950
      %v9282 = vmul.f32 %v9281, 0.6931472
      %v9283 = vlog2.pop %v8953
      %v9284 = vmul.f32 %v9283, 0.6931472
      %v9285 = vlog2.pop %v8956
      %v9286 = vmul.f32 %v9285, 0.6931472
      %v9287 = vlog2.pop %v8959
      %v9288 = vmul.f32 %v9287, 0.6931472
      %v9289 = vlog2.pop %v8962
      %v9290 = vmul.f32 %v9289, 0.6931472
      %v9291 = vlog2.pop %v8965
      %v9292 = vmul.f32 %v9291, 0.6931472
      %v9293 = vlog2.pop %v8968
      %v9294 = vmul.f32 %v9293, 0.6931472
      %v9295 = vlog2.pop %v8971
      %v9296 = vmul.f32 %v9295, 0.6931472
      %v9297 = vlog2.pop %v8974
      %v9298 = vmul.f32 %v9297, 0.6931472
      %v9299 = vlog2.pop %v8977
      %v9300 = vmul.f32 %v9299, 0.6931472
      %v9301 = vlog2.pop %v8980
      %v9302 = vmul.f32 %v9301, 0.6931472
      %v9303 = vlog2.pop %v8983
      %v9304 = vmul.f32 %v9303, 0.6931472
      %v9305 = vlog2.pop %v8986
      %v9306 = vmul.f32 %v9305, 0.6931472
      %v9307 = vlog2.pop %v8989
      %v9308 = vmul.f32 %v9307, 0.6931472
      %v9309 = vlog2.pop %v8992
      %v9310 = vmul.f32 %v9309, 0.6931472
      %v9311 = vlog2.pop %v8995
      %v9312 = vmul.f32 %v9311, 0.6931472
      %v9313 = vlog2.pop %v8998
      %v9314 = vmul.f32 %v9313, 0.6931472
      %v9315 = vlog2.pop %v9001
      %v9316 = vmul.f32 %v9315, 0.6931472
      %v9317 = vlog2.pop %v9004
      %v9318 = vmul.f32 %v9317, 0.6931472
      %v9319 = vlog2.pop %v9007
      %v9320 = vmul.f32 %v9319, 0.6931472
      %v9321 = vlog2.pop %v9010
      %v9322 = vmul.f32 %v9321, 0.6931472
      %v9323 = vlog2.pop %v9013
      %v9324 = vmul.f32 %v9323, 0.6931472
      %v9325 = vlog2.pop %v9016
      %v9326 = vmul.f32 %v9325, 0.6931472
      %v9327 = vlog2.pop %v9019
      %v9328 = vmul.f32 %v9327, 0.6931472
      %v9329 = vlog2.pop %v9022
      %v9330 = vmul.f32 %v9329, 0.6931472
      %v9331 = vlog2.pop %v9025
      %v9332 = vmul.f32 %v9331, 0.6931472
      %v9333 = vlog2.pop %v9028
      %v9334 = vmul.f32 %v9333, 0.6931472
      %v9335 = vlog2.pop %v9031
      %v9336 = vmul.f32 %v9335, 0.6931472
      %v9337 = vlog2.pop %v9034
      %v9338 = vmul.f32 %v9337, 0.6931472
      %v9339 = vlog2.pop %v9037
      %v9340 = vmul.f32 %v9339, 0.6931472
      %v9341 = vlog2.pop %v9040
      %v9342 = vmul.f32 %v9341, 0.6931472
      %v9343 = vlog2.pop %v9043
      %v9344 = vmul.f32 %v9343, 0.6931472
      %v9345 = vlog2.pop %v9046
      %v9346 = vmul.f32 %v9345, 0.6931472
      %v9347 = vlog2.pop %v9049
      %v9348 = vmul.f32 %v9347, 0.6931472
      %v9349 = vlog2.pop %v9052
      %v9350 = vmul.f32 %v9349, 0.6931472
      %v9351 = vlog2.pop %v9055
      %v9352 = vmul.f32 %v9351, 0.6931472
      %v9353 = vlog2.pop %v9058
      %v9354 = vmul.f32 %v9353, 0.6931472
      %v9355 = vlog2.pop %v9061
      %v9356 = vmul.f32 %v9355, 0.6931472
      %v9357 = vlog2.pop %v9064
      %v9358 = vmul.f32 %v9357, 0.6931472
      %v9359 = vlog2.pop %v9067
      %v9360 = vmul.f32 %v9359, 0.6931472
      %v9361 = vlog2.pop %v9070
      %v9362 = vmul.f32 %v9361, 0.6931472
      %v9363 = vlog2.pop %v9073
      %v9364 = vmul.f32 %v9363, 0.6931472
      %v9365 = vlog2.pop %v9076
      %v9366 = vmul.f32 %v9365, 0.6931472
      %v9367 = vlog2.pop %v9079
      %v9368 = vmul.f32 %v9367, 0.6931472
      %v9369 = vlog2.pop %v9082
      %v9370 = vmul.f32 %v9369, 0.6931472
      %v9371 = vlog2.pop %v9085
      %v9372 = vmul.f32 %v9371, 0.6931472
      %v9373 = vlog2.pop %v9088
      %v9374 = vmul.f32 %v9373, 0.6931472
      %v9375 = vlog2.pop %v9091
      %v9376 = vmul.f32 %v9375, 0.6931472
      %v9377 = vlog2.pop %v9094
      %v9378 = vmul.f32 %v9377, 0.6931472
      %v9379 = vlog2.pop %v9097
      %v9380 = vmul.f32 %v9379, 0.6931472
      %v9381 = vlog2.pop %v9100
      %v9382 = vmul.f32 %v9381, 0.6931472
      %v9383 = vlog2.pop %v9103
      %v9384 = vmul.f32 %v9383, 0.6931472
      %v9385 = vlog2.pop %v9106
      %v9386 = vmul.f32 %v9385, 0.6931472
      %v9387 = vlog2.pop %v9109
      %v9388 = vmul.f32 %v9387, 0.6931472
      %v9389 = vlog2.pop %v9112
      %v9390 = vmul.f32 %v9389, 0.6931472
      %v9391 = vlog2.pop %v9115
      %v9392 = vmul.f32 %v9391, 0.6931472
      %v9393 = vlog2.pop %v9118
      %v9394 = vmul.f32 %v9393, 0.6931472
      %v9395 = vlog2.pop %v9121
      %v9396 = vmul.f32 %v9395, 0.6931472
      %v9397 = vlog2.pop %v9124
      %v9398 = vmul.f32 %v9397, 0.6931472
      %v9399 = vlog2.pop %v9127
      %v9400 = vmul.f32 %v9399, 0.6931472
      %v9401 = vlog2.pop %v9130
      %v9402 = vmul.f32 %v9401, 0.6931472
      %v9403 = vlog2.pop %v9133
      %v9404 = vmul.f32 %v9403, 0.6931472
      %v9405 = vlog2.pop %v9136
      %v9406 = vmul.f32 %v9405, 0.6931472
      %v9407 = vlog2.pop %v9139
      %v9408 = vmul.f32 %v9407, 0.6931472
      %v9409 = vlog2.pop %v9142
      %v9410 = vmul.f32 %v9409, 0.6931472
      %v9411 = vlog2.pop %v9145
      %v9412 = vmul.f32 %v9411, 0.6931472
      %v9413 = vlog2.pop %v9148
      %v9414 = vmul.f32 %v9413, 0.6931472
      %v9415 = vlog2.pop %v9151
      %v9416 = vmul.f32 %v9415, 0.6931472
      %v9417 = vlog2.pop %v9154
      %v9418 = vmul.f32 %v9417, 0.6931472
      %v9419 = vlog2.pop %v9157
      %v9420 = vmul.f32 %v9419, 0.6931472
      %v9421 = vlog2.pop %v9160
      %v9422 = vmul.f32 %v9421, 0.6931472
      %v9423 = vlog2.pop %v9163
      %v9424 = vmul.f32 %v9423, 0.6931472
      %v9425 = vlog2.pop %v9166
      %v9426 = vmul.f32 %v9425, 0.6931472
      %v9427 = vlog2.pop %v9169
      %v9428 = vmul.f32 %v9427, 0.6931472
      %v9429 = vlog2.pop %v9172
      %v9430 = vmul.f32 %v9429, 0.6931472
      %v9431 = vlog2.pop %v9175
      %v9432 = vmul.f32 %v9431, 0.6931472
      %v9433 = vlog2.pop %v9178
      %v9434 = vmul.f32 %v9433, 0.6931472
      %v9435 = vsub.f32 %v5488, %v9180
      %v9436 = vsub.f32 %v5512, %v9182
      %v9437 = vsub.f32 %v5536, %v9184
      %v9438 = vsub.f32 %v5560, %v9186
      %v9439 = vsub.f32 %v5584, %v9188
      %v9440 = vsub.f32 %v5608, %v9190
      %v9441 = vsub.f32 %v5632, %v9192
      %v9442 = vsub.f32 %v5656, %v9194
      %v9443 = vsub.f32 %v5680, %v9196
      %v9444 = vsub.f32 %v5704, %v9198
      %v9445 = vsub.f32 %v5728, %v9200
      %v9446 = vsub.f32 %v5752, %v9202
      %v9447 = vsub.f32 %v5776, %v9204
      %v9448 = vsub.f32 %v5800, %v9206
      %v9449 = vsub.f32 %v5824, %v9208
      %v9450 = vsub.f32 %v5848, %v9210
      %v9451 = vsub.f32 %v5872, %v9212
      %v9452 = vsub.f32 %v5896, %v9214
      %v9453 = vsub.f32 %v5920, %v9216
      %v9454 = vsub.f32 %v5944, %v9218
      %v9455 = vsub.f32 %v5968, %v9220
      %v9456 = vsub.f32 %v5992, %v9222
      %v9457 = vsub.f32 %v6016, %v9224
      %v9458 = vsub.f32 %v6040, %v9226
      %v9459 = vsub.f32 %v6064, %v9228
      %v9460 = vsub.f32 %v6088, %v9230
      %v9461 = vsub.f32 %v6112, %v9232
      %v9462 = vsub.f32 %v6136, %v9234
      %v9463 = vsub.f32 %v6160, %v9236
      %v9464 = vsub.f32 %v6184, %v9238
      %v9465 = vsub.f32 %v6208, %v9240
      %v9466 = vsub.f32 %v6232, %v9242
      %v9467 = vsub.f32 %v6256, %v9244
      %v9468 = vsub.f32 %v6280, %v9246
      %v9469 = vsub.f32 %v6304, %v9248
      %v9470 = vsub.f32 %v6328, %v9250
      %v9471 = vsub.f32 %v6352, %v9252
      %v9472 = vsub.f32 %v6376, %v9254
      %v9473 = vsub.f32 %v6400, %v9256
      %v9474 = vsub.f32 %v6424, %v9258
      %v9475 = vsub.f32 %v6448, %v9260
      %v9476 = vsub.f32 %v6472, %v9262
      %v9477 = vsub.f32 %v6496, %v9264
      %v9478 = vsub.f32 %v6520, %v9266
      %v9479 = vsub.f32 %v6544, %v9268
      %v9480 = vsub.f32 %v6568, %v9270
      %v9481 = vsub.f32 %v6592, %v9272
      %v9482 = vsub.f32 %v6616, %v9274
      %v9483 = vsub.f32 %v6640, %v9276
      %v9484 = vsub.f32 %v6664, %v9278
      %v9485 = vsub.f32 %v6688, %v9280
      %v9486 = vsub.f32 %v6712, %v9282
      %v9487 = vsub.f32 %v6736, %v9284
      %v9488 = vsub.f32 %v6760, %v9286
      %v9489 = vsub.f32 %v6784, %v9288
      %v9490 = vsub.f32 %v6808, %v9290
      %v9491 = vsub.f32 %v6832, %v9292
      %v9492 = vsub.f32 %v6856, %v9294
      %v9493 = vsub.f32 %v6880, %v9296
      %v9494 = vsub.f32 %v6904, %v9298
      %v9495 = vsub.f32 %v6928, %v9300
      %v9496 = vsub.f32 %v6952, %v9302
      %v9497 = vsub.f32 %v6976, %v9304
      %v9498 = vsub.f32 %v7000, %v9306
      %v9499 = vsub.f32 %v7024, %v9308
      %v9500 = vsub.f32 %v7048, %v9310
      %v9501 = vsub.f32 %v7072, %v9312
      %v9502 = vsub.f32 %v7096, %v9314
      %v9503 = vsub.f32 %v7120, %v9316
      %v9504 = vsub.f32 %v7144, %v9318
      %v9505 = vsub.f32 %v7168, %v9320
      %v9506 = vsub.f32 %v7192, %v9322
      %v9507 = vsub.f32 %v7216, %v9324
      %v9508 = vsub.f32 %v7240, %v9326
      %v9509 = vsub.f32 %v7264, %v9328
      %v9510 = vsub.f32 %v7288, %v9330
      %v9511 = vsub.f32 %v7312, %v9332
      %v9512 = vsub.f32 %v7336, %v9334
      %v9513 = vsub.f32 %v7360, %v9336
      %v9514 = vsub.f32 %v7384, %v9338
      %v9515 = vsub.f32 %v7408, %v9340
      %v9516 = vsub.f32 %v7432, %v9342
      %v9517 = vsub.f32 %v7456, %v9344
      %v9518 = vsub.f32 %v7480, %v9346
      %v9519 = vsub.f32 %v7504, %v9348
      %v9520 = vsub.f32 %v7528, %v9350
      %v9521 = vsub.f32 %v7552, %v9352
      %v9522 = vsub.f32 %v7576, %v9354
      %v9523 = vsub.f32 %v7600, %v9356
      %v9524 = vsub.f32 %v7624, %v9358
      %v9525 = vsub.f32 %v7648, %v9360
      %v9526 = vsub.f32 %v7672, %v9362
      %v9527 = vsub.f32 %v7696, %v9364
      %v9528 = vsub.f32 %v7720, %v9366
      %v9529 = vsub.f32 %v7744, %v9368
      %v9530 = vsub.f32 %v7768, %v9370
      %v9531 = vsub.f32 %v7792, %v9372
      %v9532 = vsub.f32 %v7816, %v9374
      %v9533 = vsub.f32 %v7840, %v9376
      %v9534 = vsub.f32 %v7864, %v9378
      %v9535 = vsub.f32 %v7888, %v9380
      %v9536 = vsub.f32 %v7912, %v9382
      %v9537 = vsub.f32 %v7936, %v9384
      %v9538 = vsub.f32 %v7960, %v9386
      %v9539 = vsub.f32 %v7984, %v9388
      %v9540 = vsub.f32 %v8008, %v9390
      %v9541 = vsub.f32 %v8032, %v9392
      %v9542 = vsub.f32 %v8056, %v9394
      %v9543 = vsub.f32 %v8080, %v9396
      %v9544 = vsub.f32 %v8104, %v9398
      %v9545 = vsub.f32 %v8128, %v9400
      %v9546 = vsub.f32 %v8152, %v9402
      %v9547 = vsub.f32 %v8176, %v9404
      %v9548 = vsub.f32 %v8200, %v9406
      %v9549 = vsub.f32 %v8224, %v9408
      %v9550 = vsub.f32 %v8248, %v9410
      %v9551 = vsub.f32 %v8272, %v9412
      %v9552 = vsub.f32 %v8296, %v9414
      %v9553 = vsub.f32 %v8320, %v9416
      %v9554 = vsub.f32 %v8344, %v9418
      %v9555 = vsub.f32 %v8368, %v9420
      %v9556 = vsub.f32 %v8392, %v9422
      %v9557 = vsub.f32 %v8416, %v9424
      %v9558 = vsub.f32 %v8440, %v9426
      %v9559 = vsub.f32 %v8464, %v9428
      %v9560 = vsub.f32 %v8488, %v9430
      %v9561 = vsub.f32 %v8512, %v9432
      %v9562 = vsub.f32 %v8536, %v9434
      %9563 = vst.msk [vmem:[%s221] sm:$0xf] %vm8794, %v9435
      %9564 = vst.msk [vmem:[%s221 + $0x4] sm:$0xf] %vm8794, %v9436
      %9565 = vst.msk [vmem:[%s221 + $0x8] sm:$0xf] %vm8794, %v9437
      %9566 = vst.msk [vmem:[%s221 + $0xc] sm:$0xf] %vm8794, %v9438
      %9567 = vst.msk [vmem:[%s221 + $0x10] sm:$0xf] %vm8794, %v9439
      %9568 = vst.msk [vmem:[%s221 + $0x14] sm:$0xf] %vm8794, %v9440
      %9569 = vst.msk [vmem:[%s221 + $0x18] sm:$0xf] %vm8794, %v9441
      %9570 = vst.msk [vmem:[%s221 + $0x1c] sm:$0xf] %vm8794, %v9442
      %9571 = vst.msk [vmem:[%s221 + $0x20] sm:$0xf] %vm8794, %v9443
      %9572 = vst.msk [vmem:[%s221 + $0x24] sm:$0xf] %vm8794, %v9444
      %9573 = vst.msk [vmem:[%s221 + $0x28] sm:$0xf] %vm8794, %v9445
      %9574 = vst.msk [vmem:[%s221 + $0x2c] sm:$0xf] %vm8794, %v9446
      %9575 = vst.msk [vmem:[%s221 + $0x30] sm:$0xf] %vm8794, %v9447
      %9576 = vst.msk [vmem:[%s221 + $0x34] sm:$0xf] %vm8794, %v9448
      %9577 = vst.msk [vmem:[%s221 + $0x38] sm:$0xf] %vm8794, %v9449
      %9578 = vst.msk [vmem:[%s221 + $0x3c] sm:$0xf] %vm8794, %v9450
      %9579 = vst.msk [vmem:[%s221 + $0x40] sm:$0xf] %vm8794, %v9451
      %9580 = vst.msk [vmem:[%s221 + $0x44] sm:$0xf] %vm8794, %v9452
      %9581 = vst.msk [vmem:[%s221 + $0x48] sm:$0xf] %vm8794, %v9453
      %9582 = vst.msk [vmem:[%s221 + $0x4c] sm:$0xf] %vm8794, %v9454
      %9583 = vst.msk [vmem:[%s221 + $0x50] sm:$0xf] %vm8794, %v9455
      %9584 = vst.msk [vmem:[%s221 + $0x54] sm:$0xf] %vm8794, %v9456
      %9585 = vst.msk [vmem:[%s221 + $0x58] sm:$0xf] %vm8794, %v9457
      %9586 = vst.msk [vmem:[%s221 + $0x5c] sm:$0xf] %vm8794, %v9458
      %9587 = vst.msk [vmem:[%s221 + $0x60] sm:$0xf] %vm8794, %v9459
      %9588 = vst.msk [vmem:[%s221 + $0x64] sm:$0xf] %vm8794, %v9460
      %9589 = vst.msk [vmem:[%s221 + $0x68] sm:$0xf] %vm8794, %v9461
      %9590 = vst.msk [vmem:[%s221 + $0x6c] sm:$0xf] %vm8794, %v9462
      %9591 = vst.msk [vmem:[%s221 + $0x70] sm:$0xf] %vm8794, %v9463
      %9592 = vst.msk [vmem:[%s221 + $0x74] sm:$0xf] %vm8794, %v9464
      %9593 = vst.msk [vmem:[%s221 + $0x78] sm:$0xf] %vm8794, %v9465
      %9594 = vst.msk [vmem:[%s221 + $0x7c] sm:$0xf] %vm8794, %v9466
      %9595 = vst.msk [vmem:[%s221 + $0x80] sm:$0xf] %vm8794, %v9467
      %9596 = vst.msk [vmem:[%s221 + $0x84] sm:$0xf] %vm8794, %v9468
      %9597 = vst.msk [vmem:[%s221 + $0x88] sm:$0xf] %vm8794, %v9469
      %9598 = vst.msk [vmem:[%s221 + $0x8c] sm:$0xf] %vm8794, %v9470
      %9599 = vst.msk [vmem:[%s221 + $0x90] sm:$0xf] %vm8794, %v9471
      %9600 = vst.msk [vmem:[%s221 + $0x94] sm:$0xf] %vm8794, %v9472
      %9601 = vst.msk [vmem:[%s221 + $0x98] sm:$0xf] %vm8794, %v9473
      %9602 = vst.msk [vmem:[%s221 + $0x9c] sm:$0xf] %vm8794, %v9474
      %9603 = vst.msk [vmem:[%s221 + $0xa0] sm:$0xf] %vm8794, %v9475
      %9604 = vst.msk [vmem:[%s221 + $0xa4] sm:$0xf] %vm8794, %v9476
      %9605 = vst.msk [vmem:[%s221 + $0xa8] sm:$0xf] %vm8794, %v9477
      %9606 = vst.msk [vmem:[%s221 + $0xac] sm:$0xf] %vm8794, %v9478
      %9607 = vst.msk [vmem:[%s221 + $0xb0] sm:$0xf] %vm8794, %v9479
      %9608 = vst.msk [vmem:[%s221 + $0xb4] sm:$0xf] %vm8794, %v9480
      %9609 = vst.msk [vmem:[%s221 + $0xb8] sm:$0xf] %vm8794, %v9481
      %9610 = vst.msk [vmem:[%s221 + $0xbc] sm:$0xf] %vm8794, %v9482
      %9611 = vst.msk [vmem:[%s221 + $0xc0] sm:$0xf] %vm8794, %v9483
      %9612 = vst.msk [vmem:[%s221 + $0xc4] sm:$0xf] %vm8794, %v9484
      %9613 = vst.msk [vmem:[%s221 + $0xc8] sm:$0xf] %vm8794, %v9485
      %9614 = vst.msk [vmem:[%s221 + $0xcc] sm:$0xf] %vm8794, %v9486
      %9615 = vst.msk [vmem:[%s221 + $0xd0] sm:$0xf] %vm8794, %v9487
      %9616 = vst.msk [vmem:[%s221 + $0xd4] sm:$0xf] %vm8794, %v9488
      %9617 = vst.msk [vmem:[%s221 + $0xd8] sm:$0xf] %vm8794, %v9489
      %9618 = vst.msk [vmem:[%s221 + $0xdc] sm:$0xf] %vm8794, %v9490
      %9619 = vst.msk [vmem:[%s221 + $0xe0] sm:$0xf] %vm8794, %v9491
      %9620 = vst.msk [vmem:[%s221 + $0xe4] sm:$0xf] %vm8794, %v9492
      %9621 = vst.msk [vmem:[%s221 + $0xe8] sm:$0xf] %vm8794, %v9493
      %9622 = vst.msk [vmem:[%s221 + $0xec] sm:$0xf] %vm8794, %v9494
      %9623 = vst.msk [vmem:[%s221 + $0xf0] sm:$0xf] %vm8794, %v9495
      %9624 = vst.msk [vmem:[%s221 + $0xf4] sm:$0xf] %vm8794, %v9496
      %9625 = vst.msk [vmem:[%s221 + $0xf8] sm:$0xf] %vm8794, %v9497
      %9626 = vst.msk [vmem:[%s221 + $0xfc] sm:$0xf] %vm8794, %v9498
      %9627 = vst.msk [vmem:[%s221 + $0x100] sm:$0xf] %vm8794, %v9499
      %9628 = vst.msk [vmem:[%s221 + $0x104] sm:$0xf] %vm8794, %v9500
      %9629 = vst.msk [vmem:[%s221 + $0x108] sm:$0xf] %vm8794, %v9501
      %9630 = vst.msk [vmem:[%s221 + $0x10c] sm:$0xf] %vm8794, %v9502
      %9631 = vst.msk [vmem:[%s221 + $0x110] sm:$0xf] %vm8794, %v9503
      %9632 = vst.msk [vmem:[%s221 + $0x114] sm:$0xf] %vm8794, %v9504
      %9633 = vst.msk [vmem:[%s221 + $0x118] sm:$0xf] %vm8794, %v9505
      %9634 = vst.msk [vmem:[%s221 + $0x11c] sm:$0xf] %vm8794, %v9506
      %9635 = vst.msk [vmem:[%s221 + $0x120] sm:$0xf] %vm8794, %v9507
      %9636 = vst.msk [vmem:[%s221 + $0x124] sm:$0xf] %vm8794, %v9508
      %9637 = vst.msk [vmem:[%s221 + $0x128] sm:$0xf] %vm8794, %v9509
      %9638 = vst.msk [vmem:[%s221 + $0x12c] sm:$0xf] %vm8794, %v9510
      %9639 = vst.msk [vmem:[%s221 + $0x130] sm:$0xf] %vm8794, %v9511
      %9640 = vst.msk [vmem:[%s221 + $0x134] sm:$0xf] %vm8794, %v9512
      %9641 = vst.msk [vmem:[%s221 + $0x138] sm:$0xf] %vm8794, %v9513
      %9642 = vst.msk [vmem:[%s221 + $0x13c] sm:$0xf] %vm8794, %v9514
      %9643 = vst.msk [vmem:[%s221 + $0x140] sm:$0xf] %vm8794, %v9515
      %9644 = vst.msk [vmem:[%s221 + $0x144] sm:$0xf] %vm8794, %v9516
      %9645 = vst.msk [vmem:[%s221 + $0x148] sm:$0xf] %vm8794, %v9517
      %9646 = vst.msk [vmem:[%s221 + $0x14c] sm:$0xf] %vm8794, %v9518
      %9647 = vst.msk [vmem:[%s221 + $0x150] sm:$0xf] %vm8794, %v9519
      %9648 = vst.msk [vmem:[%s221 + $0x154] sm:$0xf] %vm8794, %v9520
      %9649 = vst.msk [vmem:[%s221 + $0x158] sm:$0xf] %vm8794, %v9521
      %9650 = vst.msk [vmem:[%s221 + $0x15c] sm:$0xf] %vm8794, %v9522
      %9651 = vst.msk [vmem:[%s221 + $0x160] sm:$0xf] %vm8794, %v9523
      %9652 = vst.msk [vmem:[%s221 + $0x164] sm:$0xf] %vm8794, %v9524
      %9653 = vst.msk [vmem:[%s221 + $0x168] sm:$0xf] %vm8794, %v9525
      %9654 = vst.msk [vmem:[%s221 + $0x16c] sm:$0xf] %vm8794, %v9526
      %9655 = vst.msk [vmem:[%s221 + $0x170] sm:$0xf] %vm8794, %v9527
      %9656 = vst.msk [vmem:[%s221 + $0x174] sm:$0xf] %vm8794, %v9528
      %9657 = vst.msk [vmem:[%s221 + $0x178] sm:$0xf] %vm8794, %v9529
      %9658 = vst.msk [vmem:[%s221 + $0x17c] sm:$0xf] %vm8794, %v9530
      %9659 = vst.msk [vmem:[%s221 + $0x180] sm:$0xf] %vm8794, %v9531
      %9660 = vst.msk [vmem:[%s221 + $0x184] sm:$0xf] %vm8794, %v9532
      %9661 = vst.msk [vmem:[%s221 + $0x188] sm:$0xf] %vm8794, %v9533
      %9662 = vst.msk [vmem:[%s221 + $0x18c] sm:$0xf] %vm8794, %v9534
      %9663 = vst.msk [vmem:[%s221 + $0x190] sm:$0xf] %vm8794, %v9535
      %9664 = vst.msk [vmem:[%s221 + $0x194] sm:$0xf] %vm8794, %v9536
      %9665 = vst.msk [vmem:[%s221 + $0x198] sm:$0xf] %vm8794, %v9537
      %9666 = vst.msk [vmem:[%s221 + $0x19c] sm:$0xf] %vm8794, %v9538
      %9667 = vst.msk [vmem:[%s221 + $0x1a0] sm:$0xf] %vm8794, %v9539
      %9668 = vst.msk [vmem:[%s221 + $0x1a4] sm:$0xf] %vm8794, %v9540
      %9669 = vst.msk [vmem:[%s221 + $0x1a8] sm:$0xf] %vm8794, %v9541
      %9670 = vst.msk [vmem:[%s221 + $0x1ac] sm:$0xf] %vm8794, %v9542
      %9671 = vst.msk [vmem:[%s221 + $0x1b0] sm:$0xf] %vm8794, %v9543
      %9672 = vst.msk [vmem:[%s221 + $0x1b4] sm:$0xf] %vm8794, %v9544
      %9673 = vst.msk [vmem:[%s221 + $0x1b8] sm:$0xf] %vm8794, %v9545
      %9674 = vst.msk [vmem:[%s221 + $0x1bc] sm:$0xf] %vm8794, %v9546
      %9675 = vst.msk [vmem:[%s221 + $0x1c0] sm:$0xf] %vm8794, %v9547
      %9676 = vst.msk [vmem:[%s221 + $0x1c4] sm:$0xf] %vm8794, %v9548
      %9677 = vst.msk [vmem:[%s221 + $0x1c8] sm:$0xf] %vm8794, %v9549
      %9678 = vst.msk [vmem:[%s221 + $0x1cc] sm:$0xf] %vm8794, %v9550
      %9679 = vst.msk [vmem:[%s221 + $0x1d0] sm:$0xf] %vm8794, %v9551
      %9680 = vst.msk [vmem:[%s221 + $0x1d4] sm:$0xf] %vm8794, %v9552
      %9681 = vst.msk [vmem:[%s221 + $0x1d8] sm:$0xf] %vm8794, %v9553
      %9682 = vst.msk [vmem:[%s221 + $0x1dc] sm:$0xf] %vm8794, %v9554
      %9683 = vst.msk [vmem:[%s221 + $0x1e0] sm:$0xf] %vm8794, %v9555
      %9684 = vst.msk [vmem:[%s221 + $0x1e4] sm:$0xf] %vm8794, %v9556
      %9685 = vst.msk [vmem:[%s221 + $0x1e8] sm:$0xf] %vm8794, %v9557
      %9686 = vst.msk [vmem:[%s221 + $0x1ec] sm:$0xf] %vm8794, %v9558
      %9687 = vst.msk [vmem:[%s221 + $0x1f0] sm:$0xf] %vm8794, %v9559
      %9688 = vst.msk [vmem:[%s221 + $0x1f4] sm:$0xf] %vm8794, %v9560
      %9689 = vst.msk [vmem:[%s221 + $0x1f8] sm:$0xf] %vm8794, %v9561
      %9690 = vst.msk [vmem:[%s221 + $0x1fc] sm:$0xf] %vm8794, %v9562
      %s9691 = smul.u32 128, %s15
      %p9692 = scmp.lt.s32.totalorder %s9691, 255
      %s9693 = scalar_select %p9692, %s9691, 255
      %s9694 = smul.addr %s9693, 4
      %s9695 = scalar_lea.vmem %s4, %s9694
      // Predicated region
      $region37: #{few_model_forward_batched.1} parent=35 // pred_check
        %p9696 = pneg %p127
      $region38: #{few_model_forward_batched.1} parent=35 // pred_check_branch
        %9698 = sbr.rel (%p9696) target = $region40
      $region39: #{few_model_forward_batched.1} parent=35 // pred_region
        %s9699 = smul.u32 128, %s15
      $region40: #{few_model_forward_batched.1} parent=35 // pred_fallthru
        _
    $region36: #{few_model_forward_batched.1} parent=5 // pred_fallthru
      _
    %p9700 = scmp.le.s32.totalorder 2, %s10
    // Predicated region
    $region41: #{few_model_forward_batched.1} parent=5 // pred_check
      %p9701 = pneg %p9700
    $region42: #{few_model_forward_batched.1} parent=5 // pred_check_branch
      %9703 = sbr.rel (%p9701) target = $region44
    $region43: #{few_model_forward_batched.1} parent=5 // pred_region
      %s9704 = ssub.s32 %s10, 2
      // Predicated region
      $region45: #{few_model_forward_batched.1} parent=43 // pred_check
        %p9705 = pneg %p133
      $region46: #{few_model_forward_batched.1} parent=43 // pred_check_branch
        %9707 = sbr.rel (%p9705) target = $region48
      $region47: #{few_model_forward_batched.1} parent=43 // pred_region
        %s9708 = smul.u32 128, %s16
        %p9709 = scmp.lt.s32.totalorder %s9708, 255
        %s9710 = scalar_select %p9709, %s9708, 255
        %s9711 = smul.addr %s9710, 4
        %s9712 = scalar_lea.vmem %s4, %s9711
      $region48: #{few_model_forward_batched.1} parent=43 // pred_fallthru
        _
    $region44: #{few_model_forward_batched.1} parent=5 // pred_fallthru
      _
  $region6: #{few_model_forward_batched.1} parent=0 // loop_footer
    %s14 = sadd.s32 1, %s10
  $region7: #{few_model_forward_batched.1} parent=0 // loop_footer_branch
    %9 = sbr.rel target = $region3
  $region8: #{few_model_forward_batched.1} parent=0 // loop_exit
    _

</llo_original>
